<compile_context>
chip_gen: v5e
topology: v5e:2x2
jax: 0.10.0
libtpu: 0.0.40
codegen_flags: <defaults>
</compile_context>

<pallas_src>
import functools
import math

import jax
import jax.numpy as jnp
from jax import lax
from jax.experimental import pallas as pl
from jax.experimental.pallas import tpu as pltpu  # noqa: F401  (TPU backend)


# ----------------------------------------------------------------------------
# In-kernel helpers (operate on traced values; called while tracing the kernel)
# ----------------------------------------------------------------------------
def _selector(n_out, n_in, stride, offset, dtype):
    """S[t, l] = 1 iff l == stride*t + offset (out-of-range rows are all-zero,
    which implements zero padding for free)."""
    row = lax.broadcasted_iota(jnp.int32, (n_out, n_in), 0)
    col = lax.broadcasted_iota(jnp.int32, (n_out, n_in), 1)
    return jnp.where(col == stride * row + offset, 1.0, 0.0).astype(dtype)


def _conv(xs, w_ref, l_in, l_out, *, stride, pad, ksize):
    """Conv1d (bias=False) on a list of per-sample (L, C) activations.

    w_ref holds the weight as (K, Cin, Cout) (i.e. torch W[o, c, k] -> [k, c, o]).
    out = sum_k  S_k @ x @ W_k   with bf16 MXU operands, f32 accumulation.
    """
    sels = [_selector(l_out, l_in, stride, k - pad, jnp.bfloat16) for k in range(ksize)]
    taps = [w_ref[k] for k in range(ksize)]            # (Cin, Cout) bf16 each
    outs = []
    for xb in xs:
        xb16 = xb.astype(jnp.bfloat16)
        acc = None
        for k in range(ksize):
            xg = jnp.dot(sels[k], xb16, preferred_element_type=jnp.float32)   # (Lout, Cin)
            y = jnp.dot(xg.astype(jnp.bfloat16), taps[k],
                        preferred_element_type=jnp.float32)                   # (Lout, Cout)
            acc = y if acc is None else acc + y
        outs.append(acc)
    return outs


def _bn_relu(xs, g_ref, b_ref, *, relu):
    """Training-mode BatchNorm1d (batch stats over (B, L), biased variance,
    eps=1e-5), optional ReLU. xs: list of per-sample (L, C) f32 activations."""
    g = g_ref[...]                                      # (1, C) f32
    b = b_ref[...]                                      # (1, C) f32
    n = float(len(xs) * xs[0].shape[0])

    tot = None
    for xb in xs:
        s = jnp.sum(xb, axis=0, keepdims=True)
        tot = s if tot is None else tot + s
    mean = tot * (1.0 / n)

    sq = None
    for xb in xs:
        d = xb - mean
        v = jnp.sum(d * d, axis=0, keepdims=True)
        sq = v if sq is None else sq + v
    var = sq * (1.0 / n)

    scale = g * lax.rsqrt(var + 1e-5)
    shift = b - mean * scale

    outs = []
    for xb in xs:
        y = xb * scale + shift
        if relu:
            y = jnp.maximum(y, 0.0)
        outs.append(y)
    return outs


# ----------------------------------------------------------------------------
# Fused whole-network kernel
# ----------------------------------------------------------------------------
def _make_resnet_kernel(batch, block_cfgs, l_final):
    def kernel(*args):
        out_ref = args[-1]
        it = iter(args[:-1])

        x_ref = next(it)            # (B, L0, 8)  bf16: stem im2col, K padded 3->8
        w_stem = next(it)[...]      # (8, 16)     bf16
        g_stem = next(it)
        b_stem = next(it)

        # --- stem: conv1(k=3, s=1, p=1) -> BN -> ReLU ------------------------
        xs = [jnp.dot(x_ref[bi], w_stem, preferred_element_type=jnp.float32)
              for bi in range(batch)]
        xs = _bn_relu(xs, g_stem, b_stem, relu=True)

        # --- residual stages --------------------------------------------------
        for (_cin, _cout, stride, has_sc, l_in, l_out) in block_cfgs:
            w1 = next(it)
            g1 = next(it)
            b1 = next(it)
            w2 = next(it)
            g2 = next(it)
            b2 = next(it)
            wsc = next(it) if has_sc else None

            h = _conv(xs, w1, l_in, l_out, stride=stride, pad=1, ksize=3)
            h = _bn_relu(h, g1, b1, relu=True)
            h = _conv(h, w2, l_out, l_out, stride=1, pad=1, ksize=3)
            if has_sc:
                sc = _conv(xs, wsc, l_in, l_out, stride=stride, pad=0, ksize=1)
            else:
                sc = xs
            h = [hb + sb for hb, sb in zip(h, sc)]       # residual added BEFORE bn2
            xs = _bn_relu(h, g2, b2, relu=True)

        # --- AvgPool1d(2) + Flatten + Linear ----------------------------------
        w_lin = next(it)             # (Lf//2, C, N) bf16  (flatten folded in)
        b_lin = next(it)[...]        # (1, N)        f32

        l_half = l_final // 2
        prow = lax.broadcasted_iota(jnp.int32, (l_half, l_final), 0)
        pcol = lax.broadcasted_iota(jnp.int32, (l_half, l_final), 1)
        pool = jnp.where((pcol == 2 * prow) | (pcol == 2 * prow + 1), 0.5, 0.0)

        for bi in range(batch):
            pooled = jnp.dot(pool, xs[bi], preferred_element_type=jnp.float32)  # (Lf/2, C)
            acc = b_lin
            for t in range(l_half):
                r = pooled[t:t + 1, :].astype(jnp.bfloat16)                     # (1, C)
                acc = acc + jnp.dot(r, w_lin[t], preferred_element_type=jnp.float32)
            out_ref[pl.ds(bi, 1), :] = acc

    return kernel


# ----------------------------------------------------------------------------
# Parameter init (matches the torch module's initializers) + static config
# ----------------------------------------------------------------------------
def xavier_normal(key, shape):
    out_ch, in_ch, k = shape
    fan_in, fan_out = in_ch * k, out_ch * k
    std = math.sqrt(2.0 / (fan_in + fan_out))
    return std * jax.random.normal(key, shape, jnp.float32)


def init_model(key, num_blocks_list=(1, 1, 1, 1), input_len=32, num_classes=16):
    keys = iter(jax.random.split(key, 256))
    params = {
        "stem_w": xavier_normal(next(keys), (16, 1, 3)),
        "stem_g": jnp.ones((1, 16), jnp.float32),
        "stem_b": jnp.zeros((1, 16), jnp.float32),
        "blocks": [],
    }
    block_cfgs = []
    in_ch, length = 16, input_len
    for nb, out_ch, stride in zip(num_blocks_list, (32, 64, 128, 256), (1, 2, 2, 2)):
        for s in [stride] + [1] * (nb - 1):
            l_in = length
            l_out = (l_in - 1) // s + 1
            has_sc = (s != 1) or (in_ch != out_ch)
            blk = {
                "conv1_w": xavier_normal(next(keys), (out_ch, in_ch, 3)),
                "bn1_g": jnp.ones((1, out_ch), jnp.float32),
                "bn1_b": jnp.zeros((1, out_ch), jnp.float32),
                "conv2_w": xavier_normal(next(keys), (out_ch, out_ch, 3)),
                "bn2_g": jnp.ones((1, out_ch), jnp.float32),
                "bn2_b": jnp.zeros((1, out_ch), jnp.float32),
            }
            if has_sc:
                blk["short_w"] = xavier_normal(next(keys), (out_ch, in_ch, 1))
            params["blocks"].append(blk)
            block_cfgs.append((in_ch, out_ch, s, has_sc, l_in, l_out))
            in_ch, length = out_ch, l_out
    l_final = length
    feat = in_ch * l_final // 2
    bound = 1.0 / math.sqrt(feat)
    # Linear weight stored directly in kernel layout (Lf//2, C, N); entry
    # [t, c, n] corresponds to torch W[n, c*(Lf//2) + t] (same init distribution).
    params["lin_w"] = jax.random.uniform(
        next(keys), (l_final // 2, in_ch, num_classes), jnp.float32,
        minval=-bound, maxval=bound)
    params["lin_b"] = jax.random.uniform(
        next(keys), (num_classes,), jnp.float32, minval=-bound, maxval=bound)
    cfg = (tuple(block_cfgs), input_len, l_final, num_classes)
    return params, cfg


# ----------------------------------------------------------------------------
# Forward: tiny XLA-side prep (input unfold + weight relayout) + 1 pallas_call
# ----------------------------------------------------------------------------
@functools.partial(jax.jit, static_argnums=(2,))
def resnet_forward(x, params, cfg):
    block_cfgs, l0, l_final, n_classes = cfg
    batch = x.shape[0]
    assert x.shape == (batch, 1, l0)

    # Stem im2col on the (tiny) input only: (B, L0, 3) -> pad taps to 8.
    xrow = jnp.pad(x[:, 0, :], ((0, 0), (1, 1)))                       # (B, L0+2)
    x_unf = jnp.stack([xrow[:, k:k + l0] for k in range(3)], axis=-1)  # (B, L0, 3)
    x_unf = jnp.pad(x_unf, ((0, 0), (0, 0), (0, 5))).astype(jnp.bfloat16)

    def conv_taps(w):   # torch (O, C, K) -> kernel (K, C, O), bf16 for the MXU
        return jnp.transpose(w, (2, 1, 0)).astype(jnp.bfloat16)

    w_stem = conv_taps(params["stem_w"])[:, 0, :]                      # (3, 16)
    w_stem = jnp.pad(w_stem, ((0, 5), (0, 0)))                         # (8, 16)

    inputs = [x_unf, w_stem, params["stem_g"], params["stem_b"]]
    for blk, bc in zip(params["blocks"], block_cfgs):
        inputs += [conv_taps(blk["conv1_w"]), blk["bn1_g"], blk["bn1_b"],
                   conv_taps(blk["conv2_w"]), blk["bn2_g"], blk["bn2_b"]]
        if bc[3]:
            inputs.append(conv_taps(blk["short_w"]))
    inputs += [params["lin_w"].astype(jnp.bfloat16),
               params["lin_b"].reshape(1, n_classes)]

    kernel = _make_resnet_kernel(batch, block_cfgs, l_final)
    return pl.pallas_call(
        kernel,
        out_shape=jax.ShapeDtypeStruct((batch, n_classes), jnp.float32),
    )(*inputs)


# ----------------------------------------------------------------------------
if __name__ == "__main__":
    key = jax.random.PRNGKey(0)
    pkey, xkey = jax.random.split(key)
    params, cfg = init_model(pkey, num_blocks_list=(1, 1, 1, 1), input_len=32,
                             num_classes=16)
    # EmbedBlock would produce the dense (B, 1, L) tensor; feed it directly.
    x = jax.random.normal(xkey, (2, 1, 32), jnp.float32)
    out = resnet_forward(x, params, cfg)
    jax.block_until_ready(out)
    assert out.shape == (2, 16) and out.dtype == jnp.float32
    assert bool(jnp.all(jnp.isfinite(out)))
    print("KERNEL_OK")
</pallas_src>

<mosaic_0001>
module attributes {stable_mosaic.version = 11 : i64} {
  func.func @kernel(%arg0: memref<2x32x8xbf16, #tpu.memory_space<vmem>>, %arg1: memref<8x16xbf16, #tpu.memory_space<vmem>>, %arg2: memref<1x16xf32, #tpu.memory_space<vmem>>, %arg3: memref<1x16xf32, #tpu.memory_space<vmem>>, %arg4: memref<3x16x32xbf16, #tpu.memory_space<vmem>>, %arg5: memref<1x32xf32, #tpu.memory_space<vmem>>, %arg6: memref<1x32xf32, #tpu.memory_space<vmem>>, %arg7: memref<3x32x32xbf16, #tpu.memory_space<vmem>>, %arg8: memref<1x32xf32, #tpu.memory_space<vmem>>, %arg9: memref<1x32xf32, #tpu.memory_space<vmem>>, %arg10: memref<1x16x32xbf16, #tpu.memory_space<vmem>>, %arg11: memref<3x32x64xbf16, #tpu.memory_space<vmem>>, %arg12: memref<1x64xf32, #tpu.memory_space<vmem>>, %arg13: memref<1x64xf32, #tpu.memory_space<vmem>>, %arg14: memref<3x64x64xbf16, #tpu.memory_space<vmem>>, %arg15: memref<1x64xf32, #tpu.memory_space<vmem>>, %arg16: memref<1x64xf32, #tpu.memory_space<vmem>>, %arg17: memref<1x32x64xbf16, #tpu.memory_space<vmem>>, %arg18: memref<3x64x128xbf16, #tpu.memory_space<vmem>>, %arg19: memref<1x128xf32, #tpu.memory_space<vmem>>, %arg20: memref<1x128xf32, #tpu.memory_space<vmem>>, %arg21: memref<3x128x128xbf16, #tpu.memory_space<vmem>>, %arg22: memref<1x128xf32, #tpu.memory_space<vmem>>, %arg23: memref<1x128xf32, #tpu.memory_space<vmem>>, %arg24: memref<1x64x128xbf16, #tpu.memory_space<vmem>>, %arg25: memref<3x128x256xbf16, #tpu.memory_space<vmem>>, %arg26: memref<1x256xf32, #tpu.memory_space<vmem>>, %arg27: memref<1x256xf32, #tpu.memory_space<vmem>>, %arg28: memref<3x256x256xbf16, #tpu.memory_space<vmem>>, %arg29: memref<1x256xf32, #tpu.memory_space<vmem>>, %arg30: memref<1x256xf32, #tpu.memory_space<vmem>>, %arg31: memref<1x128x256xbf16, #tpu.memory_space<vmem>>, %arg32: memref<2x256x16xbf16, #tpu.memory_space<vmem>>, %arg33: memref<1x16xf32, #tpu.memory_space<vmem>>, %arg34: memref<2x16xf32, #tpu.memory_space<vmem>>) attributes {dimension_semantics = [], scalar_prefetch = 0 : i64, scratch_operands = 0 : i64, tpu.core_type = #tpu.core_type<tc>} {
    %c0 = arith.constant 0 : index
    %c0_0 = arith.constant 0 : index
    %0 = vector.load %arg1[%c0, %c0_0] : memref<8x16xbf16, #tpu.memory_space<vmem>>, vector<8x16xbf16>
    %c0_1 = arith.constant 0 : index
    %c0_2 = arith.constant 0 : index
    %c0_3 = arith.constant 0 : index
    %1 = vector.load %arg0[%c0_1, %c0_2, %c0_3] : memref<2x32x8xbf16, #tpu.memory_space<vmem>>, vector<1x32x8xbf16>
    %2 = vector.shape_cast %1 : vector<1x32x8xbf16> to vector<32x8xbf16>
    %cst = arith.constant dense<0.000000e+00> : vector<32x16xf32>
    %3 = tpu.matmul %2, %0, %cst {dimension_numbers = #tpu.dot_dimension_numbers<[1], [0], [0], [1], [0, 0, 1, 1], [], []>} : vector<32x8xbf16>, vector<8x16xbf16>, vector<32x16xf32> -> vector<32x16xf32>
    %c1 = arith.constant 1 : index
    %c0_4 = arith.constant 0 : index
    %c0_5 = arith.constant 0 : index
    %4 = vector.load %arg0[%c1, %c0_4, %c0_5] : memref<2x32x8xbf16, #tpu.memory_space<vmem>>, vector<1x32x8xbf16>
    %5 = vector.shape_cast %4 : vector<1x32x8xbf16> to vector<32x8xbf16>
    %cst_6 = arith.constant dense<0.000000e+00> : vector<32x16xf32>
    %6 = tpu.matmul %5, %0, %cst_6 {dimension_numbers = #tpu.dot_dimension_numbers<[1], [0], [0], [1], [0, 0, 1, 1], [], []>} : vector<32x8xbf16>, vector<8x16xbf16>, vector<32x16xf32> -> vector<32x16xf32>
    %c0_7 = arith.constant 0 : index
    %c0_8 = arith.constant 0 : index
    %7 = vector.load %arg2[%c0_7, %c0_8] : memref<1x16xf32, #tpu.memory_space<vmem>>, vector<1x16xf32>
    %c0_9 = arith.constant 0 : index
    %c0_10 = arith.constant 0 : index
    %8 = vector.load %arg3[%c0_9, %c0_10] : memref<1x16xf32, #tpu.memory_space<vmem>>, vector<1x16xf32>
    %cst_11 = arith.constant dense<0.000000e+00> : vector<16xf32>
    %9 = vector.multi_reduction <add>, %3, %cst_11 [0] : vector<32x16xf32> to vector<16xf32>
    %10 = vector.shape_cast %9 : vector<16xf32> to vector<1x16xf32>
    %cst_12 = arith.constant dense<0.000000e+00> : vector<16xf32>
    %11 = vector.multi_reduction <add>, %6, %cst_12 [0] : vector<32x16xf32> to vector<16xf32>
    %12 = vector.shape_cast %11 : vector<16xf32> to vector<1x16xf32>
    %13 = arith.addf %10, %12 : vector<1x16xf32>
    %cst_13 = arith.constant 1.562500e-02 : f32
    %14 = vector.broadcast %cst_13 : f32 to vector<1x16xf32>
    %15 = arith.mulf %13, %14 : vector<1x16xf32>
    %16 = vector.broadcast %15 : vector<1x16xf32> to vector<32x16xf32>
    %17 = arith.subf %3, %16 : vector<32x16xf32>
    %18 = arith.mulf %17, %17 : vector<32x16xf32>
    %cst_14 = arith.constant dense<0.000000e+00> : vector<16xf32>
    %19 = vector.multi_reduction <add>, %18, %cst_14 [0] : vector<32x16xf32> to vector<16xf32>
    %20 = vector.shape_cast %19 : vector<16xf32> to vector<1x16xf32>
    %21 = vector.broadcast %15 : vector<1x16xf32> to vector<32x16xf32>
    %22 = arith.subf %6, %21 : vector<32x16xf32>
    %23 = arith.mulf %22, %22 : vector<32x16xf32>
    %cst_15 = arith.constant dense<0.000000e+00> : vector<16xf32>
    %24 = vector.multi_reduction <add>, %23, %cst_15 [0] : vector<32x16xf32> to vector<16xf32>
    %25 = vector.shape_cast %24 : vector<16xf32> to vector<1x16xf32>
    %26 = arith.addf %20, %25 : vector<1x16xf32>
    %cst_16 = arith.constant 1.562500e-02 : f32
    %27 = vector.broadcast %cst_16 : f32 to vector<1x16xf32>
    %28 = arith.mulf %26, %27 : vector<1x16xf32>
    %cst_17 = arith.constant 9.99999974E-6 : f32
    %29 = vector.broadcast %cst_17 : f32 to vector<1x16xf32>
    %30 = arith.addf %28, %29 : vector<1x16xf32>
    %31 = math.rsqrt %30 : vector<1x16xf32>
    %32 = arith.mulf %7, %31 : vector<1x16xf32>
    %33 = arith.mulf %15, %32 : vector<1x16xf32>
    %34 = arith.subf %8, %33 : vector<1x16xf32>
    %35 = vector.broadcast %32 : vector<1x16xf32> to vector<32x16xf32>
    %36 = arith.mulf %3, %35 : vector<32x16xf32>
    %37 = vector.broadcast %34 : vector<1x16xf32> to vector<32x16xf32>
    %38 = arith.addf %36, %37 : vector<32x16xf32>
    %cst_18 = arith.constant 0.000000e+00 : f32
    %39 = vector.broadcast %cst_18 : f32 to vector<32x16xf32>
    %40 = arith.maximumf %38, %39 : vector<32x16xf32>
    %41 = vector.broadcast %32 : vector<1x16xf32> to vector<32x16xf32>
    %42 = arith.mulf %6, %41 : vector<32x16xf32>
    %43 = vector.broadcast %34 : vector<1x16xf32> to vector<32x16xf32>
    %44 = arith.addf %42, %43 : vector<32x16xf32>
    %cst_19 = arith.constant 0.000000e+00 : f32
    %45 = vector.broadcast %cst_19 : f32 to vector<32x16xf32>
    %46 = arith.maximumf %44, %45 : vector<32x16xf32>
    %47 = tpu.iota {dimensions = array<i32: 0>} : vector<32x32xi32>
    %48 = tpu.iota {dimensions = array<i32: 1>} : vector<32x32xi32>
    %c1_i32 = arith.constant 1 : i32
    %49 = vector.broadcast %c1_i32 : i32 to vector<32x32xi32>
    %50 = arith.muli %49, %47 : vector<32x32xi32>
    %c-1_i32 = arith.constant -1 : i32
    %51 = vector.broadcast %c-1_i32 : i32 to vector<32x32xi32>
    %52 = arith.addi %50, %51 : vector<32x32xi32>
    %53 = arith.cmpi eq, %48, %52 : vector<32x32xi32>
    %cst_20 = arith.constant 1.000000e+00 : f32
    %cst_21 = arith.constant 0.000000e+00 : f32
    %54 = vector.broadcast %cst_20 : f32 to vector<32x32xf32>
    %55 = vector.broadcast %cst_21 : f32 to vector<32x32xf32>
    %56 = arith.select %53, %54, %55 : vector<32x32xi1>, vector<32x32xf32>
    %57 = arith.truncf %56 : vector<32x32xf32> to vector<32x32xbf16>
    %58 = tpu.iota {dimensions = array<i32: 0>} : vector<32x32xi32>
    %59 = tpu.iota {dimensions = array<i32: 1>} : vector<32x32xi32>
    %c1_i32_22 = arith.constant 1 : i32
    %60 = vector.broadcast %c1_i32_22 : i32 to vector<32x32xi32>
    %61 = arith.muli %60, %58 : vector<32x32xi32>
    %c0_i32 = arith.constant 0 : i32
    %62 = vector.broadcast %c0_i32 : i32 to vector<32x32xi32>
    %63 = arith.addi %61, %62 : vector<32x32xi32>
    %64 = arith.cmpi eq, %59, %63 : vector<32x32xi32>
    %cst_23 = arith.constant 1.000000e+00 : f32
    %cst_24 = arith.constant 0.000000e+00 : f32
    %65 = vector.broadcast %cst_23 : f32 to vector<32x32xf32>
    %66 = vector.broadcast %cst_24 : f32 to vector<32x32xf32>
    %67 = arith.select %64, %65, %66 : vector<32x32xi1>, vector<32x32xf32>
    %68 = arith.truncf %67 : vector<32x32xf32> to vector<32x32xbf16>
    %69 = tpu.iota {dimensions = array<i32: 0>} : vector<32x32xi32>
    %70 = tpu.iota {dimensions = array<i32: 1>} : vector<32x32xi32>
    %c1_i32_25 = arith.constant 1 : i32
    %71 = vector.broadcast %c1_i32_25 : i32 to vector<32x32xi32>
    %72 = arith.muli %71, %69 : vector<32x32xi32>
    %c1_i32_26 = arith.constant 1 : i32
    %73 = vector.broadcast %c1_i32_26 : i32 to vector<32x32xi32>
    %74 = arith.addi %72, %73 : vector<32x32xi32>
    %75 = arith.cmpi eq, %70, %74 : vector<32x32xi32>
    %cst_27 = arith.constant 1.000000e+00 : f32
    %cst_28 = arith.constant 0.000000e+00 : f32
    %76 = vector.broadcast %cst_27 : f32 to vector<32x32xf32>
    %77 = vector.broadcast %cst_28 : f32 to vector<32x32xf32>
    %78 = arith.select %75, %76, %77 : vector<32x32xi1>, vector<32x32xf32>
    %79 = arith.truncf %78 : vector<32x32xf32> to vector<32x32xbf16>
    %c0_29 = arith.constant 0 : index
    %c0_30 = arith.constant 0 : index
    %c0_31 = arith.constant 0 : index
    %80 = vector.load %arg4[%c0_29, %c0_30, %c0_31] : memref<3x16x32xbf16, #tpu.memory_space<vmem>>, vector<1x16x32xbf16>
    %81 = vector.shape_cast %80 : vector<1x16x32xbf16> to vector<16x32xbf16>
    %c1_32 = arith.constant 1 : index
    %c0_33 = arith.constant 0 : index
    %c0_34 = arith.constant 0 : index
    %82 = vector.load %arg4[%c1_32, %c0_33, %c0_34] : memref<3x16x32xbf16, #tpu.memory_space<vmem>>, vector<1x16x32xbf16>
    %83 = vector.shape_cast %82 : vector<1x16x32xbf16> to vector<16x32xbf16>
    %c2 = arith.constant 2 : index
    %c0_35 = arith.constant 0 : index
    %c0_36 = arith.constant 0 : index
    %84 = vector.load %arg4[%c2, %c0_35, %c0_36] : memref<3x16x32xbf16, #tpu.memory_space<vmem>>, vector<1x16x32xbf16>
    %85 = vector.shape_cast %84 : vector<1x16x32xbf16> to vector<16x32xbf16>
    %86 = arith.truncf %40 : vector<32x16xf32> to vector<32x16xbf16>
    %cst_37 = arith.constant dense<0.000000e+00> : vector<32x16xf32>
    %87 = tpu.matmul %57, %86, %cst_37 {dimension_numbers = #tpu.dot_dimension_numbers<[1], [0], [0], [1], [0, 0, 1, 1], [], []>} : vector<32x32xbf16>, vector<32x16xbf16>, vector<32x16xf32> -> vector<32x16xf32>
    %88 = arith.truncf %87 : vector<32x16xf32> to vector<32x16xbf16>
    %cst_38 = arith.constant dense<0.000000e+00> : vector<32x32xf32>
    %89 = tpu.matmul %88, %81, %cst_38 {dimension_numbers = #tpu.dot_dimension_numbers<[1], [0], [0], [1], [0, 0, 1, 1], [], []>} : vector<32x16xbf16>, vector<16x32xbf16>, vector<32x32xf32> -> vector<32x32xf32>
    %cst_39 = arith.constant dense<0.000000e+00> : vector<32x16xf32>
    %90 = tpu.matmul %68, %86, %cst_39 {dimension_numbers = #tpu.dot_dimension_numbers<[1], [0], [0], [1], [0, 0, 1, 1], [], []>} : vector<32x32xbf16>, vector<32x16xbf16>, vector<32x16xf32> -> vector<32x16xf32>
    %91 = arith.truncf %90 : vector<32x16xf32> to vector<32x16xbf16>
    %cst_40 = arith.constant dense<0.000000e+00> : vector<32x32xf32>
    %92 = tpu.matmul %91, %83, %cst_40 {dimension_numbers = #tpu.dot_dimension_numbers<[1], [0], [0], [1], [0, 0, 1, 1], [], []>} : vector<32x16xbf16>, vector<16x32xbf16>, vector<32x32xf32> -> vector<32x32xf32>
    %93 = arith.addf %89, %92 : vector<32x32xf32>
    %cst_41 = arith.constant dense<0.000000e+00> : vector<32x16xf32>
    %94 = tpu.matmul %79, %86, %cst_41 {dimension_numbers = #tpu.dot_dimension_numbers<[1], [0], [0], [1], [0, 0, 1, 1], [], []>} : vector<32x32xbf16>, vector<32x16xbf16>, vector<32x16xf32> -> vector<32x16xf32>
    %95 = arith.truncf %94 : vector<32x16xf32> to vector<32x16xbf16>
    %cst_42 = arith.constant dense<0.000000e+00> : vector<32x32xf32>
    %96 = tpu.matmul %95, %85, %cst_42 {dimension_numbers = #tpu.dot_dimension_numbers<[1], [0], [0], [1], [0, 0, 1, 1], [], []>} : vector<32x16xbf16>, vector<16x32xbf16>, vector<32x32xf32> -> vector<32x32xf32>
    %97 = arith.addf %93, %96 : vector<32x32xf32>
    %98 = arith.truncf %46 : vector<32x16xf32> to vector<32x16xbf16>
    %cst_43 = arith.constant dense<0.000000e+00> : vector<32x16xf32>
    %99 = tpu.matmul %57, %98, %cst_43 {dimension_numbers = #tpu.dot_dimension_numbers<[1], [0], [0], [1], [0, 0, 1, 1], [], []>} : vector<32x32xbf16>, vector<32x16xbf16>, vector<32x16xf32> -> vector<32x16xf32>
    %100 = arith.truncf %99 : vector<32x16xf32> to vector<32x16xbf16>
    %cst_44 = arith.constant dense<0.000000e+00> : vector<32x32xf32>
    %101 = tpu.matmul %100, %81, %cst_44 {dimension_numbers = #tpu.dot_dimension_numbers<[1], [0], [0], [1], [0, 0, 1, 1], [], []>} : vector<32x16xbf16>, vector<16x32xbf16>, vector<32x32xf32> -> vector<32x32xf32>
    %cst_45 = arith.constant dense<0.000000e+00> : vector<32x16xf32>
    %102 = tpu.matmul %68, %98, %cst_45 {dimension_numbers = #tpu.dot_dimension_numbers<[1], [0], [0], [1], [0, 0, 1, 1], [], []>} : vector<32x32xbf16>, vector<32x16xbf16>, vector<32x16xf32> -> vector<32x16xf32>
    %103 = arith.truncf %102 : vector<32x16xf32> to vector<32x16xbf16>
    %cst_46 = arith.constant dense<0.000000e+00> : vector<32x32xf32>
    %104 = tpu.matmul %103, %83, %cst_46 {dimension_numbers = #tpu.dot_dimension_numbers<[1], [0], [0], [1], [0, 0, 1, 1], [], []>} : vector<32x16xbf16>, vector<16x32xbf16>, vector<32x32xf32> -> vector<32x32xf32>
    %105 = arith.addf %101, %104 : vector<32x32xf32>
    %cst_47 = arith.constant dense<0.000000e+00> : vector<32x16xf32>
    %106 = tpu.matmul %79, %98, %cst_47 {dimension_numbers = #tpu.dot_dimension_numbers<[1], [0], [0], [1], [0, 0, 1, 1], [], []>} : vector<32x32xbf16>, vector<32x16xbf16>, vector<32x16xf32> -> vector<32x16xf32>
    %107 = arith.truncf %106 : vector<32x16xf32> to vector<32x16xbf16>
    %cst_48 = arith.constant dense<0.000000e+00> : vector<32x32xf32>
    %108 = tpu.matmul %107, %85, %cst_48 {dimension_numbers = #tpu.dot_dimension_numbers<[1], [0], [0], [1], [0, 0, 1, 1], [], []>} : vector<32x16xbf16>, vector<16x32xbf16>, vector<32x32xf32> -> vector<32x32xf32>
    %109 = arith.addf %105, %108 : vector<32x32xf32>
    %c0_49 = arith.constant 0 : index
    %c0_50 = arith.constant 0 : index
    %110 = vector.load %arg5[%c0_49, %c0_50] : memref<1x32xf32, #tpu.memory_space<vmem>>, vector<1x32xf32>
    %c0_51 = arith.constant 0 : index
    %c0_52 = arith.constant 0 : index
    %111 = vector.load %arg6[%c0_51, %c0_52] : memref<1x32xf32, #tpu.memory_space<vmem>>, vector<1x32xf32>
    %cst_53 = arith.constant dense<0.000000e+00> : vector<32xf32>
    %112 = vector.multi_reduction <add>, %97, %cst_53 [0] : vector<32x32xf32> to vector<32xf32>
    %113 = vector.shape_cast %112 : vector<32xf32> to vector<1x32xf32>
    %cst_54 = arith.constant dense<0.000000e+00> : vector<32xf32>
    %114 = vector.multi_reduction <add>, %109, %cst_54 [0] : vector<32x32xf32> to vector<32xf32>
    %115 = vector.shape_cast %114 : vector<32xf32> to vector<1x32xf32>
    %116 = arith.addf %113, %115 : vector<1x32xf32>
    %cst_55 = arith.constant 1.562500e-02 : f32
    %117 = vector.broadcast %cst_55 : f32 to vector<1x32xf32>
    %118 = arith.mulf %116, %117 : vector<1x32xf32>
    %119 = vector.broadcast %118 : vector<1x32xf32> to vector<32x32xf32>
    %120 = arith.subf %97, %119 : vector<32x32xf32>
    %121 = arith.mulf %120, %120 : vector<32x32xf32>
    %cst_56 = arith.constant dense<0.000000e+00> : vector<32xf32>
    %122 = vector.multi_reduction <add>, %121, %cst_56 [0] : vector<32x32xf32> to vector<32xf32>
    %123 = vector.shape_cast %122 : vector<32xf32> to vector<1x32xf32>
    %124 = vector.broadcast %118 : vector<1x32xf32> to vector<32x32xf32>
    %125 = arith.subf %109, %124 : vector<32x32xf32>
    %126 = arith.mulf %125, %125 : vector<32x32xf32>
    %cst_57 = arith.constant dense<0.000000e+00> : vector<32xf32>
    %127 = vector.multi_reduction <add>, %126, %cst_57 [0] : vector<32x32xf32> to vector<32xf32>
    %128 = vector.shape_cast %127 : vector<32xf32> to vector<1x32xf32>
    %129 = arith.addf %123, %128 : vector<1x32xf32>
    %cst_58 = arith.constant 1.562500e-02 : f32
    %130 = vector.broadcast %cst_58 : f32 to vector<1x32xf32>
    %131 = arith.mulf %129, %130 : vector<1x32xf32>
    %cst_59 = arith.constant 9.99999974E-6 : f32
    %132 = vector.broadcast %cst_59 : f32 to vector<1x32xf32>
    %133 = arith.addf %131, %132 : vector<1x32xf32>
    %134 = math.rsqrt %133 : vector<1x32xf32>
    %135 = arith.mulf %110, %134 : vector<1x32xf32>
    %136 = arith.mulf %118, %135 : vector<1x32xf32>
    %137 = arith.subf %111, %136 : vector<1x32xf32>
    %138 = vector.broadcast %135 : vector<1x32xf32> to vector<32x32xf32>
    %139 = arith.mulf %97, %138 : vector<32x32xf32>
    %140 = vector.broadcast %137 : vector<1x32xf32> to vector<32x32xf32>
    %141 = arith.addf %139, %140 : vector<32x32xf32>
    %cst_60 = arith.constant 0.000000e+00 : f32
    %142 = vector.broadcast %cst_60 : f32 to vector<32x32xf32>
    %143 = arith.maximumf %141, %142 : vector<32x32xf32>
    %144 = vector.broadcast %135 : vector<1x32xf32> to vector<32x32xf32>
    %145 = arith.mulf %109, %144 : vector<32x32xf32>
    %146 = vector.broadcast %137 : vector<1x32xf32> to vector<32x32xf32>
    %147 = arith.addf %145, %146 : vector<32x32xf32>
    %cst_61 = arith.constant 0.000000e+00 : f32
    %148 = vector.broadcast %cst_61 : f32 to vector<32x32xf32>
    %149 = arith.maximumf %147, %148 : vector<32x32xf32>
    %150 = tpu.iota {dimensions = array<i32: 0>} : vector<32x32xi32>
    %151 = tpu.iota {dimensions = array<i32: 1>} : vector<32x32xi32>
    %c1_i32_62 = arith.constant 1 : i32
    %152 = vector.broadcast %c1_i32_62 : i32 to vector<32x32xi32>
    %153 = arith.muli %152, %150 : vector<32x32xi32>
    %c-1_i32_63 = arith.constant -1 : i32
    %154 = vector.broadcast %c-1_i32_63 : i32 to vector<32x32xi32>
    %155 = arith.addi %153, %154 : vector<32x32xi32>
    %156 = arith.cmpi eq, %151, %155 : vector<32x32xi32>
    %cst_64 = arith.constant 1.000000e+00 : f32
    %cst_65 = arith.constant 0.000000e+00 : f32
    %157 = vector.broadcast %cst_64 : f32 to vector<32x32xf32>
    %158 = vector.broadcast %cst_65 : f32 to vector<32x32xf32>
    %159 = arith.select %156, %157, %158 : vector<32x32xi1>, vector<32x32xf32>
    %160 = arith.truncf %159 : vector<32x32xf32> to vector<32x32xbf16>
    %161 = tpu.iota {dimensions = array<i32: 0>} : vector<32x32xi32>
    %162 = tpu.iota {dimensions = array<i32: 1>} : vector<32x32xi32>
    %c1_i32_66 = arith.constant 1 : i32
    %163 = vector.broadcast %c1_i32_66 : i32 to vector<32x32xi32>
    %164 = arith.muli %163, %161 : vector<32x32xi32>
    %c0_i32_67 = arith.constant 0 : i32
    %165 = vector.broadcast %c0_i32_67 : i32 to vector<32x32xi32>
    %166 = arith.addi %164, %165 : vector<32x32xi32>
    %167 = arith.cmpi eq, %162, %166 : vector<32x32xi32>
    %cst_68 = arith.constant 1.000000e+00 : f32
    %cst_69 = arith.constant 0.000000e+00 : f32
    %168 = vector.broadcast %cst_68 : f32 to vector<32x32xf32>
    %169 = vector.broadcast %cst_69 : f32 to vector<32x32xf32>
    %170 = arith.select %167, %168, %169 : vector<32x32xi1>, vector<32x32xf32>
    %171 = arith.truncf %170 : vector<32x32xf32> to vector<32x32xbf16>
    %172 = tpu.iota {dimensions = array<i32: 0>} : vector<32x32xi32>
    %173 = tpu.iota {dimensions = array<i32: 1>} : vector<32x32xi32>
    %c1_i32_70 = arith.constant 1 : i32
    %174 = vector.broadcast %c1_i32_70 : i32 to vector<32x32xi32>
    %175 = arith.muli %174, %172 : vector<32x32xi32>
    %c1_i32_71 = arith.constant 1 : i32
    %176 = vector.broadcast %c1_i32_71 : i32 to vector<32x32xi32>
    %177 = arith.addi %175, %176 : vector<32x32xi32>
    %178 = arith.cmpi eq, %173, %177 : vector<32x32xi32>
    %cst_72 = arith.constant 1.000000e+00 : f32
    %cst_73 = arith.constant 0.000000e+00 : f32
    %179 = vector.broadcast %cst_72 : f32 to vector<32x32xf32>
    %180 = vector.broadcast %cst_73 : f32 to vector<32x32xf32>
    %181 = arith.select %178, %179, %180 : vector<32x32xi1>, vector<32x32xf32>
    %182 = arith.truncf %181 : vector<32x32xf32> to vector<32x32xbf16>
    %c0_74 = arith.constant 0 : index
    %c0_75 = arith.constant 0 : index
    %c0_76 = arith.constant 0 : index
    %183 = vector.load %arg7[%c0_74, %c0_75, %c0_76] : memref<3x32x32xbf16, #tpu.memory_space<vmem>>, vector<1x32x32xbf16>
    %184 = vector.shape_cast %183 : vector<1x32x32xbf16> to vector<32x32xbf16>
    %c1_77 = arith.constant 1 : index
    %c0_78 = arith.constant 0 : index
    %c0_79 = arith.constant 0 : index
    %185 = vector.load %arg7[%c1_77, %c0_78, %c0_79] : memref<3x32x32xbf16, #tpu.memory_space<vmem>>, vector<1x32x32xbf16>
    %186 = vector.shape_cast %185 : vector<1x32x32xbf16> to vector<32x32xbf16>
    %c2_80 = arith.constant 2 : index
    %c0_81 = arith.constant 0 : index
    %c0_82 = arith.constant 0 : index
    %187 = vector.load %arg7[%c2_80, %c0_81, %c0_82] : memref<3x32x32xbf16, #tpu.memory_space<vmem>>, vector<1x32x32xbf16>
    %188 = vector.shape_cast %187 : vector<1x32x32xbf16> to vector<32x32xbf16>
    %189 = arith.truncf %143 : vector<32x32xf32> to vector<32x32xbf16>
    %cst_83 = arith.constant dense<0.000000e+00> : vector<32x32xf32>
    %190 = tpu.matmul %160, %189, %cst_83 {dimension_numbers = #tpu.dot_dimension_numbers<[1], [0], [0], [1], [0, 0, 1, 1], [], []>} : vector<32x32xbf16>, vector<32x32xbf16>, vector<32x32xf32> -> vector<32x32xf32>
    %191 = arith.truncf %190 : vector<32x32xf32> to vector<32x32xbf16>
    %cst_84 = arith.constant dense<0.000000e+00> : vector<32x32xf32>
    %192 = tpu.matmul %191, %184, %cst_84 {dimension_numbers = #tpu.dot_dimension_numbers<[1], [0], [0], [1], [0, 0, 1, 1], [], []>} : vector<32x32xbf16>, vector<32x32xbf16>, vector<32x32xf32> -> vector<32x32xf32>
    %cst_85 = arith.constant dense<0.000000e+00> : vector<32x32xf32>
    %193 = tpu.matmul %171, %189, %cst_85 {dimension_numbers = #tpu.dot_dimension_numbers<[1], [0], [0], [1], [0, 0, 1, 1], [], []>} : vector<32x32xbf16>, vector<32x32xbf16>, vector<32x32xf32> -> vector<32x32xf32>
    %194 = arith.truncf %193 : vector<32x32xf32> to vector<32x32xbf16>
    %cst_86 = arith.constant dense<0.000000e+00> : vector<32x32xf32>
    %195 = tpu.matmul %194, %186, %cst_86 {dimension_numbers = #tpu.dot_dimension_numbers<[1], [0], [0], [1], [0, 0, 1, 1], [], []>} : vector<32x32xbf16>, vector<32x32xbf16>, vector<32x32xf32> -> vector<32x32xf32>
    %196 = arith.addf %192, %195 : vector<32x32xf32>
    %cst_87 = arith.constant dense<0.000000e+00> : vector<32x32xf32>
    %197 = tpu.matmul %182, %189, %cst_87 {dimension_numbers = #tpu.dot_dimension_numbers<[1], [0], [0], [1], [0, 0, 1, 1], [], []>} : vector<32x32xbf16>, vector<32x32xbf16>, vector<32x32xf32> -> vector<32x32xf32>
    %198 = arith.truncf %197 : vector<32x32xf32> to vector<32x32xbf16>
    %cst_88 = arith.constant dense<0.000000e+00> : vector<32x32xf32>
    %199 = tpu.matmul %198, %188, %cst_88 {dimension_numbers = #tpu.dot_dimension_numbers<[1], [0], [0], [1], [0, 0, 1, 1], [], []>} : vector<32x32xbf16>, vector<32x32xbf16>, vector<32x32xf32> -> vector<32x32xf32>
    %200 = arith.addf %196, %199 : vector<32x32xf32>
    %201 = arith.truncf %149 : vector<32x32xf32> to vector<32x32xbf16>
    %cst_89 = arith.constant dense<0.000000e+00> : vector<32x32xf32>
    %202 = tpu.matmul %160, %201, %cst_89 {dimension_numbers = #tpu.dot_dimension_numbers<[1], [0], [0], [1], [0, 0, 1, 1], [], []>} : vector<32x32xbf16>, vector<32x32xbf16>, vector<32x32xf32> -> vector<32x32xf32>
    %203 = arith.truncf %202 : vector<32x32xf32> to vector<32x32xbf16>
    %cst_90 = arith.constant dense<0.000000e+00> : vector<32x32xf32>
    %204 = tpu.matmul %203, %184, %cst_90 {dimension_numbers = #tpu.dot_dimension_numbers<[1], [0], [0], [1], [0, 0, 1, 1], [], []>} : vector<32x32xbf16>, vector<32x32xbf16>, vector<32x32xf32> -> vector<32x32xf32>
    %cst_91 = arith.constant dense<0.000000e+00> : vector<32x32xf32>
    %205 = tpu.matmul %171, %201, %cst_91 {dimension_numbers = #tpu.dot_dimension_numbers<[1], [0], [0], [1], [0, 0, 1, 1], [], []>} : vector<32x32xbf16>, vector<32x32xbf16>, vector<32x32xf32> -> vector<32x32xf32>
    %206 = arith.truncf %205 : vector<32x32xf32> to vector<32x32xbf16>
    %cst_92 = arith.constant dense<0.000000e+00> : vector<32x32xf32>
    %207 = tpu.matmul %206, %186, %cst_92 {dimension_numbers = #tpu.dot_dimension_numbers<[1], [0], [0], [1], [0, 0, 1, 1], [], []>} : vector<32x32xbf16>, vector<32x32xbf16>, vector<32x32xf32> -> vector<32x32xf32>
    %208 = arith.addf %204, %207 : vector<32x32xf32>
    %cst_93 = arith.constant dense<0.000000e+00> : vector<32x32xf32>
    %209 = tpu.matmul %182, %201, %cst_93 {dimension_numbers = #tpu.dot_dimension_numbers<[1], [0], [0], [1], [0, 0, 1, 1], [], []>} : vector<32x32xbf16>, vector<32x32xbf16>, vector<32x32xf32> -> vector<32x32xf32>
    %210 = arith.truncf %209 : vector<32x32xf32> to vector<32x32xbf16>
    %cst_94 = arith.constant dense<0.000000e+00> : vector<32x32xf32>
    %211 = tpu.matmul %210, %188, %cst_94 {dimension_numbers = #tpu.dot_dimension_numbers<[1], [0], [0], [1], [0, 0, 1, 1], [], []>} : vector<32x32xbf16>, vector<32x32xbf16>, vector<32x32xf32> -> vector<32x32xf32>
    %212 = arith.addf %208, %211 : vector<32x32xf32>
    %213 = tpu.iota {dimensions = array<i32: 0>} : vector<32x32xi32>
    %214 = tpu.iota {dimensions = array<i32: 1>} : vector<32x32xi32>
    %c1_i32_95 = arith.constant 1 : i32
    %215 = vector.broadcast %c1_i32_95 : i32 to vector<32x32xi32>
    %216 = arith.muli %215, %213 : vector<32x32xi32>
    %c0_i32_96 = arith.constant 0 : i32
    %217 = vector.broadcast %c0_i32_96 : i32 to vector<32x32xi32>
    %218 = arith.addi %216, %217 : vector<32x32xi32>
    %219 = arith.cmpi eq, %214, %218 : vector<32x32xi32>
    %cst_97 = arith.constant 1.000000e+00 : f32
    %cst_98 = arith.constant 0.000000e+00 : f32
    %220 = vector.broadcast %cst_97 : f32 to vector<32x32xf32>
    %221 = vector.broadcast %cst_98 : f32 to vector<32x32xf32>
    %222 = arith.select %219, %220, %221 : vector<32x32xi1>, vector<32x32xf32>
    %223 = arith.truncf %222 : vector<32x32xf32> to vector<32x32xbf16>
    %c0_99 = arith.constant 0 : index
    %c0_100 = arith.constant 0 : index
    %c0_101 = arith.constant 0 : index
    %224 = vector.load %arg10[%c0_99, %c0_100, %c0_101] : memref<1x16x32xbf16, #tpu.memory_space<vmem>>, vector<1x16x32xbf16>
    %225 = vector.shape_cast %224 : vector<1x16x32xbf16> to vector<16x32xbf16>
    %226 = arith.truncf %40 : vector<32x16xf32> to vector<32x16xbf16>
    %cst_102 = arith.constant dense<0.000000e+00> : vector<32x16xf32>
    %227 = tpu.matmul %223, %226, %cst_102 {dimension_numbers = #tpu.dot_dimension_numbers<[1], [0], [0], [1], [0, 0, 1, 1], [], []>} : vector<32x32xbf16>, vector<32x16xbf16>, vector<32x16xf32> -> vector<32x16xf32>
    %228 = arith.truncf %227 : vector<32x16xf32> to vector<32x16xbf16>
    %cst_103 = arith.constant dense<0.000000e+00> : vector<32x32xf32>
    %229 = tpu.matmul %228, %225, %cst_103 {dimension_numbers = #tpu.dot_dimension_numbers<[1], [0], [0], [1], [0, 0, 1, 1], [], []>} : vector<32x16xbf16>, vector<16x32xbf16>, vector<32x32xf32> -> vector<32x32xf32>
    %230 = arith.truncf %46 : vector<32x16xf32> to vector<32x16xbf16>
    %cst_104 = arith.constant dense<0.000000e+00> : vector<32x16xf32>
    %231 = tpu.matmul %223, %230, %cst_104 {dimension_numbers = #tpu.dot_dimension_numbers<[1], [0], [0], [1], [0, 0, 1, 1], [], []>} : vector<32x32xbf16>, vector<32x16xbf16>, vector<32x16xf32> -> vector<32x16xf32>
    %232 = arith.truncf %231 : vector<32x16xf32> to vector<32x16xbf16>
    %cst_105 = arith.constant dense<0.000000e+00> : vector<32x32xf32>
    %233 = tpu.matmul %232, %225, %cst_105 {dimension_numbers = #tpu.dot_dimension_numbers<[1], [0], [0], [1], [0, 0, 1, 1], [], []>} : vector<32x16xbf16>, vector<16x32xbf16>, vector<32x32xf32> -> vector<32x32xf32>
    %234 = arith.addf %200, %229 : vector<32x32xf32>
    %235 = arith.addf %212, %233 : vector<32x32xf32>
    %c0_106 = arith.constant 0 : index
    %c0_107 = arith.constant 0 : index
    %236 = vector.load %arg8[%c0_106, %c0_107] : memref<1x32xf32, #tpu.memory_space<vmem>>, vector<1x32xf32>
    %c0_108 = arith.constant 0 : index
    %c0_109 = arith.constant 0 : index
    %237 = vector.load %arg9[%c0_108, %c0_109] : memref<1x32xf32, #tpu.memory_space<vmem>>, vector<1x32xf32>
    %cst_110 = arith.constant dense<0.000000e+00> : vector<32xf32>
    %238 = vector.multi_reduction <add>, %234, %cst_110 [0] : vector<32x32xf32> to vector<32xf32>
    %239 = vector.shape_cast %238 : vector<32xf32> to vector<1x32xf32>
    %cst_111 = arith.constant dense<0.000000e+00> : vector<32xf32>
    %240 = vector.multi_reduction <add>, %235, %cst_111 [0] : vector<32x32xf32> to vector<32xf32>
    %241 = vector.shape_cast %240 : vector<32xf32> to vector<1x32xf32>
    %242 = arith.addf %239, %241 : vector<1x32xf32>
    %cst_112 = arith.constant 1.562500e-02 : f32
    %243 = vector.broadcast %cst_112 : f32 to vector<1x32xf32>
    %244 = arith.mulf %242, %243 : vector<1x32xf32>
    %245 = vector.broadcast %244 : vector<1x32xf32> to vector<32x32xf32>
    %246 = arith.subf %234, %245 : vector<32x32xf32>
    %247 = arith.mulf %246, %246 : vector<32x32xf32>
    %cst_113 = arith.constant dense<0.000000e+00> : vector<32xf32>
    %248 = vector.multi_reduction <add>, %247, %cst_113 [0] : vector<32x32xf32> to vector<32xf32>
    %249 = vector.shape_cast %248 : vector<32xf32> to vector<1x32xf32>
    %250 = vector.broadcast %244 : vector<1x32xf32> to vector<32x32xf32>
    %251 = arith.subf %235, %250 : vector<32x32xf32>
    %252 = arith.mulf %251, %251 : vector<32x32xf32>
    %cst_114 = arith.constant dense<0.000000e+00> : vector<32xf32>
    %253 = vector.multi_reduction <add>, %252, %cst_114 [0] : vector<32x32xf32> to vector<32xf32>
    %254 = vector.shape_cast %253 : vector<32xf32> to vector<1x32xf32>
    %255 = arith.addf %249, %254 : vector<1x32xf32>
    %cst_115 = arith.constant 1.562500e-02 : f32
    %256 = vector.broadcast %cst_115 : f32 to vector<1x32xf32>
    %257 = arith.mulf %255, %256 : vector<1x32xf32>
    %cst_116 = arith.constant 9.99999974E-6 : f32
    %258 = vector.broadcast %cst_116 : f32 to vector<1x32xf32>
    %259 = arith.addf %257, %258 : vector<1x32xf32>
    %260 = math.rsqrt %259 : vector<1x32xf32>
    %261 = arith.mulf %236, %260 : vector<1x32xf32>
    %262 = arith.mulf %244, %261 : vector<1x32xf32>
    %263 = arith.subf %237, %262 : vector<1x32xf32>
    %264 = vector.broadcast %261 : vector<1x32xf32> to vector<32x32xf32>
    %265 = arith.mulf %234, %264 : vector<32x32xf32>
    %266 = vector.broadcast %263 : vector<1x32xf32> to vector<32x32xf32>
    %267 = arith.addf %265, %266 : vector<32x32xf32>
    %cst_117 = arith.constant 0.000000e+00 : f32
    %268 = vector.broadcast %cst_117 : f32 to vector<32x32xf32>
    %269 = arith.maximumf %267, %268 : vector<32x32xf32>
    %270 = vector.broadcast %261 : vector<1x32xf32> to vector<32x32xf32>
    %271 = arith.mulf %235, %270 : vector<32x32xf32>
    %272 = vector.broadcast %263 : vector<1x32xf32> to vector<32x32xf32>
    %273 = arith.addf %271, %272 : vector<32x32xf32>
    %cst_118 = arith.constant 0.000000e+00 : f32
    %274 = vector.broadcast %cst_118 : f32 to vector<32x32xf32>
    %275 = arith.maximumf %273, %274 : vector<32x32xf32>
    %276 = tpu.iota {dimensions = array<i32: 0>} : vector<16x32xi32>
    %277 = tpu.iota {dimensions = array<i32: 1>} : vector<16x32xi32>
    %c2_i32 = arith.constant 2 : i32
    %278 = vector.broadcast %c2_i32 : i32 to vector<16x32xi32>
    %279 = arith.muli %278, %276 : vector<16x32xi32>
    %c-1_i32_119 = arith.constant -1 : i32
    %280 = vector.broadcast %c-1_i32_119 : i32 to vector<16x32xi32>
    %281 = arith.addi %279, %280 : vector<16x32xi32>
    %282 = arith.cmpi eq, %277, %281 : vector<16x32xi32>
    %cst_120 = arith.constant 1.000000e+00 : f32
    %cst_121 = arith.constant 0.000000e+00 : f32
    %283 = vector.broadcast %cst_120 : f32 to vector<16x32xf32>
    %284 = vector.broadcast %cst_121 : f32 to vector<16x32xf32>
    %285 = arith.select %282, %283, %284 : vector<16x32xi1>, vector<16x32xf32>
    %286 = arith.truncf %285 : vector<16x32xf32> to vector<16x32xbf16>
    %287 = tpu.iota {dimensions = array<i32: 0>} : vector<16x32xi32>
    %288 = tpu.iota {dimensions = array<i32: 1>} : vector<16x32xi32>
    %c2_i32_122 = arith.constant 2 : i32
    %289 = vector.broadcast %c2_i32_122 : i32 to vector<16x32xi32>
    %290 = arith.muli %289, %287 : vector<16x32xi32>
    %c0_i32_123 = arith.constant 0 : i32
    %291 = vector.broadcast %c0_i32_123 : i32 to vector<16x32xi32>
    %292 = arith.addi %290, %291 : vector<16x32xi32>
    %293 = arith.cmpi eq, %288, %292 : vector<16x32xi32>
    %cst_124 = arith.constant 1.000000e+00 : f32
    %cst_125 = arith.constant 0.000000e+00 : f32
    %294 = vector.broadcast %cst_124 : f32 to vector<16x32xf32>
    %295 = vector.broadcast %cst_125 : f32 to vector<16x32xf32>
    %296 = arith.select %293, %294, %295 : vector<16x32xi1>, vector<16x32xf32>
    %297 = arith.truncf %296 : vector<16x32xf32> to vector<16x32xbf16>
    %298 = tpu.iota {dimensions = array<i32: 0>} : vector<16x32xi32>
    %299 = tpu.iota {dimensions = array<i32: 1>} : vector<16x32xi32>
    %c2_i32_126 = arith.constant 2 : i32
    %300 = vector.broadcast %c2_i32_126 : i32 to vector<16x32xi32>
    %301 = arith.muli %300, %298 : vector<16x32xi32>
    %c1_i32_127 = arith.constant 1 : i32
    %302 = vector.broadcast %c1_i32_127 : i32 to vector<16x32xi32>
    %303 = arith.addi %301, %302 : vector<16x32xi32>
    %304 = arith.cmpi eq, %299, %303 : vector<16x32xi32>
    %cst_128 = arith.constant 1.000000e+00 : f32
    %cst_129 = arith.constant 0.000000e+00 : f32
    %305 = vector.broadcast %cst_128 : f32 to vector<16x32xf32>
    %306 = vector.broadcast %cst_129 : f32 to vector<16x32xf32>
    %307 = arith.select %304, %305, %306 : vector<16x32xi1>, vector<16x32xf32>
    %308 = arith.truncf %307 : vector<16x32xf32> to vector<16x32xbf16>
    %c0_130 = arith.constant 0 : index
    %c0_131 = arith.constant 0 : index
    %c0_132 = arith.constant 0 : index
    %309 = vector.load %arg11[%c0_130, %c0_131, %c0_132] : memref<3x32x64xbf16, #tpu.memory_space<vmem>>, vector<1x32x64xbf16>
    %310 = vector.shape_cast %309 : vector<1x32x64xbf16> to vector<32x64xbf16>
    %c1_133 = arith.constant 1 : index
    %c0_134 = arith.constant 0 : index
    %c0_135 = arith.constant 0 : index
    %311 = vector.load %arg11[%c1_133, %c0_134, %c0_135] : memref<3x32x64xbf16, #tpu.memory_space<vmem>>, vector<1x32x64xbf16>
    %312 = vector.shape_cast %311 : vector<1x32x64xbf16> to vector<32x64xbf16>
    %c2_136 = arith.constant 2 : index
    %c0_137 = arith.constant 0 : index
    %c0_138 = arith.constant 0 : index
    %313 = vector.load %arg11[%c2_136, %c0_137, %c0_138] : memref<3x32x64xbf16, #tpu.memory_space<vmem>>, vector<1x32x64xbf16>
    %314 = vector.shape_cast %313 : vector<1x32x64xbf16> to vector<32x64xbf16>
    %315 = arith.truncf %269 : vector<32x32xf32> to vector<32x32xbf16>
    %cst_139 = arith.constant dense<0.000000e+00> : vector<16x32xf32>
    %316 = tpu.matmul %286, %315, %cst_139 {dimension_numbers = #tpu.dot_dimension_numbers<[1], [0], [0], [1], [0, 0, 1, 1], [], []>} : vector<16x32xbf16>, vector<32x32xbf16>, vector<16x32xf32> -> vector<16x32xf32>
    %317 = arith.truncf %316 : vector<16x32xf32> to vector<16x32xbf16>
    %cst_140 = arith.constant dense<0.000000e+00> : vector<16x64xf32>
    %318 = tpu.matmul %317, %310, %cst_140 {dimension_numbers = #tpu.dot_dimension_numbers<[1], [0], [0], [1], [0, 0, 1, 1], [], []>} : vector<16x32xbf16>, vector<32x64xbf16>, vector<16x64xf32> -> vector<16x64xf32>
    %cst_141 = arith.constant dense<0.000000e+00> : vector<16x32xf32>
    %319 = tpu.matmul %297, %315, %cst_141 {dimension_numbers = #tpu.dot_dimension_numbers<[1], [0], [0], [1], [0, 0, 1, 1], [], []>} : vector<16x32xbf16>, vector<32x32xbf16>, vector<16x32xf32> -> vector<16x32xf32>
    %320 = arith.truncf %319 : vector<16x32xf32> to vector<16x32xbf16>
    %cst_142 = arith.constant dense<0.000000e+00> : vector<16x64xf32>
    %321 = tpu.matmul %320, %312, %cst_142 {dimension_numbers = #tpu.dot_dimension_numbers<[1], [0], [0], [1], [0, 0, 1, 1], [], []>} : vector<16x32xbf16>, vector<32x64xbf16>, vector<16x64xf32> -> vector<16x64xf32>
    %322 = arith.addf %318, %321 : vector<16x64xf32>
    %cst_143 = arith.constant dense<0.000000e+00> : vector<16x32xf32>
    %323 = tpu.matmul %308, %315, %cst_143 {dimension_numbers = #tpu.dot_dimension_numbers<[1], [0], [0], [1], [0, 0, 1, 1], [], []>} : vector<16x32xbf16>, vector<32x32xbf16>, vector<16x32xf32> -> vector<16x32xf32>
    %324 = arith.truncf %323 : vector<16x32xf32> to vector<16x32xbf16>
    %cst_144 = arith.constant dense<0.000000e+00> : vector<16x64xf32>
    %325 = tpu.matmul %324, %314, %cst_144 {dimension_numbers = #tpu.dot_dimension_numbers<[1], [0], [0], [1], [0, 0, 1, 1], [], []>} : vector<16x32xbf16>, vector<32x64xbf16>, vector<16x64xf32> -> vector<16x64xf32>
    %326 = arith.addf %322, %325 : vector<16x64xf32>
    %327 = arith.truncf %275 : vector<32x32xf32> to vector<32x32xbf16>
    %cst_145 = arith.constant dense<0.000000e+00> : vector<16x32xf32>
    %328 = tpu.matmul %286, %327, %cst_145 {dimension_numbers = #tpu.dot_dimension_numbers<[1], [0], [0], [1], [0, 0, 1, 1], [], []>} : vector<16x32xbf16>, vector<32x32xbf16>, vector<16x32xf32> -> vector<16x32xf32>
    %329 = arith.truncf %328 : vector<16x32xf32> to vector<16x32xbf16>
    %cst_146 = arith.constant dense<0.000000e+00> : vector<16x64xf32>
    %330 = tpu.matmul %329, %310, %cst_146 {dimension_numbers = #tpu.dot_dimension_numbers<[1], [0], [0], [1], [0, 0, 1, 1], [], []>} : vector<16x32xbf16>, vector<32x64xbf16>, vector<16x64xf32> -> vector<16x64xf32>
    %cst_147 = arith.constant dense<0.000000e+00> : vector<16x32xf32>
    %331 = tpu.matmul %297, %327, %cst_147 {dimension_numbers = #tpu.dot_dimension_numbers<[1], [0], [0], [1], [0, 0, 1, 1], [], []>} : vector<16x32xbf16>, vector<32x32xbf16>, vector<16x32xf32> -> vector<16x32xf32>
    %332 = arith.truncf %331 : vector<16x32xf32> to vector<16x32xbf16>
    %cst_148 = arith.constant dense<0.000000e+00> : vector<16x64xf32>
    %333 = tpu.matmul %332, %312, %cst_148 {dimension_numbers = #tpu.dot_dimension_numbers<[1], [0], [0], [1], [0, 0, 1, 1], [], []>} : vector<16x32xbf16>, vector<32x64xbf16>, vector<16x64xf32> -> vector<16x64xf32>
    %334 = arith.addf %330, %333 : vector<16x64xf32>
    %cst_149 = arith.constant dense<0.000000e+00> : vector<16x32xf32>
    %335 = tpu.matmul %308, %327, %cst_149 {dimension_numbers = #tpu.dot_dimension_numbers<[1], [0], [0], [1], [0, 0, 1, 1], [], []>} : vector<16x32xbf16>, vector<32x32xbf16>, vector<16x32xf32> -> vector<16x32xf32>
    %336 = arith.truncf %335 : vector<16x32xf32> to vector<16x32xbf16>
    %cst_150 = arith.constant dense<0.000000e+00> : vector<16x64xf32>
    %337 = tpu.matmul %336, %314, %cst_150 {dimension_numbers = #tpu.dot_dimension_numbers<[1], [0], [0], [1], [0, 0, 1, 1], [], []>} : vector<16x32xbf16>, vector<32x64xbf16>, vector<16x64xf32> -> vector<16x64xf32>
    %338 = arith.addf %334, %337 : vector<16x64xf32>
    %c0_151 = arith.constant 0 : index
    %c0_152 = arith.constant 0 : index
    %339 = vector.load %arg12[%c0_151, %c0_152] : memref<1x64xf32, #tpu.memory_space<vmem>>, vector<1x64xf32>
    %c0_153 = arith.constant 0 : index
    %c0_154 = arith.constant 0 : index
    %340 = vector.load %arg13[%c0_153, %c0_154] : memref<1x64xf32, #tpu.memory_space<vmem>>, vector<1x64xf32>
    %cst_155 = arith.constant dense<0.000000e+00> : vector<64xf32>
    %341 = vector.multi_reduction <add>, %326, %cst_155 [0] : vector<16x64xf32> to vector<64xf32>
    %342 = vector.shape_cast %341 : vector<64xf32> to vector<1x64xf32>
    %cst_156 = arith.constant dense<0.000000e+00> : vector<64xf32>
    %343 = vector.multi_reduction <add>, %338, %cst_156 [0] : vector<16x64xf32> to vector<64xf32>
    %344 = vector.shape_cast %343 : vector<64xf32> to vector<1x64xf32>
    %345 = arith.addf %342, %344 : vector<1x64xf32>
    %cst_157 = arith.constant 3.125000e-02 : f32
    %346 = vector.broadcast %cst_157 : f32 to vector<1x64xf32>
    %347 = arith.mulf %345, %346 : vector<1x64xf32>
    %348 = vector.broadcast %347 : vector<1x64xf32> to vector<16x64xf32>
    %349 = arith.subf %326, %348 : vector<16x64xf32>
    %350 = arith.mulf %349, %349 : vector<16x64xf32>
    %cst_158 = arith.constant dense<0.000000e+00> : vector<64xf32>
    %351 = vector.multi_reduction <add>, %350, %cst_158 [0] : vector<16x64xf32> to vector<64xf32>
    %352 = vector.shape_cast %351 : vector<64xf32> to vector<1x64xf32>
    %353 = vector.broadcast %347 : vector<1x64xf32> to vector<16x64xf32>
    %354 = arith.subf %338, %353 : vector<16x64xf32>
    %355 = arith.mulf %354, %354 : vector<16x64xf32>
    %cst_159 = arith.constant dense<0.000000e+00> : vector<64xf32>
    %356 = vector.multi_reduction <add>, %355, %cst_159 [0] : vector<16x64xf32> to vector<64xf32>
    %357 = vector.shape_cast %356 : vector<64xf32> to vector<1x64xf32>
    %358 = arith.addf %352, %357 : vector<1x64xf32>
    %cst_160 = arith.constant 3.125000e-02 : f32
    %359 = vector.broadcast %cst_160 : f32 to vector<1x64xf32>
    %360 = arith.mulf %358, %359 : vector<1x64xf32>
    %cst_161 = arith.constant 9.99999974E-6 : f32
    %361 = vector.broadcast %cst_161 : f32 to vector<1x64xf32>
    %362 = arith.addf %360, %361 : vector<1x64xf32>
    %363 = math.rsqrt %362 : vector<1x64xf32>
    %364 = arith.mulf %339, %363 : vector<1x64xf32>
    %365 = arith.mulf %347, %364 : vector<1x64xf32>
    %366 = arith.subf %340, %365 : vector<1x64xf32>
    %367 = vector.broadcast %364 : vector<1x64xf32> to vector<16x64xf32>
    %368 = arith.mulf %326, %367 : vector<16x64xf32>
    %369 = vector.broadcast %366 : vector<1x64xf32> to vector<16x64xf32>
    %370 = arith.addf %368, %369 : vector<16x64xf32>
    %cst_162 = arith.constant 0.000000e+00 : f32
    %371 = vector.broadcast %cst_162 : f32 to vector<16x64xf32>
    %372 = arith.maximumf %370, %371 : vector<16x64xf32>
    %373 = vector.broadcast %364 : vector<1x64xf32> to vector<16x64xf32>
    %374 = arith.mulf %338, %373 : vector<16x64xf32>
    %375 = vector.broadcast %366 : vector<1x64xf32> to vector<16x64xf32>
    %376 = arith.addf %374, %375 : vector<16x64xf32>
    %cst_163 = arith.constant 0.000000e+00 : f32
    %377 = vector.broadcast %cst_163 : f32 to vector<16x64xf32>
    %378 = arith.maximumf %376, %377 : vector<16x64xf32>
    %379 = tpu.iota {dimensions = array<i32: 0>} : vector<16x16xi32>
    %380 = tpu.iota {dimensions = array<i32: 1>} : vector<16x16xi32>
    %c1_i32_164 = arith.constant 1 : i32
    %381 = vector.broadcast %c1_i32_164 : i32 to vector<16x16xi32>
    %382 = arith.muli %381, %379 : vector<16x16xi32>
    %c-1_i32_165 = arith.constant -1 : i32
    %383 = vector.broadcast %c-1_i32_165 : i32 to vector<16x16xi32>
    %384 = arith.addi %382, %383 : vector<16x16xi32>
    %385 = arith.cmpi eq, %380, %384 : vector<16x16xi32>
    %cst_166 = arith.constant 1.000000e+00 : f32
    %cst_167 = arith.constant 0.000000e+00 : f32
    %386 = vector.broadcast %cst_166 : f32 to vector<16x16xf32>
    %387 = vector.broadcast %cst_167 : f32 to vector<16x16xf32>
    %388 = arith.select %385, %386, %387 : vector<16x16xi1>, vector<16x16xf32>
    %389 = arith.truncf %388 : vector<16x16xf32> to vector<16x16xbf16>
    %390 = tpu.iota {dimensions = array<i32: 0>} : vector<16x16xi32>
    %391 = tpu.iota {dimensions = array<i32: 1>} : vector<16x16xi32>
    %c1_i32_168 = arith.constant 1 : i32
    %392 = vector.broadcast %c1_i32_168 : i32 to vector<16x16xi32>
    %393 = arith.muli %392, %390 : vector<16x16xi32>
    %c0_i32_169 = arith.constant 0 : i32
    %394 = vector.broadcast %c0_i32_169 : i32 to vector<16x16xi32>
    %395 = arith.addi %393, %394 : vector<16x16xi32>
    %396 = arith.cmpi eq, %391, %395 : vector<16x16xi32>
    %cst_170 = arith.constant 1.000000e+00 : f32
    %cst_171 = arith.constant 0.000000e+00 : f32
    %397 = vector.broadcast %cst_170 : f32 to vector<16x16xf32>
    %398 = vector.broadcast %cst_171 : f32 to vector<16x16xf32>
    %399 = arith.select %396, %397, %398 : vector<16x16xi1>, vector<16x16xf32>
    %400 = arith.truncf %399 : vector<16x16xf32> to vector<16x16xbf16>
    %401 = tpu.iota {dimensions = array<i32: 0>} : vector<16x16xi32>
    %402 = tpu.iota {dimensions = array<i32: 1>} : vector<16x16xi32>
    %c1_i32_172 = arith.constant 1 : i32
    %403 = vector.broadcast %c1_i32_172 : i32 to vector<16x16xi32>
    %404 = arith.muli %403, %401 : vector<16x16xi32>
    %c1_i32_173 = arith.constant 1 : i32
    %405 = vector.broadcast %c1_i32_173 : i32 to vector<16x16xi32>
    %406 = arith.addi %404, %405 : vector<16x16xi32>
    %407 = arith.cmpi eq, %402, %406 : vector<16x16xi32>
    %cst_174 = arith.constant 1.000000e+00 : f32
    %cst_175 = arith.constant 0.000000e+00 : f32
    %408 = vector.broadcast %cst_174 : f32 to vector<16x16xf32>
    %409 = vector.broadcast %cst_175 : f32 to vector<16x16xf32>
    %410 = arith.select %407, %408, %409 : vector<16x16xi1>, vector<16x16xf32>
    %411 = arith.truncf %410 : vector<16x16xf32> to vector<16x16xbf16>
    %c0_176 = arith.constant 0 : index
    %c0_177 = arith.constant 0 : index
    %c0_178 = arith.constant 0 : index
    %412 = vector.load %arg14[%c0_176, %c0_177, %c0_178] : memref<3x64x64xbf16, #tpu.memory_space<vmem>>, vector<1x64x64xbf16>
    %413 = vector.shape_cast %412 : vector<1x64x64xbf16> to vector<64x64xbf16>
    %c1_179 = arith.constant 1 : index
    %c0_180 = arith.constant 0 : index
    %c0_181 = arith.constant 0 : index
    %414 = vector.load %arg14[%c1_179, %c0_180, %c0_181] : memref<3x64x64xbf16, #tpu.memory_space<vmem>>, vector<1x64x64xbf16>
    %415 = vector.shape_cast %414 : vector<1x64x64xbf16> to vector<64x64xbf16>
    %c2_182 = arith.constant 2 : index
    %c0_183 = arith.constant 0 : index
    %c0_184 = arith.constant 0 : index
    %416 = vector.load %arg14[%c2_182, %c0_183, %c0_184] : memref<3x64x64xbf16, #tpu.memory_space<vmem>>, vector<1x64x64xbf16>
    %417 = vector.shape_cast %416 : vector<1x64x64xbf16> to vector<64x64xbf16>
    %418 = arith.truncf %372 : vector<16x64xf32> to vector<16x64xbf16>
    %cst_185 = arith.constant dense<0.000000e+00> : vector<16x64xf32>
    %419 = tpu.matmul %389, %418, %cst_185 {dimension_numbers = #tpu.dot_dimension_numbers<[1], [0], [0], [1], [0, 0, 1, 1], [], []>} : vector<16x16xbf16>, vector<16x64xbf16>, vector<16x64xf32> -> vector<16x64xf32>
    %420 = arith.truncf %419 : vector<16x64xf32> to vector<16x64xbf16>
    %cst_186 = arith.constant dense<0.000000e+00> : vector<16x64xf32>
    %421 = tpu.matmul %420, %413, %cst_186 {dimension_numbers = #tpu.dot_dimension_numbers<[1], [0], [0], [1], [0, 0, 1, 1], [], []>} : vector<16x64xbf16>, vector<64x64xbf16>, vector<16x64xf32> -> vector<16x64xf32>
    %cst_187 = arith.constant dense<0.000000e+00> : vector<16x64xf32>
    %422 = tpu.matmul %400, %418, %cst_187 {dimension_numbers = #tpu.dot_dimension_numbers<[1], [0], [0], [1], [0, 0, 1, 1], [], []>} : vector<16x16xbf16>, vector<16x64xbf16>, vector<16x64xf32> -> vector<16x64xf32>
    %423 = arith.truncf %422 : vector<16x64xf32> to vector<16x64xbf16>
    %cst_188 = arith.constant dense<0.000000e+00> : vector<16x64xf32>
    %424 = tpu.matmul %423, %415, %cst_188 {dimension_numbers = #tpu.dot_dimension_numbers<[1], [0], [0], [1], [0, 0, 1, 1], [], []>} : vector<16x64xbf16>, vector<64x64xbf16>, vector<16x64xf32> -> vector<16x64xf32>
    %425 = arith.addf %421, %424 : vector<16x64xf32>
    %cst_189 = arith.constant dense<0.000000e+00> : vector<16x64xf32>
    %426 = tpu.matmul %411, %418, %cst_189 {dimension_numbers = #tpu.dot_dimension_numbers<[1], [0], [0], [1], [0, 0, 1, 1], [], []>} : vector<16x16xbf16>, vector<16x64xbf16>, vector<16x64xf32> -> vector<16x64xf32>
    %427 = arith.truncf %426 : vector<16x64xf32> to vector<16x64xbf16>
    %cst_190 = arith.constant dense<0.000000e+00> : vector<16x64xf32>
    %428 = tpu.matmul %427, %417, %cst_190 {dimension_numbers = #tpu.dot_dimension_numbers<[1], [0], [0], [1], [0, 0, 1, 1], [], []>} : vector<16x64xbf16>, vector<64x64xbf16>, vector<16x64xf32> -> vector<16x64xf32>
    %429 = arith.addf %425, %428 : vector<16x64xf32>
    %430 = arith.truncf %378 : vector<16x64xf32> to vector<16x64xbf16>
    %cst_191 = arith.constant dense<0.000000e+00> : vector<16x64xf32>
    %431 = tpu.matmul %389, %430, %cst_191 {dimension_numbers = #tpu.dot_dimension_numbers<[1], [0], [0], [1], [0, 0, 1, 1], [], []>} : vector<16x16xbf16>, vector<16x64xbf16>, vector<16x64xf32> -> vector<16x64xf32>
    %432 = arith.truncf %431 : vector<16x64xf32> to vector<16x64xbf16>
    %cst_192 = arith.constant dense<0.000000e+00> : vector<16x64xf32>
    %433 = tpu.matmul %432, %413, %cst_192 {dimension_numbers = #tpu.dot_dimension_numbers<[1], [0], [0], [1], [0, 0, 1, 1], [], []>} : vector<16x64xbf16>, vector<64x64xbf16>, vector<16x64xf32> -> vector<16x64xf32>
    %cst_193 = arith.constant dense<0.000000e+00> : vector<16x64xf32>
    %434 = tpu.matmul %400, %430, %cst_193 {dimension_numbers = #tpu.dot_dimension_numbers<[1], [0], [0], [1], [0, 0, 1, 1], [], []>} : vector<16x16xbf16>, vector<16x64xbf16>, vector<16x64xf32> -> vector<16x64xf32>
    %435 = arith.truncf %434 : vector<16x64xf32> to vector<16x64xbf16>
    %cst_194 = arith.constant dense<0.000000e+00> : vector<16x64xf32>
    %436 = tpu.matmul %435, %415, %cst_194 {dimension_numbers = #tpu.dot_dimension_numbers<[1], [0], [0], [1], [0, 0, 1, 1], [], []>} : vector<16x64xbf16>, vector<64x64xbf16>, vector<16x64xf32> -> vector<16x64xf32>
    %437 = arith.addf %433, %436 : vector<16x64xf32>
    %cst_195 = arith.constant dense<0.000000e+00> : vector<16x64xf32>
    %438 = tpu.matmul %411, %430, %cst_195 {dimension_numbers = #tpu.dot_dimension_numbers<[1], [0], [0], [1], [0, 0, 1, 1], [], []>} : vector<16x16xbf16>, vector<16x64xbf16>, vector<16x64xf32> -> vector<16x64xf32>
    %439 = arith.truncf %438 : vector<16x64xf32> to vector<16x64xbf16>
    %cst_196 = arith.constant dense<0.000000e+00> : vector<16x64xf32>
    %440 = tpu.matmul %439, %417, %cst_196 {dimension_numbers = #tpu.dot_dimension_numbers<[1], [0], [0], [1], [0, 0, 1, 1], [], []>} : vector<16x64xbf16>, vector<64x64xbf16>, vector<16x64xf32> -> vector<16x64xf32>
    %441 = arith.addf %437, %440 : vector<16x64xf32>
    %442 = tpu.iota {dimensions = array<i32: 0>} : vector<16x32xi32>
    %443 = tpu.iota {dimensions = array<i32: 1>} : vector<16x32xi32>
    %c2_i32_197 = arith.constant 2 : i32
    %444 = vector.broadcast %c2_i32_197 : i32 to vector<16x32xi32>
    %445 = arith.muli %444, %442 : vector<16x32xi32>
    %c0_i32_198 = arith.constant 0 : i32
    %446 = vector.broadcast %c0_i32_198 : i32 to vector<16x32xi32>
    %447 = arith.addi %445, %446 : vector<16x32xi32>
    %448 = arith.cmpi eq, %443, %447 : vector<16x32xi32>
    %cst_199 = arith.constant 1.000000e+00 : f32
    %cst_200 = arith.constant 0.000000e+00 : f32
    %449 = vector.broadcast %cst_199 : f32 to vector<16x32xf32>
    %450 = vector.broadcast %cst_200 : f32 to vector<16x32xf32>
    %451 = arith.select %448, %449, %450 : vector<16x32xi1>, vector<16x32xf32>
    %452 = arith.truncf %451 : vector<16x32xf32> to vector<16x32xbf16>
    %c0_201 = arith.constant 0 : index
    %c0_202 = arith.constant 0 : index
    %c0_203 = arith.constant 0 : index
    %453 = vector.load %arg17[%c0_201, %c0_202, %c0_203] : memref<1x32x64xbf16, #tpu.memory_space<vmem>>, vector<1x32x64xbf16>
    %454 = vector.shape_cast %453 : vector<1x32x64xbf16> to vector<32x64xbf16>
    %455 = arith.truncf %269 : vector<32x32xf32> to vector<32x32xbf16>
    %cst_204 = arith.constant dense<0.000000e+00> : vector<16x32xf32>
    %456 = tpu.matmul %452, %455, %cst_204 {dimension_numbers = #tpu.dot_dimension_numbers<[1], [0], [0], [1], [0, 0, 1, 1], [], []>} : vector<16x32xbf16>, vector<32x32xbf16>, vector<16x32xf32> -> vector<16x32xf32>
    %457 = arith.truncf %456 : vector<16x32xf32> to vector<16x32xbf16>
    %cst_205 = arith.constant dense<0.000000e+00> : vector<16x64xf32>
    %458 = tpu.matmul %457, %454, %cst_205 {dimension_numbers = #tpu.dot_dimension_numbers<[1], [0], [0], [1], [0, 0, 1, 1], [], []>} : vector<16x32xbf16>, vector<32x64xbf16>, vector<16x64xf32> -> vector<16x64xf32>
    %459 = arith.truncf %275 : vector<32x32xf32> to vector<32x32xbf16>
    %cst_206 = arith.constant dense<0.000000e+00> : vector<16x32xf32>
    %460 = tpu.matmul %452, %459, %cst_206 {dimension_numbers = #tpu.dot_dimension_numbers<[1], [0], [0], [1], [0, 0, 1, 1], [], []>} : vector<16x32xbf16>, vector<32x32xbf16>, vector<16x32xf32> -> vector<16x32xf32>
    %461 = arith.truncf %460 : vector<16x32xf32> to vector<16x32xbf16>
    %cst_207 = arith.constant dense<0.000000e+00> : vector<16x64xf32>
    %462 = tpu.matmul %461, %454, %cst_207 {dimension_numbers = #tpu.dot_dimension_numbers<[1], [0], [0], [1], [0, 0, 1, 1], [], []>} : vector<16x32xbf16>, vector<32x64xbf16>, vector<16x64xf32> -> vector<16x64xf32>
    %463 = arith.addf %429, %458 : vector<16x64xf32>
    %464 = arith.addf %441, %462 : vector<16x64xf32>
    %c0_208 = arith.constant 0 : index
    %c0_209 = arith.constant 0 : index
    %465 = vector.load %arg15[%c0_208, %c0_209] : memref<1x64xf32, #tpu.memory_space<vmem>>, vector<1x64xf32>
    %c0_210 = arith.constant 0 : index
    %c0_211 = arith.constant 0 : index
    %466 = vector.load %arg16[%c0_210, %c0_211] : memref<1x64xf32, #tpu.memory_space<vmem>>, vector<1x64xf32>
    %cst_212 = arith.constant dense<0.000000e+00> : vector<64xf32>
    %467 = vector.multi_reduction <add>, %463, %cst_212 [0] : vector<16x64xf32> to vector<64xf32>
    %468 = vector.shape_cast %467 : vector<64xf32> to vector<1x64xf32>
    %cst_213 = arith.constant dense<0.000000e+00> : vector<64xf32>
    %469 = vector.multi_reduction <add>, %464, %cst_213 [0] : vector<16x64xf32> to vector<64xf32>
    %470 = vector.shape_cast %469 : vector<64xf32> to vector<1x64xf32>
    %471 = arith.addf %468, %470 : vector<1x64xf32>
    %cst_214 = arith.constant 3.125000e-02 : f32
    %472 = vector.broadcast %cst_214 : f32 to vector<1x64xf32>
    %473 = arith.mulf %471, %472 : vector<1x64xf32>
    %474 = vector.broadcast %473 : vector<1x64xf32> to vector<16x64xf32>
    %475 = arith.subf %463, %474 : vector<16x64xf32>
    %476 = arith.mulf %475, %475 : vector<16x64xf32>
    %cst_215 = arith.constant dense<0.000000e+00> : vector<64xf32>
    %477 = vector.multi_reduction <add>, %476, %cst_215 [0] : vector<16x64xf32> to vector<64xf32>
    %478 = vector.shape_cast %477 : vector<64xf32> to vector<1x64xf32>
    %479 = vector.broadcast %473 : vector<1x64xf32> to vector<16x64xf32>
    %480 = arith.subf %464, %479 : vector<16x64xf32>
    %481 = arith.mulf %480, %480 : vector<16x64xf32>
    %cst_216 = arith.constant dense<0.000000e+00> : vector<64xf32>
    %482 = vector.multi_reduction <add>, %481, %cst_216 [0] : vector<16x64xf32> to vector<64xf32>
    %483 = vector.shape_cast %482 : vector<64xf32> to vector<1x64xf32>
    %484 = arith.addf %478, %483 : vector<1x64xf32>
    %cst_217 = arith.constant 3.125000e-02 : f32
    %485 = vector.broadcast %cst_217 : f32 to vector<1x64xf32>
    %486 = arith.mulf %484, %485 : vector<1x64xf32>
    %cst_218 = arith.constant 9.99999974E-6 : f32
    %487 = vector.broadcast %cst_218 : f32 to vector<1x64xf32>
    %488 = arith.addf %486, %487 : vector<1x64xf32>
    %489 = math.rsqrt %488 : vector<1x64xf32>
    %490 = arith.mulf %465, %489 : vector<1x64xf32>
    %491 = arith.mulf %473, %490 : vector<1x64xf32>
    %492 = arith.subf %466, %491 : vector<1x64xf32>
    %493 = vector.broadcast %490 : vector<1x64xf32> to vector<16x64xf32>
    %494 = arith.mulf %463, %493 : vector<16x64xf32>
    %495 = vector.broadcast %492 : vector<1x64xf32> to vector<16x64xf32>
    %496 = arith.addf %494, %495 : vector<16x64xf32>
    %cst_219 = arith.constant 0.000000e+00 : f32
    %497 = vector.broadcast %cst_219 : f32 to vector<16x64xf32>
    %498 = arith.maximumf %496, %497 : vector<16x64xf32>
    %499 = vector.broadcast %490 : vector<1x64xf32> to vector<16x64xf32>
    %500 = arith.mulf %464, %499 : vector<16x64xf32>
    %501 = vector.broadcast %492 : vector<1x64xf32> to vector<16x64xf32>
    %502 = arith.addf %500, %501 : vector<16x64xf32>
    %cst_220 = arith.constant 0.000000e+00 : f32
    %503 = vector.broadcast %cst_220 : f32 to vector<16x64xf32>
    %504 = arith.maximumf %502, %503 : vector<16x64xf32>
    %505 = tpu.iota {dimensions = array<i32: 0>} : vector<8x16xi32>
    %506 = tpu.iota {dimensions = array<i32: 1>} : vector<8x16xi32>
    %c2_i32_221 = arith.constant 2 : i32
    %507 = vector.broadcast %c2_i32_221 : i32 to vector<8x16xi32>
    %508 = arith.muli %507, %505 : vector<8x16xi32>
    %c-1_i32_222 = arith.constant -1 : i32
    %509 = vector.broadcast %c-1_i32_222 : i32 to vector<8x16xi32>
    %510 = arith.addi %508, %509 : vector<8x16xi32>
    %511 = arith.cmpi eq, %506, %510 : vector<8x16xi32>
    %cst_223 = arith.constant 1.000000e+00 : f32
    %cst_224 = arith.constant 0.000000e+00 : f32
    %512 = vector.broadcast %cst_223 : f32 to vector<8x16xf32>
    %513 = vector.broadcast %cst_224 : f32 to vector<8x16xf32>
    %514 = arith.select %511, %512, %513 : vector<8x16xi1>, vector<8x16xf32>
    %515 = arith.truncf %514 : vector<8x16xf32> to vector<8x16xbf16>
    %516 = tpu.iota {dimensions = array<i32: 0>} : vector<8x16xi32>
    %517 = tpu.iota {dimensions = array<i32: 1>} : vector<8x16xi32>
    %c2_i32_225 = arith.constant 2 : i32
    %518 = vector.broadcast %c2_i32_225 : i32 to vector<8x16xi32>
    %519 = arith.muli %518, %516 : vector<8x16xi32>
    %c0_i32_226 = arith.constant 0 : i32
    %520 = vector.broadcast %c0_i32_226 : i32 to vector<8x16xi32>
    %521 = arith.addi %519, %520 : vector<8x16xi32>
    %522 = arith.cmpi eq, %517, %521 : vector<8x16xi32>
    %cst_227 = arith.constant 1.000000e+00 : f32
    %cst_228 = arith.constant 0.000000e+00 : f32
    %523 = vector.broadcast %cst_227 : f32 to vector<8x16xf32>
    %524 = vector.broadcast %cst_228 : f32 to vector<8x16xf32>
    %525 = arith.select %522, %523, %524 : vector<8x16xi1>, vector<8x16xf32>
    %526 = arith.truncf %525 : vector<8x16xf32> to vector<8x16xbf16>
    %527 = tpu.iota {dimensions = array<i32: 0>} : vector<8x16xi32>
    %528 = tpu.iota {dimensions = array<i32: 1>} : vector<8x16xi32>
    %c2_i32_229 = arith.constant 2 : i32
    %529 = vector.broadcast %c2_i32_229 : i32 to vector<8x16xi32>
    %530 = arith.muli %529, %527 : vector<8x16xi32>
    %c1_i32_230 = arith.constant 1 : i32
    %531 = vector.broadcast %c1_i32_230 : i32 to vector<8x16xi32>
    %532 = arith.addi %530, %531 : vector<8x16xi32>
    %533 = arith.cmpi eq, %528, %532 : vector<8x16xi32>
    %cst_231 = arith.constant 1.000000e+00 : f32
    %cst_232 = arith.constant 0.000000e+00 : f32
    %534 = vector.broadcast %cst_231 : f32 to vector<8x16xf32>
    %535 = vector.broadcast %cst_232 : f32 to vector<8x16xf32>
    %536 = arith.select %533, %534, %535 : vector<8x16xi1>, vector<8x16xf32>
    %537 = arith.truncf %536 : vector<8x16xf32> to vector<8x16xbf16>
    %c0_233 = arith.constant 0 : index
    %c0_234 = arith.constant 0 : index
    %c0_235 = arith.constant 0 : index
    %538 = vector.load %arg18[%c0_233, %c0_234, %c0_235] : memref<3x64x128xbf16, #tpu.memory_space<vmem>>, vector<1x64x128xbf16>
    %539 = vector.shape_cast %538 : vector<1x64x128xbf16> to vector<64x128xbf16>
    %c1_236 = arith.constant 1 : index
    %c0_237 = arith.constant 0 : index
    %c0_238 = arith.constant 0 : index
    %540 = vector.load %arg18[%c1_236, %c0_237, %c0_238] : memref<3x64x128xbf16, #tpu.memory_space<vmem>>, vector<1x64x128xbf16>
    %541 = vector.shape_cast %540 : vector<1x64x128xbf16> to vector<64x128xbf16>
    %c2_239 = arith.constant 2 : index
    %c0_240 = arith.constant 0 : index
    %c0_241 = arith.constant 0 : index
    %542 = vector.load %arg18[%c2_239, %c0_240, %c0_241] : memref<3x64x128xbf16, #tpu.memory_space<vmem>>, vector<1x64x128xbf16>
    %543 = vector.shape_cast %542 : vector<1x64x128xbf16> to vector<64x128xbf16>
    %544 = arith.truncf %498 : vector<16x64xf32> to vector<16x64xbf16>
    %cst_242 = arith.constant dense<0.000000e+00> : vector<8x64xf32>
    %545 = tpu.matmul %515, %544, %cst_242 {dimension_numbers = #tpu.dot_dimension_numbers<[1], [0], [0], [1], [0, 0, 1, 1], [], []>} : vector<8x16xbf16>, vector<16x64xbf16>, vector<8x64xf32> -> vector<8x64xf32>
    %546 = arith.truncf %545 : vector<8x64xf32> to vector<8x64xbf16>
    %cst_243 = arith.constant dense<0.000000e+00> : vector<8x128xf32>
    %547 = tpu.matmul %546, %539, %cst_243 {dimension_numbers = #tpu.dot_dimension_numbers<[1], [0], [0], [1], [0, 0, 1, 1], [], []>} : vector<8x64xbf16>, vector<64x128xbf16>, vector<8x128xf32> -> vector<8x128xf32>
    %cst_244 = arith.constant dense<0.000000e+00> : vector<8x64xf32>
    %548 = tpu.matmul %526, %544, %cst_244 {dimension_numbers = #tpu.dot_dimension_numbers<[1], [0], [0], [1], [0, 0, 1, 1], [], []>} : vector<8x16xbf16>, vector<16x64xbf16>, vector<8x64xf32> -> vector<8x64xf32>
    %549 = arith.truncf %548 : vector<8x64xf32> to vector<8x64xbf16>
    %cst_245 = arith.constant dense<0.000000e+00> : vector<8x128xf32>
    %550 = tpu.matmul %549, %541, %cst_245 {dimension_numbers = #tpu.dot_dimension_numbers<[1], [0], [0], [1], [0, 0, 1, 1], [], []>} : vector<8x64xbf16>, vector<64x128xbf16>, vector<8x128xf32> -> vector<8x128xf32>
    %551 = arith.addf %547, %550 : vector<8x128xf32>
    %cst_246 = arith.constant dense<0.000000e+00> : vector<8x64xf32>
    %552 = tpu.matmul %537, %544, %cst_246 {dimension_numbers = #tpu.dot_dimension_numbers<[1], [0], [0], [1], [0, 0, 1, 1], [], []>} : vector<8x16xbf16>, vector<16x64xbf16>, vector<8x64xf32> -> vector<8x64xf32>
    %553 = arith.truncf %552 : vector<8x64xf32> to vector<8x64xbf16>
    %cst_247 = arith.constant dense<0.000000e+00> : vector<8x128xf32>
    %554 = tpu.matmul %553, %543, %cst_247 {dimension_numbers = #tpu.dot_dimension_numbers<[1], [0], [0], [1], [0, 0, 1, 1], [], []>} : vector<8x64xbf16>, vector<64x128xbf16>, vector<8x128xf32> -> vector<8x128xf32>
    %555 = arith.addf %551, %554 : vector<8x128xf32>
    %556 = arith.truncf %504 : vector<16x64xf32> to vector<16x64xbf16>
    %cst_248 = arith.constant dense<0.000000e+00> : vector<8x64xf32>
    %557 = tpu.matmul %515, %556, %cst_248 {dimension_numbers = #tpu.dot_dimension_numbers<[1], [0], [0], [1], [0, 0, 1, 1], [], []>} : vector<8x16xbf16>, vector<16x64xbf16>, vector<8x64xf32> -> vector<8x64xf32>
    %558 = arith.truncf %557 : vector<8x64xf32> to vector<8x64xbf16>
    %cst_249 = arith.constant dense<0.000000e+00> : vector<8x128xf32>
    %559 = tpu.matmul %558, %539, %cst_249 {dimension_numbers = #tpu.dot_dimension_numbers<[1], [0], [0], [1], [0, 0, 1, 1], [], []>} : vector<8x64xbf16>, vector<64x128xbf16>, vector<8x128xf32> -> vector<8x128xf32>
    %cst_250 = arith.constant dense<0.000000e+00> : vector<8x64xf32>
    %560 = tpu.matmul %526, %556, %cst_250 {dimension_numbers = #tpu.dot_dimension_numbers<[1], [0], [0], [1], [0, 0, 1, 1], [], []>} : vector<8x16xbf16>, vector<16x64xbf16>, vector<8x64xf32> -> vector<8x64xf32>
    %561 = arith.truncf %560 : vector<8x64xf32> to vector<8x64xbf16>
    %cst_251 = arith.constant dense<0.000000e+00> : vector<8x128xf32>
    %562 = tpu.matmul %561, %541, %cst_251 {dimension_numbers = #tpu.dot_dimension_numbers<[1], [0], [0], [1], [0, 0, 1, 1], [], []>} : vector<8x64xbf16>, vector<64x128xbf16>, vector<8x128xf32> -> vector<8x128xf32>
    %563 = arith.addf %559, %562 : vector<8x128xf32>
    %cst_252 = arith.constant dense<0.000000e+00> : vector<8x64xf32>
    %564 = tpu.matmul %537, %556, %cst_252 {dimension_numbers = #tpu.dot_dimension_numbers<[1], [0], [0], [1], [0, 0, 1, 1], [], []>} : vector<8x16xbf16>, vector<16x64xbf16>, vector<8x64xf32> -> vector<8x64xf32>
    %565 = arith.truncf %564 : vector<8x64xf32> to vector<8x64xbf16>
    %cst_253 = arith.constant dense<0.000000e+00> : vector<8x128xf32>
    %566 = tpu.matmul %565, %543, %cst_253 {dimension_numbers = #tpu.dot_dimension_numbers<[1], [0], [0], [1], [0, 0, 1, 1], [], []>} : vector<8x64xbf16>, vector<64x128xbf16>, vector<8x128xf32> -> vector<8x128xf32>
    %567 = arith.addf %563, %566 : vector<8x128xf32>
    %c0_254 = arith.constant 0 : index
    %c0_255 = arith.constant 0 : index
    %568 = vector.load %arg19[%c0_254, %c0_255] : memref<1x128xf32, #tpu.memory_space<vmem>>, vector<1x128xf32>
    %c0_256 = arith.constant 0 : index
    %c0_257 = arith.constant 0 : index
    %569 = vector.load %arg20[%c0_256, %c0_257] : memref<1x128xf32, #tpu.memory_space<vmem>>, vector<1x128xf32>
    %cst_258 = arith.constant dense<0.000000e+00> : vector<128xf32>
    %570 = vector.multi_reduction <add>, %555, %cst_258 [0] : vector<8x128xf32> to vector<128xf32>
    %571 = vector.shape_cast %570 : vector<128xf32> to vector<1x128xf32>
    %cst_259 = arith.constant dense<0.000000e+00> : vector<128xf32>
    %572 = vector.multi_reduction <add>, %567, %cst_259 [0] : vector<8x128xf32> to vector<128xf32>
    %573 = vector.shape_cast %572 : vector<128xf32> to vector<1x128xf32>
    %574 = arith.addf %571, %573 : vector<1x128xf32>
    %cst_260 = arith.constant 6.250000e-02 : f32
    %575 = vector.broadcast %cst_260 : f32 to vector<1x128xf32>
    %576 = arith.mulf %574, %575 : vector<1x128xf32>
    %577 = vector.broadcast %576 : vector<1x128xf32> to vector<8x128xf32>
    %578 = arith.subf %555, %577 : vector<8x128xf32>
    %579 = arith.mulf %578, %578 : vector<8x128xf32>
    %cst_261 = arith.constant dense<0.000000e+00> : vector<128xf32>
    %580 = vector.multi_reduction <add>, %579, %cst_261 [0] : vector<8x128xf32> to vector<128xf32>
    %581 = vector.shape_cast %580 : vector<128xf32> to vector<1x128xf32>
    %582 = vector.broadcast %576 : vector<1x128xf32> to vector<8x128xf32>
    %583 = arith.subf %567, %582 : vector<8x128xf32>
    %584 = arith.mulf %583, %583 : vector<8x128xf32>
    %cst_262 = arith.constant dense<0.000000e+00> : vector<128xf32>
    %585 = vector.multi_reduction <add>, %584, %cst_262 [0] : vector<8x128xf32> to vector<128xf32>
    %586 = vector.shape_cast %585 : vector<128xf32> to vector<1x128xf32>
    %587 = arith.addf %581, %586 : vector<1x128xf32>
    %cst_263 = arith.constant 6.250000e-02 : f32
    %588 = vector.broadcast %cst_263 : f32 to vector<1x128xf32>
    %589 = arith.mulf %587, %588 : vector<1x128xf32>
    %cst_264 = arith.constant 9.99999974E-6 : f32
    %590 = vector.broadcast %cst_264 : f32 to vector<1x128xf32>
    %591 = arith.addf %589, %590 : vector<1x128xf32>
    %592 = math.rsqrt %591 : vector<1x128xf32>
    %593 = arith.mulf %568, %592 : vector<1x128xf32>
    %594 = arith.mulf %576, %593 : vector<1x128xf32>
    %595 = arith.subf %569, %594 : vector<1x128xf32>
    %596 = vector.broadcast %593 : vector<1x128xf32> to vector<8x128xf32>
    %597 = arith.mulf %555, %596 : vector<8x128xf32>
    %598 = vector.broadcast %595 : vector<1x128xf32> to vector<8x128xf32>
    %599 = arith.addf %597, %598 : vector<8x128xf32>
    %cst_265 = arith.constant 0.000000e+00 : f32
    %600 = vector.broadcast %cst_265 : f32 to vector<8x128xf32>
    %601 = arith.maximumf %599, %600 : vector<8x128xf32>
    %602 = vector.broadcast %593 : vector<1x128xf32> to vector<8x128xf32>
    %603 = arith.mulf %567, %602 : vector<8x128xf32>
    %604 = vector.broadcast %595 : vector<1x128xf32> to vector<8x128xf32>
    %605 = arith.addf %603, %604 : vector<8x128xf32>
    %cst_266 = arith.constant 0.000000e+00 : f32
    %606 = vector.broadcast %cst_266 : f32 to vector<8x128xf32>
    %607 = arith.maximumf %605, %606 : vector<8x128xf32>
    %608 = tpu.iota {dimensions = array<i32: 0>} : vector<8x8xi32>
    %609 = tpu.iota {dimensions = array<i32: 1>} : vector<8x8xi32>
    %c1_i32_267 = arith.constant 1 : i32
    %610 = vector.broadcast %c1_i32_267 : i32 to vector<8x8xi32>
    %611 = arith.muli %610, %608 : vector<8x8xi32>
    %c-1_i32_268 = arith.constant -1 : i32
    %612 = vector.broadcast %c-1_i32_268 : i32 to vector<8x8xi32>
    %613 = arith.addi %611, %612 : vector<8x8xi32>
    %614 = arith.cmpi eq, %609, %613 : vector<8x8xi32>
    %cst_269 = arith.constant 1.000000e+00 : f32
    %cst_270 = arith.constant 0.000000e+00 : f32
    %615 = vector.broadcast %cst_269 : f32 to vector<8x8xf32>
    %616 = vector.broadcast %cst_270 : f32 to vector<8x8xf32>
    %617 = arith.select %614, %615, %616 : vector<8x8xi1>, vector<8x8xf32>
    %618 = arith.truncf %617 : vector<8x8xf32> to vector<8x8xbf16>
    %619 = tpu.iota {dimensions = array<i32: 0>} : vector<8x8xi32>
    %620 = tpu.iota {dimensions = array<i32: 1>} : vector<8x8xi32>
    %c1_i32_271 = arith.constant 1 : i32
    %621 = vector.broadcast %c1_i32_271 : i32 to vector<8x8xi32>
    %622 = arith.muli %621, %619 : vector<8x8xi32>
    %c0_i32_272 = arith.constant 0 : i32
    %623 = vector.broadcast %c0_i32_272 : i32 to vector<8x8xi32>
    %624 = arith.addi %622, %623 : vector<8x8xi32>
    %625 = arith.cmpi eq, %620, %624 : vector<8x8xi32>
    %cst_273 = arith.constant 1.000000e+00 : f32
    %cst_274 = arith.constant 0.000000e+00 : f32
    %626 = vector.broadcast %cst_273 : f32 to vector<8x8xf32>
    %627 = vector.broadcast %cst_274 : f32 to vector<8x8xf32>
    %628 = arith.select %625, %626, %627 : vector<8x8xi1>, vector<8x8xf32>
    %629 = arith.truncf %628 : vector<8x8xf32> to vector<8x8xbf16>
    %630 = tpu.iota {dimensions = array<i32: 0>} : vector<8x8xi32>
    %631 = tpu.iota {dimensions = array<i32: 1>} : vector<8x8xi32>
    %c1_i32_275 = arith.constant 1 : i32
    %632 = vector.broadcast %c1_i32_275 : i32 to vector<8x8xi32>
    %633 = arith.muli %632, %630 : vector<8x8xi32>
    %c1_i32_276 = arith.constant 1 : i32
    %634 = vector.broadcast %c1_i32_276 : i32 to vector<8x8xi32>
    %635 = arith.addi %633, %634 : vector<8x8xi32>
    %636 = arith.cmpi eq, %631, %635 : vector<8x8xi32>
    %cst_277 = arith.constant 1.000000e+00 : f32
    %cst_278 = arith.constant 0.000000e+00 : f32
    %637 = vector.broadcast %cst_277 : f32 to vector<8x8xf32>
    %638 = vector.broadcast %cst_278 : f32 to vector<8x8xf32>
    %639 = arith.select %636, %637, %638 : vector<8x8xi1>, vector<8x8xf32>
    %640 = arith.truncf %639 : vector<8x8xf32> to vector<8x8xbf16>
    %c0_279 = arith.constant 0 : index
    %c0_280 = arith.constant 0 : index
    %c0_281 = arith.constant 0 : index
    %641 = vector.load %arg21[%c0_279, %c0_280, %c0_281] : memref<3x128x128xbf16, #tpu.memory_space<vmem>>, vector<1x128x128xbf16>
    %642 = vector.shape_cast %641 : vector<1x128x128xbf16> to vector<128x128xbf16>
    %c1_282 = arith.constant 1 : index
    %c0_283 = arith.constant 0 : index
    %c0_284 = arith.constant 0 : index
    %643 = vector.load %arg21[%c1_282, %c0_283, %c0_284] : memref<3x128x128xbf16, #tpu.memory_space<vmem>>, vector<1x128x128xbf16>
    %644 = vector.shape_cast %643 : vector<1x128x128xbf16> to vector<128x128xbf16>
    %c2_285 = arith.constant 2 : index
    %c0_286 = arith.constant 0 : index
    %c0_287 = arith.constant 0 : index
    %645 = vector.load %arg21[%c2_285, %c0_286, %c0_287] : memref<3x128x128xbf16, #tpu.memory_space<vmem>>, vector<1x128x128xbf16>
    %646 = vector.shape_cast %645 : vector<1x128x128xbf16> to vector<128x128xbf16>
    %647 = arith.truncf %601 : vector<8x128xf32> to vector<8x128xbf16>
    %cst_288 = arith.constant dense<0.000000e+00> : vector<8x128xf32>
    %648 = tpu.matmul %618, %647, %cst_288 {dimension_numbers = #tpu.dot_dimension_numbers<[1], [0], [0], [1], [0, 0, 1, 1], [], []>} : vector<8x8xbf16>, vector<8x128xbf16>, vector<8x128xf32> -> vector<8x128xf32>
    %649 = arith.truncf %648 : vector<8x128xf32> to vector<8x128xbf16>
    %cst_289 = arith.constant dense<0.000000e+00> : vector<8x128xf32>
    %650 = tpu.matmul %649, %642, %cst_289 {dimension_numbers = #tpu.dot_dimension_numbers<[1], [0], [0], [1], [0, 0, 1, 1], [], []>} : vector<8x128xbf16>, vector<128x128xbf16>, vector<8x128xf32> -> vector<8x128xf32>
    %cst_290 = arith.constant dense<0.000000e+00> : vector<8x128xf32>
    %651 = tpu.matmul %629, %647, %cst_290 {dimension_numbers = #tpu.dot_dimension_numbers<[1], [0], [0], [1], [0, 0, 1, 1], [], []>} : vector<8x8xbf16>, vector<8x128xbf16>, vector<8x128xf32> -> vector<8x128xf32>
    %652 = arith.truncf %651 : vector<8x128xf32> to vector<8x128xbf16>
    %cst_291 = arith.constant dense<0.000000e+00> : vector<8x128xf32>
    %653 = tpu.matmul %652, %644, %cst_291 {dimension_numbers = #tpu.dot_dimension_numbers<[1], [0], [0], [1], [0, 0, 1, 1], [], []>} : vector<8x128xbf16>, vector<128x128xbf16>, vector<8x128xf32> -> vector<8x128xf32>
    %654 = arith.addf %650, %653 : vector<8x128xf32>
    %cst_292 = arith.constant dense<0.000000e+00> : vector<8x128xf32>
    %655 = tpu.matmul %640, %647, %cst_292 {dimension_numbers = #tpu.dot_dimension_numbers<[1], [0], [0], [1], [0, 0, 1, 1], [], []>} : vector<8x8xbf16>, vector<8x128xbf16>, vector<8x128xf32> -> vector<8x128xf32>
    %656 = arith.truncf %655 : vector<8x128xf32> to vector<8x128xbf16>
    %cst_293 = arith.constant dense<0.000000e+00> : vector<8x128xf32>
    %657 = tpu.matmul %656, %646, %cst_293 {dimension_numbers = #tpu.dot_dimension_numbers<[1], [0], [0], [1], [0, 0, 1, 1], [], []>} : vector<8x128xbf16>, vector<128x128xbf16>, vector<8x128xf32> -> vector<8x128xf32>
    %658 = arith.addf %654, %657 : vector<8x128xf32>
    %659 = arith.truncf %607 : vector<8x128xf32> to vector<8x128xbf16>
    %cst_294 = arith.constant dense<0.000000e+00> : vector<8x128xf32>
    %660 = tpu.matmul %618, %659, %cst_294 {dimension_numbers = #tpu.dot_dimension_numbers<[1], [0], [0], [1], [0, 0, 1, 1], [], []>} : vector<8x8xbf16>, vector<8x128xbf16>, vector<8x128xf32> -> vector<8x128xf32>
    %661 = arith.truncf %660 : vector<8x128xf32> to vector<8x128xbf16>
    %cst_295 = arith.constant dense<0.000000e+00> : vector<8x128xf32>
    %662 = tpu.matmul %661, %642, %cst_295 {dimension_numbers = #tpu.dot_dimension_numbers<[1], [0], [0], [1], [0, 0, 1, 1], [], []>} : vector<8x128xbf16>, vector<128x128xbf16>, vector<8x128xf32> -> vector<8x128xf32>
    %cst_296 = arith.constant dense<0.000000e+00> : vector<8x128xf32>
    %663 = tpu.matmul %629, %659, %cst_296 {dimension_numbers = #tpu.dot_dimension_numbers<[1], [0], [0], [1], [0, 0, 1, 1], [], []>} : vector<8x8xbf16>, vector<8x128xbf16>, vector<8x128xf32> -> vector<8x128xf32>
    %664 = arith.truncf %663 : vector<8x128xf32> to vector<8x128xbf16>
    %cst_297 = arith.constant dense<0.000000e+00> : vector<8x128xf32>
    %665 = tpu.matmul %664, %644, %cst_297 {dimension_numbers = #tpu.dot_dimension_numbers<[1], [0], [0], [1], [0, 0, 1, 1], [], []>} : vector<8x128xbf16>, vector<128x128xbf16>, vector<8x128xf32> -> vector<8x128xf32>
    %666 = arith.addf %662, %665 : vector<8x128xf32>
    %cst_298 = arith.constant dense<0.000000e+00> : vector<8x128xf32>
    %667 = tpu.matmul %640, %659, %cst_298 {dimension_numbers = #tpu.dot_dimension_numbers<[1], [0], [0], [1], [0, 0, 1, 1], [], []>} : vector<8x8xbf16>, vector<8x128xbf16>, vector<8x128xf32> -> vector<8x128xf32>
    %668 = arith.truncf %667 : vector<8x128xf32> to vector<8x128xbf16>
    %cst_299 = arith.constant dense<0.000000e+00> : vector<8x128xf32>
    %669 = tpu.matmul %668, %646, %cst_299 {dimension_numbers = #tpu.dot_dimension_numbers<[1], [0], [0], [1], [0, 0, 1, 1], [], []>} : vector<8x128xbf16>, vector<128x128xbf16>, vector<8x128xf32> -> vector<8x128xf32>
    %670 = arith.addf %666, %669 : vector<8x128xf32>
    %671 = tpu.iota {dimensions = array<i32: 0>} : vector<8x16xi32>
    %672 = tpu.iota {dimensions = array<i32: 1>} : vector<8x16xi32>
    %c2_i32_300 = arith.constant 2 : i32
    %673 = vector.broadcast %c2_i32_300 : i32 to vector<8x16xi32>
    %674 = arith.muli %673, %671 : vector<8x16xi32>
    %c0_i32_301 = arith.constant 0 : i32
    %675 = vector.broadcast %c0_i32_301 : i32 to vector<8x16xi32>
    %676 = arith.addi %674, %675 : vector<8x16xi32>
    %677 = arith.cmpi eq, %672, %676 : vector<8x16xi32>
    %cst_302 = arith.constant 1.000000e+00 : f32
    %cst_303 = arith.constant 0.000000e+00 : f32
    %678 = vector.broadcast %cst_302 : f32 to vector<8x16xf32>
    %679 = vector.broadcast %cst_303 : f32 to vector<8x16xf32>
    %680 = arith.select %677, %678, %679 : vector<8x16xi1>, vector<8x16xf32>
    %681 = arith.truncf %680 : vector<8x16xf32> to vector<8x16xbf16>
    %c0_304 = arith.constant 0 : index
    %c0_305 = arith.constant 0 : index
    %c0_306 = arith.constant 0 : index
    %682 = vector.load %arg24[%c0_304, %c0_305, %c0_306] : memref<1x64x128xbf16, #tpu.memory_space<vmem>>, vector<1x64x128xbf16>
    %683 = vector.shape_cast %682 : vector<1x64x128xbf16> to vector<64x128xbf16>
    %684 = arith.truncf %498 : vector<16x64xf32> to vector<16x64xbf16>
    %cst_307 = arith.constant dense<0.000000e+00> : vector<8x64xf32>
    %685 = tpu.matmul %681, %684, %cst_307 {dimension_numbers = #tpu.dot_dimension_numbers<[1], [0], [0], [1], [0, 0, 1, 1], [], []>} : vector<8x16xbf16>, vector<16x64xbf16>, vector<8x64xf32> -> vector<8x64xf32>
    %686 = arith.truncf %685 : vector<8x64xf32> to vector<8x64xbf16>
    %cst_308 = arith.constant dense<0.000000e+00> : vector<8x128xf32>
    %687 = tpu.matmul %686, %683, %cst_308 {dimension_numbers = #tpu.dot_dimension_numbers<[1], [0], [0], [1], [0, 0, 1, 1], [], []>} : vector<8x64xbf16>, vector<64x128xbf16>, vector<8x128xf32> -> vector<8x128xf32>
    %688 = arith.truncf %504 : vector<16x64xf32> to vector<16x64xbf16>
    %cst_309 = arith.constant dense<0.000000e+00> : vector<8x64xf32>
    %689 = tpu.matmul %681, %688, %cst_309 {dimension_numbers = #tpu.dot_dimension_numbers<[1], [0], [0], [1], [0, 0, 1, 1], [], []>} : vector<8x16xbf16>, vector<16x64xbf16>, vector<8x64xf32> -> vector<8x64xf32>
    %690 = arith.truncf %689 : vector<8x64xf32> to vector<8x64xbf16>
    %cst_310 = arith.constant dense<0.000000e+00> : vector<8x128xf32>
    %691 = tpu.matmul %690, %683, %cst_310 {dimension_numbers = #tpu.dot_dimension_numbers<[1], [0], [0], [1], [0, 0, 1, 1], [], []>} : vector<8x64xbf16>, vector<64x128xbf16>, vector<8x128xf32> -> vector<8x128xf32>
    %692 = arith.addf %658, %687 : vector<8x128xf32>
    %693 = arith.addf %670, %691 : vector<8x128xf32>
    %c0_311 = arith.constant 0 : index
    %c0_312 = arith.constant 0 : index
    %694 = vector.load %arg22[%c0_311, %c0_312] : memref<1x128xf32, #tpu.memory_space<vmem>>, vector<1x128xf32>
    %c0_313 = arith.constant 0 : index
    %c0_314 = arith.constant 0 : index
    %695 = vector.load %arg23[%c0_313, %c0_314] : memref<1x128xf32, #tpu.memory_space<vmem>>, vector<1x128xf32>
    %cst_315 = arith.constant dense<0.000000e+00> : vector<128xf32>
    %696 = vector.multi_reduction <add>, %692, %cst_315 [0] : vector<8x128xf32> to vector<128xf32>
    %697 = vector.shape_cast %696 : vector<128xf32> to vector<1x128xf32>
    %cst_316 = arith.constant dense<0.000000e+00> : vector<128xf32>
    %698 = vector.multi_reduction <add>, %693, %cst_316 [0] : vector<8x128xf32> to vector<128xf32>
    %699 = vector.shape_cast %698 : vector<128xf32> to vector<1x128xf32>
    %700 = arith.addf %697, %699 : vector<1x128xf32>
    %cst_317 = arith.constant 6.250000e-02 : f32
    %701 = vector.broadcast %cst_317 : f32 to vector<1x128xf32>
    %702 = arith.mulf %700, %701 : vector<1x128xf32>
    %703 = vector.broadcast %702 : vector<1x128xf32> to vector<8x128xf32>
    %704 = arith.subf %692, %703 : vector<8x128xf32>
    %705 = arith.mulf %704, %704 : vector<8x128xf32>
    %cst_318 = arith.constant dense<0.000000e+00> : vector<128xf32>
    %706 = vector.multi_reduction <add>, %705, %cst_318 [0] : vector<8x128xf32> to vector<128xf32>
    %707 = vector.shape_cast %706 : vector<128xf32> to vector<1x128xf32>
    %708 = vector.broadcast %702 : vector<1x128xf32> to vector<8x128xf32>
    %709 = arith.subf %693, %708 : vector<8x128xf32>
    %710 = arith.mulf %709, %709 : vector<8x128xf32>
    %cst_319 = arith.constant dense<0.000000e+00> : vector<128xf32>
    %711 = vector.multi_reduction <add>, %710, %cst_319 [0] : vector<8x128xf32> to vector<128xf32>
    %712 = vector.shape_cast %711 : vector<128xf32> to vector<1x128xf32>
    %713 = arith.addf %707, %712 : vector<1x128xf32>
    %cst_320 = arith.constant 6.250000e-02 : f32
    %714 = vector.broadcast %cst_320 : f32 to vector<1x128xf32>
    %715 = arith.mulf %713, %714 : vector<1x128xf32>
    %cst_321 = arith.constant 9.99999974E-6 : f32
    %716 = vector.broadcast %cst_321 : f32 to vector<1x128xf32>
    %717 = arith.addf %715, %716 : vector<1x128xf32>
    %718 = math.rsqrt %717 : vector<1x128xf32>
    %719 = arith.mulf %694, %718 : vector<1x128xf32>
    %720 = arith.mulf %702, %719 : vector<1x128xf32>
    %721 = arith.subf %695, %720 : vector<1x128xf32>
    %722 = vector.broadcast %719 : vector<1x128xf32> to vector<8x128xf32>
    %723 = arith.mulf %692, %722 : vector<8x128xf32>
    %724 = vector.broadcast %721 : vector<1x128xf32> to vector<8x128xf32>
    %725 = arith.addf %723, %724 : vector<8x128xf32>
    %cst_322 = arith.constant 0.000000e+00 : f32
    %726 = vector.broadcast %cst_322 : f32 to vector<8x128xf32>
    %727 = arith.maximumf %725, %726 : vector<8x128xf32>
    %728 = vector.broadcast %719 : vector<1x128xf32> to vector<8x128xf32>
    %729 = arith.mulf %693, %728 : vector<8x128xf32>
    %730 = vector.broadcast %721 : vector<1x128xf32> to vector<8x128xf32>
    %731 = arith.addf %729, %730 : vector<8x128xf32>
    %cst_323 = arith.constant 0.000000e+00 : f32
    %732 = vector.broadcast %cst_323 : f32 to vector<8x128xf32>
    %733 = arith.maximumf %731, %732 : vector<8x128xf32>
    %734 = tpu.iota {dimensions = array<i32: 0>} : vector<4x8xi32>
    %735 = tpu.iota {dimensions = array<i32: 1>} : vector<4x8xi32>
    %c2_i32_324 = arith.constant 2 : i32
    %736 = vector.broadcast %c2_i32_324 : i32 to vector<4x8xi32>
    %737 = arith.muli %736, %734 : vector<4x8xi32>
    %c-1_i32_325 = arith.constant -1 : i32
    %738 = vector.broadcast %c-1_i32_325 : i32 to vector<4x8xi32>
    %739 = arith.addi %737, %738 : vector<4x8xi32>
    %740 = arith.cmpi eq, %735, %739 : vector<4x8xi32>
    %cst_326 = arith.constant 1.000000e+00 : f32
    %cst_327 = arith.constant 0.000000e+00 : f32
    %741 = vector.broadcast %cst_326 : f32 to vector<4x8xf32>
    %742 = vector.broadcast %cst_327 : f32 to vector<4x8xf32>
    %743 = arith.select %740, %741, %742 : vector<4x8xi1>, vector<4x8xf32>
    %744 = arith.truncf %743 : vector<4x8xf32> to vector<4x8xbf16>
    %745 = tpu.iota {dimensions = array<i32: 0>} : vector<4x8xi32>
    %746 = tpu.iota {dimensions = array<i32: 1>} : vector<4x8xi32>
    %c2_i32_328 = arith.constant 2 : i32
    %747 = vector.broadcast %c2_i32_328 : i32 to vector<4x8xi32>
    %748 = arith.muli %747, %745 : vector<4x8xi32>
    %c0_i32_329 = arith.constant 0 : i32
    %749 = vector.broadcast %c0_i32_329 : i32 to vector<4x8xi32>
    %750 = arith.addi %748, %749 : vector<4x8xi32>
    %751 = arith.cmpi eq, %746, %750 : vector<4x8xi32>
    %cst_330 = arith.constant 1.000000e+00 : f32
    %cst_331 = arith.constant 0.000000e+00 : f32
    %752 = vector.broadcast %cst_330 : f32 to vector<4x8xf32>
    %753 = vector.broadcast %cst_331 : f32 to vector<4x8xf32>
    %754 = arith.select %751, %752, %753 : vector<4x8xi1>, vector<4x8xf32>
    %755 = arith.truncf %754 : vector<4x8xf32> to vector<4x8xbf16>
    %756 = tpu.iota {dimensions = array<i32: 0>} : vector<4x8xi32>
    %757 = tpu.iota {dimensions = array<i32: 1>} : vector<4x8xi32>
    %c2_i32_332 = arith.constant 2 : i32
    %758 = vector.broadcast %c2_i32_332 : i32 to vector<4x8xi32>
    %759 = arith.muli %758, %756 : vector<4x8xi32>
    %c1_i32_333 = arith.constant 1 : i32
    %760 = vector.broadcast %c1_i32_333 : i32 to vector<4x8xi32>
    %761 = arith.addi %759, %760 : vector<4x8xi32>
    %762 = arith.cmpi eq, %757, %761 : vector<4x8xi32>
    %cst_334 = arith.constant 1.000000e+00 : f32
    %cst_335 = arith.constant 0.000000e+00 : f32
    %763 = vector.broadcast %cst_334 : f32 to vector<4x8xf32>
    %764 = vector.broadcast %cst_335 : f32 to vector<4x8xf32>
    %765 = arith.select %762, %763, %764 : vector<4x8xi1>, vector<4x8xf32>
    %766 = arith.truncf %765 : vector<4x8xf32> to vector<4x8xbf16>
    %c0_336 = arith.constant 0 : index
    %c0_337 = arith.constant 0 : index
    %c0_338 = arith.constant 0 : index
    %767 = vector.load %arg25[%c0_336, %c0_337, %c0_338] : memref<3x128x256xbf16, #tpu.memory_space<vmem>>, vector<1x128x256xbf16>
    %768 = vector.shape_cast %767 : vector<1x128x256xbf16> to vector<128x256xbf16>
    %c1_339 = arith.constant 1 : index
    %c0_340 = arith.constant 0 : index
    %c0_341 = arith.constant 0 : index
    %769 = vector.load %arg25[%c1_339, %c0_340, %c0_341] : memref<3x128x256xbf16, #tpu.memory_space<vmem>>, vector<1x128x256xbf16>
    %770 = vector.shape_cast %769 : vector<1x128x256xbf16> to vector<128x256xbf16>
    %c2_342 = arith.constant 2 : index
    %c0_343 = arith.constant 0 : index
    %c0_344 = arith.constant 0 : index
    %771 = vector.load %arg25[%c2_342, %c0_343, %c0_344] : memref<3x128x256xbf16, #tpu.memory_space<vmem>>, vector<1x128x256xbf16>
    %772 = vector.shape_cast %771 : vector<1x128x256xbf16> to vector<128x256xbf16>
    %773 = arith.truncf %727 : vector<8x128xf32> to vector<8x128xbf16>
    %cst_345 = arith.constant dense<0.000000e+00> : vector<4x128xf32>
    %774 = tpu.matmul %744, %773, %cst_345 {dimension_numbers = #tpu.dot_dimension_numbers<[1], [0], [0], [1], [0, 0, 1, 1], [], []>} : vector<4x8xbf16>, vector<8x128xbf16>, vector<4x128xf32> -> vector<4x128xf32>
    %775 = arith.truncf %774 : vector<4x128xf32> to vector<4x128xbf16>
    %cst_346 = arith.constant dense<0.000000e+00> : vector<4x256xf32>
    %776 = tpu.matmul %775, %768, %cst_346 {dimension_numbers = #tpu.dot_dimension_numbers<[1], [0], [0], [1], [0, 0, 1, 1], [], []>} : vector<4x128xbf16>, vector<128x256xbf16>, vector<4x256xf32> -> vector<4x256xf32>
    %cst_347 = arith.constant dense<0.000000e+00> : vector<4x128xf32>
    %777 = tpu.matmul %755, %773, %cst_347 {dimension_numbers = #tpu.dot_dimension_numbers<[1], [0], [0], [1], [0, 0, 1, 1], [], []>} : vector<4x8xbf16>, vector<8x128xbf16>, vector<4x128xf32> -> vector<4x128xf32>
    %778 = arith.truncf %777 : vector<4x128xf32> to vector<4x128xbf16>
    %cst_348 = arith.constant dense<0.000000e+00> : vector<4x256xf32>
    %779 = tpu.matmul %778, %770, %cst_348 {dimension_numbers = #tpu.dot_dimension_numbers<[1], [0], [0], [1], [0, 0, 1, 1], [], []>} : vector<4x128xbf16>, vector<128x256xbf16>, vector<4x256xf32> -> vector<4x256xf32>
    %780 = arith.addf %776, %779 : vector<4x256xf32>
    %cst_349 = arith.constant dense<0.000000e+00> : vector<4x128xf32>
    %781 = tpu.matmul %766, %773, %cst_349 {dimension_numbers = #tpu.dot_dimension_numbers<[1], [0], [0], [1], [0, 0, 1, 1], [], []>} : vector<4x8xbf16>, vector<8x128xbf16>, vector<4x128xf32> -> vector<4x128xf32>
    %782 = arith.truncf %781 : vector<4x128xf32> to vector<4x128xbf16>
    %cst_350 = arith.constant dense<0.000000e+00> : vector<4x256xf32>
    %783 = tpu.matmul %782, %772, %cst_350 {dimension_numbers = #tpu.dot_dimension_numbers<[1], [0], [0], [1], [0, 0, 1, 1], [], []>} : vector<4x128xbf16>, vector<128x256xbf16>, vector<4x256xf32> -> vector<4x256xf32>
    %784 = arith.addf %780, %783 : vector<4x256xf32>
    %785 = arith.truncf %733 : vector<8x128xf32> to vector<8x128xbf16>
    %cst_351 = arith.constant dense<0.000000e+00> : vector<4x128xf32>
    %786 = tpu.matmul %744, %785, %cst_351 {dimension_numbers = #tpu.dot_dimension_numbers<[1], [0], [0], [1], [0, 0, 1, 1], [], []>} : vector<4x8xbf16>, vector<8x128xbf16>, vector<4x128xf32> -> vector<4x128xf32>
    %787 = arith.truncf %786 : vector<4x128xf32> to vector<4x128xbf16>
    %cst_352 = arith.constant dense<0.000000e+00> : vector<4x256xf32>
    %788 = tpu.matmul %787, %768, %cst_352 {dimension_numbers = #tpu.dot_dimension_numbers<[1], [0], [0], [1], [0, 0, 1, 1], [], []>} : vector<4x128xbf16>, vector<128x256xbf16>, vector<4x256xf32> -> vector<4x256xf32>
    %cst_353 = arith.constant dense<0.000000e+00> : vector<4x128xf32>
    %789 = tpu.matmul %755, %785, %cst_353 {dimension_numbers = #tpu.dot_dimension_numbers<[1], [0], [0], [1], [0, 0, 1, 1], [], []>} : vector<4x8xbf16>, vector<8x128xbf16>, vector<4x128xf32> -> vector<4x128xf32>
    %790 = arith.truncf %789 : vector<4x128xf32> to vector<4x128xbf16>
    %cst_354 = arith.constant dense<0.000000e+00> : vector<4x256xf32>
    %791 = tpu.matmul %790, %770, %cst_354 {dimension_numbers = #tpu.dot_dimension_numbers<[1], [0], [0], [1], [0, 0, 1, 1], [], []>} : vector<4x128xbf16>, vector<128x256xbf16>, vector<4x256xf32> -> vector<4x256xf32>
    %792 = arith.addf %788, %791 : vector<4x256xf32>
    %cst_355 = arith.constant dense<0.000000e+00> : vector<4x128xf32>
    %793 = tpu.matmul %766, %785, %cst_355 {dimension_numbers = #tpu.dot_dimension_numbers<[1], [0], [0], [1], [0, 0, 1, 1], [], []>} : vector<4x8xbf16>, vector<8x128xbf16>, vector<4x128xf32> -> vector<4x128xf32>
    %794 = arith.truncf %793 : vector<4x128xf32> to vector<4x128xbf16>
    %cst_356 = arith.constant dense<0.000000e+00> : vector<4x256xf32>
    %795 = tpu.matmul %794, %772, %cst_356 {dimension_numbers = #tpu.dot_dimension_numbers<[1], [0], [0], [1], [0, 0, 1, 1], [], []>} : vector<4x128xbf16>, vector<128x256xbf16>, vector<4x256xf32> -> vector<4x256xf32>
    %796 = arith.addf %792, %795 : vector<4x256xf32>
    %c0_357 = arith.constant 0 : index
    %c0_358 = arith.constant 0 : index
    %797 = vector.load %arg26[%c0_357, %c0_358] : memref<1x256xf32, #tpu.memory_space<vmem>>, vector<1x256xf32>
    %c0_359 = arith.constant 0 : index
    %c0_360 = arith.constant 0 : index
    %798 = vector.load %arg27[%c0_359, %c0_360] : memref<1x256xf32, #tpu.memory_space<vmem>>, vector<1x256xf32>
    %cst_361 = arith.constant dense<0.000000e+00> : vector<256xf32>
    %799 = vector.multi_reduction <add>, %784, %cst_361 [0] : vector<4x256xf32> to vector<256xf32>
    %800 = vector.shape_cast %799 : vector<256xf32> to vector<1x256xf32>
    %cst_362 = arith.constant dense<0.000000e+00> : vector<256xf32>
    %801 = vector.multi_reduction <add>, %796, %cst_362 [0] : vector<4x256xf32> to vector<256xf32>
    %802 = vector.shape_cast %801 : vector<256xf32> to vector<1x256xf32>
    %803 = arith.addf %800, %802 : vector<1x256xf32>
    %cst_363 = arith.constant 1.250000e-01 : f32
    %804 = vector.broadcast %cst_363 : f32 to vector<1x256xf32>
    %805 = arith.mulf %803, %804 : vector<1x256xf32>
    %806 = vector.broadcast %805 : vector<1x256xf32> to vector<4x256xf32>
    %807 = arith.subf %784, %806 : vector<4x256xf32>
    %808 = arith.mulf %807, %807 : vector<4x256xf32>
    %cst_364 = arith.constant dense<0.000000e+00> : vector<256xf32>
    %809 = vector.multi_reduction <add>, %808, %cst_364 [0] : vector<4x256xf32> to vector<256xf32>
    %810 = vector.shape_cast %809 : vector<256xf32> to vector<1x256xf32>
    %811 = vector.broadcast %805 : vector<1x256xf32> to vector<4x256xf32>
    %812 = arith.subf %796, %811 : vector<4x256xf32>
    %813 = arith.mulf %812, %812 : vector<4x256xf32>
    %cst_365 = arith.constant dense<0.000000e+00> : vector<256xf32>
    %814 = vector.multi_reduction <add>, %813, %cst_365 [0] : vector<4x256xf32> to vector<256xf32>
    %815 = vector.shape_cast %814 : vector<256xf32> to vector<1x256xf32>
    %816 = arith.addf %810, %815 : vector<1x256xf32>
    %cst_366 = arith.constant 1.250000e-01 : f32
    %817 = vector.broadcast %cst_366 : f32 to vector<1x256xf32>
    %818 = arith.mulf %816, %817 : vector<1x256xf32>
    %cst_367 = arith.constant 9.99999974E-6 : f32
    %819 = vector.broadcast %cst_367 : f32 to vector<1x256xf32>
    %820 = arith.addf %818, %819 : vector<1x256xf32>
    %821 = math.rsqrt %820 : vector<1x256xf32>
    %822 = arith.mulf %797, %821 : vector<1x256xf32>
    %823 = arith.mulf %805, %822 : vector<1x256xf32>
    %824 = arith.subf %798, %823 : vector<1x256xf32>
    %825 = vector.broadcast %822 : vector<1x256xf32> to vector<4x256xf32>
    %826 = arith.mulf %784, %825 : vector<4x256xf32>
    %827 = vector.broadcast %824 : vector<1x256xf32> to vector<4x256xf32>
    %828 = arith.addf %826, %827 : vector<4x256xf32>
    %cst_368 = arith.constant 0.000000e+00 : f32
    %829 = vector.broadcast %cst_368 : f32 to vector<4x256xf32>
    %830 = arith.maximumf %828, %829 : vector<4x256xf32>
    %831 = vector.broadcast %822 : vector<1x256xf32> to vector<4x256xf32>
    %832 = arith.mulf %796, %831 : vector<4x256xf32>
    %833 = vector.broadcast %824 : vector<1x256xf32> to vector<4x256xf32>
    %834 = arith.addf %832, %833 : vector<4x256xf32>
    %cst_369 = arith.constant 0.000000e+00 : f32
    %835 = vector.broadcast %cst_369 : f32 to vector<4x256xf32>
    %836 = arith.maximumf %834, %835 : vector<4x256xf32>
    %837 = tpu.iota {dimensions = array<i32: 0>} : vector<4x4xi32>
    %838 = tpu.iota {dimensions = array<i32: 1>} : vector<4x4xi32>
    %c1_i32_370 = arith.constant 1 : i32
    %839 = vector.broadcast %c1_i32_370 : i32 to vector<4x4xi32>
    %840 = arith.muli %839, %837 : vector<4x4xi32>
    %c-1_i32_371 = arith.constant -1 : i32
    %841 = vector.broadcast %c-1_i32_371 : i32 to vector<4x4xi32>
    %842 = arith.addi %840, %841 : vector<4x4xi32>
    %843 = arith.cmpi eq, %838, %842 : vector<4x4xi32>
    %cst_372 = arith.constant 1.000000e+00 : f32
    %cst_373 = arith.constant 0.000000e+00 : f32
    %844 = vector.broadcast %cst_372 : f32 to vector<4x4xf32>
    %845 = vector.broadcast %cst_373 : f32 to vector<4x4xf32>
    %846 = arith.select %843, %844, %845 : vector<4x4xi1>, vector<4x4xf32>
    %847 = arith.truncf %846 : vector<4x4xf32> to vector<4x4xbf16>
    %848 = tpu.iota {dimensions = array<i32: 0>} : vector<4x4xi32>
    %849 = tpu.iota {dimensions = array<i32: 1>} : vector<4x4xi32>
    %c1_i32_374 = arith.constant 1 : i32
    %850 = vector.broadcast %c1_i32_374 : i32 to vector<4x4xi32>
    %851 = arith.muli %850, %848 : vector<4x4xi32>
    %c0_i32_375 = arith.constant 0 : i32
    %852 = vector.broadcast %c0_i32_375 : i32 to vector<4x4xi32>
    %853 = arith.addi %851, %852 : vector<4x4xi32>
    %854 = arith.cmpi eq, %849, %853 : vector<4x4xi32>
    %cst_376 = arith.constant 1.000000e+00 : f32
    %cst_377 = arith.constant 0.000000e+00 : f32
    %855 = vector.broadcast %cst_376 : f32 to vector<4x4xf32>
    %856 = vector.broadcast %cst_377 : f32 to vector<4x4xf32>
    %857 = arith.select %854, %855, %856 : vector<4x4xi1>, vector<4x4xf32>
    %858 = arith.truncf %857 : vector<4x4xf32> to vector<4x4xbf16>
    %859 = tpu.iota {dimensions = array<i32: 0>} : vector<4x4xi32>
    %860 = tpu.iota {dimensions = array<i32: 1>} : vector<4x4xi32>
    %c1_i32_378 = arith.constant 1 : i32
    %861 = vector.broadcast %c1_i32_378 : i32 to vector<4x4xi32>
    %862 = arith.muli %861, %859 : vector<4x4xi32>
    %c1_i32_379 = arith.constant 1 : i32
    %863 = vector.broadcast %c1_i32_379 : i32 to vector<4x4xi32>
    %864 = arith.addi %862, %863 : vector<4x4xi32>
    %865 = arith.cmpi eq, %860, %864 : vector<4x4xi32>
    %cst_380 = arith.constant 1.000000e+00 : f32
    %cst_381 = arith.constant 0.000000e+00 : f32
    %866 = vector.broadcast %cst_380 : f32 to vector<4x4xf32>
    %867 = vector.broadcast %cst_381 : f32 to vector<4x4xf32>
    %868 = arith.select %865, %866, %867 : vector<4x4xi1>, vector<4x4xf32>
    %869 = arith.truncf %868 : vector<4x4xf32> to vector<4x4xbf16>
    %c0_382 = arith.constant 0 : index
    %c0_383 = arith.constant 0 : index
    %c0_384 = arith.constant 0 : index
    %870 = vector.load %arg28[%c0_382, %c0_383, %c0_384] : memref<3x256x256xbf16, #tpu.memory_space<vmem>>, vector<1x256x256xbf16>
    %871 = vector.shape_cast %870 : vector<1x256x256xbf16> to vector<256x256xbf16>
    %c1_385 = arith.constant 1 : index
    %c0_386 = arith.constant 0 : index
    %c0_387 = arith.constant 0 : index
    %872 = vector.load %arg28[%c1_385, %c0_386, %c0_387] : memref<3x256x256xbf16, #tpu.memory_space<vmem>>, vector<1x256x256xbf16>
    %873 = vector.shape_cast %872 : vector<1x256x256xbf16> to vector<256x256xbf16>
    %c2_388 = arith.constant 2 : index
    %c0_389 = arith.constant 0 : index
    %c0_390 = arith.constant 0 : index
    %874 = vector.load %arg28[%c2_388, %c0_389, %c0_390] : memref<3x256x256xbf16, #tpu.memory_space<vmem>>, vector<1x256x256xbf16>
    %875 = vector.shape_cast %874 : vector<1x256x256xbf16> to vector<256x256xbf16>
    %876 = arith.truncf %830 : vector<4x256xf32> to vector<4x256xbf16>
    %cst_391 = arith.constant dense<0.000000e+00> : vector<4x256xf32>
    %877 = tpu.matmul %847, %876, %cst_391 {dimension_numbers = #tpu.dot_dimension_numbers<[1], [0], [0], [1], [0, 0, 1, 1], [], []>} : vector<4x4xbf16>, vector<4x256xbf16>, vector<4x256xf32> -> vector<4x256xf32>
    %878 = arith.truncf %877 : vector<4x256xf32> to vector<4x256xbf16>
    %cst_392 = arith.constant dense<0.000000e+00> : vector<4x256xf32>
    %879 = tpu.matmul %878, %871, %cst_392 {dimension_numbers = #tpu.dot_dimension_numbers<[1], [0], [0], [1], [0, 0, 1, 1], [], []>} : vector<4x256xbf16>, vector<256x256xbf16>, vector<4x256xf32> -> vector<4x256xf32>
    %cst_393 = arith.constant dense<0.000000e+00> : vector<4x256xf32>
    %880 = tpu.matmul %858, %876, %cst_393 {dimension_numbers = #tpu.dot_dimension_numbers<[1], [0], [0], [1], [0, 0, 1, 1], [], []>} : vector<4x4xbf16>, vector<4x256xbf16>, vector<4x256xf32> -> vector<4x256xf32>
    %881 = arith.truncf %880 : vector<4x256xf32> to vector<4x256xbf16>
    %cst_394 = arith.constant dense<0.000000e+00> : vector<4x256xf32>
    %882 = tpu.matmul %881, %873, %cst_394 {dimension_numbers = #tpu.dot_dimension_numbers<[1], [0], [0], [1], [0, 0, 1, 1], [], []>} : vector<4x256xbf16>, vector<256x256xbf16>, vector<4x256xf32> -> vector<4x256xf32>
    %883 = arith.addf %879, %882 : vector<4x256xf32>
    %cst_395 = arith.constant dense<0.000000e+00> : vector<4x256xf32>
    %884 = tpu.matmul %869, %876, %cst_395 {dimension_numbers = #tpu.dot_dimension_numbers<[1], [0], [0], [1], [0, 0, 1, 1], [], []>} : vector<4x4xbf16>, vector<4x256xbf16>, vector<4x256xf32> -> vector<4x256xf32>
    %885 = arith.truncf %884 : vector<4x256xf32> to vector<4x256xbf16>
    %cst_396 = arith.constant dense<0.000000e+00> : vector<4x256xf32>
    %886 = tpu.matmul %885, %875, %cst_396 {dimension_numbers = #tpu.dot_dimension_numbers<[1], [0], [0], [1], [0, 0, 1, 1], [], []>} : vector<4x256xbf16>, vector<256x256xbf16>, vector<4x256xf32> -> vector<4x256xf32>
    %887 = arith.addf %883, %886 : vector<4x256xf32>
    %888 = arith.truncf %836 : vector<4x256xf32> to vector<4x256xbf16>
    %cst_397 = arith.constant dense<0.000000e+00> : vector<4x256xf32>
    %889 = tpu.matmul %847, %888, %cst_397 {dimension_numbers = #tpu.dot_dimension_numbers<[1], [0], [0], [1], [0, 0, 1, 1], [], []>} : vector<4x4xbf16>, vector<4x256xbf16>, vector<4x256xf32> -> vector<4x256xf32>
    %890 = arith.truncf %889 : vector<4x256xf32> to vector<4x256xbf16>
    %cst_398 = arith.constant dense<0.000000e+00> : vector<4x256xf32>
    %891 = tpu.matmul %890, %871, %cst_398 {dimension_numbers = #tpu.dot_dimension_numbers<[1], [0], [0], [1], [0, 0, 1, 1], [], []>} : vector<4x256xbf16>, vector<256x256xbf16>, vector<4x256xf32> -> vector<4x256xf32>
    %cst_399 = arith.constant dense<0.000000e+00> : vector<4x256xf32>
    %892 = tpu.matmul %858, %888, %cst_399 {dimension_numbers = #tpu.dot_dimension_numbers<[1], [0], [0], [1], [0, 0, 1, 1], [], []>} : vector<4x4xbf16>, vector<4x256xbf16>, vector<4x256xf32> -> vector<4x256xf32>
    %893 = arith.truncf %892 : vector<4x256xf32> to vector<4x256xbf16>
    %cst_400 = arith.constant dense<0.000000e+00> : vector<4x256xf32>
    %894 = tpu.matmul %893, %873, %cst_400 {dimension_numbers = #tpu.dot_dimension_numbers<[1], [0], [0], [1], [0, 0, 1, 1], [], []>} : vector<4x256xbf16>, vector<256x256xbf16>, vector<4x256xf32> -> vector<4x256xf32>
    %895 = arith.addf %891, %894 : vector<4x256xf32>
    %cst_401 = arith.constant dense<0.000000e+00> : vector<4x256xf32>
    %896 = tpu.matmul %869, %888, %cst_401 {dimension_numbers = #tpu.dot_dimension_numbers<[1], [0], [0], [1], [0, 0, 1, 1], [], []>} : vector<4x4xbf16>, vector<4x256xbf16>, vector<4x256xf32> -> vector<4x256xf32>
    %897 = arith.truncf %896 : vector<4x256xf32> to vector<4x256xbf16>
    %cst_402 = arith.constant dense<0.000000e+00> : vector<4x256xf32>
    %898 = tpu.matmul %897, %875, %cst_402 {dimension_numbers = #tpu.dot_dimension_numbers<[1], [0], [0], [1], [0, 0, 1, 1], [], []>} : vector<4x256xbf16>, vector<256x256xbf16>, vector<4x256xf32> -> vector<4x256xf32>
    %899 = arith.addf %895, %898 : vector<4x256xf32>
    %900 = tpu.iota {dimensions = array<i32: 0>} : vector<4x8xi32>
    %901 = tpu.iota {dimensions = array<i32: 1>} : vector<4x8xi32>
    %c2_i32_403 = arith.constant 2 : i32
    %902 = vector.broadcast %c2_i32_403 : i32 to vector<4x8xi32>
    %903 = arith.muli %902, %900 : vector<4x8xi32>
    %c0_i32_404 = arith.constant 0 : i32
    %904 = vector.broadcast %c0_i32_404 : i32 to vector<4x8xi32>
    %905 = arith.addi %903, %904 : vector<4x8xi32>
    %906 = arith.cmpi eq, %901, %905 : vector<4x8xi32>
    %cst_405 = arith.constant 1.000000e+00 : f32
    %cst_406 = arith.constant 0.000000e+00 : f32
    %907 = vector.broadcast %cst_405 : f32 to vector<4x8xf32>
    %908 = vector.broadcast %cst_406 : f32 to vector<4x8xf32>
    %909 = arith.select %906, %907, %908 : vector<4x8xi1>, vector<4x8xf32>
    %910 = arith.truncf %909 : vector<4x8xf32> to vector<4x8xbf16>
    %c0_407 = arith.constant 0 : index
    %c0_408 = arith.constant 0 : index
    %c0_409 = arith.constant 0 : index
    %911 = vector.load %arg31[%c0_407, %c0_408, %c0_409] : memref<1x128x256xbf16, #tpu.memory_space<vmem>>, vector<1x128x256xbf16>
    %912 = vector.shape_cast %911 : vector<1x128x256xbf16> to vector<128x256xbf16>
    %913 = arith.truncf %727 : vector<8x128xf32> to vector<8x128xbf16>
    %cst_410 = arith.constant dense<0.000000e+00> : vector<4x128xf32>
    %914 = tpu.matmul %910, %913, %cst_410 {dimension_numbers = #tpu.dot_dimension_numbers<[1], [0], [0], [1], [0, 0, 1, 1], [], []>} : vector<4x8xbf16>, vector<8x128xbf16>, vector<4x128xf32> -> vector<4x128xf32>
    %915 = arith.truncf %914 : vector<4x128xf32> to vector<4x128xbf16>
    %cst_411 = arith.constant dense<0.000000e+00> : vector<4x256xf32>
    %916 = tpu.matmul %915, %912, %cst_411 {dimension_numbers = #tpu.dot_dimension_numbers<[1], [0], [0], [1], [0, 0, 1, 1], [], []>} : vector<4x128xbf16>, vector<128x256xbf16>, vector<4x256xf32> -> vector<4x256xf32>
    %917 = arith.truncf %733 : vector<8x128xf32> to vector<8x128xbf16>
    %cst_412 = arith.constant dense<0.000000e+00> : vector<4x128xf32>
    %918 = tpu.matmul %910, %917, %cst_412 {dimension_numbers = #tpu.dot_dimension_numbers<[1], [0], [0], [1], [0, 0, 1, 1], [], []>} : vector<4x8xbf16>, vector<8x128xbf16>, vector<4x128xf32> -> vector<4x128xf32>
    %919 = arith.truncf %918 : vector<4x128xf32> to vector<4x128xbf16>
    %cst_413 = arith.constant dense<0.000000e+00> : vector<4x256xf32>
    %920 = tpu.matmul %919, %912, %cst_413 {dimension_numbers = #tpu.dot_dimension_numbers<[1], [0], [0], [1], [0, 0, 1, 1], [], []>} : vector<4x128xbf16>, vector<128x256xbf16>, vector<4x256xf32> -> vector<4x256xf32>
    %921 = arith.addf %887, %916 : vector<4x256xf32>
    %922 = arith.addf %899, %920 : vector<4x256xf32>
    %c0_414 = arith.constant 0 : index
    %c0_415 = arith.constant 0 : index
    %923 = vector.load %arg29[%c0_414, %c0_415] : memref<1x256xf32, #tpu.memory_space<vmem>>, vector<1x256xf32>
    %c0_416 = arith.constant 0 : index
    %c0_417 = arith.constant 0 : index
    %924 = vector.load %arg30[%c0_416, %c0_417] : memref<1x256xf32, #tpu.memory_space<vmem>>, vector<1x256xf32>
    %cst_418 = arith.constant dense<0.000000e+00> : vector<256xf32>
    %925 = vector.multi_reduction <add>, %921, %cst_418 [0] : vector<4x256xf32> to vector<256xf32>
    %926 = vector.shape_cast %925 : vector<256xf32> to vector<1x256xf32>
    %cst_419 = arith.constant dense<0.000000e+00> : vector<256xf32>
    %927 = vector.multi_reduction <add>, %922, %cst_419 [0] : vector<4x256xf32> to vector<256xf32>
    %928 = vector.shape_cast %927 : vector<256xf32> to vector<1x256xf32>
    %929 = arith.addf %926, %928 : vector<1x256xf32>
    %cst_420 = arith.constant 1.250000e-01 : f32
    %930 = vector.broadcast %cst_420 : f32 to vector<1x256xf32>
    %931 = arith.mulf %929, %930 : vector<1x256xf32>
    %932 = vector.broadcast %931 : vector<1x256xf32> to vector<4x256xf32>
    %933 = arith.subf %921, %932 : vector<4x256xf32>
    %934 = arith.mulf %933, %933 : vector<4x256xf32>
    %cst_421 = arith.constant dense<0.000000e+00> : vector<256xf32>
    %935 = vector.multi_reduction <add>, %934, %cst_421 [0] : vector<4x256xf32> to vector<256xf32>
    %936 = vector.shape_cast %935 : vector<256xf32> to vector<1x256xf32>
    %937 = vector.broadcast %931 : vector<1x256xf32> to vector<4x256xf32>
    %938 = arith.subf %922, %937 : vector<4x256xf32>
    %939 = arith.mulf %938, %938 : vector<4x256xf32>
    %cst_422 = arith.constant dense<0.000000e+00> : vector<256xf32>
    %940 = vector.multi_reduction <add>, %939, %cst_422 [0] : vector<4x256xf32> to vector<256xf32>
    %941 = vector.shape_cast %940 : vector<256xf32> to vector<1x256xf32>
    %942 = arith.addf %936, %941 : vector<1x256xf32>
    %cst_423 = arith.constant 1.250000e-01 : f32
    %943 = vector.broadcast %cst_423 : f32 to vector<1x256xf32>
    %944 = arith.mulf %942, %943 : vector<1x256xf32>
    %cst_424 = arith.constant 9.99999974E-6 : f32
    %945 = vector.broadcast %cst_424 : f32 to vector<1x256xf32>
    %946 = arith.addf %944, %945 : vector<1x256xf32>
    %947 = math.rsqrt %946 : vector<1x256xf32>
    %948 = arith.mulf %923, %947 : vector<1x256xf32>
    %949 = arith.mulf %931, %948 : vector<1x256xf32>
    %950 = arith.subf %924, %949 : vector<1x256xf32>
    %951 = vector.broadcast %948 : vector<1x256xf32> to vector<4x256xf32>
    %952 = arith.mulf %921, %951 : vector<4x256xf32>
    %953 = vector.broadcast %950 : vector<1x256xf32> to vector<4x256xf32>
    %954 = arith.addf %952, %953 : vector<4x256xf32>
    %cst_425 = arith.constant 0.000000e+00 : f32
    %955 = vector.broadcast %cst_425 : f32 to vector<4x256xf32>
    %956 = arith.maximumf %954, %955 : vector<4x256xf32>
    %957 = vector.broadcast %948 : vector<1x256xf32> to vector<4x256xf32>
    %958 = arith.mulf %922, %957 : vector<4x256xf32>
    %959 = vector.broadcast %950 : vector<1x256xf32> to vector<4x256xf32>
    %960 = arith.addf %958, %959 : vector<4x256xf32>
    %cst_426 = arith.constant 0.000000e+00 : f32
    %961 = vector.broadcast %cst_426 : f32 to vector<4x256xf32>
    %962 = arith.maximumf %960, %961 : vector<4x256xf32>
    %c0_427 = arith.constant 0 : index
    %c0_428 = arith.constant 0 : index
    %963 = vector.load %arg33[%c0_427, %c0_428] : memref<1x16xf32, #tpu.memory_space<vmem>>, vector<1x16xf32>
    %964 = tpu.iota {dimensions = array<i32: 0>} : vector<2x4xi32>
    %965 = tpu.iota {dimensions = array<i32: 1>} : vector<2x4xi32>
    %c2_i32_429 = arith.constant 2 : i32
    %966 = vector.broadcast %c2_i32_429 : i32 to vector<2x4xi32>
    %967 = arith.muli %966, %964 : vector<2x4xi32>
    %968 = arith.cmpi eq, %965, %967 : vector<2x4xi32>
    %c2_i32_430 = arith.constant 2 : i32
    %969 = vector.broadcast %c2_i32_430 : i32 to vector<2x4xi32>
    %970 = arith.muli %969, %964 : vector<2x4xi32>
    %c1_i32_431 = arith.constant 1 : i32
    %971 = vector.broadcast %c1_i32_431 : i32 to vector<2x4xi32>
    %972 = arith.addi %970, %971 : vector<2x4xi32>
    %973 = arith.cmpi eq, %965, %972 : vector<2x4xi32>
    %974 = arith.ori %968, %973 : vector<2x4xi1>
    %cst_432 = arith.constant 5.000000e-01 : f32
    %cst_433 = arith.constant 0.000000e+00 : f32
    %975 = vector.broadcast %cst_432 : f32 to vector<2x4xf32>
    %976 = vector.broadcast %cst_433 : f32 to vector<2x4xf32>
    %977 = arith.select %974, %975, %976 : vector<2x4xi1>, vector<2x4xf32>
    %cst_434 = arith.constant dense<0.000000e+00> : vector<2x256xf32>
    %978 = tpu.matmul %977, %956, %cst_434 {dimension_numbers = #tpu.dot_dimension_numbers<[1], [0], [0], [1], [0, 0, 1, 1], [], []>} : vector<2x4xf32>, vector<4x256xf32>, vector<2x256xf32> -> vector<2x256xf32>
    %979 = vector.extract_strided_slice %978 {offsets = [0, 0], sizes = [1, 256], strides = [1, 1]} : vector<2x256xf32> to vector<1x256xf32>
    %980 = arith.truncf %979 : vector<1x256xf32> to vector<1x256xbf16>
    %c0_435 = arith.constant 0 : index
    %c0_436 = arith.constant 0 : index
    %c0_437 = arith.constant 0 : index
    %981 = vector.load %arg32[%c0_435, %c0_436, %c0_437] : memref<2x256x16xbf16, #tpu.memory_space<vmem>>, vector<1x256x16xbf16>
    %982 = vector.shape_cast %981 : vector<1x256x16xbf16> to vector<256x16xbf16>
    %cst_438 = arith.constant dense<0.000000e+00> : vector<1x16xf32>
    %983 = tpu.matmul %980, %982, %cst_438 {dimension_numbers = #tpu.dot_dimension_numbers<[1], [0], [0], [1], [0, 0, 1, 1], [], []>} : vector<1x256xbf16>, vector<256x16xbf16>, vector<1x16xf32> -> vector<1x16xf32>
    %984 = arith.addf %963, %983 : vector<1x16xf32>
    %985 = vector.extract_strided_slice %978 {offsets = [1, 0], sizes = [1, 256], strides = [1, 1]} : vector<2x256xf32> to vector<1x256xf32>
    %986 = arith.truncf %985 : vector<1x256xf32> to vector<1x256xbf16>
    %c1_439 = arith.constant 1 : index
    %c0_440 = arith.constant 0 : index
    %c0_441 = arith.constant 0 : index
    %987 = vector.load %arg32[%c1_439, %c0_440, %c0_441] : memref<2x256x16xbf16, #tpu.memory_space<vmem>>, vector<1x256x16xbf16>
    %988 = vector.shape_cast %987 : vector<1x256x16xbf16> to vector<256x16xbf16>
    %cst_442 = arith.constant dense<0.000000e+00> : vector<1x16xf32>
    %989 = tpu.matmul %986, %988, %cst_442 {dimension_numbers = #tpu.dot_dimension_numbers<[1], [0], [0], [1], [0, 0, 1, 1], [], []>} : vector<1x256xbf16>, vector<256x16xbf16>, vector<1x16xf32> -> vector<1x16xf32>
    %990 = arith.addf %984, %989 : vector<1x16xf32>
    %c0_443 = arith.constant 0 : index
    %c0_444 = arith.constant 0 : index
    %991 = vector.load %arg34[%c0_443, %c0_444] : memref<2x16xf32, #tpu.memory_space<vmem>>, vector<1x16xf32>
    tpu.vector_store %arg34[%c0_443, %c0_444], %990 {strides = array<i32>} : memref<2x16xf32, #tpu.memory_space<vmem>>, vector<1x16xf32>,
    %cst_445 = arith.constant dense<0.000000e+00> : vector<2x256xf32>
    %992 = tpu.matmul %977, %962, %cst_445 {dimension_numbers = #tpu.dot_dimension_numbers<[1], [0], [0], [1], [0, 0, 1, 1], [], []>} : vector<2x4xf32>, vector<4x256xf32>, vector<2x256xf32> -> vector<2x256xf32>
    %993 = vector.extract_strided_slice %992 {offsets = [0, 0], sizes = [1, 256], strides = [1, 1]} : vector<2x256xf32> to vector<1x256xf32>
    %994 = arith.truncf %993 : vector<1x256xf32> to vector<1x256xbf16>
    %c0_446 = arith.constant 0 : index
    %c0_447 = arith.constant 0 : index
    %c0_448 = arith.constant 0 : index
    %995 = vector.load %arg32[%c0_446, %c0_447, %c0_448] : memref<2x256x16xbf16, #tpu.memory_space<vmem>>, vector<1x256x16xbf16>
    %996 = vector.shape_cast %995 : vector<1x256x16xbf16> to vector<256x16xbf16>
    %cst_449 = arith.constant dense<0.000000e+00> : vector<1x16xf32>
    %997 = tpu.matmul %994, %996, %cst_449 {dimension_numbers = #tpu.dot_dimension_numbers<[1], [0], [0], [1], [0, 0, 1, 1], [], []>} : vector<1x256xbf16>, vector<256x16xbf16>, vector<1x16xf32> -> vector<1x16xf32>
    %998 = arith.addf %963, %997 : vector<1x16xf32>
    %999 = vector.extract_strided_slice %992 {offsets = [1, 0], sizes = [1, 256], strides = [1, 1]} : vector<2x256xf32> to vector<1x256xf32>
    %1000 = arith.truncf %999 : vector<1x256xf32> to vector<1x256xbf16>
    %c1_450 = arith.constant 1 : index
    %c0_451 = arith.constant 0 : index
    %c0_452 = arith.constant 0 : index
    %1001 = vector.load %arg32[%c1_450, %c0_451, %c0_452] : memref<2x256x16xbf16, #tpu.memory_space<vmem>>, vector<1x256x16xbf16>
    %1002 = vector.shape_cast %1001 : vector<1x256x16xbf16> to vector<256x16xbf16>
    %cst_453 = arith.constant dense<0.000000e+00> : vector<1x16xf32>
    %1003 = tpu.matmul %1000, %1002, %cst_453 {dimension_numbers = #tpu.dot_dimension_numbers<[1], [0], [0], [1], [0, 0, 1, 1], [], []>} : vector<1x256xbf16>, vector<256x16xbf16>, vector<1x16xf32> -> vector<1x16xf32>
    %1004 = arith.addf %998, %1003 : vector<1x16xf32>
    %c1_454 = arith.constant 1 : index
    %c0_455 = arith.constant 0 : index
    %1005 = vector.load %arg34[%c1_454, %c0_455] : memref<2x16xf32, #tpu.memory_space<vmem>>, vector<1x16xf32>
    tpu.vector_store %arg34[%c1_454, %c0_455], %1004 {strides = array<i32>} : memref<2x16xf32, #tpu.memory_space<vmem>>, vector<1x16xf32>,
    return
  }
}

</mosaic_0001>

<llo_original>
// kernel: resnet_forward.1
$region0: #{resnet_forward.1}
  #allocation0 [shape = 'u32[]', space=smem, size = 0x4, offset = 0x4, fixed_abs, tag = 'smem constant byte address 0x4 - core index']
  #allocation1 [shape = 'u32[72,128]{1,0:T(1,128)}', space=vmem, size = 0x9000, scoped, tag = 'internal scratch']
  %s0 = inlined_call_operand.smem [shape: u32[35], index: -1, kind: input, shape index: {}]
  %s1 = sld [smem:[%s0]]
  %s2 = scalar_lea.smem %s0, 1
  %s3 = sld [smem:[%s2]]
  %s4 = scalar_lea.smem %s0, 2
  %s5 = sld [smem:[%s4]]
  %s6 = scalar_lea.smem %s0, 3
  %s7 = sld [smem:[%s6]]
  %s8 = scalar_lea.smem %s0, 4
  %s9 = sld [smem:[%s8]]
  %s10 = scalar_lea.smem %s0, 5
  %s11 = sld [smem:[%s10]]
  %s12 = scalar_lea.smem %s0, 6
  %s13 = sld [smem:[%s12]]
  %s14 = scalar_lea.smem %s0, 7
  %s15 = sld [smem:[%s14]]
  %s16 = scalar_lea.smem %s0, 8
  %s17 = sld [smem:[%s16]]
  %s18 = scalar_lea.smem %s0, 9
  %s19 = sld [smem:[%s18]]
  %s20 = scalar_lea.smem %s0, 10
  %s21 = sld [smem:[%s20]]
  %s22 = scalar_lea.smem %s0, 11
  %s23 = sld [smem:[%s22]]
  %s24 = scalar_lea.smem %s0, 12
  %s25 = sld [smem:[%s24]]
  %s26 = scalar_lea.smem %s0, 13
  %s27 = sld [smem:[%s26]]
  %s28 = scalar_lea.smem %s0, 14
  %s29 = sld [smem:[%s28]]
  %s30 = scalar_lea.smem %s0, 15
  %s31 = sld [smem:[%s30]]
  %s32 = scalar_lea.smem %s0, 16
  %s33 = sld [smem:[%s32]]
  %s34 = scalar_lea.smem %s0, 17
  %s35 = sld [smem:[%s34]]
  %s36 = scalar_lea.smem %s0, 18
  %s37 = sld [smem:[%s36]]
  %s38 = scalar_lea.smem %s0, 19
  %s39 = sld [smem:[%s38]]
  %s40 = scalar_lea.smem %s0, 20
  %s41 = sld [smem:[%s40]]
  %s42 = scalar_lea.smem %s0, 21
  %s43 = sld [smem:[%s42]]
  %s44 = scalar_lea.smem %s0, 22
  %s45 = sld [smem:[%s44]]
  %s46 = scalar_lea.smem %s0, 23
  %s47 = sld [smem:[%s46]]
  %s48 = scalar_lea.smem %s0, 24
  %s49 = sld [smem:[%s48]]
  %s50 = scalar_lea.smem %s0, 25
  %s51 = sld [smem:[%s50]]
  %s52 = scalar_lea.smem %s0, 26
  %s53 = sld [smem:[%s52]]
  %s54 = scalar_lea.smem %s0, 27
  %s55 = sld [smem:[%s54]]
  %s56 = scalar_lea.smem %s0, 28
  %s57 = sld [smem:[%s56]]
  %s58 = scalar_lea.smem %s0, 29
  %s59 = sld [smem:[%s58]]
  %s60 = scalar_lea.smem %s0, 30
  %s61 = sld [smem:[%s60]]
  %s62 = scalar_lea.smem %s0, 31
  %s63 = sld [smem:[%s62]]
  %s64 = scalar_lea.smem %s0, 32
  %s65 = sld [smem:[%s64]]
  %s66 = scalar_lea.smem %s0, 33
  %s67 = sld [smem:[%s66]]
  %s68 = scalar_lea.smem %s0, 34
  %s69 = sld [smem:[%s68]]
  %s70 = sld [smem:[#allocation0]]
  $region146: #{resnet_forward.1} parent=0
    _
  %s72 = ssub.s32 1, %s70
  %s73 = scalar_select 0, %s72, %s70
  $region1: #{resnet_forward.1} parent=0
    #allocation2 [shape = 'u8[1024]{0}', space=vmem, size = 0x400, scoped, tag = 'output window, operand 0, single buffered']
    #allocation3 [shape = 's32[1]{0}', space=sflag, size = 0x4, scoped, tag = 'scoped memory for resnet_forward.1']
    %74 = vsyncpa [#allocation3], 0
    // Predicated region
    $region2: #{resnet_forward.1} parent=1 // pred_check
      _
    $region3: #{resnet_forward.1} parent=1 // pred_check_branch
      %76 = sbr.rel (0) target = $region5
    $region4: #{resnet_forward.1} parent=1 // pred_region
      _
    $region5: #{resnet_forward.1} parent=1 // pred_fallthru
      _
    // Predicated region
    $region6: #{resnet_forward.1} parent=1 // pred_check
      _
    $region7: #{resnet_forward.1} parent=1 // pred_check_branch
      %78 = sbr.rel (0) target = $region9
    $region8: #{resnet_forward.1} parent=1 // pred_region
      _
    $region9: #{resnet_forward.1} parent=1 // pred_fallthru
      _
    // Predicated region
    $region10: #{resnet_forward.1} parent=1 // pred_check
      _
    $region11: #{resnet_forward.1} parent=1 // pred_check_branch
      %80 = sbr.rel (0) target = $region13
    $region12: #{resnet_forward.1} parent=1 // pred_region
      _
    $region13: #{resnet_forward.1} parent=1 // pred_fallthru
      _
    // Predicated region
    $region14: #{resnet_forward.1} parent=1 // pred_check
      _
    $region15: #{resnet_forward.1} parent=1 // pred_check_branch
      %82 = sbr.rel (0) target = $region17
    $region16: #{resnet_forward.1} parent=1 // pred_region
      _
    $region17: #{resnet_forward.1} parent=1 // pred_fallthru
      _
    // Predicated region
    $region18: #{resnet_forward.1} parent=1 // pred_check
      _
    $region19: #{resnet_forward.1} parent=1 // pred_check_branch
      %84 = sbr.rel (0) target = $region21
    $region20: #{resnet_forward.1} parent=1 // pred_region
      _
    $region21: #{resnet_forward.1} parent=1 // pred_fallthru
      _
    // Predicated region
    $region22: #{resnet_forward.1} parent=1 // pred_check
      _
    $region23: #{resnet_forward.1} parent=1 // pred_check_branch
      %86 = sbr.rel (0) target = $region25
    $region24: #{resnet_forward.1} parent=1 // pred_region
      _
    $region25: #{resnet_forward.1} parent=1 // pred_fallthru
      _
    // Predicated region
    $region26: #{resnet_forward.1} parent=1 // pred_check
      _
    $region27: #{resnet_forward.1} parent=1 // pred_check_branch
      %88 = sbr.rel (0) target = $region29
    $region28: #{resnet_forward.1} parent=1 // pred_region
      _
    $region29: #{resnet_forward.1} parent=1 // pred_fallthru
      _
    // Predicated region
    $region30: #{resnet_forward.1} parent=1 // pred_check
      _
    $region31: #{resnet_forward.1} parent=1 // pred_check_branch
      %90 = sbr.rel (0) target = $region33
    $region32: #{resnet_forward.1} parent=1 // pred_region
      _
    $region33: #{resnet_forward.1} parent=1 // pred_fallthru
      _
    // Predicated region
    $region34: #{resnet_forward.1} parent=1 // pred_check
      _
    $region35: #{resnet_forward.1} parent=1 // pred_check_branch
      %92 = sbr.rel (0) target = $region37
    $region36: #{resnet_forward.1} parent=1 // pred_region
      _
    $region37: #{resnet_forward.1} parent=1 // pred_fallthru
      _
    // Predicated region
    $region38: #{resnet_forward.1} parent=1 // pred_check
      _
    $region39: #{resnet_forward.1} parent=1 // pred_check_branch
      %94 = sbr.rel (0) target = $region41
    $region40: #{resnet_forward.1} parent=1 // pred_region
      _
    $region41: #{resnet_forward.1} parent=1 // pred_fallthru
      _
    // Predicated region
    $region42: #{resnet_forward.1} parent=1 // pred_check
      _
    $region43: #{resnet_forward.1} parent=1 // pred_check_branch
      %96 = sbr.rel (0) target = $region45
    $region44: #{resnet_forward.1} parent=1 // pred_region
      _
    $region45: #{resnet_forward.1} parent=1 // pred_fallthru
      _
    // Predicated region
    $region46: #{resnet_forward.1} parent=1 // pred_check
      _
    $region47: #{resnet_forward.1} parent=1 // pred_check_branch
      %98 = sbr.rel (0) target = $region49
    $region48: #{resnet_forward.1} parent=1 // pred_region
      _
    $region49: #{resnet_forward.1} parent=1 // pred_fallthru
      _
    // Predicated region
    $region50: #{resnet_forward.1} parent=1 // pred_check
      _
    $region51: #{resnet_forward.1} parent=1 // pred_check_branch
      %100 = sbr.rel (0) target = $region53
    $region52: #{resnet_forward.1} parent=1 // pred_region
      _
    $region53: #{resnet_forward.1} parent=1 // pred_fallthru
      _
    // Predicated region
    $region54: #{resnet_forward.1} parent=1 // pred_check
      _
    $region55: #{resnet_forward.1} parent=1 // pred_check_branch
      %102 = sbr.rel (0) target = $region57
    $region56: #{resnet_forward.1} parent=1 // pred_region
      _
    $region57: #{resnet_forward.1} parent=1 // pred_fallthru
      _
    // Predicated region
    $region58: #{resnet_forward.1} parent=1 // pred_check
      _
    $region59: #{resnet_forward.1} parent=1 // pred_check_branch
      %104 = sbr.rel (0) target = $region61
    $region60: #{resnet_forward.1} parent=1 // pred_region
      _
    $region61: #{resnet_forward.1} parent=1 // pred_fallthru
      _
    // Predicated region
    $region62: #{resnet_forward.1} parent=1 // pred_check
      _
    $region63: #{resnet_forward.1} parent=1 // pred_check_branch
      %106 = sbr.rel (0) target = $region65
    $region64: #{resnet_forward.1} parent=1 // pred_region
      _
    $region65: #{resnet_forward.1} parent=1 // pred_fallthru
      _
    // Predicated region
    $region66: #{resnet_forward.1} parent=1 // pred_check
      _
    $region67: #{resnet_forward.1} parent=1 // pred_check_branch
      %108 = sbr.rel (0) target = $region69
    $region68: #{resnet_forward.1} parent=1 // pred_region
      _
    $region69: #{resnet_forward.1} parent=1 // pred_fallthru
      _
    // Predicated region
    $region70: #{resnet_forward.1} parent=1 // pred_check
      _
    $region71: #{resnet_forward.1} parent=1 // pred_check_branch
      %110 = sbr.rel (0) target = $region73
    $region72: #{resnet_forward.1} parent=1 // pred_region
      _
    $region73: #{resnet_forward.1} parent=1 // pred_fallthru
      _
    // Predicated region
    $region74: #{resnet_forward.1} parent=1 // pred_check
      _
    $region75: #{resnet_forward.1} parent=1 // pred_check_branch
      %112 = sbr.rel (0) target = $region77
    $region76: #{resnet_forward.1} parent=1 // pred_region
      _
    $region77: #{resnet_forward.1} parent=1 // pred_fallthru
      _
    // Predicated region
    $region78: #{resnet_forward.1} parent=1 // pred_check
      _
    $region79: #{resnet_forward.1} parent=1 // pred_check_branch
      %114 = sbr.rel (0) target = $region81
    $region80: #{resnet_forward.1} parent=1 // pred_region
      _
    $region81: #{resnet_forward.1} parent=1 // pred_fallthru
      _
    // Predicated region
    $region82: #{resnet_forward.1} parent=1 // pred_check
      _
    $region83: #{resnet_forward.1} parent=1 // pred_check_branch
      %116 = sbr.rel (0) target = $region85
    $region84: #{resnet_forward.1} parent=1 // pred_region
      _
    $region85: #{resnet_forward.1} parent=1 // pred_fallthru
      _
    // Predicated region
    $region86: #{resnet_forward.1} parent=1 // pred_check
      _
    $region87: #{resnet_forward.1} parent=1 // pred_check_branch
      %118 = sbr.rel (0) target = $region89
    $region88: #{resnet_forward.1} parent=1 // pred_region
      _
    $region89: #{resnet_forward.1} parent=1 // pred_fallthru
      _
    // Predicated region
    $region90: #{resnet_forward.1} parent=1 // pred_check
      _
    $region91: #{resnet_forward.1} parent=1 // pred_check_branch
      %120 = sbr.rel (0) target = $region93
    $region92: #{resnet_forward.1} parent=1 // pred_region
      _
    $region93: #{resnet_forward.1} parent=1 // pred_fallthru
      _
    // Predicated region
    $region94: #{resnet_forward.1} parent=1 // pred_check
      _
    $region95: #{resnet_forward.1} parent=1 // pred_check_branch
      %122 = sbr.rel (0) target = $region97
    $region96: #{resnet_forward.1} parent=1 // pred_region
      _
    $region97: #{resnet_forward.1} parent=1 // pred_fallthru
      _
    // Predicated region
    $region98: #{resnet_forward.1} parent=1 // pred_check
      _
    $region99: #{resnet_forward.1} parent=1 // pred_check_branch
      %124 = sbr.rel (0) target = $region101
    $region100: #{resnet_forward.1} parent=1 // pred_region
      _
    $region101: #{resnet_forward.1} parent=1 // pred_fallthru
      _
    // Predicated region
    $region102: #{resnet_forward.1} parent=1 // pred_check
      _
    $region103: #{resnet_forward.1} parent=1 // pred_check_branch
      %126 = sbr.rel (0) target = $region105
    $region104: #{resnet_forward.1} parent=1 // pred_region
      _
    $region105: #{resnet_forward.1} parent=1 // pred_fallthru
      _
    // Predicated region
    $region106: #{resnet_forward.1} parent=1 // pred_check
      _
    $region107: #{resnet_forward.1} parent=1 // pred_check_branch
      %128 = sbr.rel (0) target = $region109
    $region108: #{resnet_forward.1} parent=1 // pred_region
      _
    $region109: #{resnet_forward.1} parent=1 // pred_fallthru
      _
    // Predicated region
    $region110: #{resnet_forward.1} parent=1 // pred_check
      _
    $region111: #{resnet_forward.1} parent=1 // pred_check_branch
      %130 = sbr.rel (0) target = $region113
    $region112: #{resnet_forward.1} parent=1 // pred_region
      _
    $region113: #{resnet_forward.1} parent=1 // pred_fallthru
      _
    // Predicated region
    $region114: #{resnet_forward.1} parent=1 // pred_check
      _
    $region115: #{resnet_forward.1} parent=1 // pred_check_branch
      %132 = sbr.rel (0) target = $region117
    $region116: #{resnet_forward.1} parent=1 // pred_region
      _
    $region117: #{resnet_forward.1} parent=1 // pred_fallthru
      _
    // Predicated region
    $region118: #{resnet_forward.1} parent=1 // pred_check
      _
    $region119: #{resnet_forward.1} parent=1 // pred_check_branch
      %134 = sbr.rel (0) target = $region121
    $region120: #{resnet_forward.1} parent=1 // pred_region
      _
    $region121: #{resnet_forward.1} parent=1 // pred_fallthru
      _
    // Predicated region
    $region122: #{resnet_forward.1} parent=1 // pred_check
      _
    $region123: #{resnet_forward.1} parent=1 // pred_check_branch
      %136 = sbr.rel (0) target = $region125
    $region124: #{resnet_forward.1} parent=1 // pred_region
      _
    $region125: #{resnet_forward.1} parent=1 // pred_fallthru
      _
    // Predicated region
    $region126: #{resnet_forward.1} parent=1 // pred_check
      _
    $region127: #{resnet_forward.1} parent=1 // pred_check_branch
      %138 = sbr.rel (0) target = $region129
    $region128: #{resnet_forward.1} parent=1 // pred_region
      _
    $region129: #{resnet_forward.1} parent=1 // pred_fallthru
      _
    // Predicated region
    $region130: #{resnet_forward.1} parent=1 // pred_check
      _
    $region131: #{resnet_forward.1} parent=1 // pred_check_branch
      %140 = sbr.rel (0) target = $region133
    $region132: #{resnet_forward.1} parent=1 // pred_region
      _
    $region133: #{resnet_forward.1} parent=1 // pred_fallthru
      _
    // Predicated region
    $region134: #{resnet_forward.1} parent=1 // pred_check
      _
    $region135: #{resnet_forward.1} parent=1 // pred_check_branch
      %142 = sbr.rel (0) target = $region137
    $region136: #{resnet_forward.1} parent=1 // pred_region
      _
    $region137: #{resnet_forward.1} parent=1 // pred_fallthru
      _
    %v144 = vld [vmem:[%s3] sm:$0xf]
    %v145 = vld [vmem:[%s1] sm:$0xf]
    %v146 = vld [vmem:[%s1 + $0x4] sm:$0xf]
    %v147 = vld [vmem:[%s1 + $0x8] sm:$0xf]
    %v148 = vld [vmem:[%s1 + $0xc] sm:$0xf]
    %v153 = vunpack.c.l.b16 %v145
    %v154 = vunpack.c.l.b16 %v146
    %v155 = vunpack.c.l.b16 %v147
    %v156 = vunpack.c.l.b16 %v148
    %v157 = vpack.c.b16 %v154, %v153
    %v158 = vpack.c.b16 %v156, %v155
    %vm159 = vcmask 64512
    %v161 = vsel %vm159, %v157, 0
    %v164 = vsel %vm159, %v158, 0
    %vm166 = vcmask 1043456
    %v168 = vsel %vm166, %v144, 0
    %170 = vmatpush.bf16.msra.mxu0 0
    %171 = vmatpush.bf16.msra.mxu0 0
    %172 = vmatpush.bf16.msra.mxu0 0
    %173 = vmatpush.bf16.msra.mxu0 0
    %174 = vmatpush.bf16.msra.mxu0 0
    %175 = vmatpush.bf16.msra.mxu0 0
    %176 = vmatpush.bf16.msra.mxu0 0
    %177 = vmatpush.bf16.msra.mxu0 %v168
    %178 = vmatmul.bf16.gmra.mxu0 %v161
    %v179 = vpop.f32.mrf.mxu0
    %v180 = vadd.f32 0.0, %v179
    %v181 = vpop.f32.mrf.mxu0
    %v182 = vadd.f32 0.0, %v181
    %183 = vmatmul.bf16.gmra.mxu0 %v164
    %v184 = vpop.f32.mrf.mxu0
    %v185 = vadd.f32 0.0, %v184
    %v186 = vpop.f32.mrf.mxu0
    %v187 = vadd.f32 0.0, %v186
    %188 = vdwg.mxu0
    %s189 = scalar_lea.vmem %s1, 16
    %v190 = vld [vmem:[%s189] sm:$0xf]
    %v191 = vld [vmem:[%s189 + $0x4] sm:$0xf]
    %v192 = vld [vmem:[%s189 + $0x8] sm:$0xf]
    %v193 = vld [vmem:[%s189 + $0xc] sm:$0xf]
    %v198 = vunpack.c.l.b16 %v190
    %v199 = vunpack.c.l.b16 %v191
    %v200 = vunpack.c.l.b16 %v192
    %v201 = vunpack.c.l.b16 %v193
    %v202 = vpack.c.b16 %v199, %v198
    %v203 = vpack.c.b16 %v201, %v200
    %v205 = vsel %vm159, %v202, 0
    %v208 = vsel %vm159, %v203, 0
    %210 = vmatpush.bf16.msra.mxu0 0
    %211 = vmatpush.bf16.msra.mxu0 0
    %212 = vmatpush.bf16.msra.mxu0 0
    %213 = vmatpush.bf16.msra.mxu0 0
    %214 = vmatpush.bf16.msra.mxu0 0
    %215 = vmatpush.bf16.msra.mxu0 0
    %216 = vmatpush.bf16.msra.mxu0 0
    %217 = vmatpush.bf16.msra.mxu0 %v168
    %218 = vmatmul.bf16.gmra.mxu0 %v205
    %v219 = vpop.f32.mrf.mxu0
    %v220 = vadd.f32 0.0, %v219
    %v221 = vpop.f32.mrf.mxu0
    %v222 = vadd.f32 0.0, %v221
    %223 = vmatmul.bf16.gmra.mxu0 %v208
    %v224 = vpop.f32.mrf.mxu0
    %v225 = vadd.f32 0.0, %v224
    %v226 = vpop.f32.mrf.mxu0
    %v227 = vadd.f32 0.0, %v226
    %228 = vdwg.mxu0
    %v229 = vld [vmem:[%s5] sm:$0x1]
    %v230 = vld [vmem:[%s7] sm:$0x1]
    %vm231 = vcmask 130048
    %v232 = vsel %vm231, %v180, 0.0
    %v233 = vsel %vm231, %v182, 0.0
    %v234 = vadd.f32 %v232, %v233
    %v235 = vsel %vm231, %v185, 0.0
    %v236 = vadd.f32 %v234, %v235
    %v237 = vsel %vm231, %v187, 0.0
    %v238 = vadd.f32 %v236, %v237
    %v239 = vrot.slane %v238, 4
    %v240 = vadd.f32 %v238, %v239
    %v241 = vrot.slane %v240, 2
    %v242 = vadd.f32 %v240, %v241
    %v243 = vrot.slane %v242, 1
    %v244 = vadd.f32 %v242, %v243
    %v245 = vsel %vm231, %v220, 0.0
    %v246 = vsel %vm231, %v222, 0.0
    %v247 = vadd.f32 %v245, %v246
    %v248 = vsel %vm231, %v225, 0.0
    %v249 = vadd.f32 %v247, %v248
    %v250 = vsel %vm231, %v227, 0.0
    %v251 = vadd.f32 %v249, %v250
    %v252 = vrot.slane %v251, 4
    %v253 = vadd.f32 %v251, %v252
    %v254 = vrot.slane %v253, 2
    %v255 = vadd.f32 %v253, %v254
    %v256 = vrot.slane %v255, 1
    %v257 = vadd.f32 %v255, %v256
    %v258 = vadd.f32 %v244, %v257
    %v259 = vmul.f32 %v258, 0.015625
    %v260 = vsub.f32 %v180, %v259
    %v261 = vsub.f32 %v182, %v259
    %v262 = vsub.f32 %v185, %v259
    %v263 = vsub.f32 %v187, %v259
    %v264 = vmul.f32 %v260, %v260
    %v265 = vmul.f32 %v261, %v261
    %v266 = vmul.f32 %v262, %v262
    %v267 = vmul.f32 %v263, %v263
    %v268 = vsel %vm231, %v264, 0.0
    %v269 = vsel %vm231, %v265, 0.0
    %v270 = vadd.f32 %v268, %v269
    %v271 = vsel %vm231, %v266, 0.0
    %v272 = vadd.f32 %v270, %v271
    %v273 = vsel %vm231, %v267, 0.0
    %v274 = vadd.f32 %v272, %v273
    %v275 = vrot.slane %v274, 4
    %v276 = vadd.f32 %v274, %v275
    %v277 = vrot.slane %v276, 2
    %v278 = vadd.f32 %v276, %v277
    %v279 = vrot.slane %v278, 1
    %v280 = vadd.f32 %v278, %v279
    %v281 = vsub.f32 %v220, %v259
    %v282 = vsub.f32 %v222, %v259
    %v283 = vsub.f32 %v225, %v259
    %v284 = vsub.f32 %v227, %v259
    %v285 = vmul.f32 %v281, %v281
    %v286 = vmul.f32 %v282, %v282
    %v287 = vmul.f32 %v283, %v283
    %v288 = vmul.f32 %v284, %v284
    %v289 = vsel %vm231, %v285, 0.0
    %v290 = vsel %vm231, %v286, 0.0
    %v291 = vadd.f32 %v289, %v290
    %v292 = vsel %vm231, %v287, 0.0
    %v293 = vadd.f32 %v291, %v292
    %v294 = vsel %vm231, %v288, 0.0
    %v295 = vadd.f32 %v293, %v294
    %v296 = vrot.slane %v295, 4
    %v297 = vadd.f32 %v295, %v296
    %v298 = vrot.slane %v297, 2
    %v299 = vadd.f32 %v297, %v298
    %v300 = vrot.slane %v299, 1
    %v301 = vadd.f32 %v299, %v300
    %v302 = vadd.f32 %v280, %v301
    %v303 = vmul.f32 %v302, 0.015625
    %v304 = vadd.f32 %v303, 1e-05
    %v305 = vrsqrt.pop %v304
    %v306 = vmul.f32 %v305, %v304
    %v307 = vmul.f32 %v306, %v305
    %v308 = vmul.f32 0.5, %v307
    %v309 = vsub.f32 1.5, %v308
    %v310 = vmul.f32 %v305, %v309
    %vm311 = vweird.f32 %v304
    %vm312 = vweird.f32 %v305
    %vm313 = vmor %vm311, %vm312
    %v314 = vsel %vm313, %v305, %v310
    %v315 = vmul.f32 %v229, %v314
    %v316 = vmul.f32 %v259, %v315
    %v317 = vsub.f32 %v230, %v316
    %v319 = vperm.slane %v315, 0
    %v321 = vmul.f32 %v180, %v319
    %v322 = vmul.f32 %v182, %v319
    %v323 = vmul.f32 %v185, %v319
    %v324 = vmul.f32 %v187, %v319
    %v326 = vperm.slane %v317, 0
    %v328 = vadd.f32 %v321, %v326
    %v329 = vadd.f32 %v322, %v326
    %v330 = vadd.f32 %v323, %v326
    %v331 = vadd.f32 %v324, %v326
    %v332 = vmax.f32 %v328, 0.0
    %v333 = vmax.f32 %v329, 0.0
    %v334 = vmax.f32 %v330, 0.0
    %v335 = vmax.f32 %v331, 0.0
    %v336 = vmul.f32 %v220, %v319
    %v337 = vmul.f32 %v222, %v319
    %v338 = vmul.f32 %v225, %v319
    %v339 = vmul.f32 %v227, %v319
    %v340 = vadd.f32 %v336, %v326
    %v341 = vadd.f32 %v337, %v326
    %v342 = vadd.f32 %v338, %v326
    %v343 = vadd.f32 %v339, %v326
    %v344 = vmax.f32 %v340, 0.0
    %v345 = vmax.f32 %v341, 0.0
    %v346 = vmax.f32 %v342, 0.0
    %v347 = vmax.f32 %v343, 0.0
    %v348 = vlaneseq
    %v349 = vshrl.u32 %v348, 7
    %v350 = vadd.s32 %v349, 8
    %v351 = vadd.s32 %v349, 16
    %v352 = vadd.s32 %v349, 24
    %v353 = vlaneseq
    %v354 = vand.u32 %v353, 127
    %v355 = vadd.s32 %v349, 4294967295
    %v356 = vadd.s32 %v350, 4294967295
    %v357 = vadd.s32 %v351, 4294967295
    %v358 = vadd.s32 %v352, 4294967295
    %vm359 = vcmp.eq.s32.totalorder %v354, %v355
    %vm360 = vcmp.eq.s32.totalorder %v354, %v356
    %vm361 = vcmp.eq.s32.totalorder %v354, %v357
    %vm362 = vcmp.eq.s32.totalorder %v354, %v358
    %v363 = vsel %vm359, 1.0, 0.0
    %v364 = vsel %vm360, 1.0, 0.0
    %v365 = vsel %vm361, 1.0, 0.0
    %v366 = vsel %vm362, 1.0, 0.0
    %v367 = vpack.c.bf16 %v364, %v363
    %v368 = vpack.c.bf16 %v366, %v365
    %vm369 = vcmp.eq.s32.totalorder %v354, %v349
    %vm370 = vcmp.eq.s32.totalorder %v354, %v350
    %vm371 = vcmp.eq.s32.totalorder %v354, %v351
    %vm372 = vcmp.eq.s32.totalorder %v354, %v352
    %v373 = vsel %vm369, 1.0, 0.0
    %v374 = vsel %vm370, 1.0, 0.0
    %v375 = vsel %vm371, 1.0, 0.0
    %v376 = vsel %vm372, 1.0, 0.0
    %v377 = vpack.c.bf16 %v374, %v373
    %v378 = vpack.c.bf16 %v376, %v375
    %v379 = vadd.s32 %v349, 1
    %v380 = vadd.s32 %v350, 1
    %v381 = vadd.s32 %v351, 1
    %v382 = vadd.s32 %v352, 1
    %vm383 = vcmp.eq.s32.totalorder %v354, %v379
    %vm384 = vcmp.eq.s32.totalorder %v354, %v380
    %vm385 = vcmp.eq.s32.totalorder %v354, %v381
    %vm386 = vcmp.eq.s32.totalorder %v354, %v382
    %v387 = vsel %vm383, 1.0, 0.0
    %v388 = vsel %vm384, 1.0, 0.0
    %v389 = vsel %vm385, 1.0, 0.0
    %v390 = vsel %vm386, 1.0, 0.0
    %v391 = vpack.c.bf16 %v388, %v387
    %v392 = vpack.c.bf16 %v390, %v389
    %v393 = vld [vmem:[%s9] sm:$0xf]
    %v394 = vld [vmem:[%s9 + $0x4] sm:$0xf]
    %s395 = scalar_lea.vmem %s9, 8
    %v396 = vld [vmem:[%s395] sm:$0xf]
    %v397 = vld [vmem:[%s395 + $0x4] sm:$0xf]
    %s398 = scalar_lea.vmem %s9, 16
    %v399 = vld [vmem:[%s398] sm:$0xf]
    %v400 = vld [vmem:[%s398 + $0x4] sm:$0xf]
    %v401 = vpack.c.bf16 %v333, %v332
    %v402 = vpack.c.bf16 %v335, %v334
    %vm403 = vcmask 261120
    %v405 = vsel %vm403, %v367, 0
    %v408 = vsel %vm403, %v368, 0
    %410 = vmatpush.bf16.msra.mxu0 0
    %411 = vmatpush.bf16.msra.mxu0 0
    %412 = vmatpush.bf16.msra.mxu0 0
    %413 = vmatpush.bf16.msra.mxu0 0
    %414 = vmatpush.bf16.msra.mxu0 0
    %415 = vmatpush.bf16.msra.mxu0 0
    %416 = vmatpush.bf16.msra.mxu0 %v402
    %417 = vmatpush.bf16.msra.mxu0 %v401
    %418 = vmatmul.bf16.gmra.mxu0 %v405
    %v419 = vpop.f32.mrf.mxu0
    %v420 = vadd.f32 0.0, %v419
    %v421 = vpop.f32.mrf.mxu0
    %v422 = vadd.f32 0.0, %v421
    %423 = vmatmul.bf16.gmra.mxu0 %v408
    %v424 = vpop.f32.mrf.mxu0
    %v425 = vadd.f32 0.0, %v424
    %v426 = vpop.f32.mrf.mxu0
    %v427 = vadd.f32 0.0, %v426
    %428 = vdwg.mxu0
    %v429 = vpack.c.bf16 %v422, %v420
    %v430 = vpack.c.bf16 %v427, %v425
    %v432 = vsel %vm403, %v377, 0
    %v435 = vsel %vm403, %v378, 0
    %437 = vmatpush.bf16.msra.mxu0 0
    %438 = vmatpush.bf16.msra.mxu0 0
    %439 = vmatpush.bf16.msra.mxu0 0
    %440 = vmatpush.bf16.msra.mxu0 0
    %441 = vmatpush.bf16.msra.mxu0 0
    %442 = vmatpush.bf16.msra.mxu0 0
    %443 = vmatpush.bf16.msra.mxu0 %v402
    %444 = vmatpush.bf16.msra.mxu0 %v401
    %445 = vmatmul.bf16.gmra.mxu0 %v432
    %v446 = vpop.f32.mrf.mxu0
    %v447 = vadd.f32 0.0, %v446
    %v448 = vpop.f32.mrf.mxu0
    %v449 = vadd.f32 0.0, %v448
    %450 = vmatmul.bf16.gmra.mxu0 %v435
    %v451 = vpop.f32.mrf.mxu0
    %v452 = vadd.f32 0.0, %v451
    %v453 = vpop.f32.mrf.mxu0
    %v454 = vadd.f32 0.0, %v453
    %455 = vdwg.mxu0
    %v456 = vpack.c.bf16 %v449, %v447
    %v457 = vpack.c.bf16 %v454, %v452
    %v460 = vunpack.c.l.b16 %v396
    %v461 = vunpack.c.l.b16 %v397
    %v462 = vpack.c.b16 %v461, %v460
    %v465 = vsel %vm231, %v456, 0
    %v468 = vsel %vm231, %v457, 0
    %470 = vmatpush.bf16.msra.mxu0 0
    %471 = vmatpush.bf16.msra.mxu0 0
    %472 = vmatpush.bf16.msra.mxu0 0
    %473 = vmatpush.bf16.msra.mxu0 0
    %474 = vmatpush.bf16.msra.mxu0 0
    %475 = vmatpush.bf16.msra.mxu0 0
    %476 = vmatpush.bf16.msra.mxu0 0
    %477 = vmatpush.bf16.msra.mxu0 %v462
    %478 = vmatmul.bf16.gmra.mxu0 %v465
    %v479 = vpop.f32.mrf.mxu0
    %v480 = vadd.f32 0.0, %v479
    %v481 = vpop.f32.mrf.mxu0
    %v482 = vadd.f32 0.0, %v481
    %483 = vmatmul.bf16.gmra.mxu0 %v468
    %v484 = vpop.f32.mrf.mxu0
    %v485 = vadd.f32 0.0, %v484
    %v486 = vpop.f32.mrf.mxu0
    %v487 = vadd.f32 0.0, %v486
    %488 = vdwg.mxu0
    %v491 = vunpack.c.l.b16 %v393
    %v492 = vunpack.c.l.b16 %v394
    %v493 = vpack.c.b16 %v492, %v491
    %v496 = vsel %vm231, %v429, 0
    %v499 = vsel %vm231, %v430, 0
    %501 = vmatpush.bf16.msra.mxu0 0
    %502 = vmatpush.bf16.msra.mxu0 0
    %503 = vmatpush.bf16.msra.mxu0 0
    %504 = vmatpush.bf16.msra.mxu0 0
    %505 = vmatpush.bf16.msra.mxu0 0
    %506 = vmatpush.bf16.msra.mxu0 0
    %507 = vmatpush.bf16.msra.mxu0 0
    %508 = vmatpush.bf16.msra.mxu0 %v493
    %509 = vmatmul.bf16.gmra.mxu0 %v496
    %v510 = vpop.f32.mrf.mxu0
    %v511 = vadd.f32 %v480, %v510
    %v512 = vpop.f32.mrf.mxu0
    %v513 = vadd.f32 %v482, %v512
    %514 = vmatmul.bf16.gmra.mxu0 %v499
    %v515 = vpop.f32.mrf.mxu0
    %v516 = vadd.f32 %v485, %v515
    %v517 = vpop.f32.mrf.mxu0
    %v518 = vadd.f32 %v487, %v517
    %519 = vdwg.mxu0
    %v521 = vsel %vm403, %v391, 0
    %v524 = vsel %vm403, %v392, 0
    %526 = vmatpush.bf16.msra.mxu0 0
    %527 = vmatpush.bf16.msra.mxu0 0
    %528 = vmatpush.bf16.msra.mxu0 0
    %529 = vmatpush.bf16.msra.mxu0 0
    %530 = vmatpush.bf16.msra.mxu0 0
    %531 = vmatpush.bf16.msra.mxu0 0
    %532 = vmatpush.bf16.msra.mxu0 %v402
    %533 = vmatpush.bf16.msra.mxu0 %v401
    %534 = vmatmul.bf16.gmra.mxu0 %v521
    %v535 = vpop.f32.mrf.mxu0
    %v536 = vadd.f32 0.0, %v535
    %v537 = vpop.f32.mrf.mxu0
    %v538 = vadd.f32 0.0, %v537
    %539 = vmatmul.bf16.gmra.mxu0 %v524
    %v540 = vpop.f32.mrf.mxu0
    %v541 = vadd.f32 0.0, %v540
    %v542 = vpop.f32.mrf.mxu0
    %v543 = vadd.f32 0.0, %v542
    %544 = vdwg.mxu0
    %v545 = vpack.c.bf16 %v538, %v536
    %v546 = vpack.c.bf16 %v543, %v541
    %v549 = vunpack.c.l.b16 %v399
    %v550 = vunpack.c.l.b16 %v400
    %v551 = vpack.c.b16 %v550, %v549
    %v554 = vsel %vm231, %v545, 0
    %v557 = vsel %vm231, %v546, 0
    %559 = vmatpush.bf16.msra.mxu0 0
    %560 = vmatpush.bf16.msra.mxu0 0
    %561 = vmatpush.bf16.msra.mxu0 0
    %562 = vmatpush.bf16.msra.mxu0 0
    %563 = vmatpush.bf16.msra.mxu0 0
    %564 = vmatpush.bf16.msra.mxu0 0
    %565 = vmatpush.bf16.msra.mxu0 0
    %566 = vmatpush.bf16.msra.mxu0 %v551
    %567 = vmatmul.bf16.gmra.mxu0 %v554
    %v568 = vpop.f32.mrf.mxu0
    %v569 = vadd.f32 0.0, %v568
    %v570 = vpop.f32.mrf.mxu0
    %v571 = vadd.f32 0.0, %v570
    %572 = vmatmul.bf16.gmra.mxu0 %v557
    %v573 = vpop.f32.mrf.mxu0
    %v574 = vadd.f32 0.0, %v573
    %v575 = vpop.f32.mrf.mxu0
    %v576 = vadd.f32 0.0, %v575
    %577 = vdwg.mxu0
    %v578 = vadd.f32 %v511, %v569
    %v579 = vadd.f32 %v513, %v571
    %v580 = vadd.f32 %v516, %v574
    %v581 = vadd.f32 %v518, %v576
    %v582 = vpack.c.bf16 %v345, %v344
    %v583 = vpack.c.bf16 %v347, %v346
    %584 = vmatpush.bf16.msra.mxu0 0
    %585 = vmatpush.bf16.msra.mxu0 0
    %586 = vmatpush.bf16.msra.mxu0 0
    %587 = vmatpush.bf16.msra.mxu0 0
    %588 = vmatpush.bf16.msra.mxu0 0
    %589 = vmatpush.bf16.msra.mxu0 0
    %590 = vmatpush.bf16.msra.mxu0 %v583
    %591 = vmatpush.bf16.msra.mxu0 %v582
    %592 = vmatmul.bf16.gmra.mxu0 %v405
    %v593 = vpop.f32.mrf.mxu0
    %v594 = vadd.f32 0.0, %v593
    %v595 = vpop.f32.mrf.mxu0
    %v596 = vadd.f32 0.0, %v595
    %597 = vmatmul.bf16.gmra.mxu0 %v408
    %v598 = vpop.f32.mrf.mxu0
    %v599 = vadd.f32 0.0, %v598
    %v600 = vpop.f32.mrf.mxu0
    %v601 = vadd.f32 0.0, %v600
    %602 = vdwg.mxu0
    %v603 = vpack.c.bf16 %v596, %v594
    %v604 = vpack.c.bf16 %v601, %v599
    %605 = vmatpush.bf16.msra.mxu0 0
    %606 = vmatpush.bf16.msra.mxu0 0
    %607 = vmatpush.bf16.msra.mxu0 0
    %608 = vmatpush.bf16.msra.mxu0 0
    %609 = vmatpush.bf16.msra.mxu0 0
    %610 = vmatpush.bf16.msra.mxu0 0
    %611 = vmatpush.bf16.msra.mxu0 %v583
    %612 = vmatpush.bf16.msra.mxu0 %v582
    %613 = vmatmul.bf16.gmra.mxu0 %v432
    %v614 = vpop.f32.mrf.mxu0
    %v615 = vadd.f32 0.0, %v614
    %v616 = vpop.f32.mrf.mxu0
    %v617 = vadd.f32 0.0, %v616
    %618 = vmatmul.bf16.gmra.mxu0 %v435
    %v619 = vpop.f32.mrf.mxu0
    %v620 = vadd.f32 0.0, %v619
    %v621 = vpop.f32.mrf.mxu0
    %v622 = vadd.f32 0.0, %v621
    %623 = vdwg.mxu0
    %v624 = vpack.c.bf16 %v617, %v615
    %v625 = vpack.c.bf16 %v622, %v620
    %v627 = vsel %vm231, %v624, 0
    %v630 = vsel %vm231, %v625, 0
    %632 = vmatpush.bf16.msra.mxu0 0
    %633 = vmatpush.bf16.msra.mxu0 0
    %634 = vmatpush.bf16.msra.mxu0 0
    %635 = vmatpush.bf16.msra.mxu0 0
    %636 = vmatpush.bf16.msra.mxu0 0
    %637 = vmatpush.bf16.msra.mxu0 0
    %638 = vmatpush.bf16.msra.mxu0 0
    %639 = vmatpush.bf16.msra.mxu0 %v462
    %640 = vmatmul.bf16.gmra.mxu0 %v627
    %v641 = vpop.f32.mrf.mxu0
    %v642 = vadd.f32 0.0, %v641
    %v643 = vpop.f32.mrf.mxu0
    %v644 = vadd.f32 0.0, %v643
    %645 = vmatmul.bf16.gmra.mxu0 %v630
    %v646 = vpop.f32.mrf.mxu0
    %v647 = vadd.f32 0.0, %v646
    %v648 = vpop.f32.mrf.mxu0
    %v649 = vadd.f32 0.0, %v648
    %650 = vdwg.mxu0
    %v652 = vsel %vm231, %v603, 0
    %v655 = vsel %vm231, %v604, 0
    %657 = vmatpush.bf16.msra.mxu0 0
    %658 = vmatpush.bf16.msra.mxu0 0
    %659 = vmatpush.bf16.msra.mxu0 0
    %660 = vmatpush.bf16.msra.mxu0 0
    %661 = vmatpush.bf16.msra.mxu0 0
    %662 = vmatpush.bf16.msra.mxu0 0
    %663 = vmatpush.bf16.msra.mxu0 0
    %664 = vmatpush.bf16.msra.mxu0 %v493
    %665 = vmatmul.bf16.gmra.mxu0 %v652
    %v666 = vpop.f32.mrf.mxu0
    %v667 = vadd.f32 %v642, %v666
    %v668 = vpop.f32.mrf.mxu0
    %v669 = vadd.f32 %v644, %v668
    %670 = vmatmul.bf16.gmra.mxu0 %v655
    %v671 = vpop.f32.mrf.mxu0
    %v672 = vadd.f32 %v647, %v671
    %v673 = vpop.f32.mrf.mxu0
    %v674 = vadd.f32 %v649, %v673
    %675 = vdwg.mxu0
    %676 = vmatpush.bf16.msra.mxu0 0
    %677 = vmatpush.bf16.msra.mxu0 0
    %678 = vmatpush.bf16.msra.mxu0 0
    %679 = vmatpush.bf16.msra.mxu0 0
    %680 = vmatpush.bf16.msra.mxu0 0
    %681 = vmatpush.bf16.msra.mxu0 0
    %682 = vmatpush.bf16.msra.mxu0 %v583
    %683 = vmatpush.bf16.msra.mxu0 %v582
    %684 = vmatmul.bf16.gmra.mxu0 %v521
    %v685 = vpop.f32.mrf.mxu0
    %v686 = vadd.f32 0.0, %v685
    %v687 = vpop.f32.mrf.mxu0
    %v688 = vadd.f32 0.0, %v687
    %689 = vmatmul.bf16.gmra.mxu0 %v524
    %v690 = vpop.f32.mrf.mxu0
    %v691 = vadd.f32 0.0, %v690
    %v692 = vpop.f32.mrf.mxu0
    %v693 = vadd.f32 0.0, %v692
    %694 = vdwg.mxu0
    %v695 = vpack.c.bf16 %v688, %v686
    %v696 = vpack.c.bf16 %v693, %v691
    %v698 = vsel %vm231, %v695, 0
    %v701 = vsel %vm231, %v696, 0
    %703 = vmatpush.bf16.msra.mxu0 0
    %704 = vmatpush.bf16.msra.mxu0 0
    %705 = vmatpush.bf16.msra.mxu0 0
    %706 = vmatpush.bf16.msra.mxu0 0
    %707 = vmatpush.bf16.msra.mxu0 0
    %708 = vmatpush.bf16.msra.mxu0 0
    %709 = vmatpush.bf16.msra.mxu0 0
    %710 = vmatpush.bf16.msra.mxu0 %v551
    %711 = vmatmul.bf16.gmra.mxu0 %v698
    %v712 = vpop.f32.mrf.mxu0
    %v713 = vadd.f32 0.0, %v712
    %v714 = vpop.f32.mrf.mxu0
    %v715 = vadd.f32 0.0, %v714
    %716 = vmatmul.bf16.gmra.mxu0 %v701
    %v717 = vpop.f32.mrf.mxu0
    %v718 = vadd.f32 0.0, %v717
    %v719 = vpop.f32.mrf.mxu0
    %v720 = vadd.f32 0.0, %v719
    %721 = vdwg.mxu0
    %v722 = vadd.f32 %v667, %v713
    %v723 = vadd.f32 %v669, %v715
    %v724 = vadd.f32 %v672, %v718
    %v725 = vadd.f32 %v674, %v720
    %v726 = vld [vmem:[%s11] sm:$0x1]
    %v727 = vld [vmem:[%s13] sm:$0x1]
    %v728 = vsel %vm403, %v578, 0.0
    %v729 = vsel %vm403, %v579, 0.0
    %v730 = vadd.f32 %v728, %v729
    %v731 = vsel %vm403, %v580, 0.0
    %v732 = vadd.f32 %v730, %v731
    %v733 = vsel %vm403, %v581, 0.0
    %v734 = vadd.f32 %v732, %v733
    %v735 = vrot.slane %v734, 4
    %v736 = vadd.f32 %v734, %v735
    %v737 = vrot.slane %v736, 2
    %v738 = vadd.f32 %v736, %v737
    %v739 = vrot.slane %v738, 1
    %v740 = vadd.f32 %v738, %v739
    %v741 = vsel %vm403, %v722, 0.0
    %v742 = vsel %vm403, %v723, 0.0
    %v743 = vadd.f32 %v741, %v742
    %v744 = vsel %vm403, %v724, 0.0
    %v745 = vadd.f32 %v743, %v744
    %v746 = vsel %vm403, %v725, 0.0
    %v747 = vadd.f32 %v745, %v746
    %v748 = vrot.slane %v747, 4
    %v749 = vadd.f32 %v747, %v748
    %v750 = vrot.slane %v749, 2
    %v751 = vadd.f32 %v749, %v750
    %v752 = vrot.slane %v751, 1
    %v753 = vadd.f32 %v751, %v752
    %v754 = vadd.f32 %v740, %v753
    %v755 = vmul.f32 %v754, 0.015625
    %v756 = vsub.f32 %v578, %v755
    %v757 = vsub.f32 %v579, %v755
    %v758 = vsub.f32 %v580, %v755
    %v759 = vsub.f32 %v581, %v755
    %v760 = vmul.f32 %v756, %v756
    %v761 = vmul.f32 %v757, %v757
    %v762 = vmul.f32 %v758, %v758
    %v763 = vmul.f32 %v759, %v759
    %v764 = vsel %vm403, %v760, 0.0
    %v765 = vsel %vm403, %v761, 0.0
    %v766 = vadd.f32 %v764, %v765
    %v767 = vsel %vm403, %v762, 0.0
    %v768 = vadd.f32 %v766, %v767
    %v769 = vsel %vm403, %v763, 0.0
    %v770 = vadd.f32 %v768, %v769
    %v771 = vrot.slane %v770, 4
    %v772 = vadd.f32 %v770, %v771
    %v773 = vrot.slane %v772, 2
    %v774 = vadd.f32 %v772, %v773
    %v775 = vrot.slane %v774, 1
    %v776 = vadd.f32 %v774, %v775
    %v777 = vsub.f32 %v722, %v755
    %v778 = vsub.f32 %v723, %v755
    %v779 = vsub.f32 %v724, %v755
    %v780 = vsub.f32 %v725, %v755
    %v781 = vmul.f32 %v777, %v777
    %v782 = vmul.f32 %v778, %v778
    %v783 = vmul.f32 %v779, %v779
    %v784 = vmul.f32 %v780, %v780
    %v785 = vsel %vm403, %v781, 0.0
    %v786 = vsel %vm403, %v782, 0.0
    %v787 = vadd.f32 %v785, %v786
    %v788 = vsel %vm403, %v783, 0.0
    %v789 = vadd.f32 %v787, %v788
    %v790 = vsel %vm403, %v784, 0.0
    %v791 = vadd.f32 %v789, %v790
    %v792 = vrot.slane %v791, 4
    %v793 = vadd.f32 %v791, %v792
    %v794 = vrot.slane %v793, 2
    %v795 = vadd.f32 %v793, %v794
    %v796 = vrot.slane %v795, 1
    %v797 = vadd.f32 %v795, %v796
    %v798 = vadd.f32 %v776, %v797
    %v799 = vmul.f32 %v798, 0.015625
    %v800 = vadd.f32 %v799, 1e-05
    %v801 = vrsqrt.pop %v800
    %v802 = vmul.f32 %v801, %v800
    %v803 = vmul.f32 %v802, %v801
    %v804 = vmul.f32 0.5, %v803
    %v805 = vsub.f32 1.5, %v804
    %v806 = vmul.f32 %v801, %v805
    %vm807 = vweird.f32 %v800
    %vm808 = vweird.f32 %v801
    %vm809 = vmor %vm807, %vm808
    %v810 = vsel %vm809, %v801, %v806
    %v811 = vmul.f32 %v726, %v810
    %v812 = vmul.f32 %v755, %v811
    %v813 = vsub.f32 %v727, %v812
    %v815 = vperm.slane %v811, 0
    %v817 = vmul.f32 %v578, %v815
    %v818 = vmul.f32 %v579, %v815
    %v819 = vmul.f32 %v580, %v815
    %v820 = vmul.f32 %v581, %v815
    %v822 = vperm.slane %v813, 0
    %v824 = vadd.f32 %v817, %v822
    %v825 = vadd.f32 %v818, %v822
    %v826 = vadd.f32 %v819, %v822
    %v827 = vadd.f32 %v820, %v822
    %v828 = vmax.f32 %v824, 0.0
    %v829 = vmax.f32 %v825, 0.0
    %v830 = vmax.f32 %v826, 0.0
    %v831 = vmax.f32 %v827, 0.0
    %v832 = vmul.f32 %v722, %v815
    %v833 = vmul.f32 %v723, %v815
    %v834 = vmul.f32 %v724, %v815
    %v835 = vmul.f32 %v725, %v815
    %v836 = vadd.f32 %v832, %v822
    %v837 = vadd.f32 %v833, %v822
    %v838 = vadd.f32 %v834, %v822
    %v839 = vadd.f32 %v835, %v822
    %v840 = vmax.f32 %v836, 0.0
    %v841 = vmax.f32 %v837, 0.0
    %v842 = vmax.f32 %v838, 0.0
    %v843 = vmax.f32 %v839, 0.0
    %v844 = vld [vmem:[%s15] sm:$0xf]
    %v845 = vld [vmem:[%s15 + $0x4] sm:$0xf]
    %v846 = vld [vmem:[%s15 + $0x8] sm:$0xf]
    %v847 = vld [vmem:[%s15 + $0xc] sm:$0xf]
    %s848 = scalar_lea.vmem %s15, 16
    %v849 = vld [vmem:[%s848] sm:$0xf]
    %v850 = vld [vmem:[%s848 + $0x4] sm:$0xf]
    %v851 = vld [vmem:[%s848 + $0x8] sm:$0xf]
    %v852 = vld [vmem:[%s848 + $0xc] sm:$0xf]
    %s853 = scalar_lea.vmem %s15, 32
    %v854 = vld [vmem:[%s853] sm:$0xf]
    %v855 = vld [vmem:[%s853 + $0x4] sm:$0xf]
    %v856 = vld [vmem:[%s853 + $0x8] sm:$0xf]
    %v857 = vld [vmem:[%s853 + $0xc] sm:$0xf]
    %v858 = vpack.c.bf16 %v829, %v828
    %v859 = vpack.c.bf16 %v831, %v830
    %860 = vmatpush.bf16.msra.mxu0 0
    %861 = vmatpush.bf16.msra.mxu0 0
    %862 = vmatpush.bf16.msra.mxu0 0
    %863 = vmatpush.bf16.msra.mxu0 0
    %864 = vmatpush.bf16.msra.mxu0 0
    %865 = vmatpush.bf16.msra.mxu0 0
    %866 = vmatpush.bf16.msra.mxu0 %v859
    %867 = vmatpush.bf16.msra.mxu0 %v858
    %868 = vmatmul.bf16.gmra.mxu0 %v405
    %v869 = vpop.f32.mrf.mxu0
    %v870 = vadd.f32 0.0, %v869
    %v871 = vpop.f32.mrf.mxu0
    %v872 = vadd.f32 0.0, %v871
    %873 = vmatmul.bf16.gmra.mxu0 %v408
    %v874 = vpop.f32.mrf.mxu0
    %v875 = vadd.f32 0.0, %v874
    %v876 = vpop.f32.mrf.mxu0
    %v877 = vadd.f32 0.0, %v876
    %878 = vdwg.mxu0
    %v879 = vpack.c.bf16 %v872, %v870
    %v880 = vpack.c.bf16 %v877, %v875
    %881 = vmatpush.bf16.msra.mxu0 0
    %882 = vmatpush.bf16.msra.mxu0 0
    %883 = vmatpush.bf16.msra.mxu0 0
    %884 = vmatpush.bf16.msra.mxu0 0
    %885 = vmatpush.bf16.msra.mxu0 0
    %886 = vmatpush.bf16.msra.mxu0 0
    %887 = vmatpush.bf16.msra.mxu0 %v859
    %888 = vmatpush.bf16.msra.mxu0 %v858
    %889 = vmatmul.bf16.gmra.mxu0 %v432
    %v890 = vpop.f32.mrf.mxu0
    %v891 = vadd.f32 0.0, %v890
    %v892 = vpop.f32.mrf.mxu0
    %v893 = vadd.f32 0.0, %v892
    %894 = vmatmul.bf16.gmra.mxu0 %v435
    %v895 = vpop.f32.mrf.mxu0
    %v896 = vadd.f32 0.0, %v895
    %v897 = vpop.f32.mrf.mxu0
    %v898 = vadd.f32 0.0, %v897
    %899 = vdwg.mxu0
    %v900 = vpack.c.bf16 %v893, %v891
    %v901 = vpack.c.bf16 %v898, %v896
    %v906 = vunpack.c.l.b16 %v849
    %v907 = vunpack.c.l.b16 %v850
    %v908 = vunpack.c.l.b16 %v851
    %v909 = vunpack.c.l.b16 %v852
    %v910 = vpack.c.b16 %v907, %v906
    %v911 = vpack.c.b16 %v909, %v908
    %v915 = vsel %vm403, %v900, 0
    %v918 = vsel %vm403, %v901, 0
    %920 = vmatpush.bf16.msra.mxu0 0
    %921 = vmatpush.bf16.msra.mxu0 0
    %922 = vmatpush.bf16.msra.mxu0 0
    %923 = vmatpush.bf16.msra.mxu0 0
    %924 = vmatpush.bf16.msra.mxu0 0
    %925 = vmatpush.bf16.msra.mxu0 0
    %926 = vmatpush.bf16.msra.mxu0 %v911
    %927 = vmatpush.bf16.msra.mxu0 %v910
    %928 = vmatmul.bf16.gmra.mxu0 %v915
    %v929 = vpop.f32.mrf.mxu0
    %v930 = vadd.f32 0.0, %v929
    %v931 = vpop.f32.mrf.mxu0
    %v932 = vadd.f32 0.0, %v931
    %933 = vmatmul.bf16.gmra.mxu0 %v918
    %v934 = vpop.f32.mrf.mxu0
    %v935 = vadd.f32 0.0, %v934
    %v936 = vpop.f32.mrf.mxu0
    %v937 = vadd.f32 0.0, %v936
    %938 = vdwg.mxu0
    %v943 = vunpack.c.l.b16 %v844
    %v944 = vunpack.c.l.b16 %v845
    %v945 = vunpack.c.l.b16 %v846
    %v946 = vunpack.c.l.b16 %v847
    %v947 = vpack.c.b16 %v944, %v943
    %v948 = vpack.c.b16 %v946, %v945
    %v952 = vsel %vm403, %v879, 0
    %v955 = vsel %vm403, %v880, 0
    %957 = vmatpush.bf16.msra.mxu0 0
    %958 = vmatpush.bf16.msra.mxu0 0
    %959 = vmatpush.bf16.msra.mxu0 0
    %960 = vmatpush.bf16.msra.mxu0 0
    %961 = vmatpush.bf16.msra.mxu0 0
    %962 = vmatpush.bf16.msra.mxu0 0
    %963 = vmatpush.bf16.msra.mxu0 %v948
    %964 = vmatpush.bf16.msra.mxu0 %v947
    %965 = vmatmul.bf16.gmra.mxu0 %v952
    %v966 = vpop.f32.mrf.mxu0
    %v967 = vadd.f32 %v930, %v966
    %v968 = vpop.f32.mrf.mxu0
    %v969 = vadd.f32 %v932, %v968
    %970 = vmatmul.bf16.gmra.mxu0 %v955
    %v971 = vpop.f32.mrf.mxu0
    %v972 = vadd.f32 %v935, %v971
    %v973 = vpop.f32.mrf.mxu0
    %v974 = vadd.f32 %v937, %v973
    %975 = vdwg.mxu0
    %976 = vmatpush.bf16.msra.mxu0 0
    %977 = vmatpush.bf16.msra.mxu0 0
    %978 = vmatpush.bf16.msra.mxu0 0
    %979 = vmatpush.bf16.msra.mxu0 0
    %980 = vmatpush.bf16.msra.mxu0 0
    %981 = vmatpush.bf16.msra.mxu0 0
    %982 = vmatpush.bf16.msra.mxu0 %v859
    %983 = vmatpush.bf16.msra.mxu0 %v858
    %984 = vmatmul.bf16.gmra.mxu0 %v521
    %v985 = vpop.f32.mrf.mxu0
    %v986 = vadd.f32 0.0, %v985
    %v987 = vpop.f32.mrf.mxu0
    %v988 = vadd.f32 0.0, %v987
    %989 = vmatmul.bf16.gmra.mxu0 %v524
    %v990 = vpop.f32.mrf.mxu0
    %v991 = vadd.f32 0.0, %v990
    %v992 = vpop.f32.mrf.mxu0
    %v993 = vadd.f32 0.0, %v992
    %994 = vdwg.mxu0
    %v995 = vpack.c.bf16 %v988, %v986
    %v996 = vpack.c.bf16 %v993, %v991
    %v1001 = vunpack.c.l.b16 %v854
    %v1002 = vunpack.c.l.b16 %v855
    %v1003 = vunpack.c.l.b16 %v856
    %v1004 = vunpack.c.l.b16 %v857
    %v1005 = vpack.c.b16 %v1002, %v1001
    %v1006 = vpack.c.b16 %v1004, %v1003
    %v1010 = vsel %vm403, %v995, 0
    %v1013 = vsel %vm403, %v996, 0
    %1015 = vmatpush.bf16.msra.mxu0 0
    %1016 = vmatpush.bf16.msra.mxu0 0
    %1017 = vmatpush.bf16.msra.mxu0 0
    %1018 = vmatpush.bf16.msra.mxu0 0
    %1019 = vmatpush.bf16.msra.mxu0 0
    %1020 = vmatpush.bf16.msra.mxu0 0
    %1021 = vmatpush.bf16.msra.mxu0 %v1006
    %1022 = vmatpush.bf16.msra.mxu0 %v1005
    %1023 = vmatmul.bf16.gmra.mxu0 %v1010
    %v1024 = vpop.f32.mrf.mxu0
    %v1025 = vadd.f32 0.0, %v1024
    %v1026 = vpop.f32.mrf.mxu0
    %v1027 = vadd.f32 0.0, %v1026
    %1028 = vmatmul.bf16.gmra.mxu0 %v1013
    %v1029 = vpop.f32.mrf.mxu0
    %v1030 = vadd.f32 0.0, %v1029
    %v1031 = vpop.f32.mrf.mxu0
    %v1032 = vadd.f32 0.0, %v1031
    %1033 = vdwg.mxu0
    %v1034 = vadd.f32 %v967, %v1025
    %v1035 = vadd.f32 %v969, %v1027
    %v1036 = vadd.f32 %v972, %v1030
    %v1037 = vadd.f32 %v974, %v1032
    %v1038 = vpack.c.bf16 %v841, %v840
    %v1039 = vpack.c.bf16 %v843, %v842
    %1040 = vmatpush.bf16.msra.mxu0 0
    %1041 = vmatpush.bf16.msra.mxu0 0
    %1042 = vmatpush.bf16.msra.mxu0 0
    %1043 = vmatpush.bf16.msra.mxu0 0
    %1044 = vmatpush.bf16.msra.mxu0 0
    %1045 = vmatpush.bf16.msra.mxu0 0
    %1046 = vmatpush.bf16.msra.mxu0 %v1039
    %1047 = vmatpush.bf16.msra.mxu0 %v1038
    %1048 = vmatmul.bf16.gmra.mxu0 %v405
    %v1049 = vpop.f32.mrf.mxu0
    %v1050 = vadd.f32 0.0, %v1049
    %v1051 = vpop.f32.mrf.mxu0
    %v1052 = vadd.f32 0.0, %v1051
    %1053 = vmatmul.bf16.gmra.mxu0 %v408
    %v1054 = vpop.f32.mrf.mxu0
    %v1055 = vadd.f32 0.0, %v1054
    %v1056 = vpop.f32.mrf.mxu0
    %v1057 = vadd.f32 0.0, %v1056
    %1058 = vdwg.mxu0
    %v1059 = vpack.c.bf16 %v1052, %v1050
    %v1060 = vpack.c.bf16 %v1057, %v1055
    %1061 = vmatpush.bf16.msra.mxu0 0
    %1062 = vmatpush.bf16.msra.mxu0 0
    %1063 = vmatpush.bf16.msra.mxu0 0
    %1064 = vmatpush.bf16.msra.mxu0 0
    %1065 = vmatpush.bf16.msra.mxu0 0
    %1066 = vmatpush.bf16.msra.mxu0 0
    %1067 = vmatpush.bf16.msra.mxu0 %v1039
    %1068 = vmatpush.bf16.msra.mxu0 %v1038
    %1069 = vmatmul.bf16.gmra.mxu0 %v432
    %v1070 = vpop.f32.mrf.mxu0
    %v1071 = vadd.f32 0.0, %v1070
    %v1072 = vpop.f32.mrf.mxu0
    %v1073 = vadd.f32 0.0, %v1072
    %1074 = vmatmul.bf16.gmra.mxu0 %v435
    %v1075 = vpop.f32.mrf.mxu0
    %v1076 = vadd.f32 0.0, %v1075
    %v1077 = vpop.f32.mrf.mxu0
    %v1078 = vadd.f32 0.0, %v1077
    %1079 = vdwg.mxu0
    %v1080 = vpack.c.bf16 %v1073, %v1071
    %v1081 = vpack.c.bf16 %v1078, %v1076
    %v1083 = vsel %vm403, %v1080, 0
    %v1086 = vsel %vm403, %v1081, 0
    %1088 = vmatpush.bf16.msra.mxu0 0
    %1089 = vmatpush.bf16.msra.mxu0 0
    %1090 = vmatpush.bf16.msra.mxu0 0
    %1091 = vmatpush.bf16.msra.mxu0 0
    %1092 = vmatpush.bf16.msra.mxu0 0
    %1093 = vmatpush.bf16.msra.mxu0 0
    %1094 = vmatpush.bf16.msra.mxu0 %v911
    %1095 = vmatpush.bf16.msra.mxu0 %v910
    %1096 = vmatmul.bf16.gmra.mxu0 %v1083
    %v1097 = vpop.f32.mrf.mxu0
    %v1098 = vadd.f32 0.0, %v1097
    %v1099 = vpop.f32.mrf.mxu0
    %v1100 = vadd.f32 0.0, %v1099
    %1101 = vmatmul.bf16.gmra.mxu0 %v1086
    %v1102 = vpop.f32.mrf.mxu0
    %v1103 = vadd.f32 0.0, %v1102
    %v1104 = vpop.f32.mrf.mxu0
    %v1105 = vadd.f32 0.0, %v1104
    %1106 = vdwg.mxu0
    %v1108 = vsel %vm403, %v1059, 0
    %v1111 = vsel %vm403, %v1060, 0
    %1113 = vmatpush.bf16.msra.mxu0 0
    %1114 = vmatpush.bf16.msra.mxu0 0
    %1115 = vmatpush.bf16.msra.mxu0 0
    %1116 = vmatpush.bf16.msra.mxu0 0
    %1117 = vmatpush.bf16.msra.mxu0 0
    %1118 = vmatpush.bf16.msra.mxu0 0
    %1119 = vmatpush.bf16.msra.mxu0 %v948
    %1120 = vmatpush.bf16.msra.mxu0 %v947
    %1121 = vmatmul.bf16.gmra.mxu0 %v1108
    %v1122 = vpop.f32.mrf.mxu0
    %v1123 = vadd.f32 %v1098, %v1122
    %v1124 = vpop.f32.mrf.mxu0
    %v1125 = vadd.f32 %v1100, %v1124
    %1126 = vmatmul.bf16.gmra.mxu0 %v1111
    %v1127 = vpop.f32.mrf.mxu0
    %v1128 = vadd.f32 %v1103, %v1127
    %v1129 = vpop.f32.mrf.mxu0
    %v1130 = vadd.f32 %v1105, %v1129
    %1131 = vdwg.mxu0
    %1132 = vmatpush.bf16.msra.mxu0 0
    %1133 = vmatpush.bf16.msra.mxu0 0
    %1134 = vmatpush.bf16.msra.mxu0 0
    %1135 = vmatpush.bf16.msra.mxu0 0
    %1136 = vmatpush.bf16.msra.mxu0 0
    %1137 = vmatpush.bf16.msra.mxu0 0
    %1138 = vmatpush.bf16.msra.mxu0 %v1039
    %1139 = vmatpush.bf16.msra.mxu0 %v1038
    %1140 = vmatmul.bf16.gmra.mxu0 %v521
    %v1141 = vpop.f32.mrf.mxu0
    %v1142 = vadd.f32 0.0, %v1141
    %v1143 = vpop.f32.mrf.mxu0
    %v1144 = vadd.f32 0.0, %v1143
    %1145 = vmatmul.bf16.gmra.mxu0 %v524
    %v1146 = vpop.f32.mrf.mxu0
    %v1147 = vadd.f32 0.0, %v1146
    %v1148 = vpop.f32.mrf.mxu0
    %v1149 = vadd.f32 0.0, %v1148
    %1150 = vdwg.mxu0
    %v1151 = vpack.c.bf16 %v1144, %v1142
    %v1152 = vpack.c.bf16 %v1149, %v1147
    %v1154 = vsel %vm403, %v1151, 0
    %v1157 = vsel %vm403, %v1152, 0
    %1159 = vmatpush.bf16.msra.mxu0 0
    %1160 = vmatpush.bf16.msra.mxu0 0
    %1161 = vmatpush.bf16.msra.mxu0 0
    %1162 = vmatpush.bf16.msra.mxu0 0
    %1163 = vmatpush.bf16.msra.mxu0 0
    %1164 = vmatpush.bf16.msra.mxu0 0
    %1165 = vmatpush.bf16.msra.mxu0 %v1006
    %1166 = vmatpush.bf16.msra.mxu0 %v1005
    %1167 = vmatmul.bf16.gmra.mxu0 %v1154
    %v1168 = vpop.f32.mrf.mxu0
    %v1169 = vadd.f32 0.0, %v1168
    %v1170 = vpop.f32.mrf.mxu0
    %v1171 = vadd.f32 0.0, %v1170
    %1172 = vmatmul.bf16.gmra.mxu0 %v1157
    %v1173 = vpop.f32.mrf.mxu0
    %v1174 = vadd.f32 0.0, %v1173
    %v1175 = vpop.f32.mrf.mxu0
    %v1176 = vadd.f32 0.0, %v1175
    %1177 = vdwg.mxu0
    %v1178 = vadd.f32 %v1123, %v1169
    %v1179 = vadd.f32 %v1125, %v1171
    %v1180 = vadd.f32 %v1128, %v1174
    %v1181 = vadd.f32 %v1130, %v1176
    %v1182 = vld [vmem:[%s21] sm:$0xf]
    %v1183 = vld [vmem:[%s21 + $0x4] sm:$0xf]
    %v1186 = vunpack.c.l.b16 %v1182
    %v1187 = vunpack.c.l.b16 %v1183
    %v1188 = vpack.c.b16 %v1187, %v1186
    %1190 = vmatpush.bf16.msra.mxu0 0
    %1191 = vmatpush.bf16.msra.mxu0 0
    %1192 = vmatpush.bf16.msra.mxu0 0
    %1193 = vmatpush.bf16.msra.mxu0 0
    %1194 = vmatpush.bf16.msra.mxu0 0
    %1195 = vmatpush.bf16.msra.mxu0 0
    %1196 = vmatpush.bf16.msra.mxu0 0
    %1197 = vmatpush.bf16.msra.mxu0 %v1188
    %1198 = vmatmul.bf16.gmra.mxu0 %v465
    %v1199 = vpop.f32.mrf.mxu0
    %v1200 = vadd.f32 0.0, %v1199
    %v1201 = vpop.f32.mrf.mxu0
    %v1202 = vadd.f32 0.0, %v1201
    %1203 = vmatmul.bf16.gmra.mxu0 %v468
    %v1204 = vpop.f32.mrf.mxu0
    %v1205 = vadd.f32 0.0, %v1204
    %v1206 = vpop.f32.mrf.mxu0
    %v1207 = vadd.f32 0.0, %v1206
    %1208 = vdwg.mxu0
    %1209 = vmatpush.bf16.msra.mxu0 0
    %1210 = vmatpush.bf16.msra.mxu0 0
    %1211 = vmatpush.bf16.msra.mxu0 0
    %1212 = vmatpush.bf16.msra.mxu0 0
    %1213 = vmatpush.bf16.msra.mxu0 0
    %1214 = vmatpush.bf16.msra.mxu0 0
    %1215 = vmatpush.bf16.msra.mxu0 0
    %1216 = vmatpush.bf16.msra.mxu0 %v1188
    %1217 = vmatmul.bf16.gmra.mxu0 %v627
    %v1218 = vpop.f32.mrf.mxu0
    %v1219 = vadd.f32 0.0, %v1218
    %v1220 = vpop.f32.mrf.mxu0
    %v1221 = vadd.f32 0.0, %v1220
    %1222 = vmatmul.bf16.gmra.mxu0 %v630
    %v1223 = vpop.f32.mrf.mxu0
    %v1224 = vadd.f32 0.0, %v1223
    %v1225 = vpop.f32.mrf.mxu0
    %v1226 = vadd.f32 0.0, %v1225
    %1227 = vdwg.mxu0
    %v1228 = vadd.f32 %v1034, %v1200
    %v1229 = vadd.f32 %v1035, %v1202
    %v1230 = vadd.f32 %v1036, %v1205
    %v1231 = vadd.f32 %v1037, %v1207
    %v1232 = vadd.f32 %v1178, %v1219
    %v1233 = vadd.f32 %v1179, %v1221
    %v1234 = vadd.f32 %v1180, %v1224
    %v1235 = vadd.f32 %v1181, %v1226
    %v1236 = vld [vmem:[%s17] sm:$0x1]
    %v1237 = vld [vmem:[%s19] sm:$0x1]
    %v1238 = vsel %vm403, %v1228, 0.0
    %v1239 = vsel %vm403, %v1229, 0.0
    %v1240 = vadd.f32 %v1238, %v1239
    %v1241 = vsel %vm403, %v1230, 0.0
    %v1242 = vadd.f32 %v1240, %v1241
    %v1243 = vsel %vm403, %v1231, 0.0
    %v1244 = vadd.f32 %v1242, %v1243
    %v1245 = vrot.slane %v1244, 4
    %v1246 = vadd.f32 %v1244, %v1245
    %v1247 = vrot.slane %v1246, 2
    %v1248 = vadd.f32 %v1246, %v1247
    %v1249 = vrot.slane %v1248, 1
    %v1250 = vadd.f32 %v1248, %v1249
    %v1251 = vsel %vm403, %v1232, 0.0
    %v1252 = vsel %vm403, %v1233, 0.0
    %v1253 = vadd.f32 %v1251, %v1252
    %v1254 = vsel %vm403, %v1234, 0.0
    %v1255 = vadd.f32 %v1253, %v1254
    %v1256 = vsel %vm403, %v1235, 0.0
    %v1257 = vadd.f32 %v1255, %v1256
    %v1258 = vrot.slane %v1257, 4
    %v1259 = vadd.f32 %v1257, %v1258
    %v1260 = vrot.slane %v1259, 2
    %v1261 = vadd.f32 %v1259, %v1260
    %v1262 = vrot.slane %v1261, 1
    %v1263 = vadd.f32 %v1261, %v1262
    %v1264 = vadd.f32 %v1250, %v1263
    %v1265 = vmul.f32 %v1264, 0.015625
    %v1266 = vsub.f32 %v1228, %v1265
    %v1267 = vsub.f32 %v1229, %v1265
    %v1268 = vsub.f32 %v1230, %v1265
    %v1269 = vsub.f32 %v1231, %v1265
    %v1270 = vmul.f32 %v1266, %v1266
    %v1271 = vmul.f32 %v1267, %v1267
    %v1272 = vmul.f32 %v1268, %v1268
    %v1273 = vmul.f32 %v1269, %v1269
    %v1274 = vsel %vm403, %v1270, 0.0
    %v1275 = vsel %vm403, %v1271, 0.0
    %v1276 = vadd.f32 %v1274, %v1275
    %v1277 = vsel %vm403, %v1272, 0.0
    %v1278 = vadd.f32 %v1276, %v1277
    %v1279 = vsel %vm403, %v1273, 0.0
    %v1280 = vadd.f32 %v1278, %v1279
    %v1281 = vrot.slane %v1280, 4
    %v1282 = vadd.f32 %v1280, %v1281
    %v1283 = vrot.slane %v1282, 2
    %v1284 = vadd.f32 %v1282, %v1283
    %v1285 = vrot.slane %v1284, 1
    %v1286 = vadd.f32 %v1284, %v1285
    %v1287 = vsub.f32 %v1232, %v1265
    %v1288 = vsub.f32 %v1233, %v1265
    %v1289 = vsub.f32 %v1234, %v1265
    %v1290 = vsub.f32 %v1235, %v1265
    %v1291 = vmul.f32 %v1287, %v1287
    %v1292 = vmul.f32 %v1288, %v1288
    %v1293 = vmul.f32 %v1289, %v1289
    %v1294 = vmul.f32 %v1290, %v1290
    %v1295 = vsel %vm403, %v1291, 0.0
    %v1296 = vsel %vm403, %v1292, 0.0
    %v1297 = vadd.f32 %v1295, %v1296
    %v1298 = vsel %vm403, %v1293, 0.0
    %v1299 = vadd.f32 %v1297, %v1298
    %v1300 = vsel %vm403, %v1294, 0.0
    %v1301 = vadd.f32 %v1299, %v1300
    %v1302 = vrot.slane %v1301, 4
    %v1303 = vadd.f32 %v1301, %v1302
    %v1304 = vrot.slane %v1303, 2
    %v1305 = vadd.f32 %v1303, %v1304
    %v1306 = vrot.slane %v1305, 1
    %v1307 = vadd.f32 %v1305, %v1306
    %v1308 = vadd.f32 %v1286, %v1307
    %v1309 = vmul.f32 %v1308, 0.015625
    %v1310 = vadd.f32 %v1309, 1e-05
    %v1311 = vrsqrt.pop %v1310
    %v1312 = vmul.f32 %v1311, %v1310
    %v1313 = vmul.f32 %v1312, %v1311
    %v1314 = vmul.f32 0.5, %v1313
    %v1315 = vsub.f32 1.5, %v1314
    %v1316 = vmul.f32 %v1311, %v1315
    %vm1317 = vweird.f32 %v1310
    %vm1318 = vweird.f32 %v1311
    %vm1319 = vmor %vm1317, %vm1318
    %v1320 = vsel %vm1319, %v1311, %v1316
    %v1321 = vmul.f32 %v1236, %v1320
    %v1322 = vmul.f32 %v1265, %v1321
    %v1323 = vsub.f32 %v1237, %v1322
    %v1325 = vperm.slane %v1321, 0
    %v1327 = vmul.f32 %v1228, %v1325
    %v1328 = vmul.f32 %v1229, %v1325
    %v1329 = vmul.f32 %v1230, %v1325
    %v1330 = vmul.f32 %v1231, %v1325
    %v1332 = vperm.slane %v1323, 0
    %v1334 = vadd.f32 %v1327, %v1332
    %v1335 = vadd.f32 %v1328, %v1332
    %v1336 = vadd.f32 %v1329, %v1332
    %v1337 = vadd.f32 %v1330, %v1332
    %v1338 = vmax.f32 %v1334, 0.0
    %v1339 = vmax.f32 %v1335, 0.0
    %v1340 = vmax.f32 %v1336, 0.0
    %v1341 = vmax.f32 %v1337, 0.0
    %v1342 = vmul.f32 %v1232, %v1325
    %v1343 = vmul.f32 %v1233, %v1325
    %v1344 = vmul.f32 %v1234, %v1325
    %v1345 = vmul.f32 %v1235, %v1325
    %v1346 = vadd.f32 %v1342, %v1332
    %v1347 = vadd.f32 %v1343, %v1332
    %v1348 = vadd.f32 %v1344, %v1332
    %v1349 = vadd.f32 %v1345, %v1332
    %v1350 = vmax.f32 %v1346, 0.0
    %v1351 = vmax.f32 %v1347, 0.0
    %v1352 = vmax.f32 %v1348, 0.0
    %v1353 = vmax.f32 %v1349, 0.0
    %v1354 = vmul.u32 %v349, 2
    %v1355 = vmul.u32 %v350, 2
    %v1356 = vadd.s32 %v1354, 4294967295
    %v1357 = vadd.s32 %v1355, 4294967295
    %vm1358 = vcmp.eq.s32.totalorder %v354, %v1356
    %vm1359 = vcmp.eq.s32.totalorder %v354, %v1357
    %v1360 = vsel %vm1358, 1.0, 0.0
    %v1361 = vsel %vm1359, 1.0, 0.0
    %v1362 = vpack.c.bf16 %v1361, %v1360
    %vm1363 = vcmp.eq.s32.totalorder %v354, %v1354
    %vm1364 = vcmp.eq.s32.totalorder %v354, %v1355
    %v1365 = vsel %vm1363, 1.0, 0.0
    %v1366 = vsel %vm1364, 1.0, 0.0
    %v1367 = vpack.c.bf16 %v1366, %v1365
    %v1368 = vadd.s32 %v1354, 1
    %v1369 = vadd.s32 %v1355, 1
    %vm1370 = vcmp.eq.s32.totalorder %v354, %v1368
    %vm1371 = vcmp.eq.s32.totalorder %v354, %v1369
    %v1372 = vsel %vm1370, 1.0, 0.0
    %v1373 = vsel %vm1371, 1.0, 0.0
    %v1374 = vpack.c.bf16 %v1373, %v1372
    %v1375 = vld [vmem:[%s23] sm:$0xf]
    %v1376 = vld [vmem:[%s23 + $0x4] sm:$0xf]
    %v1377 = vld [vmem:[%s23 + $0x8] sm:$0xf]
    %v1378 = vld [vmem:[%s23 + $0xc] sm:$0xf]
    %s1379 = scalar_lea.vmem %s23, 16
    %v1380 = vld [vmem:[%s1379] sm:$0xf]
    %v1381 = vld [vmem:[%s1379 + $0x4] sm:$0xf]
    %v1382 = vld [vmem:[%s1379 + $0x8] sm:$0xf]
    %v1383 = vld [vmem:[%s1379 + $0xc] sm:$0xf]
    %s1384 = scalar_lea.vmem %s23, 32
    %v1385 = vld [vmem:[%s1384] sm:$0xf]
    %v1386 = vld [vmem:[%s1384 + $0x4] sm:$0xf]
    %v1387 = vld [vmem:[%s1384 + $0x8] sm:$0xf]
    %v1388 = vld [vmem:[%s1384 + $0xc] sm:$0xf]
    %v1389 = vpack.c.bf16 %v1339, %v1338
    %v1390 = vpack.c.bf16 %v1341, %v1340
    %v1392 = vsel %vm403, %v1362, 0
    %1394 = vmatpush.bf16.msra.mxu0 0
    %1395 = vmatpush.bf16.msra.mxu0 0
    %1396 = vmatpush.bf16.msra.mxu0 0
    %1397 = vmatpush.bf16.msra.mxu0 0
    %1398 = vmatpush.bf16.msra.mxu0 0
    %1399 = vmatpush.bf16.msra.mxu0 0
    %1400 = vmatpush.bf16.msra.mxu0 %v1390
    %1401 = vmatpush.bf16.msra.mxu0 %v1389
    %1402 = vmatmul.bf16.gmra.mxu0 %v1392
    %v1403 = vpop.f32.mrf.mxu0
    %v1404 = vadd.f32 0.0, %v1403
    %v1405 = vpop.f32.mrf.mxu0
    %v1406 = vadd.f32 0.0, %v1405
    %1407 = vdwg.mxu0
    %v1408 = vpack.c.bf16 %v1406, %v1404
    %v1410 = vsel %vm403, %v1367, 0
    %1412 = vmatpush.bf16.msra.mxu0 0
    %1413 = vmatpush.bf16.msra.mxu0 0
    %1414 = vmatpush.bf16.msra.mxu0 0
    %1415 = vmatpush.bf16.msra.mxu0 0
    %1416 = vmatpush.bf16.msra.mxu0 0
    %1417 = vmatpush.bf16.msra.mxu0 0
    %1418 = vmatpush.bf16.msra.mxu0 %v1390
    %1419 = vmatpush.bf16.msra.mxu0 %v1389
    %1420 = vmatmul.bf16.gmra.mxu0 %v1410
    %v1421 = vpop.f32.mrf.mxu0
    %v1422 = vadd.f32 0.0, %v1421
    %v1423 = vpop.f32.mrf.mxu0
    %v1424 = vadd.f32 0.0, %v1423
    %1425 = vdwg.mxu0
    %v1426 = vpack.c.bf16 %v1424, %v1422
    %v1431 = vunpack.c.l.b16 %v1380
    %v1432 = vunpack.c.l.b16 %v1381
    %v1433 = vunpack.c.l.b16 %v1382
    %v1434 = vunpack.c.l.b16 %v1383
    %v1435 = vpack.c.b16 %v1432, %v1431
    %v1436 = vpack.c.b16 %v1434, %v1433
    %v1440 = vsel %vm403, %v1426, 0
    %1442 = vmatpush.bf16.msra.mxu0 0
    %1443 = vmatpush.bf16.msra.mxu0 0
    %1444 = vmatpush.bf16.msra.mxu0 0
    %1445 = vmatpush.bf16.msra.mxu0 0
    %1446 = vmatpush.bf16.msra.mxu0 0
    %1447 = vmatpush.bf16.msra.mxu0 0
    %1448 = vmatpush.bf16.msra.mxu0 %v1436
    %1449 = vmatpush.bf16.msra.mxu0 %v1435
    %1450 = vmatmul.bf16.gmra.mxu0 %v1440
    %v1451 = vpop.f32.mrf.mxu0
    %v1452 = vadd.f32 0.0, %v1451
    %v1453 = vpop.f32.mrf.mxu0
    %v1454 = vadd.f32 0.0, %v1453
    %1455 = vdwg.mxu0
    %v1460 = vunpack.c.l.b16 %v1375
    %v1461 = vunpack.c.l.b16 %v1376
    %v1462 = vunpack.c.l.b16 %v1377
    %v1463 = vunpack.c.l.b16 %v1378
    %v1464 = vpack.c.b16 %v1461, %v1460
    %v1465 = vpack.c.b16 %v1463, %v1462
    %v1469 = vsel %vm403, %v1408, 0
    %1471 = vmatpush.bf16.msra.mxu0 0
    %1472 = vmatpush.bf16.msra.mxu0 0
    %1473 = vmatpush.bf16.msra.mxu0 0
    %1474 = vmatpush.bf16.msra.mxu0 0
    %1475 = vmatpush.bf16.msra.mxu0 0
    %1476 = vmatpush.bf16.msra.mxu0 0
    %1477 = vmatpush.bf16.msra.mxu0 %v1465
    %1478 = vmatpush.bf16.msra.mxu0 %v1464
    %1479 = vmatmul.bf16.gmra.mxu0 %v1469
    %v1480 = vpop.f32.mrf.mxu0
    %v1481 = vadd.f32 %v1452, %v1480
    %v1482 = vpop.f32.mrf.mxu0
    %v1483 = vadd.f32 %v1454, %v1482
    %1484 = vdwg.mxu0
    %v1486 = vsel %vm403, %v1374, 0
    %1488 = vmatpush.bf16.msra.mxu0 0
    %1489 = vmatpush.bf16.msra.mxu0 0
    %1490 = vmatpush.bf16.msra.mxu0 0
    %1491 = vmatpush.bf16.msra.mxu0 0
    %1492 = vmatpush.bf16.msra.mxu0 0
    %1493 = vmatpush.bf16.msra.mxu0 0
    %1494 = vmatpush.bf16.msra.mxu0 %v1390
    %1495 = vmatpush.bf16.msra.mxu0 %v1389
    %1496 = vmatmul.bf16.gmra.mxu0 %v1486
    %v1497 = vpop.f32.mrf.mxu0
    %v1498 = vadd.f32 0.0, %v1497
    %v1499 = vpop.f32.mrf.mxu0
    %v1500 = vadd.f32 0.0, %v1499
    %1501 = vdwg.mxu0
    %v1502 = vpack.c.bf16 %v1500, %v1498
    %v1507 = vunpack.c.l.b16 %v1385
    %v1508 = vunpack.c.l.b16 %v1386
    %v1509 = vunpack.c.l.b16 %v1387
    %v1510 = vunpack.c.l.b16 %v1388
    %v1511 = vpack.c.b16 %v1508, %v1507
    %v1512 = vpack.c.b16 %v1510, %v1509
    %v1516 = vsel %vm403, %v1502, 0
    %1518 = vmatpush.bf16.msra.mxu0 0
    %1519 = vmatpush.bf16.msra.mxu0 0
    %1520 = vmatpush.bf16.msra.mxu0 0
    %1521 = vmatpush.bf16.msra.mxu0 0
    %1522 = vmatpush.bf16.msra.mxu0 0
    %1523 = vmatpush.bf16.msra.mxu0 0
    %1524 = vmatpush.bf16.msra.mxu0 %v1512
    %1525 = vmatpush.bf16.msra.mxu0 %v1511
    %1526 = vmatmul.bf16.gmra.mxu0 %v1516
    %v1527 = vpop.f32.mrf.mxu0
    %v1528 = vadd.f32 0.0, %v1527
    %v1529 = vpop.f32.mrf.mxu0
    %v1530 = vadd.f32 0.0, %v1529
    %1531 = vdwg.mxu0
    %v1532 = vadd.f32 %v1481, %v1528
    %v1533 = vadd.f32 %v1483, %v1530
    %v1534 = vpack.c.bf16 %v1351, %v1350
    %v1535 = vpack.c.bf16 %v1353, %v1352
    %1536 = vmatpush.bf16.msra.mxu0 0
    %1537 = vmatpush.bf16.msra.mxu0 0
    %1538 = vmatpush.bf16.msra.mxu0 0
    %1539 = vmatpush.bf16.msra.mxu0 0
    %1540 = vmatpush.bf16.msra.mxu0 0
    %1541 = vmatpush.bf16.msra.mxu0 0
    %1542 = vmatpush.bf16.msra.mxu0 %v1535
    %1543 = vmatpush.bf16.msra.mxu0 %v1534
    %1544 = vmatmul.bf16.gmra.mxu0 %v1392
    %v1545 = vpop.f32.mrf.mxu0
    %v1546 = vadd.f32 0.0, %v1545
    %v1547 = vpop.f32.mrf.mxu0
    %v1548 = vadd.f32 0.0, %v1547
    %1549 = vdwg.mxu0
    %v1550 = vpack.c.bf16 %v1548, %v1546
    %1551 = vmatpush.bf16.msra.mxu0 0
    %1552 = vmatpush.bf16.msra.mxu0 0
    %1553 = vmatpush.bf16.msra.mxu0 0
    %1554 = vmatpush.bf16.msra.mxu0 0
    %1555 = vmatpush.bf16.msra.mxu0 0
    %1556 = vmatpush.bf16.msra.mxu0 0
    %1557 = vmatpush.bf16.msra.mxu0 %v1535
    %1558 = vmatpush.bf16.msra.mxu0 %v1534
    %1559 = vmatmul.bf16.gmra.mxu0 %v1410
    %v1560 = vpop.f32.mrf.mxu0
    %v1561 = vadd.f32 0.0, %v1560
    %v1562 = vpop.f32.mrf.mxu0
    %v1563 = vadd.f32 0.0, %v1562
    %1564 = vdwg.mxu0
    %v1565 = vpack.c.bf16 %v1563, %v1561
    %v1567 = vsel %vm403, %v1565, 0
    %1569 = vmatpush.bf16.msra.mxu0 0
    %1570 = vmatpush.bf16.msra.mxu0 0
    %1571 = vmatpush.bf16.msra.mxu0 0
    %1572 = vmatpush.bf16.msra.mxu0 0
    %1573 = vmatpush.bf16.msra.mxu0 0
    %1574 = vmatpush.bf16.msra.mxu0 0
    %1575 = vmatpush.bf16.msra.mxu0 %v1436
    %1576 = vmatpush.bf16.msra.mxu0 %v1435
    %1577 = vmatmul.bf16.gmra.mxu0 %v1567
    %v1578 = vpop.f32.mrf.mxu0
    %v1579 = vadd.f32 0.0, %v1578
    %v1580 = vpop.f32.mrf.mxu0
    %v1581 = vadd.f32 0.0, %v1580
    %1582 = vdwg.mxu0
    %v1584 = vsel %vm403, %v1550, 0
    %1586 = vmatpush.bf16.msra.mxu0 0
    %1587 = vmatpush.bf16.msra.mxu0 0
    %1588 = vmatpush.bf16.msra.mxu0 0
    %1589 = vmatpush.bf16.msra.mxu0 0
    %1590 = vmatpush.bf16.msra.mxu0 0
    %1591 = vmatpush.bf16.msra.mxu0 0
    %1592 = vmatpush.bf16.msra.mxu0 %v1465
    %1593 = vmatpush.bf16.msra.mxu0 %v1464
    %1594 = vmatmul.bf16.gmra.mxu0 %v1584
    %v1595 = vpop.f32.mrf.mxu0
    %v1596 = vadd.f32 %v1579, %v1595
    %v1597 = vpop.f32.mrf.mxu0
    %v1598 = vadd.f32 %v1581, %v1597
    %1599 = vdwg.mxu0
    %1600 = vmatpush.bf16.msra.mxu0 0
    %1601 = vmatpush.bf16.msra.mxu0 0
    %1602 = vmatpush.bf16.msra.mxu0 0
    %1603 = vmatpush.bf16.msra.mxu0 0
    %1604 = vmatpush.bf16.msra.mxu0 0
    %1605 = vmatpush.bf16.msra.mxu0 0
    %1606 = vmatpush.bf16.msra.mxu0 %v1535
    %1607 = vmatpush.bf16.msra.mxu0 %v1534
    %1608 = vmatmul.bf16.gmra.mxu0 %v1486
    %v1609 = vpop.f32.mrf.mxu0
    %v1610 = vadd.f32 0.0, %v1609
    %v1611 = vpop.f32.mrf.mxu0
    %v1612 = vadd.f32 0.0, %v1611
    %1613 = vdwg.mxu0
    %v1614 = vpack.c.bf16 %v1612, %v1610
    %v1616 = vsel %vm403, %v1614, 0
    %1618 = vmatpush.bf16.msra.mxu0 0
    %1619 = vmatpush.bf16.msra.mxu0 0
    %1620 = vmatpush.bf16.msra.mxu0 0
    %1621 = vmatpush.bf16.msra.mxu0 0
    %1622 = vmatpush.bf16.msra.mxu0 0
    %1623 = vmatpush.bf16.msra.mxu0 0
    %1624 = vmatpush.bf16.msra.mxu0 %v1512
    %1625 = vmatpush.bf16.msra.mxu0 %v1511
    %1626 = vmatmul.bf16.gmra.mxu0 %v1616
    %v1627 = vpop.f32.mrf.mxu0
    %v1628 = vadd.f32 0.0, %v1627
    %v1629 = vpop.f32.mrf.mxu0
    %v1630 = vadd.f32 0.0, %v1629
    %1631 = vdwg.mxu0
    %v1632 = vadd.f32 %v1596, %v1628
    %v1633 = vadd.f32 %v1598, %v1630
    %v1634 = vld [vmem:[%s25] sm:$0x1]
    %v1635 = vld [vmem:[%s27] sm:$0x1]
    %vm1636 = vcmask 523264
    %v1637 = vsel %vm1636, %v1532, 0.0
    %v1638 = vsel %vm1636, %v1533, 0.0
    %v1639 = vadd.f32 %v1637, %v1638
    %v1640 = vrot.slane %v1639, 4
    %v1641 = vadd.f32 %v1639, %v1640
    %v1642 = vrot.slane %v1641, 2
    %v1643 = vadd.f32 %v1641, %v1642
    %v1644 = vrot.slane %v1643, 1
    %v1645 = vadd.f32 %v1643, %v1644
    %v1646 = vsel %vm1636, %v1632, 0.0
    %v1647 = vsel %vm1636, %v1633, 0.0
    %v1648 = vadd.f32 %v1646, %v1647
    %v1649 = vrot.slane %v1648, 4
    %v1650 = vadd.f32 %v1648, %v1649
    %v1651 = vrot.slane %v1650, 2
    %v1652 = vadd.f32 %v1650, %v1651
    %v1653 = vrot.slane %v1652, 1
    %v1654 = vadd.f32 %v1652, %v1653
    %v1655 = vadd.f32 %v1645, %v1654
    %v1656 = vmul.f32 %v1655, 0.03125
    %v1657 = vsub.f32 %v1532, %v1656
    %v1658 = vsub.f32 %v1533, %v1656
    %v1659 = vmul.f32 %v1657, %v1657
    %v1660 = vmul.f32 %v1658, %v1658
    %v1661 = vsel %vm1636, %v1659, 0.0
    %v1662 = vsel %vm1636, %v1660, 0.0
    %v1663 = vadd.f32 %v1661, %v1662
    %v1664 = vrot.slane %v1663, 4
    %v1665 = vadd.f32 %v1663, %v1664
    %v1666 = vrot.slane %v1665, 2
    %v1667 = vadd.f32 %v1665, %v1666
    %v1668 = vrot.slane %v1667, 1
    %v1669 = vadd.f32 %v1667, %v1668
    %v1670 = vsub.f32 %v1632, %v1656
    %v1671 = vsub.f32 %v1633, %v1656
    %v1672 = vmul.f32 %v1670, %v1670
    %v1673 = vmul.f32 %v1671, %v1671
    %v1674 = vsel %vm1636, %v1672, 0.0
    %v1675 = vsel %vm1636, %v1673, 0.0
    %v1676 = vadd.f32 %v1674, %v1675
    %v1677 = vrot.slane %v1676, 4
    %v1678 = vadd.f32 %v1676, %v1677
    %v1679 = vrot.slane %v1678, 2
    %v1680 = vadd.f32 %v1678, %v1679
    %v1681 = vrot.slane %v1680, 1
    %v1682 = vadd.f32 %v1680, %v1681
    %v1683 = vadd.f32 %v1669, %v1682
    %v1684 = vmul.f32 %v1683, 0.03125
    %v1685 = vadd.f32 %v1684, 1e-05
    %v1686 = vrsqrt.pop %v1685
    %v1687 = vmul.f32 %v1686, %v1685
    %v1688 = vmul.f32 %v1687, %v1686
    %v1689 = vmul.f32 0.5, %v1688
    %v1690 = vsub.f32 1.5, %v1689
    %v1691 = vmul.f32 %v1686, %v1690
    %vm1692 = vweird.f32 %v1685
    %vm1693 = vweird.f32 %v1686
    %vm1694 = vmor %vm1692, %vm1693
    %v1695 = vsel %vm1694, %v1686, %v1691
    %v1696 = vmul.f32 %v1634, %v1695
    %v1697 = vmul.f32 %v1656, %v1696
    %v1698 = vsub.f32 %v1635, %v1697
    %v1700 = vperm.slane %v1696, 0
    %v1702 = vmul.f32 %v1532, %v1700
    %v1703 = vmul.f32 %v1533, %v1700
    %v1705 = vperm.slane %v1698, 0
    %v1707 = vadd.f32 %v1702, %v1705
    %v1708 = vadd.f32 %v1703, %v1705
    %v1709 = vmax.f32 %v1707, 0.0
    %v1710 = vmax.f32 %v1708, 0.0
    %v1711 = vmul.f32 %v1632, %v1700
    %v1712 = vmul.f32 %v1633, %v1700
    %v1713 = vadd.f32 %v1711, %v1705
    %v1714 = vadd.f32 %v1712, %v1705
    %v1715 = vmax.f32 %v1713, 0.0
    %v1716 = vmax.f32 %v1714, 0.0
    %v1717 = vld [vmem:[%s29] sm:$0xf]
    %v1718 = vld [vmem:[%s29 + $0x4] sm:$0xf]
    %v1719 = vld [vmem:[%s29 + $0x8] sm:$0xf]
    %v1720 = vld [vmem:[%s29 + $0xc] sm:$0xf]
    %v1721 = vld [vmem:[%s29 + $0x10] sm:$0xf]
    %v1722 = vld [vmem:[%s29 + $0x14] sm:$0xf]
    %v1723 = vld [vmem:[%s29 + $0x18] sm:$0xf]
    %v1724 = vld [vmem:[%s29 + $0x1c] sm:$0xf]
    %s1725 = scalar_lea.vmem %s29, 32
    %v1726 = vld [vmem:[%s1725] sm:$0xf]
    %v1727 = vld [vmem:[%s1725 + $0x4] sm:$0xf]
    %v1728 = vld [vmem:[%s1725 + $0x8] sm:$0xf]
    %v1729 = vld [vmem:[%s1725 + $0xc] sm:$0xf]
    %v1730 = vld [vmem:[%s1725 + $0x10] sm:$0xf]
    %v1731 = vld [vmem:[%s1725 + $0x14] sm:$0xf]
    %v1732 = vld [vmem:[%s1725 + $0x18] sm:$0xf]
    %v1733 = vld [vmem:[%s1725 + $0x1c] sm:$0xf]
    %s1734 = scalar_lea.vmem %s29, 64
    %v1735 = vld [vmem:[%s1734] sm:$0xf]
    %v1736 = vld [vmem:[%s1734 + $0x4] sm:$0xf]
    %v1737 = vld [vmem:[%s1734 + $0x8] sm:$0xf]
    %v1738 = vld [vmem:[%s1734 + $0xc] sm:$0xf]
    %v1739 = vld [vmem:[%s1734 + $0x10] sm:$0xf]
    %v1740 = vld [vmem:[%s1734 + $0x14] sm:$0xf]
    %v1741 = vld [vmem:[%s1734 + $0x18] sm:$0xf]
    %v1742 = vld [vmem:[%s1734 + $0x1c] sm:$0xf]
    %v1743 = vpack.c.bf16 %v1710, %v1709
    %v1744 = vsel %vm231, %v367, 0
    %1746 = vmatpush.bf16.msra.mxu0 0
    %1747 = vmatpush.bf16.msra.mxu0 0
    %1748 = vmatpush.bf16.msra.mxu0 0
    %1749 = vmatpush.bf16.msra.mxu0 0
    %1750 = vmatpush.bf16.msra.mxu0 0
    %1751 = vmatpush.bf16.msra.mxu0 0
    %1752 = vmatpush.bf16.msra.mxu0 0
    %1753 = vmatpush.bf16.msra.mxu0 %v1743
    %1754 = vmatmul.bf16.gmra.mxu0 %v1744
    %v1755 = vpop.f32.mrf.mxu0
    %v1756 = vadd.f32 0.0, %v1755
    %v1757 = vpop.f32.mrf.mxu0
    %v1758 = vadd.f32 0.0, %v1757
    %1759 = vdwg.mxu0
    %v1760 = vpack.c.bf16 %v1758, %v1756
    %v1761 = vsel %vm231, %v377, 0
    %1763 = vmatpush.bf16.msra.mxu0 0
    %1764 = vmatpush.bf16.msra.mxu0 0
    %1765 = vmatpush.bf16.msra.mxu0 0
    %1766 = vmatpush.bf16.msra.mxu0 0
    %1767 = vmatpush.bf16.msra.mxu0 0
    %1768 = vmatpush.bf16.msra.mxu0 0
    %1769 = vmatpush.bf16.msra.mxu0 0
    %1770 = vmatpush.bf16.msra.mxu0 %v1743
    %1771 = vmatmul.bf16.gmra.mxu0 %v1761
    %v1772 = vpop.f32.mrf.mxu0
    %v1773 = vadd.f32 0.0, %v1772
    %v1774 = vpop.f32.mrf.mxu0
    %v1775 = vadd.f32 0.0, %v1774
    %1776 = vdwg.mxu0
    %v1777 = vpack.c.bf16 %v1775, %v1773
    %v1786 = vunpack.c.l.b16 %v1726
    %v1787 = vunpack.c.l.b16 %v1727
    %v1788 = vunpack.c.l.b16 %v1728
    %v1789 = vunpack.c.l.b16 %v1729
    %v1790 = vunpack.c.l.b16 %v1730
    %v1791 = vunpack.c.l.b16 %v1731
    %v1792 = vunpack.c.l.b16 %v1732
    %v1793 = vunpack.c.l.b16 %v1733
    %v1794 = vpack.c.b16 %v1787, %v1786
    %v1795 = vpack.c.b16 %v1789, %v1788
    %v1796 = vpack.c.b16 %v1791, %v1790
    %v1797 = vpack.c.b16 %v1793, %v1792
    %v1803 = vsel %vm1636, %v1777, 0
    %1805 = vmatpush.bf16.msra.mxu0 0
    %1806 = vmatpush.bf16.msra.mxu0 0
    %1807 = vmatpush.bf16.msra.mxu0 0
    %1808 = vmatpush.bf16.msra.mxu0 0
    %1809 = vmatpush.bf16.msra.mxu0 %v1797
    %1810 = vmatpush.bf16.msra.mxu0 %v1796
    %1811 = vmatpush.bf16.msra.mxu0 %v1795
    %1812 = vmatpush.bf16.msra.mxu0 %v1794
    %1813 = vmatmul.bf16.gmra.mxu0 %v1803
    %v1814 = vpop.f32.mrf.mxu0
    %v1815 = vadd.f32 0.0, %v1814
    %v1816 = vpop.f32.mrf.mxu0
    %v1817 = vadd.f32 0.0, %v1816
    %1818 = vdwg.mxu0
    %v1827 = vunpack.c.l.b16 %v1717
    %v1828 = vunpack.c.l.b16 %v1718
    %v1829 = vunpack.c.l.b16 %v1719
    %v1830 = vunpack.c.l.b16 %v1720
    %v1831 = vunpack.c.l.b16 %v1721
    %v1832 = vunpack.c.l.b16 %v1722
    %v1833 = vunpack.c.l.b16 %v1723
    %v1834 = vunpack.c.l.b16 %v1724
    %v1835 = vpack.c.b16 %v1828, %v1827
    %v1836 = vpack.c.b16 %v1830, %v1829
    %v1837 = vpack.c.b16 %v1832, %v1831
    %v1838 = vpack.c.b16 %v1834, %v1833
    %v1844 = vsel %vm1636, %v1760, 0
    %1846 = vmatpush.bf16.msra.mxu0 0
    %1847 = vmatpush.bf16.msra.mxu0 0
    %1848 = vmatpush.bf16.msra.mxu0 0
    %1849 = vmatpush.bf16.msra.mxu0 0
    %1850 = vmatpush.bf16.msra.mxu0 %v1838
    %1851 = vmatpush.bf16.msra.mxu0 %v1837
    %1852 = vmatpush.bf16.msra.mxu0 %v1836
    %1853 = vmatpush.bf16.msra.mxu0 %v1835
    %1854 = vmatmul.bf16.gmra.mxu0 %v1844
    %v1855 = vpop.f32.mrf.mxu0
    %v1856 = vadd.f32 %v1815, %v1855
    %v1857 = vpop.f32.mrf.mxu0
    %v1858 = vadd.f32 %v1817, %v1857
    %1859 = vdwg.mxu0
    %v1860 = vsel %vm231, %v391, 0
    %1862 = vmatpush.bf16.msra.mxu0 0
    %1863 = vmatpush.bf16.msra.mxu0 0
    %1864 = vmatpush.bf16.msra.mxu0 0
    %1865 = vmatpush.bf16.msra.mxu0 0
    %1866 = vmatpush.bf16.msra.mxu0 0
    %1867 = vmatpush.bf16.msra.mxu0 0
    %1868 = vmatpush.bf16.msra.mxu0 0
    %1869 = vmatpush.bf16.msra.mxu0 %v1743
    %1870 = vmatmul.bf16.gmra.mxu0 %v1860
    %v1871 = vpop.f32.mrf.mxu0
    %v1872 = vadd.f32 0.0, %v1871
    %v1873 = vpop.f32.mrf.mxu0
    %v1874 = vadd.f32 0.0, %v1873
    %1875 = vdwg.mxu0
    %v1876 = vpack.c.bf16 %v1874, %v1872
    %v1885 = vunpack.c.l.b16 %v1735
    %v1886 = vunpack.c.l.b16 %v1736
    %v1887 = vunpack.c.l.b16 %v1737
    %v1888 = vunpack.c.l.b16 %v1738
    %v1889 = vunpack.c.l.b16 %v1739
    %v1890 = vunpack.c.l.b16 %v1740
    %v1891 = vunpack.c.l.b16 %v1741
    %v1892 = vunpack.c.l.b16 %v1742
    %v1893 = vpack.c.b16 %v1886, %v1885
    %v1894 = vpack.c.b16 %v1888, %v1887
    %v1895 = vpack.c.b16 %v1890, %v1889
    %v1896 = vpack.c.b16 %v1892, %v1891
    %v1902 = vsel %vm1636, %v1876, 0
    %1904 = vmatpush.bf16.msra.mxu0 0
    %1905 = vmatpush.bf16.msra.mxu0 0
    %1906 = vmatpush.bf16.msra.mxu0 0
    %1907 = vmatpush.bf16.msra.mxu0 0
    %1908 = vmatpush.bf16.msra.mxu0 %v1896
    %1909 = vmatpush.bf16.msra.mxu0 %v1895
    %1910 = vmatpush.bf16.msra.mxu0 %v1894
    %1911 = vmatpush.bf16.msra.mxu0 %v1893
    %1912 = vmatmul.bf16.gmra.mxu0 %v1902
    %v1913 = vpop.f32.mrf.mxu0
    %v1914 = vadd.f32 0.0, %v1913
    %v1915 = vpop.f32.mrf.mxu0
    %v1916 = vadd.f32 0.0, %v1915
    %1917 = vdwg.mxu0
    %v1918 = vadd.f32 %v1856, %v1914
    %v1919 = vadd.f32 %v1858, %v1916
    %v1920 = vpack.c.bf16 %v1716, %v1715
    %1921 = vmatpush.bf16.msra.mxu0 0
    %1922 = vmatpush.bf16.msra.mxu0 0
    %1923 = vmatpush.bf16.msra.mxu0 0
    %1924 = vmatpush.bf16.msra.mxu0 0
    %1925 = vmatpush.bf16.msra.mxu0 0
    %1926 = vmatpush.bf16.msra.mxu0 0
    %1927 = vmatpush.bf16.msra.mxu0 0
    %1928 = vmatpush.bf16.msra.mxu0 %v1920
    %1929 = vmatmul.bf16.gmra.mxu0 %v1744
    %v1930 = vpop.f32.mrf.mxu0
    %v1931 = vadd.f32 0.0, %v1930
    %v1932 = vpop.f32.mrf.mxu0
    %v1933 = vadd.f32 0.0, %v1932
    %1934 = vdwg.mxu0
    %v1935 = vpack.c.bf16 %v1933, %v1931
    %1936 = vmatpush.bf16.msra.mxu0 0
    %1937 = vmatpush.bf16.msra.mxu0 0
    %1938 = vmatpush.bf16.msra.mxu0 0
    %1939 = vmatpush.bf16.msra.mxu0 0
    %1940 = vmatpush.bf16.msra.mxu0 0
    %1941 = vmatpush.bf16.msra.mxu0 0
    %1942 = vmatpush.bf16.msra.mxu0 0
    %1943 = vmatpush.bf16.msra.mxu0 %v1920
    %1944 = vmatmul.bf16.gmra.mxu0 %v1761
    %v1945 = vpop.f32.mrf.mxu0
    %v1946 = vadd.f32 0.0, %v1945
    %v1947 = vpop.f32.mrf.mxu0
    %v1948 = vadd.f32 0.0, %v1947
    %1949 = vdwg.mxu0
    %v1950 = vpack.c.bf16 %v1948, %v1946
    %v1952 = vsel %vm1636, %v1950, 0
    %1954 = vmatpush.bf16.msra.mxu0 0
    %1955 = vmatpush.bf16.msra.mxu0 0
    %1956 = vmatpush.bf16.msra.mxu0 0
    %1957 = vmatpush.bf16.msra.mxu0 0
    %1958 = vmatpush.bf16.msra.mxu0 %v1797
    %1959 = vmatpush.bf16.msra.mxu0 %v1796
    %1960 = vmatpush.bf16.msra.mxu0 %v1795
    %1961 = vmatpush.bf16.msra.mxu0 %v1794
    %1962 = vmatmul.bf16.gmra.mxu0 %v1952
    %v1963 = vpop.f32.mrf.mxu0
    %v1964 = vadd.f32 0.0, %v1963
    %v1965 = vpop.f32.mrf.mxu0
    %v1966 = vadd.f32 0.0, %v1965
    %1967 = vdwg.mxu0
    %v1969 = vsel %vm1636, %v1935, 0
    %1971 = vmatpush.bf16.msra.mxu0 0
    %1972 = vmatpush.bf16.msra.mxu0 0
    %1973 = vmatpush.bf16.msra.mxu0 0
    %1974 = vmatpush.bf16.msra.mxu0 0
    %1975 = vmatpush.bf16.msra.mxu0 %v1838
    %1976 = vmatpush.bf16.msra.mxu0 %v1837
    %1977 = vmatpush.bf16.msra.mxu0 %v1836
    %1978 = vmatpush.bf16.msra.mxu0 %v1835
    %1979 = vmatmul.bf16.gmra.mxu0 %v1969
    %v1980 = vpop.f32.mrf.mxu0
    %v1981 = vadd.f32 %v1964, %v1980
    %v1982 = vpop.f32.mrf.mxu0
    %v1983 = vadd.f32 %v1966, %v1982
    %1984 = vdwg.mxu0
    %1985 = vmatpush.bf16.msra.mxu0 0
    %1986 = vmatpush.bf16.msra.mxu0 0
    %1987 = vmatpush.bf16.msra.mxu0 0
    %1988 = vmatpush.bf16.msra.mxu0 0
    %1989 = vmatpush.bf16.msra.mxu0 0
    %1990 = vmatpush.bf16.msra.mxu0 0
    %1991 = vmatpush.bf16.msra.mxu0 0
    %1992 = vmatpush.bf16.msra.mxu0 %v1920
    %1993 = vmatmul.bf16.gmra.mxu0 %v1860
    %v1994 = vpop.f32.mrf.mxu0
    %v1995 = vadd.f32 0.0, %v1994
    %v1996 = vpop.f32.mrf.mxu0
    %v1997 = vadd.f32 0.0, %v1996
    %1998 = vdwg.mxu0
    %v1999 = vpack.c.bf16 %v1997, %v1995
    %v2001 = vsel %vm1636, %v1999, 0
    %2003 = vmatpush.bf16.msra.mxu0 0
    %2004 = vmatpush.bf16.msra.mxu0 0
    %2005 = vmatpush.bf16.msra.mxu0 0
    %2006 = vmatpush.bf16.msra.mxu0 0
    %2007 = vmatpush.bf16.msra.mxu0 %v1896
    %2008 = vmatpush.bf16.msra.mxu0 %v1895
    %2009 = vmatpush.bf16.msra.mxu0 %v1894
    %2010 = vmatpush.bf16.msra.mxu0 %v1893
    %2011 = vmatmul.bf16.gmra.mxu0 %v2001
    %v2012 = vpop.f32.mrf.mxu0
    %v2013 = vadd.f32 0.0, %v2012
    %v2014 = vpop.f32.mrf.mxu0
    %v2015 = vadd.f32 0.0, %v2014
    %2016 = vdwg.mxu0
    %v2017 = vadd.f32 %v1981, %v2013
    %v2018 = vadd.f32 %v1983, %v2015
    %v2019 = vld [vmem:[%s35] sm:$0xf]
    %v2020 = vld [vmem:[%s35 + $0x4] sm:$0xf]
    %v2021 = vld [vmem:[%s35 + $0x8] sm:$0xf]
    %v2022 = vld [vmem:[%s35 + $0xc] sm:$0xf]
    %v2027 = vunpack.c.l.b16 %v2019
    %v2028 = vunpack.c.l.b16 %v2020
    %v2029 = vunpack.c.l.b16 %v2021
    %v2030 = vunpack.c.l.b16 %v2022
    %v2031 = vpack.c.b16 %v2028, %v2027
    %v2032 = vpack.c.b16 %v2030, %v2029
    %2035 = vmatpush.bf16.msra.mxu0 0
    %2036 = vmatpush.bf16.msra.mxu0 0
    %2037 = vmatpush.bf16.msra.mxu0 0
    %2038 = vmatpush.bf16.msra.mxu0 0
    %2039 = vmatpush.bf16.msra.mxu0 0
    %2040 = vmatpush.bf16.msra.mxu0 0
    %2041 = vmatpush.bf16.msra.mxu0 %v2032
    %2042 = vmatpush.bf16.msra.mxu0 %v2031
    %2043 = vmatmul.bf16.gmra.mxu0 %v1440
    %v2044 = vpop.f32.mrf.mxu0
    %v2045 = vadd.f32 0.0, %v2044
    %v2046 = vpop.f32.mrf.mxu0
    %v2047 = vadd.f32 0.0, %v2046
    %2048 = vdwg.mxu0
    %2049 = vmatpush.bf16.msra.mxu0 0
    %2050 = vmatpush.bf16.msra.mxu0 0
    %2051 = vmatpush.bf16.msra.mxu0 0
    %2052 = vmatpush.bf16.msra.mxu0 0
    %2053 = vmatpush.bf16.msra.mxu0 0
    %2054 = vmatpush.bf16.msra.mxu0 0
    %2055 = vmatpush.bf16.msra.mxu0 %v2032
    %2056 = vmatpush.bf16.msra.mxu0 %v2031
    %2057 = vmatmul.bf16.gmra.mxu0 %v1567
    %v2058 = vpop.f32.mrf.mxu0
    %v2059 = vadd.f32 0.0, %v2058
    %v2060 = vpop.f32.mrf.mxu0
    %v2061 = vadd.f32 0.0, %v2060
    %2062 = vdwg.mxu0
    %v2063 = vadd.f32 %v1918, %v2045
    %v2064 = vadd.f32 %v1919, %v2047
    %v2065 = vadd.f32 %v2017, %v2059
    %v2066 = vadd.f32 %v2018, %v2061
    %v2067 = vld [vmem:[%s31] sm:$0x1]
    %v2068 = vld [vmem:[%s33] sm:$0x1]
    %v2069 = vsel %vm1636, %v2063, 0.0
    %v2070 = vsel %vm1636, %v2064, 0.0
    %v2071 = vadd.f32 %v2069, %v2070
    %v2072 = vrot.slane %v2071, 4
    %v2073 = vadd.f32 %v2071, %v2072
    %v2074 = vrot.slane %v2073, 2
    %v2075 = vadd.f32 %v2073, %v2074
    %v2076 = vrot.slane %v2075, 1
    %v2077 = vadd.f32 %v2075, %v2076
    %v2078 = vsel %vm1636, %v2065, 0.0
    %v2079 = vsel %vm1636, %v2066, 0.0
    %v2080 = vadd.f32 %v2078, %v2079
    %v2081 = vrot.slane %v2080, 4
    %v2082 = vadd.f32 %v2080, %v2081
    %v2083 = vrot.slane %v2082, 2
    %v2084 = vadd.f32 %v2082, %v2083
    %v2085 = vrot.slane %v2084, 1
    %v2086 = vadd.f32 %v2084, %v2085
    %v2087 = vadd.f32 %v2077, %v2086
    %v2088 = vmul.f32 %v2087, 0.03125
    %v2089 = vsub.f32 %v2063, %v2088
    %v2090 = vsub.f32 %v2064, %v2088
    %v2091 = vmul.f32 %v2089, %v2089
    %v2092 = vmul.f32 %v2090, %v2090
    %v2093 = vsel %vm1636, %v2091, 0.0
    %v2094 = vsel %vm1636, %v2092, 0.0
    %v2095 = vadd.f32 %v2093, %v2094
    %v2096 = vrot.slane %v2095, 4
    %v2097 = vadd.f32 %v2095, %v2096
    %v2098 = vrot.slane %v2097, 2
    %v2099 = vadd.f32 %v2097, %v2098
    %v2100 = vrot.slane %v2099, 1
    %v2101 = vadd.f32 %v2099, %v2100
    %v2102 = vsub.f32 %v2065, %v2088
    %v2103 = vsub.f32 %v2066, %v2088
    %v2104 = vmul.f32 %v2102, %v2102
    %v2105 = vmul.f32 %v2103, %v2103
    %v2106 = vsel %vm1636, %v2104, 0.0
    %v2107 = vsel %vm1636, %v2105, 0.0
    %v2108 = vadd.f32 %v2106, %v2107
    %v2109 = vrot.slane %v2108, 4
    %v2110 = vadd.f32 %v2108, %v2109
    %v2111 = vrot.slane %v2110, 2
    %v2112 = vadd.f32 %v2110, %v2111
    %v2113 = vrot.slane %v2112, 1
    %v2114 = vadd.f32 %v2112, %v2113
    %v2115 = vadd.f32 %v2101, %v2114
    %v2116 = vmul.f32 %v2115, 0.03125
    %v2117 = vadd.f32 %v2116, 1e-05
    %v2118 = vrsqrt.pop %v2117
    %v2119 = vmul.f32 %v2118, %v2117
    %v2120 = vmul.f32 %v2119, %v2118
    %v2121 = vmul.f32 0.5, %v2120
    %v2122 = vsub.f32 1.5, %v2121
    %v2123 = vmul.f32 %v2118, %v2122
    %vm2124 = vweird.f32 %v2117
    %vm2125 = vweird.f32 %v2118
    %vm2126 = vmor %vm2124, %vm2125
    %v2127 = vsel %vm2126, %v2118, %v2123
    %v2128 = vmul.f32 %v2067, %v2127
    %v2129 = vmul.f32 %v2088, %v2128
    %v2130 = vsub.f32 %v2068, %v2129
    %v2132 = vperm.slane %v2128, 0
    %v2134 = vmul.f32 %v2063, %v2132
    %v2135 = vmul.f32 %v2064, %v2132
    %v2137 = vperm.slane %v2130, 0
    %v2139 = vadd.f32 %v2134, %v2137
    %v2140 = vadd.f32 %v2135, %v2137
    %v2141 = vmax.f32 %v2139, 0.0
    %v2142 = vmax.f32 %v2140, 0.0
    %v2143 = vmul.f32 %v2065, %v2132
    %v2144 = vmul.f32 %v2066, %v2132
    %v2145 = vadd.f32 %v2143, %v2137
    %v2146 = vadd.f32 %v2144, %v2137
    %v2147 = vmax.f32 %v2145, 0.0
    %v2148 = vmax.f32 %v2146, 0.0
    %v2149 = vpack.c.bf16 %v1360, %v1360
    %v2150 = vpack.c.bf16 %v1365, %v1365
    %v2151 = vpack.c.bf16 %v1372, %v1372
    %v2152 = vld [vmem:[%s37] sm:$0xf]
    %v2153 = vld [vmem:[%s37 + $0x4] sm:$0xf]
    %v2154 = vld [vmem:[%s37 + $0x8] sm:$0xf]
    %v2155 = vld [vmem:[%s37 + $0xc] sm:$0xf]
    %v2156 = vld [vmem:[%s37 + $0x10] sm:$0xf]
    %v2157 = vld [vmem:[%s37 + $0x14] sm:$0xf]
    %v2158 = vld [vmem:[%s37 + $0x18] sm:$0xf]
    %v2159 = vld [vmem:[%s37 + $0x1c] sm:$0xf]
    %s2160 = scalar_lea.vmem %s37, 32
    %v2161 = vld [vmem:[%s2160] sm:$0xf]
    %v2162 = vld [vmem:[%s2160 + $0x4] sm:$0xf]
    %v2163 = vld [vmem:[%s2160 + $0x8] sm:$0xf]
    %v2164 = vld [vmem:[%s2160 + $0xc] sm:$0xf]
    %v2165 = vld [vmem:[%s2160 + $0x10] sm:$0xf]
    %v2166 = vld [vmem:[%s2160 + $0x14] sm:$0xf]
    %v2167 = vld [vmem:[%s2160 + $0x18] sm:$0xf]
    %v2168 = vld [vmem:[%s2160 + $0x1c] sm:$0xf]
    %s2169 = scalar_lea.vmem %s37, 64
    %v2170 = vld [vmem:[%s2169] sm:$0xf]
    %v2171 = vld [vmem:[%s2169 + $0x4] sm:$0xf]
    %v2172 = vld [vmem:[%s2169 + $0x8] sm:$0xf]
    %v2173 = vld [vmem:[%s2169 + $0xc] sm:$0xf]
    %v2174 = vld [vmem:[%s2169 + $0x10] sm:$0xf]
    %v2175 = vld [vmem:[%s2169 + $0x14] sm:$0xf]
    %v2176 = vld [vmem:[%s2169 + $0x18] sm:$0xf]
    %v2177 = vld [vmem:[%s2169 + $0x1c] sm:$0xf]
    %v2178 = vpack.c.bf16 %v2142, %v2141
    %v2180 = vsel %vm231, %v2149, 0
    %2182 = vmatpush.bf16.msra.mxu0 0
    %2183 = vmatpush.bf16.msra.mxu0 0
    %2184 = vmatpush.bf16.msra.mxu0 0
    %2185 = vmatpush.bf16.msra.mxu0 0
    %2186 = vmatpush.bf16.msra.mxu0 0
    %2187 = vmatpush.bf16.msra.mxu0 0
    %2188 = vmatpush.bf16.msra.mxu0 0
    %2189 = vmatpush.bf16.msra.mxu0 %v2178
    %2190 = vmatmul.bf16.gmra.mxu0 %v2180
    %v2191 = vpop.f32.mrf.mxu0
    %v2192 = vadd.f32 0.0, %v2191
    %v2193 = vpop.f32.mrf.mxu0
    %2194 = vdwg.mxu0
    %v2195 = vpack.c.bf16 %v2192, %v2192
    %v2197 = vsel %vm231, %v2150, 0
    %2199 = vmatpush.bf16.msra.mxu0 0
    %2200 = vmatpush.bf16.msra.mxu0 0
    %2201 = vmatpush.bf16.msra.mxu0 0
    %2202 = vmatpush.bf16.msra.mxu0 0
    %2203 = vmatpush.bf16.msra.mxu0 0
    %2204 = vmatpush.bf16.msra.mxu0 0
    %2205 = vmatpush.bf16.msra.mxu0 0
    %2206 = vmatpush.bf16.msra.mxu0 %v2178
    %2207 = vmatmul.bf16.gmra.mxu0 %v2197
    %v2208 = vpop.f32.mrf.mxu0
    %v2209 = vadd.f32 0.0, %v2208
    %v2210 = vpop.f32.mrf.mxu0
    %2211 = vdwg.mxu0
    %v2212 = vpack.c.bf16 %v2209, %v2209
    %v2221 = vunpack.c.l.b16 %v2161
    %v2222 = vunpack.c.l.b16 %v2162
    %v2223 = vunpack.c.l.b16 %v2163
    %v2224 = vunpack.c.l.b16 %v2164
    %v2225 = vunpack.c.l.b16 %v2165
    %v2226 = vunpack.c.l.b16 %v2166
    %v2227 = vunpack.c.l.b16 %v2167
    %v2228 = vunpack.c.l.b16 %v2168
    %v2229 = vpack.c.b16 %v2222, %v2221
    %v2230 = vpack.c.b16 %v2224, %v2223
    %v2231 = vpack.c.b16 %v2226, %v2225
    %v2232 = vpack.c.b16 %v2228, %v2227
    %v2238 = vsel %vm1636, %v2212, 0
    %2240 = vmatpush.bf16.msra.mxu0 0
    %2241 = vmatpush.bf16.msra.mxu0 0
    %2242 = vmatpush.bf16.msra.mxu0 0
    %2243 = vmatpush.bf16.msra.mxu0 0
    %2244 = vmatpush.bf16.msra.mxu0 %v2232
    %2245 = vmatpush.bf16.msra.mxu0 %v2231
    %2246 = vmatpush.bf16.msra.mxu0 %v2230
    %2247 = vmatpush.bf16.msra.mxu0 %v2229
    %2248 = vmatmul.bf16.gmra.mxu0 %v2238
    %v2249 = vpop.f32.mrf.mxu0
    %v2250 = vadd.f32 0.0, %v2249
    %v2251 = vpop.f32.mrf.mxu0
    %2252 = vdwg.mxu0
    %v2261 = vunpack.c.l.b16 %v2152
    %v2262 = vunpack.c.l.b16 %v2153
    %v2263 = vunpack.c.l.b16 %v2154
    %v2264 = vunpack.c.l.b16 %v2155
    %v2265 = vunpack.c.l.b16 %v2156
    %v2266 = vunpack.c.l.b16 %v2157
    %v2267 = vunpack.c.l.b16 %v2158
    %v2268 = vunpack.c.l.b16 %v2159
    %v2269 = vpack.c.b16 %v2262, %v2261
    %v2270 = vpack.c.b16 %v2264, %v2263
    %v2271 = vpack.c.b16 %v2266, %v2265
    %v2272 = vpack.c.b16 %v2268, %v2267
    %v2278 = vsel %vm1636, %v2195, 0
    %2280 = vmatpush.bf16.msra.mxu0 0
    %2281 = vmatpush.bf16.msra.mxu0 0
    %2282 = vmatpush.bf16.msra.mxu0 0
    %2283 = vmatpush.bf16.msra.mxu0 0
    %2284 = vmatpush.bf16.msra.mxu0 %v2272
    %2285 = vmatpush.bf16.msra.mxu0 %v2271
    %2286 = vmatpush.bf16.msra.mxu0 %v2270
    %2287 = vmatpush.bf16.msra.mxu0 %v2269
    %2288 = vmatmul.bf16.gmra.mxu0 %v2278
    %v2289 = vpop.f32.mrf.mxu0
    %v2290 = vadd.f32 %v2250, %v2289
    %v2291 = vpop.f32.mrf.mxu0
    %2292 = vdwg.mxu0
    %v2294 = vsel %vm231, %v2151, 0
    %2296 = vmatpush.bf16.msra.mxu0 0
    %2297 = vmatpush.bf16.msra.mxu0 0
    %2298 = vmatpush.bf16.msra.mxu0 0
    %2299 = vmatpush.bf16.msra.mxu0 0
    %2300 = vmatpush.bf16.msra.mxu0 0
    %2301 = vmatpush.bf16.msra.mxu0 0
    %2302 = vmatpush.bf16.msra.mxu0 0
    %2303 = vmatpush.bf16.msra.mxu0 %v2178
    %2304 = vmatmul.bf16.gmra.mxu0 %v2294
    %v2305 = vpop.f32.mrf.mxu0
    %v2306 = vadd.f32 0.0, %v2305
    %v2307 = vpop.f32.mrf.mxu0
    %2308 = vdwg.mxu0
    %v2309 = vpack.c.bf16 %v2306, %v2306
    %v2318 = vunpack.c.l.b16 %v2170
    %v2319 = vunpack.c.l.b16 %v2171
    %v2320 = vunpack.c.l.b16 %v2172
    %v2321 = vunpack.c.l.b16 %v2173
    %v2322 = vunpack.c.l.b16 %v2174
    %v2323 = vunpack.c.l.b16 %v2175
    %v2324 = vunpack.c.l.b16 %v2176
    %v2325 = vunpack.c.l.b16 %v2177
    %v2326 = vpack.c.b16 %v2319, %v2318
    %v2327 = vpack.c.b16 %v2321, %v2320
    %v2328 = vpack.c.b16 %v2323, %v2322
    %v2329 = vpack.c.b16 %v2325, %v2324
    %v2335 = vsel %vm1636, %v2309, 0
    %2337 = vmatpush.bf16.msra.mxu0 0
    %2338 = vmatpush.bf16.msra.mxu0 0
    %2339 = vmatpush.bf16.msra.mxu0 0
    %2340 = vmatpush.bf16.msra.mxu0 0
    %2341 = vmatpush.bf16.msra.mxu0 %v2329
    %2342 = vmatpush.bf16.msra.mxu0 %v2328
    %2343 = vmatpush.bf16.msra.mxu0 %v2327
    %2344 = vmatpush.bf16.msra.mxu0 %v2326
    %2345 = vmatmul.bf16.gmra.mxu0 %v2335
    %v2346 = vpop.f32.mrf.mxu0
    %v2347 = vadd.f32 0.0, %v2346
    %v2348 = vpop.f32.mrf.mxu0
    %2349 = vdwg.mxu0
    %v2350 = vadd.f32 %v2290, %v2347
    %v2351 = vpack.c.bf16 %v2148, %v2147
    %2352 = vmatpush.bf16.msra.mxu0 0
    %2353 = vmatpush.bf16.msra.mxu0 0
    %2354 = vmatpush.bf16.msra.mxu0 0
    %2355 = vmatpush.bf16.msra.mxu0 0
    %2356 = vmatpush.bf16.msra.mxu0 0
    %2357 = vmatpush.bf16.msra.mxu0 0
    %2358 = vmatpush.bf16.msra.mxu0 0
    %2359 = vmatpush.bf16.msra.mxu0 %v2351
    %2360 = vmatmul.bf16.gmra.mxu0 %v2180
    %v2361 = vpop.f32.mrf.mxu0
    %v2362 = vadd.f32 0.0, %v2361
    %v2363 = vpop.f32.mrf.mxu0
    %2364 = vdwg.mxu0
    %v2365 = vpack.c.bf16 %v2362, %v2362
    %2366 = vmatpush.bf16.msra.mxu0 0
    %2367 = vmatpush.bf16.msra.mxu0 0
    %2368 = vmatpush.bf16.msra.mxu0 0
    %2369 = vmatpush.bf16.msra.mxu0 0
    %2370 = vmatpush.bf16.msra.mxu0 0
    %2371 = vmatpush.bf16.msra.mxu0 0
    %2372 = vmatpush.bf16.msra.mxu0 0
    %2373 = vmatpush.bf16.msra.mxu0 %v2351
    %2374 = vmatmul.bf16.gmra.mxu0 %v2197
    %v2375 = vpop.f32.mrf.mxu0
    %v2376 = vadd.f32 0.0, %v2375
    %v2377 = vpop.f32.mrf.mxu0
    %2378 = vdwg.mxu0
    %v2379 = vpack.c.bf16 %v2376, %v2376
    %v2381 = vsel %vm1636, %v2379, 0
    %2383 = vmatpush.bf16.msra.mxu0 0
    %2384 = vmatpush.bf16.msra.mxu0 0
    %2385 = vmatpush.bf16.msra.mxu0 0
    %2386 = vmatpush.bf16.msra.mxu0 0
    %2387 = vmatpush.bf16.msra.mxu0 %v2232
    %2388 = vmatpush.bf16.msra.mxu0 %v2231
    %2389 = vmatpush.bf16.msra.mxu0 %v2230
    %2390 = vmatpush.bf16.msra.mxu0 %v2229
    %2391 = vmatmul.bf16.gmra.mxu0 %v2381
    %v2392 = vpop.f32.mrf.mxu0
    %v2393 = vadd.f32 0.0, %v2392
    %v2394 = vpop.f32.mrf.mxu0
    %2395 = vdwg.mxu0
    %v2397 = vsel %vm1636, %v2365, 0
    %2399 = vmatpush.bf16.msra.mxu0 0
    %2400 = vmatpush.bf16.msra.mxu0 0
    %2401 = vmatpush.bf16.msra.mxu0 0
    %2402 = vmatpush.bf16.msra.mxu0 0
    %2403 = vmatpush.bf16.msra.mxu0 %v2272
    %2404 = vmatpush.bf16.msra.mxu0 %v2271
    %2405 = vmatpush.bf16.msra.mxu0 %v2270
    %2406 = vmatpush.bf16.msra.mxu0 %v2269
    %2407 = vmatmul.bf16.gmra.mxu0 %v2397
    %v2408 = vpop.f32.mrf.mxu0
    %v2409 = vadd.f32 %v2393, %v2408
    %v2410 = vpop.f32.mrf.mxu0
    %2411 = vdwg.mxu0
    %2412 = vmatpush.bf16.msra.mxu0 0
    %2413 = vmatpush.bf16.msra.mxu0 0
    %2414 = vmatpush.bf16.msra.mxu0 0
    %2415 = vmatpush.bf16.msra.mxu0 0
    %2416 = vmatpush.bf16.msra.mxu0 0
    %2417 = vmatpush.bf16.msra.mxu0 0
    %2418 = vmatpush.bf16.msra.mxu0 0
    %2419 = vmatpush.bf16.msra.mxu0 %v2351
    %2420 = vmatmul.bf16.gmra.mxu0 %v2294
    %v2421 = vpop.f32.mrf.mxu0
    %v2422 = vadd.f32 0.0, %v2421
    %v2423 = vpop.f32.mrf.mxu0
    %2424 = vdwg.mxu0
    %v2425 = vpack.c.bf16 %v2422, %v2422
    %v2427 = vsel %vm1636, %v2425, 0
    %2429 = vmatpush.bf16.msra.mxu0 0
    %2430 = vmatpush.bf16.msra.mxu0 0
    %2431 = vmatpush.bf16.msra.mxu0 0
    %2432 = vmatpush.bf16.msra.mxu0 0
    %2433 = vmatpush.bf16.msra.mxu0 %v2329
    %2434 = vmatpush.bf16.msra.mxu0 %v2328
    %2435 = vmatpush.bf16.msra.mxu0 %v2327
    %2436 = vmatpush.bf16.msra.mxu0 %v2326
    %2437 = vmatmul.bf16.gmra.mxu0 %v2427
    %v2438 = vpop.f32.mrf.mxu0
    %v2439 = vadd.f32 0.0, %v2438
    %v2440 = vpop.f32.mrf.mxu0
    %2441 = vdwg.mxu0
    %v2442 = vadd.f32 %v2409, %v2439
    %v2443 = vld [vmem:[%s39] sm:$0x1]
    %v2444 = vld [vmem:[%s41] sm:$0x1]
    %v2445 = vrot.slane %v2350, 4
    %v2446 = vadd.f32 %v2350, %v2445
    %v2447 = vrot.slane %v2446, 2
    %v2448 = vadd.f32 %v2446, %v2447
    %v2449 = vrot.slane %v2448, 1
    %v2450 = vadd.f32 %v2448, %v2449
    %v2451 = vrot.slane %v2442, 4
    %v2452 = vadd.f32 %v2442, %v2451
    %v2453 = vrot.slane %v2452, 2
    %v2454 = vadd.f32 %v2452, %v2453
    %v2455 = vrot.slane %v2454, 1
    %v2456 = vadd.f32 %v2454, %v2455
    %v2457 = vadd.f32 %v2450, %v2456
    %v2458 = vmul.f32 %v2457, 0.0625
    %v2459 = vsub.f32 %v2350, %v2458
    %v2460 = vmul.f32 %v2459, %v2459
    %v2461 = vrot.slane %v2460, 4
    %v2462 = vadd.f32 %v2460, %v2461
    %v2463 = vrot.slane %v2462, 2
    %v2464 = vadd.f32 %v2462, %v2463
    %v2465 = vrot.slane %v2464, 1
    %v2466 = vadd.f32 %v2464, %v2465
    %v2467 = vsub.f32 %v2442, %v2458
    %v2468 = vmul.f32 %v2467, %v2467
    %v2469 = vrot.slane %v2468, 4
    %v2470 = vadd.f32 %v2468, %v2469
    %v2471 = vrot.slane %v2470, 2
    %v2472 = vadd.f32 %v2470, %v2471
    %v2473 = vrot.slane %v2472, 1
    %v2474 = vadd.f32 %v2472, %v2473
    %v2475 = vadd.f32 %v2466, %v2474
    %v2476 = vmul.f32 %v2475, 0.0625
    %v2477 = vadd.f32 %v2476, 1e-05
    %v2478 = vrsqrt.pop %v2477
    %v2479 = vmul.f32 %v2478, %v2477
    %v2480 = vmul.f32 %v2479, %v2478
    %v2481 = vmul.f32 0.5, %v2480
    %v2482 = vsub.f32 1.5, %v2481
    %v2483 = vmul.f32 %v2478, %v2482
    %vm2484 = vweird.f32 %v2477
    %vm2485 = vweird.f32 %v2478
    %vm2486 = vmor %vm2484, %vm2485
    %v2487 = vsel %vm2486, %v2478, %v2483
    %v2488 = vmul.f32 %v2443, %v2487
    %v2489 = vmul.f32 %v2458, %v2488
    %v2490 = vsub.f32 %v2444, %v2489
    %v2492 = vperm.slane %v2488, 0
    %v2494 = vmul.f32 %v2350, %v2492
    %v2496 = vperm.slane %v2490, 0
    %v2498 = vadd.f32 %v2494, %v2496
    %v2499 = vmax.f32 %v2498, 0.0
    %v2500 = vmul.f32 %v2442, %v2492
    %v2501 = vadd.f32 %v2500, %v2496
    %v2502 = vmax.f32 %v2501, 0.0
    %v2503 = vpack.c.bf16 %v363, %v363
    %v2504 = vpack.c.bf16 %v373, %v373
    %v2505 = vpack.c.bf16 %v387, %v387
    %v2506 = vld [vmem:[%s43] sm:$0xf]
    %v2507 = vld [vmem:[%s43 + $0x4] sm:$0xf]
    %v2508 = vld [vmem:[%s43 + $0x8] sm:$0xf]
    %v2509 = vld [vmem:[%s43 + $0xc] sm:$0xf]
    %v2510 = vld [vmem:[%s43 + $0x10] sm:$0xf]
    %v2511 = vld [vmem:[%s43 + $0x14] sm:$0xf]
    %v2512 = vld [vmem:[%s43 + $0x18] sm:$0xf]
    %v2513 = vld [vmem:[%s43 + $0x1c] sm:$0xf]
    %v2514 = vld [vmem:[%s43 + $0x20] sm:$0xf]
    %v2515 = vld [vmem:[%s43 + $0x24] sm:$0xf]
    %v2516 = vld [vmem:[%s43 + $0x28] sm:$0xf]
    %v2517 = vld [vmem:[%s43 + $0x2c] sm:$0xf]
    %v2518 = vld [vmem:[%s43 + $0x30] sm:$0xf]
    %v2519 = vld [vmem:[%s43 + $0x34] sm:$0xf]
    %v2520 = vld [vmem:[%s43 + $0x38] sm:$0xf]
    %v2521 = vld [vmem:[%s43 + $0x3c] sm:$0xf]
    %s2522 = scalar_lea.vmem %s43, 64
    %v2523 = vld [vmem:[%s2522] sm:$0xf]
    %v2524 = vld [vmem:[%s2522 + $0x4] sm:$0xf]
    %v2525 = vld [vmem:[%s2522 + $0x8] sm:$0xf]
    %v2526 = vld [vmem:[%s2522 + $0xc] sm:$0xf]
    %v2527 = vld [vmem:[%s2522 + $0x10] sm:$0xf]
    %v2528 = vld [vmem:[%s2522 + $0x14] sm:$0xf]
    %v2529 = vld [vmem:[%s2522 + $0x18] sm:$0xf]
    %v2530 = vld [vmem:[%s2522 + $0x1c] sm:$0xf]
    %v2531 = vld [vmem:[%s2522 + $0x20] sm:$0xf]
    %v2532 = vld [vmem:[%s2522 + $0x24] sm:$0xf]
    %v2533 = vld [vmem:[%s2522 + $0x28] sm:$0xf]
    %v2534 = vld [vmem:[%s2522 + $0x2c] sm:$0xf]
    %v2535 = vld [vmem:[%s2522 + $0x30] sm:$0xf]
    %v2536 = vld [vmem:[%s2522 + $0x34] sm:$0xf]
    %v2537 = vld [vmem:[%s2522 + $0x38] sm:$0xf]
    %v2538 = vld [vmem:[%s2522 + $0x3c] sm:$0xf]
    %s2539 = scalar_lea.vmem %s43, 128
    %v2540 = vld [vmem:[%s2539] sm:$0xf]
    %v2541 = vld [vmem:[%s2539 + $0x4] sm:$0xf]
    %v2542 = vld [vmem:[%s2539 + $0x8] sm:$0xf]
    %v2543 = vld [vmem:[%s2539 + $0xc] sm:$0xf]
    %v2544 = vld [vmem:[%s2539 + $0x10] sm:$0xf]
    %v2545 = vld [vmem:[%s2539 + $0x14] sm:$0xf]
    %v2546 = vld [vmem:[%s2539 + $0x18] sm:$0xf]
    %v2547 = vld [vmem:[%s2539 + $0x1c] sm:$0xf]
    %v2548 = vld [vmem:[%s2539 + $0x20] sm:$0xf]
    %v2549 = vld [vmem:[%s2539 + $0x24] sm:$0xf]
    %v2550 = vld [vmem:[%s2539 + $0x28] sm:$0xf]
    %v2551 = vld [vmem:[%s2539 + $0x2c] sm:$0xf]
    %v2552 = vld [vmem:[%s2539 + $0x30] sm:$0xf]
    %v2553 = vld [vmem:[%s2539 + $0x34] sm:$0xf]
    %v2554 = vld [vmem:[%s2539 + $0x38] sm:$0xf]
    %v2555 = vld [vmem:[%s2539 + $0x3c] sm:$0xf]
    %v2556 = vpack.c.bf16 %v2499, %v2499
    %v2558 = vsel %vm159, %v2503, 0
    %v2561 = vsel %vm166, %v2556, 0
    %2563 = vmatpush.bf16.msra.mxu0 0
    %2564 = vmatpush.bf16.msra.mxu0 0
    %2565 = vmatpush.bf16.msra.mxu0 0
    %2566 = vmatpush.bf16.msra.mxu0 0
    %2567 = vmatpush.bf16.msra.mxu0 0
    %2568 = vmatpush.bf16.msra.mxu0 0
    %2569 = vmatpush.bf16.msra.mxu0 0
    %2570 = vmatpush.bf16.msra.mxu0 %v2561
    %2571 = vmatmul.bf16.gmra.mxu0 %v2558
    %v2572 = vpop.f32.mrf.mxu0
    %v2573 = vadd.f32 0.0, %v2572
    %v2574 = vpop.f32.mrf.mxu0
    %2575 = vdwg.mxu0
    %v2576 = vpack.c.bf16 %v2573, %v2573
    %v2578 = vsel %vm159, %v2504, 0
    %2580 = vmatpush.bf16.msra.mxu0 0
    %2581 = vmatpush.bf16.msra.mxu0 0
    %2582 = vmatpush.bf16.msra.mxu0 0
    %2583 = vmatpush.bf16.msra.mxu0 0
    %2584 = vmatpush.bf16.msra.mxu0 0
    %2585 = vmatpush.bf16.msra.mxu0 0
    %2586 = vmatpush.bf16.msra.mxu0 0
    %2587 = vmatpush.bf16.msra.mxu0 %v2561
    %2588 = vmatmul.bf16.gmra.mxu0 %v2578
    %v2589 = vpop.f32.mrf.mxu0
    %v2590 = vadd.f32 0.0, %v2589
    %v2591 = vpop.f32.mrf.mxu0
    %2592 = vdwg.mxu0
    %v2593 = vpack.c.bf16 %v2590, %v2590
    %v2610 = vunpack.c.l.b16 %v2523
    %v2611 = vunpack.c.l.b16 %v2524
    %v2612 = vunpack.c.l.b16 %v2525
    %v2613 = vunpack.c.l.b16 %v2526
    %v2614 = vunpack.c.l.b16 %v2527
    %v2615 = vunpack.c.l.b16 %v2528
    %v2616 = vunpack.c.l.b16 %v2529
    %v2617 = vunpack.c.l.b16 %v2530
    %v2618 = vunpack.c.l.b16 %v2531
    %v2619 = vunpack.c.l.b16 %v2532
    %v2620 = vunpack.c.l.b16 %v2533
    %v2621 = vunpack.c.l.b16 %v2534
    %v2622 = vunpack.c.l.b16 %v2535
    %v2623 = vunpack.c.l.b16 %v2536
    %v2624 = vunpack.c.l.b16 %v2537
    %v2625 = vunpack.c.l.b16 %v2538
    %v2626 = vpack.c.b16 %v2611, %v2610
    %v2627 = vpack.c.b16 %v2613, %v2612
    %v2628 = vpack.c.b16 %v2615, %v2614
    %v2629 = vpack.c.b16 %v2617, %v2616
    %v2630 = vpack.c.b16 %v2619, %v2618
    %v2631 = vpack.c.b16 %v2621, %v2620
    %v2632 = vpack.c.b16 %v2623, %v2622
    %v2633 = vpack.c.b16 %v2625, %v2624
    %2642 = vmatpush.bf16.msra.mxu0 %v2633
    %2643 = vmatpush.bf16.msra.mxu0 %v2632
    %2644 = vmatpush.bf16.msra.mxu0 %v2631
    %2645 = vmatpush.bf16.msra.mxu0 %v2630
    %2646 = vmatpush.bf16.msra.mxu0 %v2629
    %2647 = vmatpush.bf16.msra.mxu0 %v2628
    %2648 = vmatpush.bf16.msra.mxu0 %v2627
    %2649 = vmatpush.bf16.msra.mxu0 %v2626
    %2650 = vmatmul.bf16.gmra.mxu0 %v2593
    %v2651 = vpop.f32.mrf.mxu0
    %v2652 = vadd.f32 0.0, %v2651
    %v2653 = vpop.f32.mrf.mxu0
    %2654 = vdwg.mxu0
    %v2671 = vunpack.c.l.b16 %v2506
    %v2672 = vunpack.c.l.b16 %v2507
    %v2673 = vunpack.c.l.b16 %v2508
    %v2674 = vunpack.c.l.b16 %v2509
    %v2675 = vunpack.c.l.b16 %v2510
    %v2676 = vunpack.c.l.b16 %v2511
    %v2677 = vunpack.c.l.b16 %v2512
    %v2678 = vunpack.c.l.b16 %v2513
    %v2679 = vunpack.c.l.b16 %v2514
    %v2680 = vunpack.c.l.b16 %v2515
    %v2681 = vunpack.c.l.b16 %v2516
    %v2682 = vunpack.c.l.b16 %v2517
    %v2683 = vunpack.c.l.b16 %v2518
    %v2684 = vunpack.c.l.b16 %v2519
    %v2685 = vunpack.c.l.b16 %v2520
    %v2686 = vunpack.c.l.b16 %v2521
    %v2687 = vpack.c.b16 %v2672, %v2671
    %v2688 = vpack.c.b16 %v2674, %v2673
    %v2689 = vpack.c.b16 %v2676, %v2675
    %v2690 = vpack.c.b16 %v2678, %v2677
    %v2691 = vpack.c.b16 %v2680, %v2679
    %v2692 = vpack.c.b16 %v2682, %v2681
    %v2693 = vpack.c.b16 %v2684, %v2683
    %v2694 = vpack.c.b16 %v2686, %v2685
    %2703 = vmatpush.bf16.msra.mxu0 %v2694
    %2704 = vmatpush.bf16.msra.mxu0 %v2693
    %2705 = vmatpush.bf16.msra.mxu0 %v2692
    %2706 = vmatpush.bf16.msra.mxu0 %v2691
    %2707 = vmatpush.bf16.msra.mxu0 %v2690
    %2708 = vmatpush.bf16.msra.mxu0 %v2689
    %2709 = vmatpush.bf16.msra.mxu0 %v2688
    %2710 = vmatpush.bf16.msra.mxu0 %v2687
    %2711 = vmatmul.bf16.gmra.mxu0 %v2576
    %v2712 = vpop.f32.mrf.mxu0
    %v2713 = vadd.f32 %v2652, %v2712
    %v2714 = vpop.f32.mrf.mxu0
    %2715 = vdwg.mxu0
    %v2717 = vsel %vm159, %v2505, 0
    %2719 = vmatpush.bf16.msra.mxu0 0
    %2720 = vmatpush.bf16.msra.mxu0 0
    %2721 = vmatpush.bf16.msra.mxu0 0
    %2722 = vmatpush.bf16.msra.mxu0 0
    %2723 = vmatpush.bf16.msra.mxu0 0
    %2724 = vmatpush.bf16.msra.mxu0 0
    %2725 = vmatpush.bf16.msra.mxu0 0
    %2726 = vmatpush.bf16.msra.mxu0 %v2561
    %2727 = vmatmul.bf16.gmra.mxu0 %v2717
    %v2728 = vpop.f32.mrf.mxu0
    %v2729 = vadd.f32 0.0, %v2728
    %v2730 = vpop.f32.mrf.mxu0
    %2731 = vdwg.mxu0
    %v2732 = vpack.c.bf16 %v2729, %v2729
    %v2749 = vunpack.c.l.b16 %v2540
    %v2750 = vunpack.c.l.b16 %v2541
    %v2751 = vunpack.c.l.b16 %v2542
    %v2752 = vunpack.c.l.b16 %v2543
    %v2753 = vunpack.c.l.b16 %v2544
    %v2754 = vunpack.c.l.b16 %v2545
    %v2755 = vunpack.c.l.b16 %v2546
    %v2756 = vunpack.c.l.b16 %v2547
    %v2757 = vunpack.c.l.b16 %v2548
    %v2758 = vunpack.c.l.b16 %v2549
    %v2759 = vunpack.c.l.b16 %v2550
    %v2760 = vunpack.c.l.b16 %v2551
    %v2761 = vunpack.c.l.b16 %v2552
    %v2762 = vunpack.c.l.b16 %v2553
    %v2763 = vunpack.c.l.b16 %v2554
    %v2764 = vunpack.c.l.b16 %v2555
    %v2765 = vpack.c.b16 %v2750, %v2749
    %v2766 = vpack.c.b16 %v2752, %v2751
    %v2767 = vpack.c.b16 %v2754, %v2753
    %v2768 = vpack.c.b16 %v2756, %v2755
    %v2769 = vpack.c.b16 %v2758, %v2757
    %v2770 = vpack.c.b16 %v2760, %v2759
    %v2771 = vpack.c.b16 %v2762, %v2761
    %v2772 = vpack.c.b16 %v2764, %v2763
    %2781 = vmatpush.bf16.msra.mxu0 %v2772
    %2782 = vmatpush.bf16.msra.mxu0 %v2771
    %2783 = vmatpush.bf16.msra.mxu0 %v2770
    %2784 = vmatpush.bf16.msra.mxu0 %v2769
    %2785 = vmatpush.bf16.msra.mxu0 %v2768
    %2786 = vmatpush.bf16.msra.mxu0 %v2767
    %2787 = vmatpush.bf16.msra.mxu0 %v2766
    %2788 = vmatpush.bf16.msra.mxu0 %v2765
    %2789 = vmatmul.bf16.gmra.mxu0 %v2732
    %v2790 = vpop.f32.mrf.mxu0
    %v2791 = vadd.f32 0.0, %v2790
    %v2792 = vpop.f32.mrf.mxu0
    %2793 = vdwg.mxu0
    %v2794 = vadd.f32 %v2713, %v2791
    %v2795 = vpack.c.bf16 %v2502, %v2502
    %v2797 = vsel %vm166, %v2795, 0
    %2799 = vmatpush.bf16.msra.mxu0 0
    %2800 = vmatpush.bf16.msra.mxu0 0
    %2801 = vmatpush.bf16.msra.mxu0 0
    %2802 = vmatpush.bf16.msra.mxu0 0
    %2803 = vmatpush.bf16.msra.mxu0 0
    %2804 = vmatpush.bf16.msra.mxu0 0
    %2805 = vmatpush.bf16.msra.mxu0 0
    %2806 = vmatpush.bf16.msra.mxu0 %v2797
    %2807 = vmatmul.bf16.gmra.mxu0 %v2558
    %v2808 = vpop.f32.mrf.mxu0
    %v2809 = vadd.f32 0.0, %v2808
    %v2810 = vpop.f32.mrf.mxu0
    %2811 = vdwg.mxu0
    %v2812 = vpack.c.bf16 %v2809, %v2809
    %2813 = vmatpush.bf16.msra.mxu0 0
    %2814 = vmatpush.bf16.msra.mxu0 0
    %2815 = vmatpush.bf16.msra.mxu0 0
    %2816 = vmatpush.bf16.msra.mxu0 0
    %2817 = vmatpush.bf16.msra.mxu0 0
    %2818 = vmatpush.bf16.msra.mxu0 0
    %2819 = vmatpush.bf16.msra.mxu0 0
    %2820 = vmatpush.bf16.msra.mxu0 %v2797
    %2821 = vmatmul.bf16.gmra.mxu0 %v2578
    %v2822 = vpop.f32.mrf.mxu0
    %v2823 = vadd.f32 0.0, %v2822
    %v2824 = vpop.f32.mrf.mxu0
    %2825 = vdwg.mxu0
    %v2826 = vpack.c.bf16 %v2823, %v2823
    %2827 = vmatpush.bf16.msra.mxu0 %v2633
    %2828 = vmatpush.bf16.msra.mxu0 %v2632
    %2829 = vmatpush.bf16.msra.mxu0 %v2631
    %2830 = vmatpush.bf16.msra.mxu0 %v2630
    %2831 = vmatpush.bf16.msra.mxu0 %v2629
    %2832 = vmatpush.bf16.msra.mxu0 %v2628
    %2833 = vmatpush.bf16.msra.mxu0 %v2627
    %2834 = vmatpush.bf16.msra.mxu0 %v2626
    %2835 = vmatmul.bf16.gmra.mxu0 %v2826
    %v2836 = vpop.f32.mrf.mxu0
    %v2837 = vadd.f32 0.0, %v2836
    %v2838 = vpop.f32.mrf.mxu0
    %2839 = vdwg.mxu0
    %2840 = vmatpush.bf16.msra.mxu0 %v2694
    %2841 = vmatpush.bf16.msra.mxu0 %v2693
    %2842 = vmatpush.bf16.msra.mxu0 %v2692
    %2843 = vmatpush.bf16.msra.mxu0 %v2691
    %2844 = vmatpush.bf16.msra.mxu0 %v2690
    %2845 = vmatpush.bf16.msra.mxu0 %v2689
    %2846 = vmatpush.bf16.msra.mxu0 %v2688
    %2847 = vmatpush.bf16.msra.mxu0 %v2687
    %2848 = vmatmul.bf16.gmra.mxu0 %v2812
    %v2849 = vpop.f32.mrf.mxu0
    %v2850 = vadd.f32 %v2837, %v2849
    %v2851 = vpop.f32.mrf.mxu0
    %2852 = vdwg.mxu0
    %2853 = vmatpush.bf16.msra.mxu0 0
    %2854 = vmatpush.bf16.msra.mxu0 0
    %2855 = vmatpush.bf16.msra.mxu0 0
    %2856 = vmatpush.bf16.msra.mxu0 0
    %2857 = vmatpush.bf16.msra.mxu0 0
    %2858 = vmatpush.bf16.msra.mxu0 0
    %2859 = vmatpush.bf16.msra.mxu0 0
    %2860 = vmatpush.bf16.msra.mxu0 %v2797
    %2861 = vmatmul.bf16.gmra.mxu0 %v2717
    %v2862 = vpop.f32.mrf.mxu0
    %v2863 = vadd.f32 0.0, %v2862
    %v2864 = vpop.f32.mrf.mxu0
    %2865 = vdwg.mxu0
    %v2866 = vpack.c.bf16 %v2863, %v2863
    %2867 = vmatpush.bf16.msra.mxu0 %v2772
    %2868 = vmatpush.bf16.msra.mxu0 %v2771
    %2869 = vmatpush.bf16.msra.mxu0 %v2770
    %2870 = vmatpush.bf16.msra.mxu0 %v2769
    %2871 = vmatpush.bf16.msra.mxu0 %v2768
    %2872 = vmatpush.bf16.msra.mxu0 %v2767
    %2873 = vmatpush.bf16.msra.mxu0 %v2766
    %2874 = vmatpush.bf16.msra.mxu0 %v2765
    %2875 = vmatmul.bf16.gmra.mxu0 %v2866
    %v2876 = vpop.f32.mrf.mxu0
    %v2877 = vadd.f32 0.0, %v2876
    %v2878 = vpop.f32.mrf.mxu0
    %2879 = vdwg.mxu0
    %v2880 = vadd.f32 %v2850, %v2877
    %v2881 = vld [vmem:[%s49] sm:$0xf]
    %v2882 = vld [vmem:[%s49 + $0x4] sm:$0xf]
    %v2883 = vld [vmem:[%s49 + $0x8] sm:$0xf]
    %v2884 = vld [vmem:[%s49 + $0xc] sm:$0xf]
    %v2885 = vld [vmem:[%s49 + $0x10] sm:$0xf]
    %v2886 = vld [vmem:[%s49 + $0x14] sm:$0xf]
    %v2887 = vld [vmem:[%s49 + $0x18] sm:$0xf]
    %v2888 = vld [vmem:[%s49 + $0x1c] sm:$0xf]
    %v2897 = vunpack.c.l.b16 %v2881
    %v2898 = vunpack.c.l.b16 %v2882
    %v2899 = vunpack.c.l.b16 %v2883
    %v2900 = vunpack.c.l.b16 %v2884
    %v2901 = vunpack.c.l.b16 %v2885
    %v2902 = vunpack.c.l.b16 %v2886
    %v2903 = vunpack.c.l.b16 %v2887
    %v2904 = vunpack.c.l.b16 %v2888
    %v2905 = vpack.c.b16 %v2898, %v2897
    %v2906 = vpack.c.b16 %v2900, %v2899
    %v2907 = vpack.c.b16 %v2902, %v2901
    %v2908 = vpack.c.b16 %v2904, %v2903
    %2913 = vmatpush.bf16.msra.mxu0 0
    %2914 = vmatpush.bf16.msra.mxu0 0
    %2915 = vmatpush.bf16.msra.mxu0 0
    %2916 = vmatpush.bf16.msra.mxu0 0
    %2917 = vmatpush.bf16.msra.mxu0 %v2908
    %2918 = vmatpush.bf16.msra.mxu0 %v2907
    %2919 = vmatpush.bf16.msra.mxu0 %v2906
    %2920 = vmatpush.bf16.msra.mxu0 %v2905
    %2921 = vmatmul.bf16.gmra.mxu0 %v2238
    %v2922 = vpop.f32.mrf.mxu0
    %v2923 = vadd.f32 0.0, %v2922
    %v2924 = vpop.f32.mrf.mxu0
    %2925 = vdwg.mxu0
    %2926 = vmatpush.bf16.msra.mxu0 0
    %2927 = vmatpush.bf16.msra.mxu0 0
    %2928 = vmatpush.bf16.msra.mxu0 0
    %2929 = vmatpush.bf16.msra.mxu0 0
    %2930 = vmatpush.bf16.msra.mxu0 %v2908
    %2931 = vmatpush.bf16.msra.mxu0 %v2907
    %2932 = vmatpush.bf16.msra.mxu0 %v2906
    %2933 = vmatpush.bf16.msra.mxu0 %v2905
    %2934 = vmatmul.bf16.gmra.mxu0 %v2381
    %v2935 = vpop.f32.mrf.mxu0
    %v2936 = vadd.f32 0.0, %v2935
    %v2937 = vpop.f32.mrf.mxu0
    %2938 = vdwg.mxu0
    %v2939 = vadd.f32 %v2794, %v2923
    %v2940 = vadd.f32 %v2880, %v2936
    %v2941 = vld [vmem:[%s45] sm:$0x1]
    %v2942 = vld [vmem:[%s47] sm:$0x1]
    %v2943 = vrot.slane %v2939, 4
    %v2944 = vadd.f32 %v2939, %v2943
    %v2945 = vrot.slane %v2944, 2
    %v2946 = vadd.f32 %v2944, %v2945
    %v2947 = vrot.slane %v2946, 1
    %v2948 = vadd.f32 %v2946, %v2947
    %v2949 = vrot.slane %v2940, 4
    %v2950 = vadd.f32 %v2940, %v2949
    %v2951 = vrot.slane %v2950, 2
    %v2952 = vadd.f32 %v2950, %v2951
    %v2953 = vrot.slane %v2952, 1
    %v2954 = vadd.f32 %v2952, %v2953
    %v2955 = vadd.f32 %v2948, %v2954
    %v2956 = vmul.f32 %v2955, 0.0625
    %v2957 = vsub.f32 %v2939, %v2956
    %v2958 = vmul.f32 %v2957, %v2957
    %v2959 = vrot.slane %v2958, 4
    %v2960 = vadd.f32 %v2958, %v2959
    %v2961 = vrot.slane %v2960, 2
    %v2962 = vadd.f32 %v2960, %v2961
    %v2963 = vrot.slane %v2962, 1
    %v2964 = vadd.f32 %v2962, %v2963
    %v2965 = vsub.f32 %v2940, %v2956
    %v2966 = vmul.f32 %v2965, %v2965
    %v2967 = vrot.slane %v2966, 4
    %v2968 = vadd.f32 %v2966, %v2967
    %v2969 = vrot.slane %v2968, 2
    %v2970 = vadd.f32 %v2968, %v2969
    %v2971 = vrot.slane %v2970, 1
    %v2972 = vadd.f32 %v2970, %v2971
    %v2973 = vadd.f32 %v2964, %v2972
    %v2974 = vmul.f32 %v2973, 0.0625
    %v2975 = vadd.f32 %v2974, 1e-05
    %v2976 = vrsqrt.pop %v2975
    %v2977 = vmul.f32 %v2976, %v2975
    %v2978 = vmul.f32 %v2977, %v2976
    %v2979 = vmul.f32 0.5, %v2978
    %v2980 = vsub.f32 1.5, %v2979
    %v2981 = vmul.f32 %v2976, %v2980
    %vm2982 = vweird.f32 %v2975
    %vm2983 = vweird.f32 %v2976
    %vm2984 = vmor %vm2982, %vm2983
    %v2985 = vsel %vm2984, %v2976, %v2981
    %v2986 = vmul.f32 %v2941, %v2985
    %v2987 = vmul.f32 %v2956, %v2986
    %v2988 = vsub.f32 %v2942, %v2987
    %v2990 = vperm.slane %v2986, 0
    %v2992 = vmul.f32 %v2939, %v2990
    %v2994 = vperm.slane %v2988, 0
    %v2996 = vadd.f32 %v2992, %v2994
    %v2997 = vmax.f32 %v2996, 0.0
    %v2998 = vmul.f32 %v2940, %v2990
    %v2999 = vadd.f32 %v2998, %v2994
    %v3000 = vmax.f32 %v2999, 0.0
    %v3001 = vld [vmem:[%s51] sm:$0xff]
    %v3002 = vld [vmem:[%s51 + $0x8] sm:$0xff]
    %v3003 = vld [vmem:[%s51 + $0x10] sm:$0xff]
    %v3004 = vld [vmem:[%s51 + $0x18] sm:$0xff]
    %v3005 = vld [vmem:[%s51 + $0x20] sm:$0xff]
    %v3006 = vld [vmem:[%s51 + $0x28] sm:$0xff]
    %v3007 = vld [vmem:[%s51 + $0x30] sm:$0xff]
    %v3008 = vld [vmem:[%s51 + $0x38] sm:$0xff]
    %v3009 = vld [vmem:[%s51 + $0x40] sm:$0xff]
    %v3010 = vld [vmem:[%s51 + $0x48] sm:$0xff]
    %v3011 = vld [vmem:[%s51 + $0x50] sm:$0xff]
    %v3012 = vld [vmem:[%s51 + $0x58] sm:$0xff]
    %v3013 = vld [vmem:[%s51 + $0x60] sm:$0xff]
    %v3014 = vld [vmem:[%s51 + $0x68] sm:$0xff]
    %v3015 = vld [vmem:[%s51 + $0x70] sm:$0xff]
    %v3016 = vld [vmem:[%s51 + $0x78] sm:$0xff]
    %s3017 = scalar_lea.vmem %s51, 128
    %v3018 = vld [vmem:[%s3017] sm:$0xff]
    %v3019 = vld [vmem:[%s3017 + $0x8] sm:$0xff]
    %v3020 = vld [vmem:[%s3017 + $0x10] sm:$0xff]
    %v3021 = vld [vmem:[%s3017 + $0x18] sm:$0xff]
    %v3022 = vld [vmem:[%s3017 + $0x20] sm:$0xff]
    %v3023 = vld [vmem:[%s3017 + $0x28] sm:$0xff]
    %v3024 = vld [vmem:[%s3017 + $0x30] sm:$0xff]
    %v3025 = vld [vmem:[%s3017 + $0x38] sm:$0xff]
    %v3026 = vld [vmem:[%s3017 + $0x40] sm:$0xff]
    %v3027 = vld [vmem:[%s3017 + $0x48] sm:$0xff]
    %v3028 = vld [vmem:[%s3017 + $0x50] sm:$0xff]
    %v3029 = vld [vmem:[%s3017 + $0x58] sm:$0xff]
    %v3030 = vld [vmem:[%s3017 + $0x60] sm:$0xff]
    %v3031 = vld [vmem:[%s3017 + $0x68] sm:$0xff]
    %v3032 = vld [vmem:[%s3017 + $0x70] sm:$0xff]
    %v3033 = vld [vmem:[%s3017 + $0x78] sm:$0xff]
    %s3034 = scalar_lea.vmem %s51, 256
    %v3035 = vld [vmem:[%s3034] sm:$0xff]
    %v3036 = vld [vmem:[%s3034 + $0x8] sm:$0xff]
    %v3037 = vld [vmem:[%s3034 + $0x10] sm:$0xff]
    %v3038 = vld [vmem:[%s3034 + $0x18] sm:$0xff]
    %v3039 = vld [vmem:[%s3034 + $0x20] sm:$0xff]
    %v3040 = vld [vmem:[%s3034 + $0x28] sm:$0xff]
    %v3041 = vld [vmem:[%s3034 + $0x30] sm:$0xff]
    %v3042 = vld [vmem:[%s3034 + $0x38] sm:$0xff]
    %v3043 = vld [vmem:[%s3034 + $0x40] sm:$0xff]
    %v3044 = vld [vmem:[%s3034 + $0x48] sm:$0xff]
    %v3045 = vld [vmem:[%s3034 + $0x50] sm:$0xff]
    %v3046 = vld [vmem:[%s3034 + $0x58] sm:$0xff]
    %v3047 = vld [vmem:[%s3034 + $0x60] sm:$0xff]
    %v3048 = vld [vmem:[%s3034 + $0x68] sm:$0xff]
    %v3049 = vld [vmem:[%s3034 + $0x70] sm:$0xff]
    %v3050 = vld [vmem:[%s3034 + $0x78] sm:$0xff]
    %v3051 = vpack.c.bf16 %v2997, %v2997
    %v3052 = vsel %vm159, %v2149, 0
    %v3055 = vsel %vm166, %v3051, 0
    %3057 = vmatpush.bf16.msra.mxu0 0
    %3058 = vmatpush.bf16.msra.mxu0 0
    %3059 = vmatpush.bf16.msra.mxu0 0
    %3060 = vmatpush.bf16.msra.mxu0 0
    %3061 = vmatpush.bf16.msra.mxu0 0
    %3062 = vmatpush.bf16.msra.mxu0 0
    %3063 = vmatpush.bf16.msra.mxu0 0
    %3064 = vmatpush.bf16.msra.mxu0 %v3055
    %3065 = vmatmul.bf16.gmra.mxu0 %v3052
    %v3066 = vpop.f32.mrf.mxu0
    %v3067 = vadd.f32 0.0, %v3066
    %v3068 = vpop.f32.mrf.mxu0
    %3069 = vdwg.mxu0
    %v3070 = vpack.c.bf16 %v3067, %v3067
    %v3071 = vsel %vm159, %v2150, 0
    %3073 = vmatpush.bf16.msra.mxu0 0
    %3074 = vmatpush.bf16.msra.mxu0 0
    %3075 = vmatpush.bf16.msra.mxu0 0
    %3076 = vmatpush.bf16.msra.mxu0 0
    %3077 = vmatpush.bf16.msra.mxu0 0
    %3078 = vmatpush.bf16.msra.mxu0 0
    %3079 = vmatpush.bf16.msra.mxu0 0
    %3080 = vmatpush.bf16.msra.mxu0 %v3055
    %3081 = vmatmul.bf16.gmra.mxu0 %v3071
    %v3082 = vpop.f32.mrf.mxu0
    %v3083 = vadd.f32 0.0, %v3082
    %v3084 = vpop.f32.mrf.mxu0
    %3085 = vdwg.mxu0
    %v3086 = vpack.c.bf16 %v3083, %v3083
    %v3103 = vunpack.c.l.b16 %v3018
    %v3104 = vunpack.c.h.b16 %v3018
    %v3105 = vunpack.c.l.b16 %v3019
    %v3106 = vunpack.c.h.b16 %v3019
    %v3107 = vunpack.c.l.b16 %v3020
    %v3108 = vunpack.c.h.b16 %v3020
    %v3109 = vunpack.c.l.b16 %v3021
    %v3110 = vunpack.c.h.b16 %v3021
    %v3111 = vunpack.c.l.b16 %v3022
    %v3112 = vunpack.c.h.b16 %v3022
    %v3113 = vunpack.c.l.b16 %v3023
    %v3114 = vunpack.c.h.b16 %v3023
    %v3115 = vunpack.c.l.b16 %v3024
    %v3116 = vunpack.c.h.b16 %v3024
    %v3117 = vunpack.c.l.b16 %v3025
    %v3118 = vunpack.c.h.b16 %v3025
    %v3119 = vunpack.c.l.b16 %v3026
    %v3120 = vunpack.c.h.b16 %v3026
    %v3121 = vunpack.c.l.b16 %v3027
    %v3122 = vunpack.c.h.b16 %v3027
    %v3123 = vunpack.c.l.b16 %v3028
    %v3124 = vunpack.c.h.b16 %v3028
    %v3125 = vunpack.c.l.b16 %v3029
    %v3126 = vunpack.c.h.b16 %v3029
    %v3127 = vunpack.c.l.b16 %v3030
    %v3128 = vunpack.c.h.b16 %v3030
    %v3129 = vunpack.c.l.b16 %v3031
    %v3130 = vunpack.c.h.b16 %v3031
    %v3131 = vunpack.c.l.b16 %v3032
    %v3132 = vunpack.c.h.b16 %v3032
    %v3133 = vunpack.c.l.b16 %v3033
    %v3134 = vunpack.c.h.b16 %v3033
    %v3135 = vpack.c.b16 %v3105, %v3103
    %v3136 = vpack.c.b16 %v3106, %v3104
    %v3137 = vpack.c.b16 %v3109, %v3107
    %v3138 = vpack.c.b16 %v3110, %v3108
    %v3139 = vpack.c.b16 %v3113, %v3111
    %v3140 = vpack.c.b16 %v3114, %v3112
    %v3141 = vpack.c.b16 %v3117, %v3115
    %v3142 = vpack.c.b16 %v3118, %v3116
    %v3143 = vpack.c.b16 %v3121, %v3119
    %v3144 = vpack.c.b16 %v3122, %v3120
    %v3145 = vpack.c.b16 %v3125, %v3123
    %v3146 = vpack.c.b16 %v3126, %v3124
    %v3147 = vpack.c.b16 %v3129, %v3127
    %v3148 = vpack.c.b16 %v3130, %v3128
    %v3149 = vpack.c.b16 %v3133, %v3131
    %v3150 = vpack.c.b16 %v3134, %v3132
    %3167 = vmatpush.bf16.msra.mxu0 %v3149
    %3168 = vmatpush.bf16.msra.mxu0 %v3147
    %3169 = vmatpush.bf16.msra.mxu0 %v3145
    %3170 = vmatpush.bf16.msra.mxu0 %v3143
    %3171 = vmatpush.bf16.msra.mxu0 %v3141
    %3172 = vmatpush.bf16.msra.mxu0 %v3139
    %3173 = vmatpush.bf16.msra.mxu0 %v3137
    %3174 = vmatpush.bf16.msra.mxu0 %v3135
    %3175 = vmatmul.bf16.gmra.mxu0 %v3086
    %v3176 = vpop.f32.mrf.mxu0
    %v3177 = vadd.f32 0.0, %v3176
    %v3178 = vpop.f32.mrf.mxu0
    %3179 = vdwg.mxu0
    %3180 = vmatpush.bf16.msra.mxu0 %v3150
    %3181 = vmatpush.bf16.msra.mxu0 %v3148
    %3182 = vmatpush.bf16.msra.mxu0 %v3146
    %3183 = vmatpush.bf16.msra.mxu0 %v3144
    %3184 = vmatpush.bf16.msra.mxu0 %v3142
    %3185 = vmatpush.bf16.msra.mxu0 %v3140
    %3186 = vmatpush.bf16.msra.mxu0 %v3138
    %3187 = vmatpush.bf16.msra.mxu0 %v3136
    %3188 = vmatmul.bf16.gmra.mxu0 %v3086
    %v3189 = vpop.f32.mrf.mxu0
    %v3190 = vadd.f32 0.0, %v3189
    %v3191 = vpop.f32.mrf.mxu0
    %3192 = vdwg.mxu0
    %v3209 = vunpack.c.l.b16 %v3001
    %v3210 = vunpack.c.h.b16 %v3001
    %v3211 = vunpack.c.l.b16 %v3002
    %v3212 = vunpack.c.h.b16 %v3002
    %v3213 = vunpack.c.l.b16 %v3003
    %v3214 = vunpack.c.h.b16 %v3003
    %v3215 = vunpack.c.l.b16 %v3004
    %v3216 = vunpack.c.h.b16 %v3004
    %v3217 = vunpack.c.l.b16 %v3005
    %v3218 = vunpack.c.h.b16 %v3005
    %v3219 = vunpack.c.l.b16 %v3006
    %v3220 = vunpack.c.h.b16 %v3006
    %v3221 = vunpack.c.l.b16 %v3007
    %v3222 = vunpack.c.h.b16 %v3007
    %v3223 = vunpack.c.l.b16 %v3008
    %v3224 = vunpack.c.h.b16 %v3008
    %v3225 = vunpack.c.l.b16 %v3009
    %v3226 = vunpack.c.h.b16 %v3009
    %v3227 = vunpack.c.l.b16 %v3010
    %v3228 = vunpack.c.h.b16 %v3010
    %v3229 = vunpack.c.l.b16 %v3011
    %v3230 = vunpack.c.h.b16 %v3011
    %v3231 = vunpack.c.l.b16 %v3012
    %v3232 = vunpack.c.h.b16 %v3012
    %v3233 = vunpack.c.l.b16 %v3013
    %v3234 = vunpack.c.h.b16 %v3013
    %v3235 = vunpack.c.l.b16 %v3014
    %v3236 = vunpack.c.h.b16 %v3014
    %v3237 = vunpack.c.l.b16 %v3015
    %v3238 = vunpack.c.h.b16 %v3015
    %v3239 = vunpack.c.l.b16 %v3016
    %v3240 = vunpack.c.h.b16 %v3016
    %v3241 = vpack.c.b16 %v3211, %v3209
    %v3242 = vpack.c.b16 %v3212, %v3210
    %v3243 = vpack.c.b16 %v3215, %v3213
    %v3244 = vpack.c.b16 %v3216, %v3214
    %v3245 = vpack.c.b16 %v3219, %v3217
    %v3246 = vpack.c.b16 %v3220, %v3218
    %v3247 = vpack.c.b16 %v3223, %v3221
    %v3248 = vpack.c.b16 %v3224, %v3222
    %v3249 = vpack.c.b16 %v3227, %v3225
    %v3250 = vpack.c.b16 %v3228, %v3226
    %v3251 = vpack.c.b16 %v3231, %v3229
    %v3252 = vpack.c.b16 %v3232, %v3230
    %v3253 = vpack.c.b16 %v3235, %v3233
    %v3254 = vpack.c.b16 %v3236, %v3234
    %v3255 = vpack.c.b16 %v3239, %v3237
    %v3256 = vpack.c.b16 %v3240, %v3238
    %3273 = vmatpush.bf16.msra.mxu0 %v3255
    %3274 = vmatpush.bf16.msra.mxu0 %v3253
    %3275 = vmatpush.bf16.msra.mxu0 %v3251
    %3276 = vmatpush.bf16.msra.mxu0 %v3249
    %3277 = vmatpush.bf16.msra.mxu0 %v3247
    %3278 = vmatpush.bf16.msra.mxu0 %v3245
    %3279 = vmatpush.bf16.msra.mxu0 %v3243
    %3280 = vmatpush.bf16.msra.mxu0 %v3241
    %3281 = vmatmul.bf16.gmra.mxu0 %v3070
    %v3282 = vpop.f32.mrf.mxu0
    %v3283 = vadd.f32 %v3177, %v3282
    %v3284 = vpop.f32.mrf.mxu0
    %3285 = vdwg.mxu0
    %3286 = vmatpush.bf16.msra.mxu0 %v3256
    %3287 = vmatpush.bf16.msra.mxu0 %v3254
    %3288 = vmatpush.bf16.msra.mxu0 %v3252
    %3289 = vmatpush.bf16.msra.mxu0 %v3250
    %3290 = vmatpush.bf16.msra.mxu0 %v3248
    %3291 = vmatpush.bf16.msra.mxu0 %v3246
    %3292 = vmatpush.bf16.msra.mxu0 %v3244
    %3293 = vmatpush.bf16.msra.mxu0 %v3242
    %3294 = vmatmul.bf16.gmra.mxu0 %v3070
    %v3295 = vpop.f32.mrf.mxu0
    %v3296 = vadd.f32 %v3190, %v3295
    %v3297 = vpop.f32.mrf.mxu0
    %3298 = vdwg.mxu0
    %v3299 = vsel %vm159, %v2151, 0
    %3301 = vmatpush.bf16.msra.mxu0 0
    %3302 = vmatpush.bf16.msra.mxu0 0
    %3303 = vmatpush.bf16.msra.mxu0 0
    %3304 = vmatpush.bf16.msra.mxu0 0
    %3305 = vmatpush.bf16.msra.mxu0 0
    %3306 = vmatpush.bf16.msra.mxu0 0
    %3307 = vmatpush.bf16.msra.mxu0 0
    %3308 = vmatpush.bf16.msra.mxu0 %v3055
    %3309 = vmatmul.bf16.gmra.mxu0 %v3299
    %v3310 = vpop.f32.mrf.mxu0
    %v3311 = vadd.f32 0.0, %v3310
    %v3312 = vpop.f32.mrf.mxu0
    %3313 = vdwg.mxu0
    %v3314 = vpack.c.bf16 %v3311, %v3311
    %v3331 = vunpack.c.l.b16 %v3035
    %v3332 = vunpack.c.h.b16 %v3035
    %v3333 = vunpack.c.l.b16 %v3036
    %v3334 = vunpack.c.h.b16 %v3036
    %v3335 = vunpack.c.l.b16 %v3037
    %v3336 = vunpack.c.h.b16 %v3037
    %v3337 = vunpack.c.l.b16 %v3038
    %v3338 = vunpack.c.h.b16 %v3038
    %v3339 = vunpack.c.l.b16 %v3039
    %v3340 = vunpack.c.h.b16 %v3039
    %v3341 = vunpack.c.l.b16 %v3040
    %v3342 = vunpack.c.h.b16 %v3040
    %v3343 = vunpack.c.l.b16 %v3041
    %v3344 = vunpack.c.h.b16 %v3041
    %v3345 = vunpack.c.l.b16 %v3042
    %v3346 = vunpack.c.h.b16 %v3042
    %v3347 = vunpack.c.l.b16 %v3043
    %v3348 = vunpack.c.h.b16 %v3043
    %v3349 = vunpack.c.l.b16 %v3044
    %v3350 = vunpack.c.h.b16 %v3044
    %v3351 = vunpack.c.l.b16 %v3045
    %v3352 = vunpack.c.h.b16 %v3045
    %v3353 = vunpack.c.l.b16 %v3046
    %v3354 = vunpack.c.h.b16 %v3046
    %v3355 = vunpack.c.l.b16 %v3047
    %v3356 = vunpack.c.h.b16 %v3047
    %v3357 = vunpack.c.l.b16 %v3048
    %v3358 = vunpack.c.h.b16 %v3048
    %v3359 = vunpack.c.l.b16 %v3049
    %v3360 = vunpack.c.h.b16 %v3049
    %v3361 = vunpack.c.l.b16 %v3050
    %v3362 = vunpack.c.h.b16 %v3050
    %v3363 = vpack.c.b16 %v3333, %v3331
    %v3364 = vpack.c.b16 %v3334, %v3332
    %v3365 = vpack.c.b16 %v3337, %v3335
    %v3366 = vpack.c.b16 %v3338, %v3336
    %v3367 = vpack.c.b16 %v3341, %v3339
    %v3368 = vpack.c.b16 %v3342, %v3340
    %v3369 = vpack.c.b16 %v3345, %v3343
    %v3370 = vpack.c.b16 %v3346, %v3344
    %v3371 = vpack.c.b16 %v3349, %v3347
    %v3372 = vpack.c.b16 %v3350, %v3348
    %v3373 = vpack.c.b16 %v3353, %v3351
    %v3374 = vpack.c.b16 %v3354, %v3352
    %v3375 = vpack.c.b16 %v3357, %v3355
    %v3376 = vpack.c.b16 %v3358, %v3356
    %v3377 = vpack.c.b16 %v3361, %v3359
    %v3378 = vpack.c.b16 %v3362, %v3360
    %3395 = vmatpush.bf16.msra.mxu0 %v3377
    %3396 = vmatpush.bf16.msra.mxu0 %v3375
    %3397 = vmatpush.bf16.msra.mxu0 %v3373
    %3398 = vmatpush.bf16.msra.mxu0 %v3371
    %3399 = vmatpush.bf16.msra.mxu0 %v3369
    %3400 = vmatpush.bf16.msra.mxu0 %v3367
    %3401 = vmatpush.bf16.msra.mxu0 %v3365
    %3402 = vmatpush.bf16.msra.mxu0 %v3363
    %3403 = vmatmul.bf16.gmra.mxu0 %v3314
    %v3404 = vpop.f32.mrf.mxu0
    %v3405 = vadd.f32 0.0, %v3404
    %v3406 = vpop.f32.mrf.mxu0
    %3407 = vdwg.mxu0
    %3408 = vmatpush.bf16.msra.mxu0 %v3378
    %3409 = vmatpush.bf16.msra.mxu0 %v3376
    %3410 = vmatpush.bf16.msra.mxu0 %v3374
    %3411 = vmatpush.bf16.msra.mxu0 %v3372
    %3412 = vmatpush.bf16.msra.mxu0 %v3370
    %3413 = vmatpush.bf16.msra.mxu0 %v3368
    %3414 = vmatpush.bf16.msra.mxu0 %v3366
    %3415 = vmatpush.bf16.msra.mxu0 %v3364
    %3416 = vmatmul.bf16.gmra.mxu0 %v3314
    %v3417 = vpop.f32.mrf.mxu0
    %v3418 = vadd.f32 0.0, %v3417
    %v3419 = vpop.f32.mrf.mxu0
    %3420 = vdwg.mxu0
    %v3421 = vadd.f32 %v3283, %v3405
    %v3422 = vadd.f32 %v3296, %v3418
    %v3423 = vpack.c.bf16 %v3000, %v3000
    %v3425 = vsel %vm166, %v3423, 0
    %3427 = vmatpush.bf16.msra.mxu0 0
    %3428 = vmatpush.bf16.msra.mxu0 0
    %3429 = vmatpush.bf16.msra.mxu0 0
    %3430 = vmatpush.bf16.msra.mxu0 0
    %3431 = vmatpush.bf16.msra.mxu0 0
    %3432 = vmatpush.bf16.msra.mxu0 0
    %3433 = vmatpush.bf16.msra.mxu0 0
    %3434 = vmatpush.bf16.msra.mxu0 %v3425
    %3435 = vmatmul.bf16.gmra.mxu0 %v3052
    %v3436 = vpop.f32.mrf.mxu0
    %v3437 = vadd.f32 0.0, %v3436
    %v3438 = vpop.f32.mrf.mxu0
    %3439 = vdwg.mxu0
    %v3440 = vpack.c.bf16 %v3437, %v3437
    %3441 = vmatpush.bf16.msra.mxu0 0
    %3442 = vmatpush.bf16.msra.mxu0 0
    %3443 = vmatpush.bf16.msra.mxu0 0
    %3444 = vmatpush.bf16.msra.mxu0 0
    %3445 = vmatpush.bf16.msra.mxu0 0
    %3446 = vmatpush.bf16.msra.mxu0 0
    %3447 = vmatpush.bf16.msra.mxu0 0
    %3448 = vmatpush.bf16.msra.mxu0 %v3425
    %3449 = vmatmul.bf16.gmra.mxu0 %v3071
    %v3450 = vpop.f32.mrf.mxu0
    %v3451 = vadd.f32 0.0, %v3450
    %v3452 = vpop.f32.mrf.mxu0
    %3453 = vdwg.mxu0
    %v3454 = vpack.c.bf16 %v3451, %v3451
    %3455 = vmatpush.bf16.msra.mxu0 %v3149
    %3456 = vmatpush.bf16.msra.mxu0 %v3147
    %3457 = vmatpush.bf16.msra.mxu0 %v3145
    %3458 = vmatpush.bf16.msra.mxu0 %v3143
    %3459 = vmatpush.bf16.msra.mxu0 %v3141
    %3460 = vmatpush.bf16.msra.mxu0 %v3139
    %3461 = vmatpush.bf16.msra.mxu0 %v3137
    %3462 = vmatpush.bf16.msra.mxu0 %v3135
    %3463 = vmatmul.bf16.gmra.mxu0 %v3454
    %v3464 = vpop.f32.mrf.mxu0
    %v3465 = vadd.f32 0.0, %v3464
    %v3466 = vpop.f32.mrf.mxu0
    %3467 = vdwg.mxu0
    %3468 = vmatpush.bf16.msra.mxu0 %v3150
    %3469 = vmatpush.bf16.msra.mxu0 %v3148
    %3470 = vmatpush.bf16.msra.mxu0 %v3146
    %3471 = vmatpush.bf16.msra.mxu0 %v3144
    %3472 = vmatpush.bf16.msra.mxu0 %v3142
    %3473 = vmatpush.bf16.msra.mxu0 %v3140
    %3474 = vmatpush.bf16.msra.mxu0 %v3138
    %3475 = vmatpush.bf16.msra.mxu0 %v3136
    %3476 = vmatmul.bf16.gmra.mxu0 %v3454
    %v3477 = vpop.f32.mrf.mxu0
    %v3478 = vadd.f32 0.0, %v3477
    %v3479 = vpop.f32.mrf.mxu0
    %3480 = vdwg.mxu0
    %3481 = vmatpush.bf16.msra.mxu0 %v3255
    %3482 = vmatpush.bf16.msra.mxu0 %v3253
    %3483 = vmatpush.bf16.msra.mxu0 %v3251
    %3484 = vmatpush.bf16.msra.mxu0 %v3249
    %3485 = vmatpush.bf16.msra.mxu0 %v3247
    %3486 = vmatpush.bf16.msra.mxu0 %v3245
    %3487 = vmatpush.bf16.msra.mxu0 %v3243
    %3488 = vmatpush.bf16.msra.mxu0 %v3241
    %3489 = vmatmul.bf16.gmra.mxu0 %v3440
    %v3490 = vpop.f32.mrf.mxu0
    %v3491 = vadd.f32 %v3465, %v3490
    %v3492 = vpop.f32.mrf.mxu0
    %3493 = vdwg.mxu0
    %3494 = vmatpush.bf16.msra.mxu0 %v3256
    %3495 = vmatpush.bf16.msra.mxu0 %v3254
    %3496 = vmatpush.bf16.msra.mxu0 %v3252
    %3497 = vmatpush.bf16.msra.mxu0 %v3250
    %3498 = vmatpush.bf16.msra.mxu0 %v3248
    %3499 = vmatpush.bf16.msra.mxu0 %v3246
    %3500 = vmatpush.bf16.msra.mxu0 %v3244
    %3501 = vmatpush.bf16.msra.mxu0 %v3242
    %3502 = vmatmul.bf16.gmra.mxu0 %v3440
    %v3503 = vpop.f32.mrf.mxu0
    %v3504 = vadd.f32 %v3478, %v3503
    %v3505 = vpop.f32.mrf.mxu0
    %3506 = vdwg.mxu0
    %3507 = vmatpush.bf16.msra.mxu0 0
    %3508 = vmatpush.bf16.msra.mxu0 0
    %3509 = vmatpush.bf16.msra.mxu0 0
    %3510 = vmatpush.bf16.msra.mxu0 0
    %3511 = vmatpush.bf16.msra.mxu0 0
    %3512 = vmatpush.bf16.msra.mxu0 0
    %3513 = vmatpush.bf16.msra.mxu0 0
    %3514 = vmatpush.bf16.msra.mxu0 %v3425
    %3515 = vmatmul.bf16.gmra.mxu0 %v3299
    %v3516 = vpop.f32.mrf.mxu0
    %v3517 = vadd.f32 0.0, %v3516
    %v3518 = vpop.f32.mrf.mxu0
    %3519 = vdwg.mxu0
    %v3520 = vpack.c.bf16 %v3517, %v3517
    %3521 = vmatpush.bf16.msra.mxu0 %v3377
    %3522 = vmatpush.bf16.msra.mxu0 %v3375
    %3523 = vmatpush.bf16.msra.mxu0 %v3373
    %3524 = vmatpush.bf16.msra.mxu0 %v3371
    %3525 = vmatpush.bf16.msra.mxu0 %v3369
    %3526 = vmatpush.bf16.msra.mxu0 %v3367
    %3527 = vmatpush.bf16.msra.mxu0 %v3365
    %3528 = vmatpush.bf16.msra.mxu0 %v3363
    %3529 = vmatmul.bf16.gmra.mxu0 %v3520
    %v3530 = vpop.f32.mrf.mxu0
    %v3531 = vadd.f32 0.0, %v3530
    %v3532 = vpop.f32.mrf.mxu0
    %3533 = vdwg.mxu0
    %3534 = vmatpush.bf16.msra.mxu0 %v3378
    %3535 = vmatpush.bf16.msra.mxu0 %v3376
    %3536 = vmatpush.bf16.msra.mxu0 %v3374
    %3537 = vmatpush.bf16.msra.mxu0 %v3372
    %3538 = vmatpush.bf16.msra.mxu0 %v3370
    %3539 = vmatpush.bf16.msra.mxu0 %v3368
    %3540 = vmatpush.bf16.msra.mxu0 %v3366
    %3541 = vmatpush.bf16.msra.mxu0 %v3364
    %3542 = vmatmul.bf16.gmra.mxu0 %v3520
    %v3543 = vpop.f32.mrf.mxu0
    %v3544 = vadd.f32 0.0, %v3543
    %v3545 = vpop.f32.mrf.mxu0
    %3546 = vdwg.mxu0
    %v3547 = vadd.f32 %v3491, %v3531
    %v3548 = vadd.f32 %v3504, %v3544
    %v3549 = vld [vmem:[%s53] sm:$0x3]
    %v3550 = vld [vmem:[%s55] sm:$0x3]
    %v3551 = vsel %vm166, %v3421, 0.0
    %v3552 = vrot.slane %v3551, 4
    %v3553 = vadd.f32 %v3551, %v3552
    %v3554 = vrot.slane %v3553, 2
    %v3555 = vadd.f32 %v3553, %v3554
    %v3556 = vrot.slane %v3555, 1
    %v3557 = vadd.f32 %v3555, %v3556
    %v3558 = vsel %vm166, %v3422, 0.0
    %v3559 = vrot.slane %v3558, 4
    %v3560 = vadd.f32 %v3558, %v3559
    %v3561 = vrot.slane %v3560, 2
    %v3562 = vadd.f32 %v3560, %v3561
    %v3563 = vrot.slane %v3562, 1
    %v3564 = vadd.f32 %v3562, %v3563
    %v3565 = vsel %vm166, %v3547, 0.0
    %v3566 = vrot.slane %v3565, 4
    %v3567 = vadd.f32 %v3565, %v3566
    %v3568 = vrot.slane %v3567, 2
    %v3569 = vadd.f32 %v3567, %v3568
    %v3570 = vrot.slane %v3569, 1
    %v3571 = vadd.f32 %v3569, %v3570
    %v3572 = vsel %vm166, %v3548, 0.0
    %v3573 = vrot.slane %v3572, 4
    %v3574 = vadd.f32 %v3572, %v3573
    %v3575 = vrot.slane %v3574, 2
    %v3576 = vadd.f32 %v3574, %v3575
    %v3577 = vrot.slane %v3576, 1
    %v3578 = vadd.f32 %v3576, %v3577
    %v3579 = vadd.f32 %v3557, %v3571
    %v3580 = vadd.f32 %v3564, %v3578
    %v3581 = vmul.f32 %v3579, 0.125
    %v3582 = vmul.f32 %v3580, 0.125
    %v3583 = vsub.f32 %v3421, %v3581
    %v3584 = vsub.f32 %v3422, %v3582
    %v3585 = vmul.f32 %v3583, %v3583
    %v3586 = vmul.f32 %v3584, %v3584
    %v3587 = vsel %vm166, %v3585, 0.0
    %v3588 = vrot.slane %v3587, 4
    %v3589 = vadd.f32 %v3587, %v3588
    %v3590 = vrot.slane %v3589, 2
    %v3591 = vadd.f32 %v3589, %v3590
    %v3592 = vrot.slane %v3591, 1
    %v3593 = vadd.f32 %v3591, %v3592
    %v3594 = vsel %vm166, %v3586, 0.0
    %v3595 = vrot.slane %v3594, 4
    %v3596 = vadd.f32 %v3594, %v3595
    %v3597 = vrot.slane %v3596, 2
    %v3598 = vadd.f32 %v3596, %v3597
    %v3599 = vrot.slane %v3598, 1
    %v3600 = vadd.f32 %v3598, %v3599
    %v3601 = vsub.f32 %v3547, %v3581
    %v3602 = vsub.f32 %v3548, %v3582
    %v3603 = vmul.f32 %v3601, %v3601
    %v3604 = vmul.f32 %v3602, %v3602
    %v3605 = vsel %vm166, %v3603, 0.0
    %v3606 = vrot.slane %v3605, 4
    %v3607 = vadd.f32 %v3605, %v3606
    %v3608 = vrot.slane %v3607, 2
    %v3609 = vadd.f32 %v3607, %v3608
    %v3610 = vrot.slane %v3609, 1
    %v3611 = vadd.f32 %v3609, %v3610
    %v3612 = vsel %vm166, %v3604, 0.0
    %v3613 = vrot.slane %v3612, 4
    %v3614 = vadd.f32 %v3612, %v3613
    %v3615 = vrot.slane %v3614, 2
    %v3616 = vadd.f32 %v3614, %v3615
    %v3617 = vrot.slane %v3616, 1
    %v3618 = vadd.f32 %v3616, %v3617
    %v3619 = vadd.f32 %v3593, %v3611
    %v3620 = vadd.f32 %v3600, %v3618
    %v3621 = vmul.f32 %v3619, 0.125
    %v3622 = vmul.f32 %v3620, 0.125
    %v3623 = vadd.f32 %v3621, 1e-05
    %v3624 = vadd.f32 %v3622, 1e-05
    %v3625 = vrsqrt.pop %v3623
    %v3626 = vmul.f32 %v3625, %v3623
    %v3627 = vmul.f32 %v3626, %v3625
    %v3628 = vmul.f32 0.5, %v3627
    %v3629 = vsub.f32 1.5, %v3628
    %v3630 = vmul.f32 %v3625, %v3629
    %vm3631 = vweird.f32 %v3623
    %vm3632 = vweird.f32 %v3625
    %vm3633 = vmor %vm3631, %vm3632
    %v3634 = vsel %vm3633, %v3625, %v3630
    %v3635 = vrsqrt.pop %v3624
    %v3636 = vmul.f32 %v3635, %v3624
    %v3637 = vmul.f32 %v3636, %v3635
    %v3638 = vmul.f32 0.5, %v3637
    %v3639 = vsub.f32 1.5, %v3638
    %v3640 = vmul.f32 %v3635, %v3639
    %vm3641 = vweird.f32 %v3624
    %vm3642 = vweird.f32 %v3635
    %vm3643 = vmor %vm3641, %vm3642
    %v3644 = vsel %vm3643, %v3635, %v3640
    %v3647 = vrot.slane %v3644, 7
    %vm3648 = vcmask 1040384
    %v3649 = vsel %vm3648, %v3634, %v3647
    %v3651 = vmul.f32 %v3549, %v3649
    %v3653 = vperm.slane %v3651, 0
    %v3654 = vperm.slane %v3651, 1
    %v3657 = vmul.f32 %v3581, %v3653
    %v3658 = vmul.f32 %v3582, %v3654
    %v3661 = vrot.slane %v3658, 7
    %v3662 = vsel %vm3648, %v3657, %v3661
    %v3664 = vsub.f32 %v3550, %v3662
    %v3665 = vmul.f32 %v3421, %v3653
    %v3666 = vmul.f32 %v3422, %v3654
    %v3668 = vperm.slane %v3664, 0
    %v3669 = vperm.slane %v3664, 1
    %v3672 = vadd.f32 %v3665, %v3668
    %v3673 = vadd.f32 %v3666, %v3669
    %v3674 = vmax.f32 %v3672, 0.0
    %v3675 = vmax.f32 %v3673, 0.0
    %v3676 = vmul.f32 %v3547, %v3653
    %v3677 = vmul.f32 %v3548, %v3654
    %v3678 = vadd.f32 %v3676, %v3668
    %v3679 = vadd.f32 %v3677, %v3669
    %v3680 = vmax.f32 %v3678, 0.0
    %v3681 = vmax.f32 %v3679, 0.0
    %v3682 = vld [vmem:[%s57] sm:$0xff]
    %v3683 = vld [vmem:[%s57 + $0x8] sm:$0xff]
    %v3684 = vld [vmem:[%s57 + $0x10] sm:$0xff]
    %v3685 = vld [vmem:[%s57 + $0x18] sm:$0xff]
    %v3686 = vld [vmem:[%s57 + $0x20] sm:$0xff]
    %v3687 = vld [vmem:[%s57 + $0x28] sm:$0xff]
    %v3688 = vld [vmem:[%s57 + $0x30] sm:$0xff]
    %v3689 = vld [vmem:[%s57 + $0x38] sm:$0xff]
    %v3690 = vld [vmem:[%s57 + $0x40] sm:$0xff]
    %v3691 = vld [vmem:[%s57 + $0x48] sm:$0xff]
    %v3692 = vld [vmem:[%s57 + $0x50] sm:$0xff]
    %v3693 = vld [vmem:[%s57 + $0x58] sm:$0xff]
    %v3694 = vld [vmem:[%s57 + $0x60] sm:$0xff]
    %v3695 = vld [vmem:[%s57 + $0x68] sm:$0xff]
    %v3696 = vld [vmem:[%s57 + $0x70] sm:$0xff]
    %v3697 = vld [vmem:[%s57 + $0x78] sm:$0xff]
    %v3698 = vld [vmem:[%s57 + $0x80] sm:$0xff]
    %v3699 = vld [vmem:[%s57 + $0x88] sm:$0xff]
    %v3700 = vld [vmem:[%s57 + $0x90] sm:$0xff]
    %v3701 = vld [vmem:[%s57 + $0x98] sm:$0xff]
    %v3702 = vld [vmem:[%s57 + $0xa0] sm:$0xff]
    %v3703 = vld [vmem:[%s57 + $0xa8] sm:$0xff]
    %v3704 = vld [vmem:[%s57 + $0xb0] sm:$0xff]
    %v3705 = vld [vmem:[%s57 + $0xb8] sm:$0xff]
    %v3706 = vld [vmem:[%s57 + $0xc0] sm:$0xff]
    %v3707 = vld [vmem:[%s57 + $0xc8] sm:$0xff]
    %v3708 = vld [vmem:[%s57 + $0xd0] sm:$0xff]
    %v3709 = vld [vmem:[%s57 + $0xd8] sm:$0xff]
    %v3710 = vld [vmem:[%s57 + $0xe0] sm:$0xff]
    %v3711 = vld [vmem:[%s57 + $0xe8] sm:$0xff]
    %v3712 = vld [vmem:[%s57 + $0xf0] sm:$0xff]
    %v3713 = vld [vmem:[%s57 + $0xf8] sm:$0xff]
    %s3714 = scalar_lea.vmem %s57, 256
    %v3715 = vld [vmem:[%s3714] sm:$0xff]
    %v3716 = vld [vmem:[%s3714 + $0x8] sm:$0xff]
    %v3717 = vld [vmem:[%s3714 + $0x10] sm:$0xff]
    %v3718 = vld [vmem:[%s3714 + $0x18] sm:$0xff]
    %v3719 = vld [vmem:[%s3714 + $0x20] sm:$0xff]
    %v3720 = vld [vmem:[%s3714 + $0x28] sm:$0xff]
    %v3721 = vld [vmem:[%s3714 + $0x30] sm:$0xff]
    %v3722 = vld [vmem:[%s3714 + $0x38] sm:$0xff]
    %v3723 = vld [vmem:[%s3714 + $0x40] sm:$0xff]
    %v3724 = vld [vmem:[%s3714 + $0x48] sm:$0xff]
    %v3725 = vld [vmem:[%s3714 + $0x50] sm:$0xff]
    %v3726 = vld [vmem:[%s3714 + $0x58] sm:$0xff]
    %v3727 = vld [vmem:[%s3714 + $0x60] sm:$0xff]
    %v3728 = vld [vmem:[%s3714 + $0x68] sm:$0xff]
    %v3729 = vld [vmem:[%s3714 + $0x70] sm:$0xff]
    %v3730 = vld [vmem:[%s3714 + $0x78] sm:$0xff]
    %v3731 = vld [vmem:[%s3714 + $0x80] sm:$0xff]
    %v3732 = vld [vmem:[%s3714 + $0x88] sm:$0xff]
    %v3733 = vld [vmem:[%s3714 + $0x90] sm:$0xff]
    %v3734 = vld [vmem:[%s3714 + $0x98] sm:$0xff]
    %v3735 = vld [vmem:[%s3714 + $0xa0] sm:$0xff]
    %v3736 = vld [vmem:[%s3714 + $0xa8] sm:$0xff]
    %v3737 = vld [vmem:[%s3714 + $0xb0] sm:$0xff]
    %v3738 = vld [vmem:[%s3714 + $0xb8] sm:$0xff]
    %v3739 = vld [vmem:[%s3714 + $0xc0] sm:$0xff]
    %v3740 = vld [vmem:[%s3714 + $0xc8] sm:$0xff]
    %v3741 = vld [vmem:[%s3714 + $0xd0] sm:$0xff]
    %v3742 = vld [vmem:[%s3714 + $0xd8] sm:$0xff]
    %v3743 = vld [vmem:[%s3714 + $0xe0] sm:$0xff]
    %v3744 = vld [vmem:[%s3714 + $0xe8] sm:$0xff]
    %v3745 = vld [vmem:[%s3714 + $0xf0] sm:$0xff]
    %v3746 = vld [vmem:[%s3714 + $0xf8] sm:$0xff]
    %s3747 = scalar_lea.vmem %s57, 512
    %v3748 = vld [vmem:[%s3747] sm:$0xff]
    %v3749 = vld [vmem:[%s3747 + $0x8] sm:$0xff]
    %v3750 = vld [vmem:[%s3747 + $0x10] sm:$0xff]
    %v3751 = vld [vmem:[%s3747 + $0x18] sm:$0xff]
    %v3752 = vld [vmem:[%s3747 + $0x20] sm:$0xff]
    %v3753 = vld [vmem:[%s3747 + $0x28] sm:$0xff]
    %v3754 = vld [vmem:[%s3747 + $0x30] sm:$0xff]
    %v3755 = vld [vmem:[%s3747 + $0x38] sm:$0xff]
    %v3756 = vld [vmem:[%s3747 + $0x40] sm:$0xff]
    %v3757 = vld [vmem:[%s3747 + $0x48] sm:$0xff]
    %v3758 = vld [vmem:[%s3747 + $0x50] sm:$0xff]
    %v3759 = vld [vmem:[%s3747 + $0x58] sm:$0xff]
    %v3760 = vld [vmem:[%s3747 + $0x60] sm:$0xff]
    %v3761 = vld [vmem:[%s3747 + $0x68] sm:$0xff]
    %v3762 = vld [vmem:[%s3747 + $0x70] sm:$0xff]
    %v3763 = vld [vmem:[%s3747 + $0x78] sm:$0xff]
    %v3764 = vld [vmem:[%s3747 + $0x80] sm:$0xff]
    %v3765 = vld [vmem:[%s3747 + $0x88] sm:$0xff]
    %v3766 = vld [vmem:[%s3747 + $0x90] sm:$0xff]
    %v3767 = vld [vmem:[%s3747 + $0x98] sm:$0xff]
    %v3768 = vld [vmem:[%s3747 + $0xa0] sm:$0xff]
    %v3769 = vld [vmem:[%s3747 + $0xa8] sm:$0xff]
    %v3770 = vld [vmem:[%s3747 + $0xb0] sm:$0xff]
    %v3771 = vld [vmem:[%s3747 + $0xb8] sm:$0xff]
    %v3772 = vld [vmem:[%s3747 + $0xc0] sm:$0xff]
    %v3773 = vld [vmem:[%s3747 + $0xc8] sm:$0xff]
    %v3774 = vld [vmem:[%s3747 + $0xd0] sm:$0xff]
    %v3775 = vld [vmem:[%s3747 + $0xd8] sm:$0xff]
    %v3776 = vld [vmem:[%s3747 + $0xe0] sm:$0xff]
    %v3777 = vld [vmem:[%s3747 + $0xe8] sm:$0xff]
    %v3778 = vld [vmem:[%s3747 + $0xf0] sm:$0xff]
    %v3779 = vld [vmem:[%s3747 + $0xf8] sm:$0xff]
    %v3780 = vpack.c.bf16 %v3674, %v3674
    %v3781 = vpack.c.bf16 %v3675, %v3675
    %vm3782 = vcmask 31744
    %v3783 = vsel %vm3782, %v2503, 0
    %vm3785 = vcmask 1041408
    %v3787 = vsel %vm3785, %v3780, 0
    %v3790 = vsel %vm3785, %v3781, 0
    %3792 = vmatpush.bf16.msra.mxu0 0
    %3793 = vmatpush.bf16.msra.mxu0 0
    %3794 = vmatpush.bf16.msra.mxu0 0
    %3795 = vmatpush.bf16.msra.mxu0 0
    %3796 = vmatpush.bf16.msra.mxu0 0
    %3797 = vmatpush.bf16.msra.mxu0 0
    %3798 = vmatpush.bf16.msra.mxu0 0
    %3799 = vmatpush.bf16.msra.mxu0 %v3787
    %3800 = vmatmul.bf16.gmra.mxu0 %v3783
    %v3801 = vpop.f32.mrf.mxu0
    %v3802 = vadd.f32 0.0, %v3801
    %v3803 = vpop.f32.mrf.mxu0
    %3804 = vdwg.mxu0
    %3805 = vmatpush.bf16.msra.mxu0 0
    %3806 = vmatpush.bf16.msra.mxu0 0
    %3807 = vmatpush.bf16.msra.mxu0 0
    %3808 = vmatpush.bf16.msra.mxu0 0
    %3809 = vmatpush.bf16.msra.mxu0 0
    %3810 = vmatpush.bf16.msra.mxu0 0
    %3811 = vmatpush.bf16.msra.mxu0 0
    %3812 = vmatpush.bf16.msra.mxu0 %v3790
    %3813 = vmatmul.bf16.gmra.mxu0 %v3783
    %v3814 = vpop.f32.mrf.mxu0
    %v3815 = vadd.f32 0.0, %v3814
    %v3816 = vpop.f32.mrf.mxu0
    %3817 = vdwg.mxu0
    %v3818 = vpack.c.bf16 %v3802, %v3802
    %v3819 = vpack.c.bf16 %v3815, %v3815
    %v3820 = vsel %vm3782, %v2504, 0
    %3822 = vmatpush.bf16.msra.mxu0 0
    %3823 = vmatpush.bf16.msra.mxu0 0
    %3824 = vmatpush.bf16.msra.mxu0 0
    %3825 = vmatpush.bf16.msra.mxu0 0
    %3826 = vmatpush.bf16.msra.mxu0 0
    %3827 = vmatpush.bf16.msra.mxu0 0
    %3828 = vmatpush.bf16.msra.mxu0 0
    %3829 = vmatpush.bf16.msra.mxu0 %v3787
    %3830 = vmatmul.bf16.gmra.mxu0 %v3820
    %v3831 = vpop.f32.mrf.mxu0
    %v3832 = vadd.f32 0.0, %v3831
    %v3833 = vpop.f32.mrf.mxu0
    %3834 = vdwg.mxu0
    %3835 = vmatpush.bf16.msra.mxu0 0
    %3836 = vmatpush.bf16.msra.mxu0 0
    %3837 = vmatpush.bf16.msra.mxu0 0
    %3838 = vmatpush.bf16.msra.mxu0 0
    %3839 = vmatpush.bf16.msra.mxu0 0
    %3840 = vmatpush.bf16.msra.mxu0 0
    %3841 = vmatpush.bf16.msra.mxu0 0
    %3842 = vmatpush.bf16.msra.mxu0 %v3790
    %3843 = vmatmul.bf16.gmra.mxu0 %v3820
    %v3844 = vpop.f32.mrf.mxu0
    %v3845 = vadd.f32 0.0, %v3844
    %v3846 = vpop.f32.mrf.mxu0
    %3847 = vdwg.mxu0
    %v3848 = vpack.c.bf16 %v3832, %v3832
    %v3849 = vpack.c.bf16 %v3845, %v3845
    %v3882 = vunpack.c.l.b16 %v3715
    %v3883 = vunpack.c.h.b16 %v3715
    %v3884 = vunpack.c.l.b16 %v3716
    %v3885 = vunpack.c.h.b16 %v3716
    %v3886 = vunpack.c.l.b16 %v3717
    %v3887 = vunpack.c.h.b16 %v3717
    %v3888 = vunpack.c.l.b16 %v3718
    %v3889 = vunpack.c.h.b16 %v3718
    %v3890 = vunpack.c.l.b16 %v3719
    %v3891 = vunpack.c.h.b16 %v3719
    %v3892 = vunpack.c.l.b16 %v3720
    %v3893 = vunpack.c.h.b16 %v3720
    %v3894 = vunpack.c.l.b16 %v3721
    %v3895 = vunpack.c.h.b16 %v3721
    %v3896 = vunpack.c.l.b16 %v3722
    %v3897 = vunpack.c.h.b16 %v3722
    %v3898 = vunpack.c.l.b16 %v3723
    %v3899 = vunpack.c.h.b16 %v3723
    %v3900 = vunpack.c.l.b16 %v3724
    %v3901 = vunpack.c.h.b16 %v3724
    %v3902 = vunpack.c.l.b16 %v3725
    %v3903 = vunpack.c.h.b16 %v3725
    %v3904 = vunpack.c.l.b16 %v3726
    %v3905 = vunpack.c.h.b16 %v3726
    %v3906 = vunpack.c.l.b16 %v3727
    %v3907 = vunpack.c.h.b16 %v3727
    %v3908 = vunpack.c.l.b16 %v3728
    %v3909 = vunpack.c.h.b16 %v3728
    %v3910 = vunpack.c.l.b16 %v3729
    %v3911 = vunpack.c.h.b16 %v3729
    %v3912 = vunpack.c.l.b16 %v3730
    %v3913 = vunpack.c.h.b16 %v3730
    %v3914 = vunpack.c.l.b16 %v3731
    %v3915 = vunpack.c.h.b16 %v3731
    %v3916 = vunpack.c.l.b16 %v3732
    %v3917 = vunpack.c.h.b16 %v3732
    %v3918 = vunpack.c.l.b16 %v3733
    %v3919 = vunpack.c.h.b16 %v3733
    %v3920 = vunpack.c.l.b16 %v3734
    %v3921 = vunpack.c.h.b16 %v3734
    %v3922 = vunpack.c.l.b16 %v3735
    %v3923 = vunpack.c.h.b16 %v3735
    %v3924 = vunpack.c.l.b16 %v3736
    %v3925 = vunpack.c.h.b16 %v3736
    %v3926 = vunpack.c.l.b16 %v3737
    %v3927 = vunpack.c.h.b16 %v3737
    %v3928 = vunpack.c.l.b16 %v3738
    %v3929 = vunpack.c.h.b16 %v3738
    %v3930 = vunpack.c.l.b16 %v3739
    %v3931 = vunpack.c.h.b16 %v3739
    %v3932 = vunpack.c.l.b16 %v3740
    %v3933 = vunpack.c.h.b16 %v3740
    %v3934 = vunpack.c.l.b16 %v3741
    %v3935 = vunpack.c.h.b16 %v3741
    %v3936 = vunpack.c.l.b16 %v3742
    %v3937 = vunpack.c.h.b16 %v3742
    %v3938 = vunpack.c.l.b16 %v3743
    %v3939 = vunpack.c.h.b16 %v3743
    %v3940 = vunpack.c.l.b16 %v3744
    %v3941 = vunpack.c.h.b16 %v3744
    %v3942 = vunpack.c.l.b16 %v3745
    %v3943 = vunpack.c.h.b16 %v3745
    %v3944 = vunpack.c.l.b16 %v3746
    %v3945 = vunpack.c.h.b16 %v3746
    %v3946 = vpack.c.b16 %v3884, %v3882
    %v3947 = vpack.c.b16 %v3885, %v3883
    %v3948 = vpack.c.b16 %v3888, %v3886
    %v3949 = vpack.c.b16 %v3889, %v3887
    %v3950 = vpack.c.b16 %v3892, %v3890
    %v3951 = vpack.c.b16 %v3893, %v3891
    %v3952 = vpack.c.b16 %v3896, %v3894
    %v3953 = vpack.c.b16 %v3897, %v3895
    %v3954 = vpack.c.b16 %v3900, %v3898
    %v3955 = vpack.c.b16 %v3901, %v3899
    %v3956 = vpack.c.b16 %v3904, %v3902
    %v3957 = vpack.c.b16 %v3905, %v3903
    %v3958 = vpack.c.b16 %v3908, %v3906
    %v3959 = vpack.c.b16 %v3909, %v3907
    %v3960 = vpack.c.b16 %v3912, %v3910
    %v3961 = vpack.c.b16 %v3913, %v3911
    %v3962 = vpack.c.b16 %v3916, %v3914
    %v3963 = vpack.c.b16 %v3917, %v3915
    %v3964 = vpack.c.b16 %v3920, %v3918
    %v3965 = vpack.c.b16 %v3921, %v3919
    %v3966 = vpack.c.b16 %v3924, %v3922
    %v3967 = vpack.c.b16 %v3925, %v3923
    %v3968 = vpack.c.b16 %v3928, %v3926
    %v3969 = vpack.c.b16 %v3929, %v3927
    %v3970 = vpack.c.b16 %v3932, %v3930
    %v3971 = vpack.c.b16 %v3933, %v3931
    %v3972 = vpack.c.b16 %v3936, %v3934
    %v3973 = vpack.c.b16 %v3937, %v3935
    %v3974 = vpack.c.b16 %v3940, %v3938
    %v3975 = vpack.c.b16 %v3941, %v3939
    %v3976 = vpack.c.b16 %v3944, %v3942
    %v3977 = vpack.c.b16 %v3945, %v3943
    %4010 = vmatpush.bf16.msra.mxu0 %v3960
    %4011 = vmatpush.bf16.msra.mxu0 %v3958
    %4012 = vmatpush.bf16.msra.mxu0 %v3956
    %4013 = vmatpush.bf16.msra.mxu0 %v3954
    %4014 = vmatpush.bf16.msra.mxu0 %v3952
    %4015 = vmatpush.bf16.msra.mxu0 %v3950
    %4016 = vmatpush.bf16.msra.mxu0 %v3948
    %4017 = vmatpush.bf16.msra.mxu0 %v3946
    %4018 = vmatmul.bf16.gmra.mxu0 %v3848
    %v4019 = vpop.f32.mrf.mxu0
    %v4020 = vadd.f32 0.0, %v4019
    %v4021 = vpop.f32.mrf.mxu0
    %4022 = vdwg.mxu0
    %4023 = vmatpush.bf16.msra.mxu0 %v3976
    %4024 = vmatpush.bf16.msra.mxu0 %v3974
    %4025 = vmatpush.bf16.msra.mxu0 %v3972
    %4026 = vmatpush.bf16.msra.mxu0 %v3970
    %4027 = vmatpush.bf16.msra.mxu0 %v3968
    %4028 = vmatpush.bf16.msra.mxu0 %v3966
    %4029 = vmatpush.bf16.msra.mxu0 %v3964
    %4030 = vmatpush.bf16.msra.mxu0 %v3962
    %4031 = vmatmul.bf16.gmra.mxu0 %v3849
    %v4032 = vpop.f32.mrf.mxu0
    %v4033 = vadd.f32 %v4020, %v4032
    %v4034 = vpop.f32.mrf.mxu0
    %4035 = vdwg.mxu0
    %4036 = vmatpush.bf16.msra.mxu0 %v3961
    %4037 = vmatpush.bf16.msra.mxu0 %v3959
    %4038 = vmatpush.bf16.msra.mxu0 %v3957
    %4039 = vmatpush.bf16.msra.mxu0 %v3955
    %4040 = vmatpush.bf16.msra.mxu0 %v3953
    %4041 = vmatpush.bf16.msra.mxu0 %v3951
    %4042 = vmatpush.bf16.msra.mxu0 %v3949
    %4043 = vmatpush.bf16.msra.mxu0 %v3947
    %4044 = vmatmul.bf16.gmra.mxu0 %v3848
    %v4045 = vpop.f32.mrf.mxu0
    %v4046 = vadd.f32 0.0, %v4045
    %v4047 = vpop.f32.mrf.mxu0
    %4048 = vdwg.mxu0
    %4049 = vmatpush.bf16.msra.mxu0 %v3977
    %4050 = vmatpush.bf16.msra.mxu0 %v3975
    %4051 = vmatpush.bf16.msra.mxu0 %v3973
    %4052 = vmatpush.bf16.msra.mxu0 %v3971
    %4053 = vmatpush.bf16.msra.mxu0 %v3969
    %4054 = vmatpush.bf16.msra.mxu0 %v3967
    %4055 = vmatpush.bf16.msra.mxu0 %v3965
    %4056 = vmatpush.bf16.msra.mxu0 %v3963
    %4057 = vmatmul.bf16.gmra.mxu0 %v3849
    %v4058 = vpop.f32.mrf.mxu0
    %v4059 = vadd.f32 %v4046, %v4058
    %v4060 = vpop.f32.mrf.mxu0
    %4061 = vdwg.mxu0
    %v4094 = vunpack.c.l.b16 %v3682
    %v4095 = vunpack.c.h.b16 %v3682
    %v4096 = vunpack.c.l.b16 %v3683
    %v4097 = vunpack.c.h.b16 %v3683
    %v4098 = vunpack.c.l.b16 %v3684
    %v4099 = vunpack.c.h.b16 %v3684
    %v4100 = vunpack.c.l.b16 %v3685
    %v4101 = vunpack.c.h.b16 %v3685
    %v4102 = vunpack.c.l.b16 %v3686
    %v4103 = vunpack.c.h.b16 %v3686
    %v4104 = vunpack.c.l.b16 %v3687
    %v4105 = vunpack.c.h.b16 %v3687
    %v4106 = vunpack.c.l.b16 %v3688
    %v4107 = vunpack.c.h.b16 %v3688
    %v4108 = vunpack.c.l.b16 %v3689
    %v4109 = vunpack.c.h.b16 %v3689
    %v4110 = vunpack.c.l.b16 %v3690
    %v4111 = vunpack.c.h.b16 %v3690
    %v4112 = vunpack.c.l.b16 %v3691
    %v4113 = vunpack.c.h.b16 %v3691
    %v4114 = vunpack.c.l.b16 %v3692
    %v4115 = vunpack.c.h.b16 %v3692
    %v4116 = vunpack.c.l.b16 %v3693
    %v4117 = vunpack.c.h.b16 %v3693
    %v4118 = vunpack.c.l.b16 %v3694
    %v4119 = vunpack.c.h.b16 %v3694
    %v4120 = vunpack.c.l.b16 %v3695
    %v4121 = vunpack.c.h.b16 %v3695
    %v4122 = vunpack.c.l.b16 %v3696
    %v4123 = vunpack.c.h.b16 %v3696
    %v4124 = vunpack.c.l.b16 %v3697
    %v4125 = vunpack.c.h.b16 %v3697
    %v4126 = vunpack.c.l.b16 %v3698
    %v4127 = vunpack.c.h.b16 %v3698
    %v4128 = vunpack.c.l.b16 %v3699
    %v4129 = vunpack.c.h.b16 %v3699
    %v4130 = vunpack.c.l.b16 %v3700
    %v4131 = vunpack.c.h.b16 %v3700
    %v4132 = vunpack.c.l.b16 %v3701
    %v4133 = vunpack.c.h.b16 %v3701
    %v4134 = vunpack.c.l.b16 %v3702
    %v4135 = vunpack.c.h.b16 %v3702
    %v4136 = vunpack.c.l.b16 %v3703
    %v4137 = vunpack.c.h.b16 %v3703
    %v4138 = vunpack.c.l.b16 %v3704
    %v4139 = vunpack.c.h.b16 %v3704
    %v4140 = vunpack.c.l.b16 %v3705
    %v4141 = vunpack.c.h.b16 %v3705
    %v4142 = vunpack.c.l.b16 %v3706
    %v4143 = vunpack.c.h.b16 %v3706
    %v4144 = vunpack.c.l.b16 %v3707
    %v4145 = vunpack.c.h.b16 %v3707
    %v4146 = vunpack.c.l.b16 %v3708
    %v4147 = vunpack.c.h.b16 %v3708
    %v4148 = vunpack.c.l.b16 %v3709
    %v4149 = vunpack.c.h.b16 %v3709
    %v4150 = vunpack.c.l.b16 %v3710
    %v4151 = vunpack.c.h.b16 %v3710
    %v4152 = vunpack.c.l.b16 %v3711
    %v4153 = vunpack.c.h.b16 %v3711
    %v4154 = vunpack.c.l.b16 %v3712
    %v4155 = vunpack.c.h.b16 %v3712
    %v4156 = vunpack.c.l.b16 %v3713
    %v4157 = vunpack.c.h.b16 %v3713
    %v4158 = vpack.c.b16 %v4096, %v4094
    %v4159 = vpack.c.b16 %v4097, %v4095
    %v4160 = vpack.c.b16 %v4100, %v4098
    %v4161 = vpack.c.b16 %v4101, %v4099
    %v4162 = vpack.c.b16 %v4104, %v4102
    %v4163 = vpack.c.b16 %v4105, %v4103
    %v4164 = vpack.c.b16 %v4108, %v4106
    %v4165 = vpack.c.b16 %v4109, %v4107
    %v4166 = vpack.c.b16 %v4112, %v4110
    %v4167 = vpack.c.b16 %v4113, %v4111
    %v4168 = vpack.c.b16 %v4116, %v4114
    %v4169 = vpack.c.b16 %v4117, %v4115
    %v4170 = vpack.c.b16 %v4120, %v4118
    %v4171 = vpack.c.b16 %v4121, %v4119
    %v4172 = vpack.c.b16 %v4124, %v4122
    %v4173 = vpack.c.b16 %v4125, %v4123
    %v4174 = vpack.c.b16 %v4128, %v4126
    %v4175 = vpack.c.b16 %v4129, %v4127
    %v4176 = vpack.c.b16 %v4132, %v4130
    %v4177 = vpack.c.b16 %v4133, %v4131
    %v4178 = vpack.c.b16 %v4136, %v4134
    %v4179 = vpack.c.b16 %v4137, %v4135
    %v4180 = vpack.c.b16 %v4140, %v4138
    %v4181 = vpack.c.b16 %v4141, %v4139
    %v4182 = vpack.c.b16 %v4144, %v4142
    %v4183 = vpack.c.b16 %v4145, %v4143
    %v4184 = vpack.c.b16 %v4148, %v4146
    %v4185 = vpack.c.b16 %v4149, %v4147
    %v4186 = vpack.c.b16 %v4152, %v4150
    %v4187 = vpack.c.b16 %v4153, %v4151
    %v4188 = vpack.c.b16 %v4156, %v4154
    %v4189 = vpack.c.b16 %v4157, %v4155
    %4222 = vmatpush.bf16.msra.mxu0 %v4172
    %4223 = vmatpush.bf16.msra.mxu0 %v4170
    %4224 = vmatpush.bf16.msra.mxu0 %v4168
    %4225 = vmatpush.bf16.msra.mxu0 %v4166
    %4226 = vmatpush.bf16.msra.mxu0 %v4164
    %4227 = vmatpush.bf16.msra.mxu0 %v4162
    %4228 = vmatpush.bf16.msra.mxu0 %v4160
    %4229 = vmatpush.bf16.msra.mxu0 %v4158
    %4230 = vmatmul.bf16.gmra.mxu0 %v3818
    %v4231 = vpop.f32.mrf.mxu0
    %v4232 = vadd.f32 %v4033, %v4231
    %v4233 = vpop.f32.mrf.mxu0
    %4234 = vdwg.mxu0
    %4235 = vmatpush.bf16.msra.mxu0 %v4188
    %4236 = vmatpush.bf16.msra.mxu0 %v4186
    %4237 = vmatpush.bf16.msra.mxu0 %v4184
    %4238 = vmatpush.bf16.msra.mxu0 %v4182
    %4239 = vmatpush.bf16.msra.mxu0 %v4180
    %4240 = vmatpush.bf16.msra.mxu0 %v4178
    %4241 = vmatpush.bf16.msra.mxu0 %v4176
    %4242 = vmatpush.bf16.msra.mxu0 %v4174
    %4243 = vmatmul.bf16.gmra.mxu0 %v3819
    %v4244 = vpop.f32.mrf.mxu0
    %v4245 = vadd.f32 %v4232, %v4244
    %v4246 = vpop.f32.mrf.mxu0
    %4247 = vdwg.mxu0
    %4248 = vmatpush.bf16.msra.mxu0 %v4173
    %4249 = vmatpush.bf16.msra.mxu0 %v4171
    %4250 = vmatpush.bf16.msra.mxu0 %v4169
    %4251 = vmatpush.bf16.msra.mxu0 %v4167
    %4252 = vmatpush.bf16.msra.mxu0 %v4165
    %4253 = vmatpush.bf16.msra.mxu0 %v4163
    %4254 = vmatpush.bf16.msra.mxu0 %v4161
    %4255 = vmatpush.bf16.msra.mxu0 %v4159
    %4256 = vmatmul.bf16.gmra.mxu0 %v3818
    %v4257 = vpop.f32.mrf.mxu0
    %v4258 = vadd.f32 %v4059, %v4257
    %v4259 = vpop.f32.mrf.mxu0
    %4260 = vdwg.mxu0
    %4261 = vmatpush.bf16.msra.mxu0 %v4189
    %4262 = vmatpush.bf16.msra.mxu0 %v4187
    %4263 = vmatpush.bf16.msra.mxu0 %v4185
    %4264 = vmatpush.bf16.msra.mxu0 %v4183
    %4265 = vmatpush.bf16.msra.mxu0 %v4181
    %4266 = vmatpush.bf16.msra.mxu0 %v4179
    %4267 = vmatpush.bf16.msra.mxu0 %v4177
    %4268 = vmatpush.bf16.msra.mxu0 %v4175
    %4269 = vmatmul.bf16.gmra.mxu0 %v3819
    %v4270 = vpop.f32.mrf.mxu0
    %v4271 = vadd.f32 %v4258, %v4270
    %v4272 = vpop.f32.mrf.mxu0
    %4273 = vdwg.mxu0
    %v4274 = vsel %vm3782, %v2505, 0
    %4276 = vmatpush.bf16.msra.mxu0 0
    %4277 = vmatpush.bf16.msra.mxu0 0
    %4278 = vmatpush.bf16.msra.mxu0 0
    %4279 = vmatpush.bf16.msra.mxu0 0
    %4280 = vmatpush.bf16.msra.mxu0 0
    %4281 = vmatpush.bf16.msra.mxu0 0
    %4282 = vmatpush.bf16.msra.mxu0 0
    %4283 = vmatpush.bf16.msra.mxu0 %v3787
    %4284 = vmatmul.bf16.gmra.mxu0 %v4274
    %v4285 = vpop.f32.mrf.mxu0
    %v4286 = vadd.f32 0.0, %v4285
    %v4287 = vpop.f32.mrf.mxu0
    %4288 = vdwg.mxu0
    %4289 = vmatpush.bf16.msra.mxu0 0
    %4290 = vmatpush.bf16.msra.mxu0 0
    %4291 = vmatpush.bf16.msra.mxu0 0
    %4292 = vmatpush.bf16.msra.mxu0 0
    %4293 = vmatpush.bf16.msra.mxu0 0
    %4294 = vmatpush.bf16.msra.mxu0 0
    %4295 = vmatpush.bf16.msra.mxu0 0
    %4296 = vmatpush.bf16.msra.mxu0 %v3790
    %4297 = vmatmul.bf16.gmra.mxu0 %v4274
    %v4298 = vpop.f32.mrf.mxu0
    %v4299 = vadd.f32 0.0, %v4298
    %v4300 = vpop.f32.mrf.mxu0
    %4301 = vdwg.mxu0
    %v4302 = vpack.c.bf16 %v4286, %v4286
    %v4303 = vpack.c.bf16 %v4299, %v4299
    %v4336 = vunpack.c.l.b16 %v3748
    %v4337 = vunpack.c.h.b16 %v3748
    %v4338 = vunpack.c.l.b16 %v3749
    %v4339 = vunpack.c.h.b16 %v3749
    %v4340 = vunpack.c.l.b16 %v3750
    %v4341 = vunpack.c.h.b16 %v3750
    %v4342 = vunpack.c.l.b16 %v3751
    %v4343 = vunpack.c.h.b16 %v3751
    %v4344 = vunpack.c.l.b16 %v3752
    %v4345 = vunpack.c.h.b16 %v3752
    %v4346 = vunpack.c.l.b16 %v3753
    %v4347 = vunpack.c.h.b16 %v3753
    %v4348 = vunpack.c.l.b16 %v3754
    %v4349 = vunpack.c.h.b16 %v3754
    %v4350 = vunpack.c.l.b16 %v3755
    %v4351 = vunpack.c.h.b16 %v3755
    %v4352 = vunpack.c.l.b16 %v3756
    %v4353 = vunpack.c.h.b16 %v3756
    %v4354 = vunpack.c.l.b16 %v3757
    %v4355 = vunpack.c.h.b16 %v3757
    %v4356 = vunpack.c.l.b16 %v3758
    %v4357 = vunpack.c.h.b16 %v3758
    %v4358 = vunpack.c.l.b16 %v3759
    %v4359 = vunpack.c.h.b16 %v3759
    %v4360 = vunpack.c.l.b16 %v3760
    %v4361 = vunpack.c.h.b16 %v3760
    %v4362 = vunpack.c.l.b16 %v3761
    %v4363 = vunpack.c.h.b16 %v3761
    %v4364 = vunpack.c.l.b16 %v3762
    %v4365 = vunpack.c.h.b16 %v3762
    %v4366 = vunpack.c.l.b16 %v3763
    %v4367 = vunpack.c.h.b16 %v3763
    %v4368 = vunpack.c.l.b16 %v3764
    %v4369 = vunpack.c.h.b16 %v3764
    %v4370 = vunpack.c.l.b16 %v3765
    %v4371 = vunpack.c.h.b16 %v3765
    %v4372 = vunpack.c.l.b16 %v3766
    %v4373 = vunpack.c.h.b16 %v3766
    %v4374 = vunpack.c.l.b16 %v3767
    %v4375 = vunpack.c.h.b16 %v3767
    %v4376 = vunpack.c.l.b16 %v3768
    %v4377 = vunpack.c.h.b16 %v3768
    %v4378 = vunpack.c.l.b16 %v3769
    %v4379 = vunpack.c.h.b16 %v3769
    %v4380 = vunpack.c.l.b16 %v3770
    %v4381 = vunpack.c.h.b16 %v3770
    %v4382 = vunpack.c.l.b16 %v3771
    %v4383 = vunpack.c.h.b16 %v3771
    %v4384 = vunpack.c.l.b16 %v3772
    %v4385 = vunpack.c.h.b16 %v3772
    %v4386 = vunpack.c.l.b16 %v3773
    %v4387 = vunpack.c.h.b16 %v3773
    %v4388 = vunpack.c.l.b16 %v3774
    %v4389 = vunpack.c.h.b16 %v3774
    %v4390 = vunpack.c.l.b16 %v3775
    %v4391 = vunpack.c.h.b16 %v3775
    %v4392 = vunpack.c.l.b16 %v3776
    %v4393 = vunpack.c.h.b16 %v3776
    %v4394 = vunpack.c.l.b16 %v3777
    %v4395 = vunpack.c.h.b16 %v3777
    %v4396 = vunpack.c.l.b16 %v3778
    %v4397 = vunpack.c.h.b16 %v3778
    %v4398 = vunpack.c.l.b16 %v3779
    %v4399 = vunpack.c.h.b16 %v3779
    %v4400 = vpack.c.b16 %v4338, %v4336
    %v4401 = vpack.c.b16 %v4339, %v4337
    %v4402 = vpack.c.b16 %v4342, %v4340
    %v4403 = vpack.c.b16 %v4343, %v4341
    %v4404 = vpack.c.b16 %v4346, %v4344
    %v4405 = vpack.c.b16 %v4347, %v4345
    %v4406 = vpack.c.b16 %v4350, %v4348
    %v4407 = vpack.c.b16 %v4351, %v4349
    %v4408 = vpack.c.b16 %v4354, %v4352
    %v4409 = vpack.c.b16 %v4355, %v4353
    %v4410 = vpack.c.b16 %v4358, %v4356
    %v4411 = vpack.c.b16 %v4359, %v4357
    %v4412 = vpack.c.b16 %v4362, %v4360
    %v4413 = vpack.c.b16 %v4363, %v4361
    %v4414 = vpack.c.b16 %v4366, %v4364
    %v4415 = vpack.c.b16 %v4367, %v4365
    %v4416 = vpack.c.b16 %v4370, %v4368
    %v4417 = vpack.c.b16 %v4371, %v4369
    %v4418 = vpack.c.b16 %v4374, %v4372
    %v4419 = vpack.c.b16 %v4375, %v4373
    %v4420 = vpack.c.b16 %v4378, %v4376
    %v4421 = vpack.c.b16 %v4379, %v4377
    %v4422 = vpack.c.b16 %v4382, %v4380
    %v4423 = vpack.c.b16 %v4383, %v4381
    %v4424 = vpack.c.b16 %v4386, %v4384
    %v4425 = vpack.c.b16 %v4387, %v4385
    %v4426 = vpack.c.b16 %v4390, %v4388
    %v4427 = vpack.c.b16 %v4391, %v4389
    %v4428 = vpack.c.b16 %v4394, %v4392
    %v4429 = vpack.c.b16 %v4395, %v4393
    %v4430 = vpack.c.b16 %v4398, %v4396
    %v4431 = vpack.c.b16 %v4399, %v4397
    %4464 = vmatpush.bf16.msra.mxu0 %v4414
    %4465 = vmatpush.bf16.msra.mxu0 %v4412
    %4466 = vmatpush.bf16.msra.mxu0 %v4410
    %4467 = vmatpush.bf16.msra.mxu0 %v4408
    %4468 = vmatpush.bf16.msra.mxu0 %v4406
    %4469 = vmatpush.bf16.msra.mxu0 %v4404
    %4470 = vmatpush.bf16.msra.mxu0 %v4402
    %4471 = vmatpush.bf16.msra.mxu0 %v4400
    %4472 = vmatmul.bf16.gmra.mxu0 %v4302
    %v4473 = vpop.f32.mrf.mxu0
    %v4474 = vadd.f32 0.0, %v4473
    %v4475 = vpop.f32.mrf.mxu0
    %4476 = vdwg.mxu0
    %4477 = vmatpush.bf16.msra.mxu0 %v4430
    %4478 = vmatpush.bf16.msra.mxu0 %v4428
    %4479 = vmatpush.bf16.msra.mxu0 %v4426
    %4480 = vmatpush.bf16.msra.mxu0 %v4424
    %4481 = vmatpush.bf16.msra.mxu0 %v4422
    %4482 = vmatpush.bf16.msra.mxu0 %v4420
    %4483 = vmatpush.bf16.msra.mxu0 %v4418
    %4484 = vmatpush.bf16.msra.mxu0 %v4416
    %4485 = vmatmul.bf16.gmra.mxu0 %v4303
    %v4486 = vpop.f32.mrf.mxu0
    %v4487 = vadd.f32 %v4474, %v4486
    %v4488 = vpop.f32.mrf.mxu0
    %4489 = vdwg.mxu0
    %4490 = vmatpush.bf16.msra.mxu0 %v4415
    %4491 = vmatpush.bf16.msra.mxu0 %v4413
    %4492 = vmatpush.bf16.msra.mxu0 %v4411
    %4493 = vmatpush.bf16.msra.mxu0 %v4409
    %4494 = vmatpush.bf16.msra.mxu0 %v4407
    %4495 = vmatpush.bf16.msra.mxu0 %v4405
    %4496 = vmatpush.bf16.msra.mxu0 %v4403
    %4497 = vmatpush.bf16.msra.mxu0 %v4401
    %4498 = vmatmul.bf16.gmra.mxu0 %v4302
    %v4499 = vpop.f32.mrf.mxu0
    %v4500 = vadd.f32 0.0, %v4499
    %v4501 = vpop.f32.mrf.mxu0
    %4502 = vdwg.mxu0
    %4503 = vmatpush.bf16.msra.mxu0 %v4431
    %4504 = vmatpush.bf16.msra.mxu0 %v4429
    %4505 = vmatpush.bf16.msra.mxu0 %v4427
    %4506 = vmatpush.bf16.msra.mxu0 %v4425
    %4507 = vmatpush.bf16.msra.mxu0 %v4423
    %4508 = vmatpush.bf16.msra.mxu0 %v4421
    %4509 = vmatpush.bf16.msra.mxu0 %v4419
    %4510 = vmatpush.bf16.msra.mxu0 %v4417
    %4511 = vmatmul.bf16.gmra.mxu0 %v4303
    %v4512 = vpop.f32.mrf.mxu0
    %v4513 = vadd.f32 %v4500, %v4512
    %v4514 = vpop.f32.mrf.mxu0
    %4515 = vdwg.mxu0
    %v4516 = vadd.f32 %v4245, %v4487
    %v4517 = vadd.f32 %v4271, %v4513
    %v4518 = vpack.c.bf16 %v3680, %v3680
    %v4519 = vpack.c.bf16 %v3681, %v3681
    %v4521 = vsel %vm3785, %v4518, 0
    %v4524 = vsel %vm3785, %v4519, 0
    %4526 = vmatpush.bf16.msra.mxu0 0
    %4527 = vmatpush.bf16.msra.mxu0 0
    %4528 = vmatpush.bf16.msra.mxu0 0
    %4529 = vmatpush.bf16.msra.mxu0 0
    %4530 = vmatpush.bf16.msra.mxu0 0
    %4531 = vmatpush.bf16.msra.mxu0 0
    %4532 = vmatpush.bf16.msra.mxu0 0
    %4533 = vmatpush.bf16.msra.mxu0 %v4521
    %4534 = vmatmul.bf16.gmra.mxu0 %v3783
    %v4535 = vpop.f32.mrf.mxu0
    %v4536 = vadd.f32 0.0, %v4535
    %v4537 = vpop.f32.mrf.mxu0
    %4538 = vdwg.mxu0
    %4539 = vmatpush.bf16.msra.mxu0 0
    %4540 = vmatpush.bf16.msra.mxu0 0
    %4541 = vmatpush.bf16.msra.mxu0 0
    %4542 = vmatpush.bf16.msra.mxu0 0
    %4543 = vmatpush.bf16.msra.mxu0 0
    %4544 = vmatpush.bf16.msra.mxu0 0
    %4545 = vmatpush.bf16.msra.mxu0 0
    %4546 = vmatpush.bf16.msra.mxu0 %v4524
    %4547 = vmatmul.bf16.gmra.mxu0 %v3783
    %v4548 = vpop.f32.mrf.mxu0
    %v4549 = vadd.f32 0.0, %v4548
    %v4550 = vpop.f32.mrf.mxu0
    %4551 = vdwg.mxu0
    %v4552 = vpack.c.bf16 %v4536, %v4536
    %v4553 = vpack.c.bf16 %v4549, %v4549
    %4554 = vmatpush.bf16.msra.mxu0 0
    %4555 = vmatpush.bf16.msra.mxu0 0
    %4556 = vmatpush.bf16.msra.mxu0 0
    %4557 = vmatpush.bf16.msra.mxu0 0
    %4558 = vmatpush.bf16.msra.mxu0 0
    %4559 = vmatpush.bf16.msra.mxu0 0
    %4560 = vmatpush.bf16.msra.mxu0 0
    %4561 = vmatpush.bf16.msra.mxu0 %v4521
    %4562 = vmatmul.bf16.gmra.mxu0 %v3820
    %v4563 = vpop.f32.mrf.mxu0
    %v4564 = vadd.f32 0.0, %v4563
    %v4565 = vpop.f32.mrf.mxu0
    %4566 = vdwg.mxu0
    %4567 = vmatpush.bf16.msra.mxu0 0
    %4568 = vmatpush.bf16.msra.mxu0 0
    %4569 = vmatpush.bf16.msra.mxu0 0
    %4570 = vmatpush.bf16.msra.mxu0 0
    %4571 = vmatpush.bf16.msra.mxu0 0
    %4572 = vmatpush.bf16.msra.mxu0 0
    %4573 = vmatpush.bf16.msra.mxu0 0
    %4574 = vmatpush.bf16.msra.mxu0 %v4524
    %4575 = vmatmul.bf16.gmra.mxu0 %v3820
    %v4576 = vpop.f32.mrf.mxu0
    %v4577 = vadd.f32 0.0, %v4576
    %v4578 = vpop.f32.mrf.mxu0
    %4579 = vdwg.mxu0
    %v4580 = vpack.c.bf16 %v4564, %v4564
    %v4581 = vpack.c.bf16 %v4577, %v4577
    %4582 = vmatpush.bf16.msra.mxu0 %v3960
    %4583 = vmatpush.bf16.msra.mxu0 %v3958
    %4584 = vmatpush.bf16.msra.mxu0 %v3956
    %4585 = vmatpush.bf16.msra.mxu0 %v3954
    %4586 = vmatpush.bf16.msra.mxu0 %v3952
    %4587 = vmatpush.bf16.msra.mxu0 %v3950
    %4588 = vmatpush.bf16.msra.mxu0 %v3948
    %4589 = vmatpush.bf16.msra.mxu0 %v3946
    %4590 = vmatmul.bf16.gmra.mxu0 %v4580
    %v4591 = vpop.f32.mrf.mxu0
    %v4592 = vadd.f32 0.0, %v4591
    %v4593 = vpop.f32.mrf.mxu0
    %4594 = vdwg.mxu0
    %4595 = vmatpush.bf16.msra.mxu0 %v3976
    %4596 = vmatpush.bf16.msra.mxu0 %v3974
    %4597 = vmatpush.bf16.msra.mxu0 %v3972
    %4598 = vmatpush.bf16.msra.mxu0 %v3970
    %4599 = vmatpush.bf16.msra.mxu0 %v3968
    %4600 = vmatpush.bf16.msra.mxu0 %v3966
    %4601 = vmatpush.bf16.msra.mxu0 %v3964
    %4602 = vmatpush.bf16.msra.mxu0 %v3962
    %4603 = vmatmul.bf16.gmra.mxu0 %v4581
    %v4604 = vpop.f32.mrf.mxu0
    %v4605 = vadd.f32 %v4592, %v4604
    %v4606 = vpop.f32.mrf.mxu0
    %4607 = vdwg.mxu0
    %4608 = vmatpush.bf16.msra.mxu0 %v3961
    %4609 = vmatpush.bf16.msra.mxu0 %v3959
    %4610 = vmatpush.bf16.msra.mxu0 %v3957
    %4611 = vmatpush.bf16.msra.mxu0 %v3955
    %4612 = vmatpush.bf16.msra.mxu0 %v3953
    %4613 = vmatpush.bf16.msra.mxu0 %v3951
    %4614 = vmatpush.bf16.msra.mxu0 %v3949
    %4615 = vmatpush.bf16.msra.mxu0 %v3947
    %4616 = vmatmul.bf16.gmra.mxu0 %v4580
    %v4617 = vpop.f32.mrf.mxu0
    %v4618 = vadd.f32 0.0, %v4617
    %v4619 = vpop.f32.mrf.mxu0
    %4620 = vdwg.mxu0
    %4621 = vmatpush.bf16.msra.mxu0 %v3977
    %4622 = vmatpush.bf16.msra.mxu0 %v3975
    %4623 = vmatpush.bf16.msra.mxu0 %v3973
    %4624 = vmatpush.bf16.msra.mxu0 %v3971
    %4625 = vmatpush.bf16.msra.mxu0 %v3969
    %4626 = vmatpush.bf16.msra.mxu0 %v3967
    %4627 = vmatpush.bf16.msra.mxu0 %v3965
    %4628 = vmatpush.bf16.msra.mxu0 %v3963
    %4629 = vmatmul.bf16.gmra.mxu0 %v4581
    %v4630 = vpop.f32.mrf.mxu0
    %v4631 = vadd.f32 %v4618, %v4630
    %v4632 = vpop.f32.mrf.mxu0
    %4633 = vdwg.mxu0
    %4634 = vmatpush.bf16.msra.mxu0 %v4172
    %4635 = vmatpush.bf16.msra.mxu0 %v4170
    %4636 = vmatpush.bf16.msra.mxu0 %v4168
    %4637 = vmatpush.bf16.msra.mxu0 %v4166
    %4638 = vmatpush.bf16.msra.mxu0 %v4164
    %4639 = vmatpush.bf16.msra.mxu0 %v4162
    %4640 = vmatpush.bf16.msra.mxu0 %v4160
    %4641 = vmatpush.bf16.msra.mxu0 %v4158
    %4642 = vmatmul.bf16.gmra.mxu0 %v4552
    %v4643 = vpop.f32.mrf.mxu0
    %v4644 = vadd.f32 %v4605, %v4643
    %v4645 = vpop.f32.mrf.mxu0
    %4646 = vdwg.mxu0
    %4647 = vmatpush.bf16.msra.mxu0 %v4188
    %4648 = vmatpush.bf16.msra.mxu0 %v4186
    %4649 = vmatpush.bf16.msra.mxu0 %v4184
    %4650 = vmatpush.bf16.msra.mxu0 %v4182
    %4651 = vmatpush.bf16.msra.mxu0 %v4180
    %4652 = vmatpush.bf16.msra.mxu0 %v4178
    %4653 = vmatpush.bf16.msra.mxu0 %v4176
    %4654 = vmatpush.bf16.msra.mxu0 %v4174
    %4655 = vmatmul.bf16.gmra.mxu0 %v4553
    %v4656 = vpop.f32.mrf.mxu0
    %v4657 = vadd.f32 %v4644, %v4656
    %v4658 = vpop.f32.mrf.mxu0
    %4659 = vdwg.mxu0
    %4660 = vmatpush.bf16.msra.mxu0 %v4173
    %4661 = vmatpush.bf16.msra.mxu0 %v4171
    %4662 = vmatpush.bf16.msra.mxu0 %v4169
    %4663 = vmatpush.bf16.msra.mxu0 %v4167
    %4664 = vmatpush.bf16.msra.mxu0 %v4165
    %4665 = vmatpush.bf16.msra.mxu0 %v4163
    %4666 = vmatpush.bf16.msra.mxu0 %v4161
    %4667 = vmatpush.bf16.msra.mxu0 %v4159
    %4668 = vmatmul.bf16.gmra.mxu0 %v4552
    %v4669 = vpop.f32.mrf.mxu0
    %v4670 = vadd.f32 %v4631, %v4669
    %v4671 = vpop.f32.mrf.mxu0
    %4672 = vdwg.mxu0
    %4673 = vmatpush.bf16.msra.mxu0 %v4189
    %4674 = vmatpush.bf16.msra.mxu0 %v4187
    %4675 = vmatpush.bf16.msra.mxu0 %v4185
    %4676 = vmatpush.bf16.msra.mxu0 %v4183
    %4677 = vmatpush.bf16.msra.mxu0 %v4181
    %4678 = vmatpush.bf16.msra.mxu0 %v4179
    %4679 = vmatpush.bf16.msra.mxu0 %v4177
    %4680 = vmatpush.bf16.msra.mxu0 %v4175
    %4681 = vmatmul.bf16.gmra.mxu0 %v4553
    %v4682 = vpop.f32.mrf.mxu0
    %v4683 = vadd.f32 %v4670, %v4682
    %v4684 = vpop.f32.mrf.mxu0
    %4685 = vdwg.mxu0
    %4686 = vmatpush.bf16.msra.mxu0 0
    %4687 = vmatpush.bf16.msra.mxu0 0
    %4688 = vmatpush.bf16.msra.mxu0 0
    %4689 = vmatpush.bf16.msra.mxu0 0
    %4690 = vmatpush.bf16.msra.mxu0 0
    %4691 = vmatpush.bf16.msra.mxu0 0
    %4692 = vmatpush.bf16.msra.mxu0 0
    %4693 = vmatpush.bf16.msra.mxu0 %v4521
    %4694 = vmatmul.bf16.gmra.mxu0 %v4274
    %v4695 = vpop.f32.mrf.mxu0
    %v4696 = vadd.f32 0.0, %v4695
    %v4697 = vpop.f32.mrf.mxu0
    %4698 = vdwg.mxu0
    %4699 = vmatpush.bf16.msra.mxu0 0
    %4700 = vmatpush.bf16.msra.mxu0 0
    %4701 = vmatpush.bf16.msra.mxu0 0
    %4702 = vmatpush.bf16.msra.mxu0 0
    %4703 = vmatpush.bf16.msra.mxu0 0
    %4704 = vmatpush.bf16.msra.mxu0 0
    %4705 = vmatpush.bf16.msra.mxu0 0
    %4706 = vmatpush.bf16.msra.mxu0 %v4524
    %4707 = vmatmul.bf16.gmra.mxu0 %v4274
    %v4708 = vpop.f32.mrf.mxu0
    %v4709 = vadd.f32 0.0, %v4708
    %v4710 = vpop.f32.mrf.mxu0
    %4711 = vdwg.mxu0
    %v4712 = vpack.c.bf16 %v4696, %v4696
    %v4713 = vpack.c.bf16 %v4709, %v4709
    %4714 = vmatpush.bf16.msra.mxu0 %v4414
    %4715 = vmatpush.bf16.msra.mxu0 %v4412
    %4716 = vmatpush.bf16.msra.mxu0 %v4410
    %4717 = vmatpush.bf16.msra.mxu0 %v4408
    %4718 = vmatpush.bf16.msra.mxu0 %v4406
    %4719 = vmatpush.bf16.msra.mxu0 %v4404
    %4720 = vmatpush.bf16.msra.mxu0 %v4402
    %4721 = vmatpush.bf16.msra.mxu0 %v4400
    %4722 = vmatmul.bf16.gmra.mxu0 %v4712
    %v4723 = vpop.f32.mrf.mxu0
    %v4724 = vadd.f32 0.0, %v4723
    %v4725 = vpop.f32.mrf.mxu0
    %4726 = vdwg.mxu0
    %4727 = vmatpush.bf16.msra.mxu0 %v4430
    %4728 = vmatpush.bf16.msra.mxu0 %v4428
    %4729 = vmatpush.bf16.msra.mxu0 %v4426
    %4730 = vmatpush.bf16.msra.mxu0 %v4424
    %4731 = vmatpush.bf16.msra.mxu0 %v4422
    %4732 = vmatpush.bf16.msra.mxu0 %v4420
    %4733 = vmatpush.bf16.msra.mxu0 %v4418
    %4734 = vmatpush.bf16.msra.mxu0 %v4416
    %4735 = vmatmul.bf16.gmra.mxu0 %v4713
    %v4736 = vpop.f32.mrf.mxu0
    %v4737 = vadd.f32 %v4724, %v4736
    %v4738 = vpop.f32.mrf.mxu0
    %4739 = vdwg.mxu0
    %4740 = vmatpush.bf16.msra.mxu0 %v4415
    %4741 = vmatpush.bf16.msra.mxu0 %v4413
    %4742 = vmatpush.bf16.msra.mxu0 %v4411
    %4743 = vmatpush.bf16.msra.mxu0 %v4409
    %4744 = vmatpush.bf16.msra.mxu0 %v4407
    %4745 = vmatpush.bf16.msra.mxu0 %v4405
    %4746 = vmatpush.bf16.msra.mxu0 %v4403
    %4747 = vmatpush.bf16.msra.mxu0 %v4401
    %4748 = vmatmul.bf16.gmra.mxu0 %v4712
    %v4749 = vpop.f32.mrf.mxu0
    %v4750 = vadd.f32 0.0, %v4749
    %v4751 = vpop.f32.mrf.mxu0
    %4752 = vdwg.mxu0
    %4753 = vmatpush.bf16.msra.mxu0 %v4431
    %4754 = vmatpush.bf16.msra.mxu0 %v4429
    %4755 = vmatpush.bf16.msra.mxu0 %v4427
    %4756 = vmatpush.bf16.msra.mxu0 %v4425
    %4757 = vmatpush.bf16.msra.mxu0 %v4423
    %4758 = vmatpush.bf16.msra.mxu0 %v4421
    %4759 = vmatpush.bf16.msra.mxu0 %v4419
    %4760 = vmatpush.bf16.msra.mxu0 %v4417
    %4761 = vmatmul.bf16.gmra.mxu0 %v4713
    %v4762 = vpop.f32.mrf.mxu0
    %v4763 = vadd.f32 %v4750, %v4762
    %v4764 = vpop.f32.mrf.mxu0
    %4765 = vdwg.mxu0
    %v4766 = vadd.f32 %v4657, %v4737
    %v4767 = vadd.f32 %v4683, %v4763
    %v4768 = vld [vmem:[%s63] sm:$0xff]
    %v4769 = vld [vmem:[%s63 + $0x8] sm:$0xff]
    %v4770 = vld [vmem:[%s63 + $0x10] sm:$0xff]
    %v4771 = vld [vmem:[%s63 + $0x18] sm:$0xff]
    %v4772 = vld [vmem:[%s63 + $0x20] sm:$0xff]
    %v4773 = vld [vmem:[%s63 + $0x28] sm:$0xff]
    %v4774 = vld [vmem:[%s63 + $0x30] sm:$0xff]
    %v4775 = vld [vmem:[%s63 + $0x38] sm:$0xff]
    %v4776 = vld [vmem:[%s63 + $0x40] sm:$0xff]
    %v4777 = vld [vmem:[%s63 + $0x48] sm:$0xff]
    %v4778 = vld [vmem:[%s63 + $0x50] sm:$0xff]
    %v4779 = vld [vmem:[%s63 + $0x58] sm:$0xff]
    %v4780 = vld [vmem:[%s63 + $0x60] sm:$0xff]
    %v4781 = vld [vmem:[%s63 + $0x68] sm:$0xff]
    %v4782 = vld [vmem:[%s63 + $0x70] sm:$0xff]
    %v4783 = vld [vmem:[%s63 + $0x78] sm:$0xff]
    %v4800 = vunpack.c.l.b16 %v4768
    %v4801 = vunpack.c.h.b16 %v4768
    %v4802 = vunpack.c.l.b16 %v4769
    %v4803 = vunpack.c.h.b16 %v4769
    %v4804 = vunpack.c.l.b16 %v4770
    %v4805 = vunpack.c.h.b16 %v4770
    %v4806 = vunpack.c.l.b16 %v4771
    %v4807 = vunpack.c.h.b16 %v4771
    %v4808 = vunpack.c.l.b16 %v4772
    %v4809 = vunpack.c.h.b16 %v4772
    %v4810 = vunpack.c.l.b16 %v4773
    %v4811 = vunpack.c.h.b16 %v4773
    %v4812 = vunpack.c.l.b16 %v4774
    %v4813 = vunpack.c.h.b16 %v4774
    %v4814 = vunpack.c.l.b16 %v4775
    %v4815 = vunpack.c.h.b16 %v4775
    %v4816 = vunpack.c.l.b16 %v4776
    %v4817 = vunpack.c.h.b16 %v4776
    %v4818 = vunpack.c.l.b16 %v4777
    %v4819 = vunpack.c.h.b16 %v4777
    %v4820 = vunpack.c.l.b16 %v4778
    %v4821 = vunpack.c.h.b16 %v4778
    %v4822 = vunpack.c.l.b16 %v4779
    %v4823 = vunpack.c.h.b16 %v4779
    %v4824 = vunpack.c.l.b16 %v4780
    %v4825 = vunpack.c.h.b16 %v4780
    %v4826 = vunpack.c.l.b16 %v4781
    %v4827 = vunpack.c.h.b16 %v4781
    %v4828 = vunpack.c.l.b16 %v4782
    %v4829 = vunpack.c.h.b16 %v4782
    %v4830 = vunpack.c.l.b16 %v4783
    %v4831 = vunpack.c.h.b16 %v4783
    %v4832 = vpack.c.b16 %v4802, %v4800
    %v4833 = vpack.c.b16 %v4803, %v4801
    %v4834 = vpack.c.b16 %v4806, %v4804
    %v4835 = vpack.c.b16 %v4807, %v4805
    %v4836 = vpack.c.b16 %v4810, %v4808
    %v4837 = vpack.c.b16 %v4811, %v4809
    %v4838 = vpack.c.b16 %v4814, %v4812
    %v4839 = vpack.c.b16 %v4815, %v4813
    %v4840 = vpack.c.b16 %v4818, %v4816
    %v4841 = vpack.c.b16 %v4819, %v4817
    %v4842 = vpack.c.b16 %v4822, %v4820
    %v4843 = vpack.c.b16 %v4823, %v4821
    %v4844 = vpack.c.b16 %v4826, %v4824
    %v4845 = vpack.c.b16 %v4827, %v4825
    %v4846 = vpack.c.b16 %v4830, %v4828
    %v4847 = vpack.c.b16 %v4831, %v4829
    %4864 = vmatpush.bf16.msra.mxu0 %v4846
    %4865 = vmatpush.bf16.msra.mxu0 %v4844
    %4866 = vmatpush.bf16.msra.mxu0 %v4842
    %4867 = vmatpush.bf16.msra.mxu0 %v4840
    %4868 = vmatpush.bf16.msra.mxu0 %v4838
    %4869 = vmatpush.bf16.msra.mxu0 %v4836
    %4870 = vmatpush.bf16.msra.mxu0 %v4834
    %4871 = vmatpush.bf16.msra.mxu0 %v4832
    %4872 = vmatmul.bf16.gmra.mxu0 %v3086
    %v4873 = vpop.f32.mrf.mxu0
    %v4874 = vadd.f32 0.0, %v4873
    %v4875 = vpop.f32.mrf.mxu0
    %4876 = vdwg.mxu0
    %4877 = vmatpush.bf16.msra.mxu0 %v4847
    %4878 = vmatpush.bf16.msra.mxu0 %v4845
    %4879 = vmatpush.bf16.msra.mxu0 %v4843
    %4880 = vmatpush.bf16.msra.mxu0 %v4841
    %4881 = vmatpush.bf16.msra.mxu0 %v4839
    %4882 = vmatpush.bf16.msra.mxu0 %v4837
    %4883 = vmatpush.bf16.msra.mxu0 %v4835
    %4884 = vmatpush.bf16.msra.mxu0 %v4833
    %4885 = vmatmul.bf16.gmra.mxu0 %v3086
    %v4886 = vpop.f32.mrf.mxu0
    %v4887 = vadd.f32 0.0, %v4886
    %v4888 = vpop.f32.mrf.mxu0
    %4889 = vdwg.mxu0
    %4890 = vmatpush.bf16.msra.mxu0 %v4846
    %4891 = vmatpush.bf16.msra.mxu0 %v4844
    %4892 = vmatpush.bf16.msra.mxu0 %v4842
    %4893 = vmatpush.bf16.msra.mxu0 %v4840
    %4894 = vmatpush.bf16.msra.mxu0 %v4838
    %4895 = vmatpush.bf16.msra.mxu0 %v4836
    %4896 = vmatpush.bf16.msra.mxu0 %v4834
    %4897 = vmatpush.bf16.msra.mxu0 %v4832
    %4898 = vmatmul.bf16.gmra.mxu0 %v3454
    %v4899 = vpop.f32.mrf.mxu0
    %v4900 = vadd.f32 0.0, %v4899
    %v4901 = vpop.f32.mrf.mxu0
    %4902 = vdwg.mxu0
    %4903 = vmatpush.bf16.msra.mxu0 %v4847
    %4904 = vmatpush.bf16.msra.mxu0 %v4845
    %4905 = vmatpush.bf16.msra.mxu0 %v4843
    %4906 = vmatpush.bf16.msra.mxu0 %v4841
    %4907 = vmatpush.bf16.msra.mxu0 %v4839
    %4908 = vmatpush.bf16.msra.mxu0 %v4837
    %4909 = vmatpush.bf16.msra.mxu0 %v4835
    %4910 = vmatpush.bf16.msra.mxu0 %v4833
    %4911 = vmatmul.bf16.gmra.mxu0 %v3454
    %v4912 = vpop.f32.mrf.mxu0
    %v4913 = vadd.f32 0.0, %v4912
    %v4914 = vpop.f32.mrf.mxu0
    %4915 = vdwg.mxu0
    %v4916 = vadd.f32 %v4516, %v4874
    %v4917 = vadd.f32 %v4517, %v4887
    %v4918 = vadd.f32 %v4766, %v4900
    %v4919 = vadd.f32 %v4767, %v4913
    %v4920 = vld [vmem:[%s59] sm:$0x3]
    %v4921 = vld [vmem:[%s61] sm:$0x3]
    %v4922 = vsel %vm166, %v4916, 0.0
    %v4923 = vrot.slane %v4922, 4
    %v4924 = vadd.f32 %v4922, %v4923
    %v4925 = vrot.slane %v4924, 2
    %v4926 = vadd.f32 %v4924, %v4925
    %v4927 = vrot.slane %v4926, 1
    %v4928 = vadd.f32 %v4926, %v4927
    %v4929 = vsel %vm166, %v4917, 0.0
    %v4930 = vrot.slane %v4929, 4
    %v4931 = vadd.f32 %v4929, %v4930
    %v4932 = vrot.slane %v4931, 2
    %v4933 = vadd.f32 %v4931, %v4932
    %v4934 = vrot.slane %v4933, 1
    %v4935 = vadd.f32 %v4933, %v4934
    %v4936 = vsel %vm166, %v4918, 0.0
    %v4937 = vrot.slane %v4936, 4
    %v4938 = vadd.f32 %v4936, %v4937
    %v4939 = vrot.slane %v4938, 2
    %v4940 = vadd.f32 %v4938, %v4939
    %v4941 = vrot.slane %v4940, 1
    %v4942 = vadd.f32 %v4940, %v4941
    %v4943 = vsel %vm166, %v4919, 0.0
    %v4944 = vrot.slane %v4943, 4
    %v4945 = vadd.f32 %v4943, %v4944
    %v4946 = vrot.slane %v4945, 2
    %v4947 = vadd.f32 %v4945, %v4946
    %v4948 = vrot.slane %v4947, 1
    %v4949 = vadd.f32 %v4947, %v4948
    %v4950 = vadd.f32 %v4928, %v4942
    %v4951 = vadd.f32 %v4935, %v4949
    %v4952 = vmul.f32 %v4950, 0.125
    %v4953 = vmul.f32 %v4951, 0.125
    %v4954 = vsub.f32 %v4916, %v4952
    %v4955 = vsub.f32 %v4917, %v4953
    %v4956 = vmul.f32 %v4954, %v4954
    %v4957 = vmul.f32 %v4955, %v4955
    %v4958 = vsel %vm166, %v4956, 0.0
    %v4959 = vrot.slane %v4958, 4
    %v4960 = vadd.f32 %v4958, %v4959
    %v4961 = vrot.slane %v4960, 2
    %v4962 = vadd.f32 %v4960, %v4961
    %v4963 = vrot.slane %v4962, 1
    %v4964 = vadd.f32 %v4962, %v4963
    %v4965 = vsel %vm166, %v4957, 0.0
    %v4966 = vrot.slane %v4965, 4
    %v4967 = vadd.f32 %v4965, %v4966
    %v4968 = vrot.slane %v4967, 2
    %v4969 = vadd.f32 %v4967, %v4968
    %v4970 = vrot.slane %v4969, 1
    %v4971 = vadd.f32 %v4969, %v4970
    %v4972 = vsub.f32 %v4918, %v4952
    %v4973 = vsub.f32 %v4919, %v4953
    %v4974 = vmul.f32 %v4972, %v4972
    %v4975 = vmul.f32 %v4973, %v4973
    %v4976 = vsel %vm166, %v4974, 0.0
    %v4977 = vrot.slane %v4976, 4
    %v4978 = vadd.f32 %v4976, %v4977
    %v4979 = vrot.slane %v4978, 2
    %v4980 = vadd.f32 %v4978, %v4979
    %v4981 = vrot.slane %v4980, 1
    %v4982 = vadd.f32 %v4980, %v4981
    %v4983 = vsel %vm166, %v4975, 0.0
    %v4984 = vrot.slane %v4983, 4
    %v4985 = vadd.f32 %v4983, %v4984
    %v4986 = vrot.slane %v4985, 2
    %v4987 = vadd.f32 %v4985, %v4986
    %v4988 = vrot.slane %v4987, 1
    %v4989 = vadd.f32 %v4987, %v4988
    %v4990 = vadd.f32 %v4964, %v4982
    %v4991 = vadd.f32 %v4971, %v4989
    %v4992 = vmul.f32 %v4990, 0.125
    %v4993 = vmul.f32 %v4991, 0.125
    %v4994 = vadd.f32 %v4992, 1e-05
    %v4995 = vadd.f32 %v4993, 1e-05
    %v4996 = vrsqrt.pop %v4994
    %v4997 = vmul.f32 %v4996, %v4994
    %v4998 = vmul.f32 %v4997, %v4996
    %v4999 = vmul.f32 0.5, %v4998
    %v5000 = vsub.f32 1.5, %v4999
    %v5001 = vmul.f32 %v4996, %v5000
    %vm5002 = vweird.f32 %v4994
    %vm5003 = vweird.f32 %v4996
    %vm5004 = vmor %vm5002, %vm5003
    %v5005 = vsel %vm5004, %v4996, %v5001
    %v5006 = vrsqrt.pop %v4995
    %v5007 = vmul.f32 %v5006, %v4995
    %v5008 = vmul.f32 %v5007, %v5006
    %v5009 = vmul.f32 0.5, %v5008
    %v5010 = vsub.f32 1.5, %v5009
    %v5011 = vmul.f32 %v5006, %v5010
    %vm5012 = vweird.f32 %v4995
    %vm5013 = vweird.f32 %v5006
    %vm5014 = vmor %vm5012, %vm5013
    %v5015 = vsel %vm5014, %v5006, %v5011
    %v5018 = vrot.slane %v5015, 7
    %v5019 = vsel %vm3648, %v5005, %v5018
    %v5021 = vmul.f32 %v4920, %v5019
    %v5023 = vperm.slane %v5021, 0
    %v5024 = vperm.slane %v5021, 1
    %v5027 = vmul.f32 %v4952, %v5023
    %v5028 = vmul.f32 %v4953, %v5024
    %v5031 = vrot.slane %v5028, 7
    %v5032 = vsel %vm3648, %v5027, %v5031
    %v5034 = vsub.f32 %v4921, %v5032
    %v5035 = vmul.f32 %v4916, %v5023
    %v5036 = vmul.f32 %v4917, %v5024
    %v5038 = vperm.slane %v5034, 0
    %v5039 = vperm.slane %v5034, 1
    %v5042 = vadd.f32 %v5035, %v5038
    %v5043 = vadd.f32 %v5036, %v5039
    %v5044 = vmax.f32 %v5042, 0.0
    %v5045 = vmax.f32 %v5043, 0.0
    %v5046 = vmul.f32 %v4918, %v5023
    %v5047 = vmul.f32 %v4919, %v5024
    %v5048 = vadd.f32 %v5046, %v5038
    %v5049 = vadd.f32 %v5047, %v5039
    %v5050 = vmax.f32 %v5048, 0.0
    %v5051 = vmax.f32 %v5049, 0.0
    %v5052 = vld [vmem:[%s67] sm:$0x1]
    %vm5053 = vmor %vm1363, %vm1370
    %v5054 = vsel %vm5053, 0.5, 0.0
    %v5056 = vsel %vm3782, %v5054, 0
    %v5059 = vsel %vm166, %v5044, 0
    %v5062 = vsel %vm166, %v5045, 0
    %5064 = vmatpush.msra.mxu0 0.0
    %5065 = vmatpush.msra.mxu0 0.0
    %5066 = vmatpush.msra.mxu0 0.0
    %5067 = vmatpush.msra.mxu0 0.0
    %5068 = vmatpush.msra.mxu0 0.0
    %5069 = vmatpush.msra.mxu0 0.0
    %5070 = vmatpush.msra.mxu0 0.0
    %5071 = vmatpush.msra.mxu0 0.0
    %5072 = vmatpush.msra.mxu0 0.0
    %5073 = vmatpush.msra.mxu0 0.0
    %5074 = vmatpush.msra.mxu0 0.0
    %5075 = vmatpush.msra.mxu0 0.0
    %5076 = vmatpush.msra.mxu0 0.0
    %5077 = vmatpush.msra.mxu0 0.0
    %5078 = vmatpush.msra.mxu0 0.0
    %5079 = vmatpush.msra.mxu0 %v5059
    %5080 = vmatmul.f32.gmra.mxu0 %v5056
    %v5081 = vpop.f32.mrf.mxu0
    %v5082 = vadd.f32 0.0, %v5081
    %5083 = vdwg.mxu0
    %5084 = vmatpush.msra.mxu0 0.0
    %5085 = vmatpush.msra.mxu0 0.0
    %5086 = vmatpush.msra.mxu0 0.0
    %5087 = vmatpush.msra.mxu0 0.0
    %5088 = vmatpush.msra.mxu0 0.0
    %5089 = vmatpush.msra.mxu0 0.0
    %5090 = vmatpush.msra.mxu0 0.0
    %5091 = vmatpush.msra.mxu0 0.0
    %5092 = vmatpush.msra.mxu0 0.0
    %5093 = vmatpush.msra.mxu0 0.0
    %5094 = vmatpush.msra.mxu0 0.0
    %5095 = vmatpush.msra.mxu0 0.0
    %5096 = vmatpush.msra.mxu0 0.0
    %5097 = vmatpush.msra.mxu0 0.0
    %5098 = vmatpush.msra.mxu0 0.0
    %5099 = vmatpush.msra.mxu0 %v5062
    %5100 = vmatmul.f32.gmra.mxu0 %v5056
    %v5101 = vpop.f32.mrf.mxu0
    %v5102 = vadd.f32 0.0, %v5101
    %5103 = vdwg.mxu0
    %v5104 = vpack.c.bf16 %v5082, %v5082
    %v5105 = vpack.c.bf16 %v5102, %v5102
    %v5106 = vld [vmem:[%s65] sm:$0xf]
    %v5107 = vld [vmem:[%s65 + $0x4] sm:$0xf]
    %v5108 = vld [vmem:[%s65 + $0x8] sm:$0xf]
    %v5109 = vld [vmem:[%s65 + $0xc] sm:$0xf]
    %v5110 = vld [vmem:[%s65 + $0x10] sm:$0xf]
    %v5111 = vld [vmem:[%s65 + $0x14] sm:$0xf]
    %v5112 = vld [vmem:[%s65 + $0x18] sm:$0xf]
    %v5113 = vld [vmem:[%s65 + $0x1c] sm:$0xf]
    %v5114 = vld [vmem:[%s65 + $0x20] sm:$0xf]
    %v5115 = vld [vmem:[%s65 + $0x24] sm:$0xf]
    %v5116 = vld [vmem:[%s65 + $0x28] sm:$0xf]
    %v5117 = vld [vmem:[%s65 + $0x2c] sm:$0xf]
    %v5118 = vld [vmem:[%s65 + $0x30] sm:$0xf]
    %v5119 = vld [vmem:[%s65 + $0x34] sm:$0xf]
    %v5120 = vld [vmem:[%s65 + $0x38] sm:$0xf]
    %v5121 = vld [vmem:[%s65 + $0x3c] sm:$0xf]
    %v5122 = vld [vmem:[%s65 + $0x40] sm:$0xf]
    %v5123 = vld [vmem:[%s65 + $0x44] sm:$0xf]
    %v5124 = vld [vmem:[%s65 + $0x48] sm:$0xf]
    %v5125 = vld [vmem:[%s65 + $0x4c] sm:$0xf]
    %v5126 = vld [vmem:[%s65 + $0x50] sm:$0xf]
    %v5127 = vld [vmem:[%s65 + $0x54] sm:$0xf]
    %v5128 = vld [vmem:[%s65 + $0x58] sm:$0xf]
    %v5129 = vld [vmem:[%s65 + $0x5c] sm:$0xf]
    %v5130 = vld [vmem:[%s65 + $0x60] sm:$0xf]
    %v5131 = vld [vmem:[%s65 + $0x64] sm:$0xf]
    %v5132 = vld [vmem:[%s65 + $0x68] sm:$0xf]
    %v5133 = vld [vmem:[%s65 + $0x6c] sm:$0xf]
    %v5134 = vld [vmem:[%s65 + $0x70] sm:$0xf]
    %v5135 = vld [vmem:[%s65 + $0x74] sm:$0xf]
    %v5136 = vld [vmem:[%s65 + $0x78] sm:$0xf]
    %v5137 = vld [vmem:[%s65 + $0x7c] sm:$0xf]
    %v5170 = vunpack.c.l.b16 %v5106
    %v5171 = vunpack.c.l.b16 %v5107
    %v5172 = vunpack.c.l.b16 %v5108
    %v5173 = vunpack.c.l.b16 %v5109
    %v5174 = vunpack.c.l.b16 %v5110
    %v5175 = vunpack.c.l.b16 %v5111
    %v5176 = vunpack.c.l.b16 %v5112
    %v5177 = vunpack.c.l.b16 %v5113
    %v5178 = vunpack.c.l.b16 %v5114
    %v5179 = vunpack.c.l.b16 %v5115
    %v5180 = vunpack.c.l.b16 %v5116
    %v5181 = vunpack.c.l.b16 %v5117
    %v5182 = vunpack.c.l.b16 %v5118
    %v5183 = vunpack.c.l.b16 %v5119
    %v5184 = vunpack.c.l.b16 %v5120
    %v5185 = vunpack.c.l.b16 %v5121
    %v5186 = vunpack.c.l.b16 %v5122
    %v5187 = vunpack.c.l.b16 %v5123
    %v5188 = vunpack.c.l.b16 %v5124
    %v5189 = vunpack.c.l.b16 %v5125
    %v5190 = vunpack.c.l.b16 %v5126
    %v5191 = vunpack.c.l.b16 %v5127
    %v5192 = vunpack.c.l.b16 %v5128
    %v5193 = vunpack.c.l.b16 %v5129
    %v5194 = vunpack.c.l.b16 %v5130
    %v5195 = vunpack.c.l.b16 %v5131
    %v5196 = vunpack.c.l.b16 %v5132
    %v5197 = vunpack.c.l.b16 %v5133
    %v5198 = vunpack.c.l.b16 %v5134
    %v5199 = vunpack.c.l.b16 %v5135
    %v5200 = vunpack.c.l.b16 %v5136
    %v5201 = vunpack.c.l.b16 %v5137
    %v5202 = vpack.c.b16 %v5171, %v5170
    %v5203 = vpack.c.b16 %v5173, %v5172
    %v5204 = vpack.c.b16 %v5175, %v5174
    %v5205 = vpack.c.b16 %v5177, %v5176
    %v5206 = vpack.c.b16 %v5179, %v5178
    %v5207 = vpack.c.b16 %v5181, %v5180
    %v5208 = vpack.c.b16 %v5183, %v5182
    %v5209 = vpack.c.b16 %v5185, %v5184
    %v5210 = vpack.c.b16 %v5187, %v5186
    %v5211 = vpack.c.b16 %v5189, %v5188
    %v5212 = vpack.c.b16 %v5191, %v5190
    %v5213 = vpack.c.b16 %v5193, %v5192
    %v5214 = vpack.c.b16 %v5195, %v5194
    %v5215 = vpack.c.b16 %v5197, %v5196
    %v5216 = vpack.c.b16 %v5199, %v5198
    %v5217 = vpack.c.b16 %v5201, %v5200
    %5234 = vmatpush.bf16.msra.mxu0 %v5209
    %5235 = vmatpush.bf16.msra.mxu0 %v5208
    %5236 = vmatpush.bf16.msra.mxu0 %v5207
    %5237 = vmatpush.bf16.msra.mxu0 %v5206
    %5238 = vmatpush.bf16.msra.mxu0 %v5205
    %5239 = vmatpush.bf16.msra.mxu0 %v5204
    %5240 = vmatpush.bf16.msra.mxu0 %v5203
    %5241 = vmatpush.bf16.msra.mxu0 %v5202
    %5242 = vmatmul.bf16.gmra.mxu0 %v5104
    %v5243 = vpop.f32.mrf.mxu0
    %v5244 = vadd.f32 0.0, %v5243
    %v5245 = vpop.f32.mrf.mxu0
    %5246 = vdwg.mxu0
    %5247 = vmatpush.bf16.msra.mxu0 %v5217
    %5248 = vmatpush.bf16.msra.mxu0 %v5216
    %5249 = vmatpush.bf16.msra.mxu0 %v5215
    %5250 = vmatpush.bf16.msra.mxu0 %v5214
    %5251 = vmatpush.bf16.msra.mxu0 %v5213
    %5252 = vmatpush.bf16.msra.mxu0 %v5212
    %5253 = vmatpush.bf16.msra.mxu0 %v5211
    %5254 = vmatpush.bf16.msra.mxu0 %v5210
    %5255 = vmatmul.bf16.gmra.mxu0 %v5105
    %v5256 = vpop.f32.mrf.mxu0
    %v5257 = vadd.f32 %v5244, %v5256
    %v5258 = vpop.f32.mrf.mxu0
    %5259 = vdwg.mxu0
    %v5260 = vadd.f32 %v5052, %v5257
    %s5261 = scalar_lea.vmem %s65, 128
    %v5262 = vld [vmem:[%s5261] sm:$0xf]
    %v5263 = vld [vmem:[%s5261 + $0x4] sm:$0xf]
    %v5264 = vld [vmem:[%s5261 + $0x8] sm:$0xf]
    %v5265 = vld [vmem:[%s5261 + $0xc] sm:$0xf]
    %v5266 = vld [vmem:[%s5261 + $0x10] sm:$0xf]
    %v5267 = vld [vmem:[%s5261 + $0x14] sm:$0xf]
    %v5268 = vld [vmem:[%s5261 + $0x18] sm:$0xf]
    %v5269 = vld [vmem:[%s5261 + $0x1c] sm:$0xf]
    %v5270 = vld [vmem:[%s5261 + $0x20] sm:$0xf]
    %v5271 = vld [vmem:[%s5261 + $0x24] sm:$0xf]
    %v5272 = vld [vmem:[%s5261 + $0x28] sm:$0xf]
    %v5273 = vld [vmem:[%s5261 + $0x2c] sm:$0xf]
    %v5274 = vld [vmem:[%s5261 + $0x30] sm:$0xf]
    %v5275 = vld [vmem:[%s5261 + $0x34] sm:$0xf]
    %v5276 = vld [vmem:[%s5261 + $0x38] sm:$0xf]
    %v5277 = vld [vmem:[%s5261 + $0x3c] sm:$0xf]
    %v5278 = vld [vmem:[%s5261 + $0x40] sm:$0xf]
    %v5279 = vld [vmem:[%s5261 + $0x44] sm:$0xf]
    %v5280 = vld [vmem:[%s5261 + $0x48] sm:$0xf]
    %v5281 = vld [vmem:[%s5261 + $0x4c] sm:$0xf]
    %v5282 = vld [vmem:[%s5261 + $0x50] sm:$0xf]
    %v5283 = vld [vmem:[%s5261 + $0x54] sm:$0xf]
    %v5284 = vld [vmem:[%s5261 + $0x58] sm:$0xf]
    %v5285 = vld [vmem:[%s5261 + $0x5c] sm:$0xf]
    %v5286 = vld [vmem:[%s5261 + $0x60] sm:$0xf]
    %v5287 = vld [vmem:[%s5261 + $0x64] sm:$0xf]
    %v5288 = vld [vmem:[%s5261 + $0x68] sm:$0xf]
    %v5289 = vld [vmem:[%s5261 + $0x6c] sm:$0xf]
    %v5290 = vld [vmem:[%s5261 + $0x70] sm:$0xf]
    %v5291 = vld [vmem:[%s5261 + $0x74] sm:$0xf]
    %v5292 = vld [vmem:[%s5261 + $0x78] sm:$0xf]
    %v5293 = vld [vmem:[%s5261 + $0x7c] sm:$0xf]
    %v5295 = vshrl.u32 %v5104, 16
    %v5298 = vshrl.u32 %v5105, 16
    %v5334 = vunpack.c.l.b16 %v5262
    %v5335 = vunpack.c.l.b16 %v5263
    %v5336 = vunpack.c.l.b16 %v5264
    %v5337 = vunpack.c.l.b16 %v5265
    %v5338 = vunpack.c.l.b16 %v5266
    %v5339 = vunpack.c.l.b16 %v5267
    %v5340 = vunpack.c.l.b16 %v5268
    %v5341 = vunpack.c.l.b16 %v5269
    %v5342 = vunpack.c.l.b16 %v5270
    %v5343 = vunpack.c.l.b16 %v5271
    %v5344 = vunpack.c.l.b16 %v5272
    %v5345 = vunpack.c.l.b16 %v5273
    %v5346 = vunpack.c.l.b16 %v5274
    %v5347 = vunpack.c.l.b16 %v5275
    %v5348 = vunpack.c.l.b16 %v5276
    %v5349 = vunpack.c.l.b16 %v5277
    %v5350 = vunpack.c.l.b16 %v5278
    %v5351 = vunpack.c.l.b16 %v5279
    %v5352 = vunpack.c.l.b16 %v5280
    %v5353 = vunpack.c.l.b16 %v5281
    %v5354 = vunpack.c.l.b16 %v5282
    %v5355 = vunpack.c.l.b16 %v5283
    %v5356 = vunpack.c.l.b16 %v5284
    %v5357 = vunpack.c.l.b16 %v5285
    %v5358 = vunpack.c.l.b16 %v5286
    %v5359 = vunpack.c.l.b16 %v5287
    %v5360 = vunpack.c.l.b16 %v5288
    %v5361 = vunpack.c.l.b16 %v5289
    %v5362 = vunpack.c.l.b16 %v5290
    %v5363 = vunpack.c.l.b16 %v5291
    %v5364 = vunpack.c.l.b16 %v5292
    %v5365 = vunpack.c.l.b16 %v5293
    %v5366 = vpack.c.b16 %v5335, %v5334
    %v5367 = vpack.c.b16 %v5337, %v5336
    %v5368 = vpack.c.b16 %v5339, %v5338
    %v5369 = vpack.c.b16 %v5341, %v5340
    %v5370 = vpack.c.b16 %v5343, %v5342
    %v5371 = vpack.c.b16 %v5345, %v5344
    %v5372 = vpack.c.b16 %v5347, %v5346
    %v5373 = vpack.c.b16 %v5349, %v5348
    %v5374 = vpack.c.b16 %v5351, %v5350
    %v5375 = vpack.c.b16 %v5353, %v5352
    %v5376 = vpack.c.b16 %v5355, %v5354
    %v5377 = vpack.c.b16 %v5357, %v5356
    %v5378 = vpack.c.b16 %v5359, %v5358
    %v5379 = vpack.c.b16 %v5361, %v5360
    %v5380 = vpack.c.b16 %v5363, %v5362
    %v5381 = vpack.c.b16 %v5365, %v5364
    %5398 = vmatpush.bf16.msra.mxu0 %v5373
    %5399 = vmatpush.bf16.msra.mxu0 %v5372
    %5400 = vmatpush.bf16.msra.mxu0 %v5371
    %5401 = vmatpush.bf16.msra.mxu0 %v5370
    %5402 = vmatpush.bf16.msra.mxu0 %v5369
    %5403 = vmatpush.bf16.msra.mxu0 %v5368
    %5404 = vmatpush.bf16.msra.mxu0 %v5367
    %5405 = vmatpush.bf16.msra.mxu0 %v5366
    %5406 = vmatmul.bf16.gmra.mxu0 %v5295
    %v5407 = vpop.f32.mrf.mxu0
    %v5408 = vadd.f32 0.0, %v5407
    %v5409 = vpop.f32.mrf.mxu0
    %5410 = vdwg.mxu0
    %5411 = vmatpush.bf16.msra.mxu0 %v5381
    %5412 = vmatpush.bf16.msra.mxu0 %v5380
    %5413 = vmatpush.bf16.msra.mxu0 %v5379
    %5414 = vmatpush.bf16.msra.mxu0 %v5378
    %5415 = vmatpush.bf16.msra.mxu0 %v5377
    %5416 = vmatpush.bf16.msra.mxu0 %v5376
    %5417 = vmatpush.bf16.msra.mxu0 %v5375
    %5418 = vmatpush.bf16.msra.mxu0 %v5374
    %5419 = vmatmul.bf16.gmra.mxu0 %v5298
    %v5420 = vpop.f32.mrf.mxu0
    %v5421 = vadd.f32 %v5408, %v5420
    %v5422 = vpop.f32.mrf.mxu0
    %5423 = vdwg.mxu0
    %v5424 = vadd.f32 %v5260, %v5421
    %vm5425 = vcmask 122880
    %5426 = vst.msk [vmem:[#allocation2] sm:$0x1] %vm5425, %v5424
    %v5428 = vsel %vm166, %v5050, 0
    %v5431 = vsel %vm166, %v5051, 0
    %5433 = vmatpush.msra.mxu0 0.0
    %5434 = vmatpush.msra.mxu0 0.0
    %5435 = vmatpush.msra.mxu0 0.0
    %5436 = vmatpush.msra.mxu0 0.0
    %5437 = vmatpush.msra.mxu0 0.0
    %5438 = vmatpush.msra.mxu0 0.0
    %5439 = vmatpush.msra.mxu0 0.0
    %5440 = vmatpush.msra.mxu0 0.0
    %5441 = vmatpush.msra.mxu0 0.0
    %5442 = vmatpush.msra.mxu0 0.0
    %5443 = vmatpush.msra.mxu0 0.0
    %5444 = vmatpush.msra.mxu0 0.0
    %5445 = vmatpush.msra.mxu0 0.0
    %5446 = vmatpush.msra.mxu0 0.0
    %5447 = vmatpush.msra.mxu0 0.0
    %5448 = vmatpush.msra.mxu0 %v5428
    %5449 = vmatmul.f32.gmra.mxu0 %v5056
    %v5450 = vpop.f32.mrf.mxu0
    %v5451 = vadd.f32 0.0, %v5450
    %5452 = vdwg.mxu0
    %5453 = vmatpush.msra.mxu0 0.0
    %5454 = vmatpush.msra.mxu0 0.0
    %5455 = vmatpush.msra.mxu0 0.0
    %5456 = vmatpush.msra.mxu0 0.0
    %5457 = vmatpush.msra.mxu0 0.0
    %5458 = vmatpush.msra.mxu0 0.0
    %5459 = vmatpush.msra.mxu0 0.0
    %5460 = vmatpush.msra.mxu0 0.0
    %5461 = vmatpush.msra.mxu0 0.0
    %5462 = vmatpush.msra.mxu0 0.0
    %5463 = vmatpush.msra.mxu0 0.0
    %5464 = vmatpush.msra.mxu0 0.0
    %5465 = vmatpush.msra.mxu0 0.0
    %5466 = vmatpush.msra.mxu0 0.0
    %5467 = vmatpush.msra.mxu0 0.0
    %5468 = vmatpush.msra.mxu0 %v5431
    %5469 = vmatmul.f32.gmra.mxu0 %v5056
    %v5470 = vpop.f32.mrf.mxu0
    %v5471 = vadd.f32 0.0, %v5470
    %5472 = vdwg.mxu0
    %v5473 = vpack.c.bf16 %v5451, %v5451
    %v5474 = vpack.c.bf16 %v5471, %v5471
    %v5475 = vld [vmem:[%s65] sm:$0xf]
    %v5476 = vld [vmem:[%s65 + $0x4] sm:$0xf]
    %v5477 = vld [vmem:[%s65 + $0x8] sm:$0xf]
    %v5478 = vld [vmem:[%s65 + $0xc] sm:$0xf]
    %v5479 = vld [vmem:[%s65 + $0x10] sm:$0xf]
    %v5480 = vld [vmem:[%s65 + $0x14] sm:$0xf]
    %v5481 = vld [vmem:[%s65 + $0x18] sm:$0xf]
    %v5482 = vld [vmem:[%s65 + $0x1c] sm:$0xf]
    %v5483 = vld [vmem:[%s65 + $0x20] sm:$0xf]
    %v5484 = vld [vmem:[%s65 + $0x24] sm:$0xf]
    %v5485 = vld [vmem:[%s65 + $0x28] sm:$0xf]
    %v5486 = vld [vmem:[%s65 + $0x2c] sm:$0xf]
    %v5487 = vld [vmem:[%s65 + $0x30] sm:$0xf]
    %v5488 = vld [vmem:[%s65 + $0x34] sm:$0xf]
    %v5489 = vld [vmem:[%s65 + $0x38] sm:$0xf]
    %v5490 = vld [vmem:[%s65 + $0x3c] sm:$0xf]
    %v5491 = vld [vmem:[%s65 + $0x40] sm:$0xf]
    %v5492 = vld [vmem:[%s65 + $0x44] sm:$0xf]
    %v5493 = vld [vmem:[%s65 + $0x48] sm:$0xf]
    %v5494 = vld [vmem:[%s65 + $0x4c] sm:$0xf]
    %v5495 = vld [vmem:[%s65 + $0x50] sm:$0xf]
    %v5496 = vld [vmem:[%s65 + $0x54] sm:$0xf]
    %v5497 = vld [vmem:[%s65 + $0x58] sm:$0xf]
    %v5498 = vld [vmem:[%s65 + $0x5c] sm:$0xf]
    %v5499 = vld [vmem:[%s65 + $0x60] sm:$0xf]
    %v5500 = vld [vmem:[%s65 + $0x64] sm:$0xf]
    %v5501 = vld [vmem:[%s65 + $0x68] sm:$0xf]
    %v5502 = vld [vmem:[%s65 + $0x6c] sm:$0xf]
    %v5503 = vld [vmem:[%s65 + $0x70] sm:$0xf]
    %v5504 = vld [vmem:[%s65 + $0x74] sm:$0xf]
    %v5505 = vld [vmem:[%s65 + $0x78] sm:$0xf]
    %v5506 = vld [vmem:[%s65 + $0x7c] sm:$0xf]
    %v5539 = vunpack.c.l.b16 %v5475
    %v5540 = vunpack.c.l.b16 %v5476
    %v5541 = vunpack.c.l.b16 %v5477
    %v5542 = vunpack.c.l.b16 %v5478
    %v5543 = vunpack.c.l.b16 %v5479
    %v5544 = vunpack.c.l.b16 %v5480
    %v5545 = vunpack.c.l.b16 %v5481
    %v5546 = vunpack.c.l.b16 %v5482
    %v5547 = vunpack.c.l.b16 %v5483
    %v5548 = vunpack.c.l.b16 %v5484
    %v5549 = vunpack.c.l.b16 %v5485
    %v5550 = vunpack.c.l.b16 %v5486
    %v5551 = vunpack.c.l.b16 %v5487
    %v5552 = vunpack.c.l.b16 %v5488
    %v5553 = vunpack.c.l.b16 %v5489
    %v5554 = vunpack.c.l.b16 %v5490
    %v5555 = vunpack.c.l.b16 %v5491
    %v5556 = vunpack.c.l.b16 %v5492
    %v5557 = vunpack.c.l.b16 %v5493
    %v5558 = vunpack.c.l.b16 %v5494
    %v5559 = vunpack.c.l.b16 %v5495
    %v5560 = vunpack.c.l.b16 %v5496
    %v5561 = vunpack.c.l.b16 %v5497
    %v5562 = vunpack.c.l.b16 %v5498
    %v5563 = vunpack.c.l.b16 %v5499
    %v5564 = vunpack.c.l.b16 %v5500
    %v5565 = vunpack.c.l.b16 %v5501
    %v5566 = vunpack.c.l.b16 %v5502
    %v5567 = vunpack.c.l.b16 %v5503
    %v5568 = vunpack.c.l.b16 %v5504
    %v5569 = vunpack.c.l.b16 %v5505
    %v5570 = vunpack.c.l.b16 %v5506
    %v5571 = vpack.c.b16 %v5540, %v5539
    %v5572 = vpack.c.b16 %v5542, %v5541
    %v5573 = vpack.c.b16 %v5544, %v5543
    %v5574 = vpack.c.b16 %v5546, %v5545
    %v5575 = vpack.c.b16 %v5548, %v5547
    %v5576 = vpack.c.b16 %v5550, %v5549
    %v5577 = vpack.c.b16 %v5552, %v5551
    %v5578 = vpack.c.b16 %v5554, %v5553
    %v5579 = vpack.c.b16 %v5556, %v5555
    %v5580 = vpack.c.b16 %v5558, %v5557
    %v5581 = vpack.c.b16 %v5560, %v5559
    %v5582 = vpack.c.b16 %v5562, %v5561
    %v5583 = vpack.c.b16 %v5564, %v5563
    %v5584 = vpack.c.b16 %v5566, %v5565
    %v5585 = vpack.c.b16 %v5568, %v5567
    %v5586 = vpack.c.b16 %v5570, %v5569
    %5603 = vmatpush.bf16.msra.mxu0 %v5578
    %5604 = vmatpush.bf16.msra.mxu0 %v5577
    %5605 = vmatpush.bf16.msra.mxu0 %v5576
    %5606 = vmatpush.bf16.msra.mxu0 %v5575
    %5607 = vmatpush.bf16.msra.mxu0 %v5574
    %5608 = vmatpush.bf16.msra.mxu0 %v5573
    %5609 = vmatpush.bf16.msra.mxu0 %v5572
    %5610 = vmatpush.bf16.msra.mxu0 %v5571
    %5611 = vmatmul.bf16.gmra.mxu0 %v5473
    %v5612 = vpop.f32.mrf.mxu0
    %v5613 = vadd.f32 0.0, %v5612
    %v5614 = vpop.f32.mrf.mxu0
    %5615 = vdwg.mxu0
    %5616 = vmatpush.bf16.msra.mxu0 %v5586
    %5617 = vmatpush.bf16.msra.mxu0 %v5585
    %5618 = vmatpush.bf16.msra.mxu0 %v5584
    %5619 = vmatpush.bf16.msra.mxu0 %v5583
    %5620 = vmatpush.bf16.msra.mxu0 %v5582
    %5621 = vmatpush.bf16.msra.mxu0 %v5581
    %5622 = vmatpush.bf16.msra.mxu0 %v5580
    %5623 = vmatpush.bf16.msra.mxu0 %v5579
    %5624 = vmatmul.bf16.gmra.mxu0 %v5474
    %v5625 = vpop.f32.mrf.mxu0
    %v5626 = vadd.f32 %v5613, %v5625
    %v5627 = vpop.f32.mrf.mxu0
    %5628 = vdwg.mxu0
    %v5629 = vadd.f32 %v5052, %v5626
    %v5630 = vld [vmem:[%s5261] sm:$0xf]
    %v5631 = vld [vmem:[%s5261 + $0x4] sm:$0xf]
    %v5632 = vld [vmem:[%s5261 + $0x8] sm:$0xf]
    %v5633 = vld [vmem:[%s5261 + $0xc] sm:$0xf]
    %v5634 = vld [vmem:[%s5261 + $0x10] sm:$0xf]
    %v5635 = vld [vmem:[%s5261 + $0x14] sm:$0xf]
    %v5636 = vld [vmem:[%s5261 + $0x18] sm:$0xf]
    %v5637 = vld [vmem:[%s5261 + $0x1c] sm:$0xf]
    %v5638 = vld [vmem:[%s5261 + $0x20] sm:$0xf]
    %v5639 = vld [vmem:[%s5261 + $0x24] sm:$0xf]
    %v5640 = vld [vmem:[%s5261 + $0x28] sm:$0xf]
    %v5641 = vld [vmem:[%s5261 + $0x2c] sm:$0xf]
    %v5642 = vld [vmem:[%s5261 + $0x30] sm:$0xf]
    %v5643 = vld [vmem:[%s5261 + $0x34] sm:$0xf]
    %v5644 = vld [vmem:[%s5261 + $0x38] sm:$0xf]
    %v5645 = vld [vmem:[%s5261 + $0x3c] sm:$0xf]
    %v5646 = vld [vmem:[%s5261 + $0x40] sm:$0xf]
    %v5647 = vld [vmem:[%s5261 + $0x44] sm:$0xf]
    %v5648 = vld [vmem:[%s5261 + $0x48] sm:$0xf]
    %v5649 = vld [vmem:[%s5261 + $0x4c] sm:$0xf]
    %v5650 = vld [vmem:[%s5261 + $0x50] sm:$0xf]
    %v5651 = vld [vmem:[%s5261 + $0x54] sm:$0xf]
    %v5652 = vld [vmem:[%s5261 + $0x58] sm:$0xf]
    %v5653 = vld [vmem:[%s5261 + $0x5c] sm:$0xf]
    %v5654 = vld [vmem:[%s5261 + $0x60] sm:$0xf]
    %v5655 = vld [vmem:[%s5261 + $0x64] sm:$0xf]
    %v5656 = vld [vmem:[%s5261 + $0x68] sm:$0xf]
    %v5657 = vld [vmem:[%s5261 + $0x6c] sm:$0xf]
    %v5658 = vld [vmem:[%s5261 + $0x70] sm:$0xf]
    %v5659 = vld [vmem:[%s5261 + $0x74] sm:$0xf]
    %v5660 = vld [vmem:[%s5261 + $0x78] sm:$0xf]
    %v5661 = vld [vmem:[%s5261 + $0x7c] sm:$0xf]
    %v5663 = vshrl.u32 %v5473, 16
    %v5666 = vshrl.u32 %v5474, 16
    %v5702 = vunpack.c.l.b16 %v5630
    %v5703 = vunpack.c.l.b16 %v5631
    %v5704 = vunpack.c.l.b16 %v5632
    %v5705 = vunpack.c.l.b16 %v5633
    %v5706 = vunpack.c.l.b16 %v5634
    %v5707 = vunpack.c.l.b16 %v5635
    %v5708 = vunpack.c.l.b16 %v5636
    %v5709 = vunpack.c.l.b16 %v5637
    %v5710 = vunpack.c.l.b16 %v5638
    %v5711 = vunpack.c.l.b16 %v5639
    %v5712 = vunpack.c.l.b16 %v5640
    %v5713 = vunpack.c.l.b16 %v5641
    %v5714 = vunpack.c.l.b16 %v5642
    %v5715 = vunpack.c.l.b16 %v5643
    %v5716 = vunpack.c.l.b16 %v5644
    %v5717 = vunpack.c.l.b16 %v5645
    %v5718 = vunpack.c.l.b16 %v5646
    %v5719 = vunpack.c.l.b16 %v5647
    %v5720 = vunpack.c.l.b16 %v5648
    %v5721 = vunpack.c.l.b16 %v5649
    %v5722 = vunpack.c.l.b16 %v5650
    %v5723 = vunpack.c.l.b16 %v5651
    %v5724 = vunpack.c.l.b16 %v5652
    %v5725 = vunpack.c.l.b16 %v5653
    %v5726 = vunpack.c.l.b16 %v5654
    %v5727 = vunpack.c.l.b16 %v5655
    %v5728 = vunpack.c.l.b16 %v5656
    %v5729 = vunpack.c.l.b16 %v5657
    %v5730 = vunpack.c.l.b16 %v5658
    %v5731 = vunpack.c.l.b16 %v5659
    %v5732 = vunpack.c.l.b16 %v5660
    %v5733 = vunpack.c.l.b16 %v5661
    %v5734 = vpack.c.b16 %v5703, %v5702
    %v5735 = vpack.c.b16 %v5705, %v5704
    %v5736 = vpack.c.b16 %v5707, %v5706
    %v5737 = vpack.c.b16 %v5709, %v5708
    %v5738 = vpack.c.b16 %v5711, %v5710
    %v5739 = vpack.c.b16 %v5713, %v5712
    %v5740 = vpack.c.b16 %v5715, %v5714
    %v5741 = vpack.c.b16 %v5717, %v5716
    %v5742 = vpack.c.b16 %v5719, %v5718
    %v5743 = vpack.c.b16 %v5721, %v5720
    %v5744 = vpack.c.b16 %v5723, %v5722
    %v5745 = vpack.c.b16 %v5725, %v5724
    %v5746 = vpack.c.b16 %v5727, %v5726
    %v5747 = vpack.c.b16 %v5729, %v5728
    %v5748 = vpack.c.b16 %v5731, %v5730
    %v5749 = vpack.c.b16 %v5733, %v5732
    %5766 = vmatpush.bf16.msra.mxu0 %v5741
    %5767 = vmatpush.bf16.msra.mxu0 %v5740
    %5768 = vmatpush.bf16.msra.mxu0 %v5739
    %5769 = vmatpush.bf16.msra.mxu0 %v5738
    %5770 = vmatpush.bf16.msra.mxu0 %v5737
    %5771 = vmatpush.bf16.msra.mxu0 %v5736
    %5772 = vmatpush.bf16.msra.mxu0 %v5735
    %5773 = vmatpush.bf16.msra.mxu0 %v5734
    %5774 = vmatmul.bf16.gmra.mxu0 %v5663
    %v5775 = vpop.f32.mrf.mxu0
    %v5776 = vadd.f32 0.0, %v5775
    %v5777 = vpop.f32.mrf.mxu0
    %5778 = vdwg.mxu0
    %5779 = vmatpush.bf16.msra.mxu0 %v5749
    %5780 = vmatpush.bf16.msra.mxu0 %v5748
    %5781 = vmatpush.bf16.msra.mxu0 %v5747
    %5782 = vmatpush.bf16.msra.mxu0 %v5746
    %5783 = vmatpush.bf16.msra.mxu0 %v5745
    %5784 = vmatpush.bf16.msra.mxu0 %v5744
    %5785 = vmatpush.bf16.msra.mxu0 %v5743
    %5786 = vmatpush.bf16.msra.mxu0 %v5742
    %5787 = vmatmul.bf16.gmra.mxu0 %v5666
    %v5788 = vpop.f32.mrf.mxu0
    %v5789 = vadd.f32 %v5776, %v5788
    %v5790 = vpop.f32.mrf.mxu0
    %5791 = vdwg.mxu0
    %v5792 = vadd.f32 %v5629, %v5789
    %5793 = vst.msk [vmem:[#allocation2 + $0x1] sm:$0x1] %vm5425, %v5792
    // Predicated region
    $region138: #{resnet_forward.1} parent=1 // pred_check
      _
    $region139: #{resnet_forward.1} parent=1 // pred_check_branch
      %5795 = sbr.rel (0) target = $region141
    $region140: #{resnet_forward.1} parent=1 // pred_region
      %5797 = vsyncadd [#allocation3], 0
      %s5799 = sshll.u32 [#allocation2], 4
      %s5800 = int_to_ptr.vmem [resolvable:$true] %s5799
      %s5801 = sshll.u32 %s69, 4
      %s5802 = int_to_ptr.hbm [resolvable:$true] %s5801
      %5804 = dma.vmem_to_hbm [thread:$0]  %s5800, 32, %s5802, [#allocation3]
    $region141: #{resnet_forward.1} parent=1 // pred_fallthru
      _
    // Predicated region
    $region142: #{resnet_forward.1} parent=1 // pred_check
      _
    $region143: #{resnet_forward.1} parent=1 // pred_check_branch
      %5806 = sbr.rel (0) target = $region145
    $region144: #{resnet_forward.1} parent=1 // pred_region
      %5808 = dma.done [#allocation3], 32
    $region145: #{resnet_forward.1} parent=1 // pred_fallthru
      _
    %5809 = vsyncpa [#allocation3], 1

</llo_original>
